<compile_context>
chip_gen: v5e
topology: v5e:2x2
jax: 0.10.0
libtpu: 0.0.40
codegen_flags: <defaults>
</compile_context>

<pallas_src>
import jax
import jax.numpy as jnp
import numpy as np
from jax.experimental import pallas as pl
from jax.experimental.pallas import tpu as pltpu

IMG_FEATURES = 28 * 28            # 784
LATENT_FEATURES = 32
ENC_HIDDEN = [512, 256, 128]      # AEEncoder default
DEC_HIDDEN = [128, 256, 512]      # AEDecoder default
BN_EPS = 1e-5


def _linear_bn_prelu(h, w_ref, g_ref, be_ref, alpha):
    """Linear(no bias) -> BatchNorm1d(train-mode batch stats) -> PReLU.

    The Linear bias is omitted on purpose: BatchNorm's batch-mean subtraction
    cancels any per-feature bias exactly, so it is dead work. Matmul operands
    are bf16 (MXU-native), accumulation is f32; the BN/PReLU chain stays f32.
    """
    z = jnp.dot(h.astype(jnp.bfloat16), w_ref[...],
                preferred_element_type=jnp.float32)
    # One-pass centered BN: compute d = z - mu once, reuse for var and normalize.
    mu = jnp.mean(z, axis=0, keepdims=True)
    d = z - mu
    var = jnp.mean(d * d, axis=0, keepdims=True)      # biased var (torch train mode)
    scale = g_ref[...] * jax.lax.rsqrt(var + BN_EPS)  # fold gamma into the scale (EUP rsqrt)
    y = d * scale + be_ref[...]
    return jnp.where(y >= 0.0, y, alpha * y)          # PReLU (shared alpha)


def _final_linear(h, w_ref, b_ref):
    return jnp.dot(h.astype(jnp.bfloat16), w_ref[...],
                   preferred_element_type=jnp.float32) + b_ref[...]


def ae_kernel(alpha_ref, x_ref,
              ew1_ref, eg1_ref, ebe1_ref,
              ew2_ref, eg2_ref, ebe2_ref,
              ew3_ref, eg3_ref, ebe3_ref,
              ew4_ref, eb4_ref,
              dw1_ref, dg1_ref, dbe1_ref,
              dw2_ref, dg2_ref, dbe2_ref,
              dw3_ref, dg3_ref, dbe3_ref,
              dw4_ref, db4_ref,
              out_ref):
    h = x_ref[...]
    # ---- encoder: 784 -> 512 -> 256 -> 128 -> 32 ----
    h = _linear_bn_prelu(h, ew1_ref, eg1_ref, ebe1_ref, alpha_ref[0])
    h = _linear_bn_prelu(h, ew2_ref, eg2_ref, ebe2_ref, alpha_ref[1])
    h = _linear_bn_prelu(h, ew3_ref, eg3_ref, ebe3_ref, alpha_ref[2])
    z = _final_linear(h, ew4_ref, eb4_ref)
    # ---- decoder: 32 -> 128 -> 256 -> 512 -> 784 ----
    h = _linear_bn_prelu(z, dw1_ref, dg1_ref, dbe1_ref, alpha_ref[3])
    h = _linear_bn_prelu(h, dw2_ref, dg2_ref, dbe2_ref, alpha_ref[4])
    h = _linear_bn_prelu(h, dw3_ref, dg3_ref, dbe3_ref, alpha_ref[5])
    out_ref[...] = _final_linear(h, dw4_ref, db4_ref)


@jax.jit
def ae_forward(x_nchw, params):
    """x_nchw: [N, 1, 28, 28] float32 -> [N, 1, 28, 28] float32 (AE.forward)."""
    n = x_nchw.shape[0]
    x = x_nchw.reshape(n, IMG_FEATURES)       # glue: torch .view(-1, 784)

    tensor_args = [x]
    for p in ("e", "d"):
        for i in (1, 2, 3):
            # Bias for BN-followed layers is intentionally skipped (cancels in BN).
            tensor_args += [params[f"{p}w{i}"], params[f"{p}g{i}"], params[f"{p}be{i}"]]
        tensor_args += [params[f"{p}w4"], params[f"{p}b4"]]

    vmem = pl.BlockSpec(memory_space=pltpu.MemorySpace.VMEM)
    smem = pl.BlockSpec(memory_space=pltpu.MemorySpace.SMEM)

    # Whole problem (bf16 weights ~2.3 MiB + N x 784 activations) fits in VMEM,
    # so a single grid-less invocation fuses all 8 matmuls + BN + PReLU.
    out_flat = pl.pallas_call(
        ae_kernel,
        out_shape=jax.ShapeDtypeStruct((n, IMG_FEATURES), jnp.float32),
        in_specs=[smem] + [vmem] * len(tensor_args),
        out_specs=vmem,
        compiler_params=pltpu.CompilerParams(
            vmem_limit_bytes=48 * 1024 * 1024),
    )(params["alphas"], *tensor_args)
    return out_flat.reshape(n, 1, 28, 28)


def _init_mlp(key, dims, prefix, params):
    n_layers = len(dims) - 1                  # last is the plain output Linear
    keys = jax.random.split(key, 2 * n_layers)
    for i in range(n_layers):
        din, dout = dims[i], dims[i + 1]
        bound = 1.0 / np.sqrt(din)
        w = jax.random.uniform(keys[2 * i], (din, dout), jnp.float32, -bound, bound)
        b = jax.random.uniform(keys[2 * i + 1], (1, dout), jnp.float32, -bound, bound)
        params[f"{prefix}w{i + 1}"] = w.astype(jnp.bfloat16)   # bf16 weights for the MXU
        params[f"{prefix}b{i + 1}"] = b
        if i < n_layers - 1:                  # BN + PReLU blocks only
            params[f"{prefix}g{i + 1}"] = jnp.ones((1, dout), jnp.float32)    # BN gamma
            params[f"{prefix}be{i + 1}"] = jnp.zeros((1, dout), jnp.float32)  # BN beta


def init_params(key):
    k_e, k_d = jax.random.split(key)
    params = {}
    _init_mlp(k_e, [IMG_FEATURES] + ENC_HIDDEN + [LATENT_FEATURES], "e", params)
    _init_mlp(k_d, [LATENT_FEATURES] + DEC_HIDDEN + [IMG_FEATURES], "d", params)
    params["alphas"] = jnp.full((6,), 0.25, jnp.float32)       # PReLU default init
    return params


def reference(x_nchw, params):
    """Pure-JAX reference of the faithful torch math (Linear WITH bias, then
    train-mode BN, then PReLU); bf16 matmul operands / f32 accumulation like
    the kernel. The kernel drops the pre-BN bias (it cancels), so agreement
    here also validates that fold."""
    n = x_nchw.shape[0]
    h = x_nchw.reshape(n, IMG_FEATURES)
    a = params["alphas"]

    def block(h, p, i, alpha):
        z = jnp.dot(h.astype(jnp.bfloat16), params[f"{p}w{i}"],
                    preferred_element_type=jnp.float32) + params[f"{p}b{i}"]
        mu = jnp.mean(z, axis=0, keepdims=True)
        d = z - mu
        var = jnp.mean(d * d, axis=0, keepdims=True)
        y = d * (params[f"{p}g{i}"] * jax.lax.rsqrt(var + BN_EPS)) + params[f"{p}be{i}"]
        return jnp.where(y >= 0.0, y, alpha * y)

    for i in range(1, 4):
        h = block(h, "e", i, a[i - 1])
    h = jnp.dot(h.astype(jnp.bfloat16), params["ew4"],
                preferred_element_type=jnp.float32) + params["eb4"]
    for i in range(1, 4):
        h = block(h, "d", i, a[i + 2])
    h = jnp.dot(h.astype(jnp.bfloat16), params["dw4"],
                preferred_element_type=jnp.float32) + params["db4"]
    return h.reshape(n, 1, 28, 28)


if __name__ == "__main__":
    key = jax.random.PRNGKey(0)
    k_x, k_p = jax.random.split(key)
    N = 128   # full MXU systolic height; whole batch needed anyway for train-mode BN stats
    x = jax.random.normal(k_x, (N, 1, 28, 28), jnp.float32)
    params = init_params(k_p)

    out = jax.block_until_ready(ae_forward(x, params))
    ref = jax.block_until_ready(reference(x, params))
    assert out.shape == (N, 1, 28, 28)
    np.testing.assert_allclose(np.asarray(out), np.asarray(ref), rtol=5e-3, atol=5e-3)

    print("KERNEL_OK")
</pallas_src>

<mosaic_0001>
module attributes {stable_mosaic.version = 11 : i64} {
  func.func @ae_kernel(%arg0: memref<6xf32, #tpu.memory_space<smem>>, %arg1: memref<128x784xf32, #tpu.memory_space<vmem>>, %arg2: memref<784x512xbf16, #tpu.memory_space<vmem>>, %arg3: memref<1x512xf32, #tpu.memory_space<vmem>>, %arg4: memref<1x512xf32, #tpu.memory_space<vmem>>, %arg5: memref<512x256xbf16, #tpu.memory_space<vmem>>, %arg6: memref<1x256xf32, #tpu.memory_space<vmem>>, %arg7: memref<1x256xf32, #tpu.memory_space<vmem>>, %arg8: memref<256x128xbf16, #tpu.memory_space<vmem>>, %arg9: memref<1x128xf32, #tpu.memory_space<vmem>>, %arg10: memref<1x128xf32, #tpu.memory_space<vmem>>, %arg11: memref<128x32xbf16, #tpu.memory_space<vmem>>, %arg12: memref<1x32xf32, #tpu.memory_space<vmem>>, %arg13: memref<32x128xbf16, #tpu.memory_space<vmem>>, %arg14: memref<1x128xf32, #tpu.memory_space<vmem>>, %arg15: memref<1x128xf32, #tpu.memory_space<vmem>>, %arg16: memref<128x256xbf16, #tpu.memory_space<vmem>>, %arg17: memref<1x256xf32, #tpu.memory_space<vmem>>, %arg18: memref<1x256xf32, #tpu.memory_space<vmem>>, %arg19: memref<256x512xbf16, #tpu.memory_space<vmem>>, %arg20: memref<1x512xf32, #tpu.memory_space<vmem>>, %arg21: memref<1x512xf32, #tpu.memory_space<vmem>>, %arg22: memref<512x784xbf16, #tpu.memory_space<vmem>>, %arg23: memref<1x784xf32, #tpu.memory_space<vmem>>, %arg24: memref<128x784xf32, #tpu.memory_space<vmem>>) attributes {dimension_semantics = [], scalar_prefetch = 0 : i64, scratch_operands = 0 : i64, tpu.core_type = #tpu.core_type<tc>} {
    %c0 = arith.constant 0 : index
    %c0_0 = arith.constant 0 : index
    %0 = vector.load %arg1[%c0, %c0_0] : memref<128x784xf32, #tpu.memory_space<vmem>>, vector<128x784xf32>
    %c0_1 = arith.constant 0 : index
    %1 = memref.load %arg0[%c0_1] : memref<6xf32, #tpu.memory_space<smem>>
    %2 = arith.truncf %0 : vector<128x784xf32> to vector<128x784xbf16>
    %c0_2 = arith.constant 0 : index
    %c0_3 = arith.constant 0 : index
    %3 = vector.load %arg2[%c0_2, %c0_3] : memref<784x512xbf16, #tpu.memory_space<vmem>>, vector<784x512xbf16>
    %cst = arith.constant dense<0.000000e+00> : vector<128x512xf32>
    %4 = tpu.matmul %2, %3, %cst {dimension_numbers = #tpu.dot_dimension_numbers<[1], [0], [0], [1], [0, 0, 1, 1], [], []>} : vector<128x784xbf16>, vector<784x512xbf16>, vector<128x512xf32> -> vector<128x512xf32>
    %cst_4 = arith.constant dense<0.000000e+00> : vector<512xf32>
    %5 = vector.multi_reduction <add>, %4, %cst_4 [0] : vector<128x512xf32> to vector<512xf32>
    %6 = vector.shape_cast %5 : vector<512xf32> to vector<1x512xf32>
    %cst_5 = arith.constant 1.280000e+02 : f32
    %7 = vector.broadcast %cst_5 : f32 to vector<1x512xf32>
    %8 = arith.divf %6, %7 : vector<1x512xf32>
    %9 = vector.broadcast %8 : vector<1x512xf32> to vector<128x512xf32>
    %10 = arith.subf %4, %9 : vector<128x512xf32>
    %11 = arith.mulf %10, %10 : vector<128x512xf32>
    %cst_6 = arith.constant dense<0.000000e+00> : vector<512xf32>
    %12 = vector.multi_reduction <add>, %11, %cst_6 [0] : vector<128x512xf32> to vector<512xf32>
    %13 = vector.shape_cast %12 : vector<512xf32> to vector<1x512xf32>
    %cst_7 = arith.constant 1.280000e+02 : f32
    %14 = vector.broadcast %cst_7 : f32 to vector<1x512xf32>
    %15 = arith.divf %13, %14 : vector<1x512xf32>
    %c0_8 = arith.constant 0 : index
    %c0_9 = arith.constant 0 : index
    %16 = vector.load %arg3[%c0_8, %c0_9] : memref<1x512xf32, #tpu.memory_space<vmem>>, vector<1x512xf32>
    %cst_10 = arith.constant 9.99999974E-6 : f32
    %17 = vector.broadcast %cst_10 : f32 to vector<1x512xf32>
    %18 = arith.addf %15, %17 : vector<1x512xf32>
    %19 = math.rsqrt %18 : vector<1x512xf32>
    %20 = arith.mulf %16, %19 : vector<1x512xf32>
    %21 = vector.broadcast %20 : vector<1x512xf32> to vector<128x512xf32>
    %22 = arith.mulf %10, %21 : vector<128x512xf32>
    %c0_11 = arith.constant 0 : index
    %c0_12 = arith.constant 0 : index
    %23 = vector.load %arg4[%c0_11, %c0_12] : memref<1x512xf32, #tpu.memory_space<vmem>>, vector<1x512xf32>
    %24 = vector.broadcast %23 : vector<1x512xf32> to vector<128x512xf32>
    %25 = arith.addf %22, %24 : vector<128x512xf32>
    %cst_13 = arith.constant 0.000000e+00 : f32
    %26 = vector.broadcast %cst_13 : f32 to vector<128x512xf32>
    %27 = arith.cmpf oge, %25, %26 : vector<128x512xf32>
    %28 = vector.broadcast %1 : f32 to vector<128x512xf32>
    %29 = arith.mulf %28, %25 : vector<128x512xf32>
    %30 = arith.select %27, %25, %29 : vector<128x512xi1>, vector<128x512xf32>
    %c1 = arith.constant 1 : index
    %31 = memref.load %arg0[%c1] : memref<6xf32, #tpu.memory_space<smem>>
    %32 = arith.truncf %30 : vector<128x512xf32> to vector<128x512xbf16>
    %c0_14 = arith.constant 0 : index
    %c0_15 = arith.constant 0 : index
    %33 = vector.load %arg5[%c0_14, %c0_15] : memref<512x256xbf16, #tpu.memory_space<vmem>>, vector<512x256xbf16>
    %cst_16 = arith.constant dense<0.000000e+00> : vector<128x256xf32>
    %34 = tpu.matmul %32, %33, %cst_16 {dimension_numbers = #tpu.dot_dimension_numbers<[1], [0], [0], [1], [0, 0, 1, 1], [], []>} : vector<128x512xbf16>, vector<512x256xbf16>, vector<128x256xf32> -> vector<128x256xf32>
    %cst_17 = arith.constant dense<0.000000e+00> : vector<256xf32>
    %35 = vector.multi_reduction <add>, %34, %cst_17 [0] : vector<128x256xf32> to vector<256xf32>
    %36 = vector.shape_cast %35 : vector<256xf32> to vector<1x256xf32>
    %cst_18 = arith.constant 1.280000e+02 : f32
    %37 = vector.broadcast %cst_18 : f32 to vector<1x256xf32>
    %38 = arith.divf %36, %37 : vector<1x256xf32>
    %39 = vector.broadcast %38 : vector<1x256xf32> to vector<128x256xf32>
    %40 = arith.subf %34, %39 : vector<128x256xf32>
    %41 = arith.mulf %40, %40 : vector<128x256xf32>
    %cst_19 = arith.constant dense<0.000000e+00> : vector<256xf32>
    %42 = vector.multi_reduction <add>, %41, %cst_19 [0] : vector<128x256xf32> to vector<256xf32>
    %43 = vector.shape_cast %42 : vector<256xf32> to vector<1x256xf32>
    %cst_20 = arith.constant 1.280000e+02 : f32
    %44 = vector.broadcast %cst_20 : f32 to vector<1x256xf32>
    %45 = arith.divf %43, %44 : vector<1x256xf32>
    %c0_21 = arith.constant 0 : index
    %c0_22 = arith.constant 0 : index
    %46 = vector.load %arg6[%c0_21, %c0_22] : memref<1x256xf32, #tpu.memory_space<vmem>>, vector<1x256xf32>
    %cst_23 = arith.constant 9.99999974E-6 : f32
    %47 = vector.broadcast %cst_23 : f32 to vector<1x256xf32>
    %48 = arith.addf %45, %47 : vector<1x256xf32>
    %49 = math.rsqrt %48 : vector<1x256xf32>
    %50 = arith.mulf %46, %49 : vector<1x256xf32>
    %51 = vector.broadcast %50 : vector<1x256xf32> to vector<128x256xf32>
    %52 = arith.mulf %40, %51 : vector<128x256xf32>
    %c0_24 = arith.constant 0 : index
    %c0_25 = arith.constant 0 : index
    %53 = vector.load %arg7[%c0_24, %c0_25] : memref<1x256xf32, #tpu.memory_space<vmem>>, vector<1x256xf32>
    %54 = vector.broadcast %53 : vector<1x256xf32> to vector<128x256xf32>
    %55 = arith.addf %52, %54 : vector<128x256xf32>
    %cst_26 = arith.constant 0.000000e+00 : f32
    %56 = vector.broadcast %cst_26 : f32 to vector<128x256xf32>
    %57 = arith.cmpf oge, %55, %56 : vector<128x256xf32>
    %58 = vector.broadcast %31 : f32 to vector<128x256xf32>
    %59 = arith.mulf %58, %55 : vector<128x256xf32>
    %60 = arith.select %57, %55, %59 : vector<128x256xi1>, vector<128x256xf32>
    %c2 = arith.constant 2 : index
    %61 = memref.load %arg0[%c2] : memref<6xf32, #tpu.memory_space<smem>>
    %62 = arith.truncf %60 : vector<128x256xf32> to vector<128x256xbf16>
    %c0_27 = arith.constant 0 : index
    %c0_28 = arith.constant 0 : index
    %63 = vector.load %arg8[%c0_27, %c0_28] : memref<256x128xbf16, #tpu.memory_space<vmem>>, vector<256x128xbf16>
    %cst_29 = arith.constant dense<0.000000e+00> : vector<128x128xf32>
    %64 = tpu.matmul %62, %63, %cst_29 {dimension_numbers = #tpu.dot_dimension_numbers<[1], [0], [0], [1], [0, 0, 1, 1], [], []>} : vector<128x256xbf16>, vector<256x128xbf16>, vector<128x128xf32> -> vector<128x128xf32>
    %cst_30 = arith.constant dense<0.000000e+00> : vector<128xf32>
    %65 = vector.multi_reduction <add>, %64, %cst_30 [0] : vector<128x128xf32> to vector<128xf32>
    %66 = vector.shape_cast %65 : vector<128xf32> to vector<1x128xf32>
    %cst_31 = arith.constant 1.280000e+02 : f32
    %67 = vector.broadcast %cst_31 : f32 to vector<1x128xf32>
    %68 = arith.divf %66, %67 : vector<1x128xf32>
    %69 = vector.broadcast %68 : vector<1x128xf32> to vector<128x128xf32>
    %70 = arith.subf %64, %69 : vector<128x128xf32>
    %71 = arith.mulf %70, %70 : vector<128x128xf32>
    %cst_32 = arith.constant dense<0.000000e+00> : vector<128xf32>
    %72 = vector.multi_reduction <add>, %71, %cst_32 [0] : vector<128x128xf32> to vector<128xf32>
    %73 = vector.shape_cast %72 : vector<128xf32> to vector<1x128xf32>
    %cst_33 = arith.constant 1.280000e+02 : f32
    %74 = vector.broadcast %cst_33 : f32 to vector<1x128xf32>
    %75 = arith.divf %73, %74 : vector<1x128xf32>
    %c0_34 = arith.constant 0 : index
    %c0_35 = arith.constant 0 : index
    %76 = vector.load %arg9[%c0_34, %c0_35] : memref<1x128xf32, #tpu.memory_space<vmem>>, vector<1x128xf32>
    %cst_36 = arith.constant 9.99999974E-6 : f32
    %77 = vector.broadcast %cst_36 : f32 to vector<1x128xf32>
    %78 = arith.addf %75, %77 : vector<1x128xf32>
    %79 = math.rsqrt %78 : vector<1x128xf32>
    %80 = arith.mulf %76, %79 : vector<1x128xf32>
    %81 = vector.broadcast %80 : vector<1x128xf32> to vector<128x128xf32>
    %82 = arith.mulf %70, %81 : vector<128x128xf32>
    %c0_37 = arith.constant 0 : index
    %c0_38 = arith.constant 0 : index
    %83 = vector.load %arg10[%c0_37, %c0_38] : memref<1x128xf32, #tpu.memory_space<vmem>>, vector<1x128xf32>
    %84 = vector.broadcast %83 : vector<1x128xf32> to vector<128x128xf32>
    %85 = arith.addf %82, %84 : vector<128x128xf32>
    %cst_39 = arith.constant 0.000000e+00 : f32
    %86 = vector.broadcast %cst_39 : f32 to vector<128x128xf32>
    %87 = arith.cmpf oge, %85, %86 : vector<128x128xf32>
    %88 = vector.broadcast %61 : f32 to vector<128x128xf32>
    %89 = arith.mulf %88, %85 : vector<128x128xf32>
    %90 = arith.select %87, %85, %89 : vector<128x128xi1>, vector<128x128xf32>
    %91 = arith.truncf %90 : vector<128x128xf32> to vector<128x128xbf16>
    %c0_40 = arith.constant 0 : index
    %c0_41 = arith.constant 0 : index
    %92 = vector.load %arg11[%c0_40, %c0_41] : memref<128x32xbf16, #tpu.memory_space<vmem>>, vector<128x32xbf16>
    %cst_42 = arith.constant dense<0.000000e+00> : vector<128x32xf32>
    %93 = tpu.matmul %91, %92, %cst_42 {dimension_numbers = #tpu.dot_dimension_numbers<[1], [0], [0], [1], [0, 0, 1, 1], [], []>} : vector<128x128xbf16>, vector<128x32xbf16>, vector<128x32xf32> -> vector<128x32xf32>
    %c0_43 = arith.constant 0 : index
    %c0_44 = arith.constant 0 : index
    %94 = vector.load %arg12[%c0_43, %c0_44] : memref<1x32xf32, #tpu.memory_space<vmem>>, vector<1x32xf32>
    %95 = vector.broadcast %94 : vector<1x32xf32> to vector<128x32xf32>
    %96 = arith.addf %93, %95 : vector<128x32xf32>
    %c3 = arith.constant 3 : index
    %97 = memref.load %arg0[%c3] : memref<6xf32, #tpu.memory_space<smem>>
    %98 = arith.truncf %96 : vector<128x32xf32> to vector<128x32xbf16>
    %c0_45 = arith.constant 0 : index
    %c0_46 = arith.constant 0 : index
    %99 = vector.load %arg13[%c0_45, %c0_46] : memref<32x128xbf16, #tpu.memory_space<vmem>>, vector<32x128xbf16>
    %cst_47 = arith.constant dense<0.000000e+00> : vector<128x128xf32>
    %100 = tpu.matmul %98, %99, %cst_47 {dimension_numbers = #tpu.dot_dimension_numbers<[1], [0], [0], [1], [0, 0, 1, 1], [], []>} : vector<128x32xbf16>, vector<32x128xbf16>, vector<128x128xf32> -> vector<128x128xf32>
    %cst_48 = arith.constant dense<0.000000e+00> : vector<128xf32>
    %101 = vector.multi_reduction <add>, %100, %cst_48 [0] : vector<128x128xf32> to vector<128xf32>
    %102 = vector.shape_cast %101 : vector<128xf32> to vector<1x128xf32>
    %cst_49 = arith.constant 1.280000e+02 : f32
    %103 = vector.broadcast %cst_49 : f32 to vector<1x128xf32>
    %104 = arith.divf %102, %103 : vector<1x128xf32>
    %105 = vector.broadcast %104 : vector<1x128xf32> to vector<128x128xf32>
    %106 = arith.subf %100, %105 : vector<128x128xf32>
    %107 = arith.mulf %106, %106 : vector<128x128xf32>
    %cst_50 = arith.constant dense<0.000000e+00> : vector<128xf32>
    %108 = vector.multi_reduction <add>, %107, %cst_50 [0] : vector<128x128xf32> to vector<128xf32>
    %109 = vector.shape_cast %108 : vector<128xf32> to vector<1x128xf32>
    %cst_51 = arith.constant 1.280000e+02 : f32
    %110 = vector.broadcast %cst_51 : f32 to vector<1x128xf32>
    %111 = arith.divf %109, %110 : vector<1x128xf32>
    %c0_52 = arith.constant 0 : index
    %c0_53 = arith.constant 0 : index
    %112 = vector.load %arg14[%c0_52, %c0_53] : memref<1x128xf32, #tpu.memory_space<vmem>>, vector<1x128xf32>
    %cst_54 = arith.constant 9.99999974E-6 : f32
    %113 = vector.broadcast %cst_54 : f32 to vector<1x128xf32>
    %114 = arith.addf %111, %113 : vector<1x128xf32>
    %115 = math.rsqrt %114 : vector<1x128xf32>
    %116 = arith.mulf %112, %115 : vector<1x128xf32>
    %117 = vector.broadcast %116 : vector<1x128xf32> to vector<128x128xf32>
    %118 = arith.mulf %106, %117 : vector<128x128xf32>
    %c0_55 = arith.constant 0 : index
    %c0_56 = arith.constant 0 : index
    %119 = vector.load %arg15[%c0_55, %c0_56] : memref<1x128xf32, #tpu.memory_space<vmem>>, vector<1x128xf32>
    %120 = vector.broadcast %119 : vector<1x128xf32> to vector<128x128xf32>
    %121 = arith.addf %118, %120 : vector<128x128xf32>
    %cst_57 = arith.constant 0.000000e+00 : f32
    %122 = vector.broadcast %cst_57 : f32 to vector<128x128xf32>
    %123 = arith.cmpf oge, %121, %122 : vector<128x128xf32>
    %124 = vector.broadcast %97 : f32 to vector<128x128xf32>
    %125 = arith.mulf %124, %121 : vector<128x128xf32>
    %126 = arith.select %123, %121, %125 : vector<128x128xi1>, vector<128x128xf32>
    %c4 = arith.constant 4 : index
    %127 = memref.load %arg0[%c4] : memref<6xf32, #tpu.memory_space<smem>>
    %128 = arith.truncf %126 : vector<128x128xf32> to vector<128x128xbf16>
    %c0_58 = arith.constant 0 : index
    %c0_59 = arith.constant 0 : index
    %129 = vector.load %arg16[%c0_58, %c0_59] : memref<128x256xbf16, #tpu.memory_space<vmem>>, vector<128x256xbf16>
    %cst_60 = arith.constant dense<0.000000e+00> : vector<128x256xf32>
    %130 = tpu.matmul %128, %129, %cst_60 {dimension_numbers = #tpu.dot_dimension_numbers<[1], [0], [0], [1], [0, 0, 1, 1], [], []>} : vector<128x128xbf16>, vector<128x256xbf16>, vector<128x256xf32> -> vector<128x256xf32>
    %cst_61 = arith.constant dense<0.000000e+00> : vector<256xf32>
    %131 = vector.multi_reduction <add>, %130, %cst_61 [0] : vector<128x256xf32> to vector<256xf32>
    %132 = vector.shape_cast %131 : vector<256xf32> to vector<1x256xf32>
    %cst_62 = arith.constant 1.280000e+02 : f32
    %133 = vector.broadcast %cst_62 : f32 to vector<1x256xf32>
    %134 = arith.divf %132, %133 : vector<1x256xf32>
    %135 = vector.broadcast %134 : vector<1x256xf32> to vector<128x256xf32>
    %136 = arith.subf %130, %135 : vector<128x256xf32>
    %137 = arith.mulf %136, %136 : vector<128x256xf32>
    %cst_63 = arith.constant dense<0.000000e+00> : vector<256xf32>
    %138 = vector.multi_reduction <add>, %137, %cst_63 [0] : vector<128x256xf32> to vector<256xf32>
    %139 = vector.shape_cast %138 : vector<256xf32> to vector<1x256xf32>
    %cst_64 = arith.constant 1.280000e+02 : f32
    %140 = vector.broadcast %cst_64 : f32 to vector<1x256xf32>
    %141 = arith.divf %139, %140 : vector<1x256xf32>
    %c0_65 = arith.constant 0 : index
    %c0_66 = arith.constant 0 : index
    %142 = vector.load %arg17[%c0_65, %c0_66] : memref<1x256xf32, #tpu.memory_space<vmem>>, vector<1x256xf32>
    %cst_67 = arith.constant 9.99999974E-6 : f32
    %143 = vector.broadcast %cst_67 : f32 to vector<1x256xf32>
    %144 = arith.addf %141, %143 : vector<1x256xf32>
    %145 = math.rsqrt %144 : vector<1x256xf32>
    %146 = arith.mulf %142, %145 : vector<1x256xf32>
    %147 = vector.broadcast %146 : vector<1x256xf32> to vector<128x256xf32>
    %148 = arith.mulf %136, %147 : vector<128x256xf32>
    %c0_68 = arith.constant 0 : index
    %c0_69 = arith.constant 0 : index
    %149 = vector.load %arg18[%c0_68, %c0_69] : memref<1x256xf32, #tpu.memory_space<vmem>>, vector<1x256xf32>
    %150 = vector.broadcast %149 : vector<1x256xf32> to vector<128x256xf32>
    %151 = arith.addf %148, %150 : vector<128x256xf32>
    %cst_70 = arith.constant 0.000000e+00 : f32
    %152 = vector.broadcast %cst_70 : f32 to vector<128x256xf32>
    %153 = arith.cmpf oge, %151, %152 : vector<128x256xf32>
    %154 = vector.broadcast %127 : f32 to vector<128x256xf32>
    %155 = arith.mulf %154, %151 : vector<128x256xf32>
    %156 = arith.select %153, %151, %155 : vector<128x256xi1>, vector<128x256xf32>
    %c5 = arith.constant 5 : index
    %157 = memref.load %arg0[%c5] : memref<6xf32, #tpu.memory_space<smem>>
    %158 = arith.truncf %156 : vector<128x256xf32> to vector<128x256xbf16>
    %c0_71 = arith.constant 0 : index
    %c0_72 = arith.constant 0 : index
    %159 = vector.load %arg19[%c0_71, %c0_72] : memref<256x512xbf16, #tpu.memory_space<vmem>>, vector<256x512xbf16>
    %cst_73 = arith.constant dense<0.000000e+00> : vector<128x512xf32>
    %160 = tpu.matmul %158, %159, %cst_73 {dimension_numbers = #tpu.dot_dimension_numbers<[1], [0], [0], [1], [0, 0, 1, 1], [], []>} : vector<128x256xbf16>, vector<256x512xbf16>, vector<128x512xf32> -> vector<128x512xf32>
    %cst_74 = arith.constant dense<0.000000e+00> : vector<512xf32>
    %161 = vector.multi_reduction <add>, %160, %cst_74 [0] : vector<128x512xf32> to vector<512xf32>
    %162 = vector.shape_cast %161 : vector<512xf32> to vector<1x512xf32>
    %cst_75 = arith.constant 1.280000e+02 : f32
    %163 = vector.broadcast %cst_75 : f32 to vector<1x512xf32>
    %164 = arith.divf %162, %163 : vector<1x512xf32>
    %165 = vector.broadcast %164 : vector<1x512xf32> to vector<128x512xf32>
    %166 = arith.subf %160, %165 : vector<128x512xf32>
    %167 = arith.mulf %166, %166 : vector<128x512xf32>
    %cst_76 = arith.constant dense<0.000000e+00> : vector<512xf32>
    %168 = vector.multi_reduction <add>, %167, %cst_76 [0] : vector<128x512xf32> to vector<512xf32>
    %169 = vector.shape_cast %168 : vector<512xf32> to vector<1x512xf32>
    %cst_77 = arith.constant 1.280000e+02 : f32
    %170 = vector.broadcast %cst_77 : f32 to vector<1x512xf32>
    %171 = arith.divf %169, %170 : vector<1x512xf32>
    %c0_78 = arith.constant 0 : index
    %c0_79 = arith.constant 0 : index
    %172 = vector.load %arg20[%c0_78, %c0_79] : memref<1x512xf32, #tpu.memory_space<vmem>>, vector<1x512xf32>
    %cst_80 = arith.constant 9.99999974E-6 : f32
    %173 = vector.broadcast %cst_80 : f32 to vector<1x512xf32>
    %174 = arith.addf %171, %173 : vector<1x512xf32>
    %175 = math.rsqrt %174 : vector<1x512xf32>
    %176 = arith.mulf %172, %175 : vector<1x512xf32>
    %177 = vector.broadcast %176 : vector<1x512xf32> to vector<128x512xf32>
    %178 = arith.mulf %166, %177 : vector<128x512xf32>
    %c0_81 = arith.constant 0 : index
    %c0_82 = arith.constant 0 : index
    %179 = vector.load %arg21[%c0_81, %c0_82] : memref<1x512xf32, #tpu.memory_space<vmem>>, vector<1x512xf32>
    %180 = vector.broadcast %179 : vector<1x512xf32> to vector<128x512xf32>
    %181 = arith.addf %178, %180 : vector<128x512xf32>
    %cst_83 = arith.constant 0.000000e+00 : f32
    %182 = vector.broadcast %cst_83 : f32 to vector<128x512xf32>
    %183 = arith.cmpf oge, %181, %182 : vector<128x512xf32>
    %184 = vector.broadcast %157 : f32 to vector<128x512xf32>
    %185 = arith.mulf %184, %181 : vector<128x512xf32>
    %186 = arith.select %183, %181, %185 : vector<128x512xi1>, vector<128x512xf32>
    %187 = arith.truncf %186 : vector<128x512xf32> to vector<128x512xbf16>
    %c0_84 = arith.constant 0 : index
    %c0_85 = arith.constant 0 : index
    %188 = vector.load %arg22[%c0_84, %c0_85] : memref<512x784xbf16, #tpu.memory_space<vmem>>, vector<512x784xbf16>
    %cst_86 = arith.constant dense<0.000000e+00> : vector<128x784xf32>
    %189 = tpu.matmul %187, %188, %cst_86 {dimension_numbers = #tpu.dot_dimension_numbers<[1], [0], [0], [1], [0, 0, 1, 1], [], []>} : vector<128x512xbf16>, vector<512x784xbf16>, vector<128x784xf32> -> vector<128x784xf32>
    %c0_87 = arith.constant 0 : index
    %c0_88 = arith.constant 0 : index
    %190 = vector.load %arg23[%c0_87, %c0_88] : memref<1x784xf32, #tpu.memory_space<vmem>>, vector<1x784xf32>
    %191 = vector.broadcast %190 : vector<1x784xf32> to vector<128x784xf32>
    %192 = arith.addf %189, %191 : vector<128x784xf32>
    %c0_89 = arith.constant 0 : index
    %c0_90 = arith.constant 0 : index
    %193 = vector.load %arg24[%c0_89, %c0_90] : memref<128x784xf32, #tpu.memory_space<vmem>>, vector<128x784xf32>
    tpu.vector_store %arg24[%c0_89, %c0_90], %192 {strides = array<i32>} : memref<128x784xf32, #tpu.memory_space<vmem>>, vector<128x784xf32>,
    return
  }
}

</mosaic_0001>

<llo_original>
// kernel: ae_forward.1
$region0: #{ae_forward.1}
  #allocation0 [shape = 'u32[]', space=smem, size = 0x4, offset = 0x4, fixed_abs, tag = 'smem constant byte address 0x4 - core index']
  #allocation1 [shape = 'u32[72,128]{1,0:T(1,128)}', space=vmem, size = 0x9000, scoped, tag = 'internal scratch']
  %s0 = inlined_call_operand.vmem [shape: f32[6], index: 0, kind: input, shape index: {}]
  %s1 = inlined_call_operand.vmem [shape: f32[128,784], index: 1, kind: input, shape index: {}]
  %s2 = inlined_call_operand.vmem [shape: bf16[784,512], index: 2, kind: input, shape index: {}]
  %s3 = inlined_call_operand.vmem [shape: f32[1,512], index: 3, kind: input, shape index: {}]
  %s4 = inlined_call_operand.vmem [shape: f32[1,512], index: 4, kind: input, shape index: {}]
  %s5 = inlined_call_operand.vmem [shape: bf16[512,256], index: 5, kind: input, shape index: {}]
  %s6 = inlined_call_operand.vmem [shape: f32[1,256], index: 6, kind: input, shape index: {}]
  %s7 = inlined_call_operand.vmem [shape: f32[1,256], index: 7, kind: input, shape index: {}]
  %s8 = inlined_call_operand.vmem [shape: bf16[256,128], index: 8, kind: input, shape index: {}]
  %s9 = inlined_call_operand.vmem [shape: f32[1,128], index: 9, kind: input, shape index: {}]
  %s10 = inlined_call_operand.vmem [shape: f32[1,128], index: 10, kind: input, shape index: {}]
  %s11 = inlined_call_operand.vmem [shape: bf16[128,32], index: 11, kind: input, shape index: {}]
  %s12 = inlined_call_operand.vmem [shape: f32[1,32], index: 12, kind: input, shape index: {}]
  %s13 = inlined_call_operand.vmem [shape: bf16[32,128], index: 13, kind: input, shape index: {}]
  %s14 = inlined_call_operand.vmem [shape: f32[1,128], index: 14, kind: input, shape index: {}]
  %s15 = inlined_call_operand.vmem [shape: f32[1,128], index: 15, kind: input, shape index: {}]
  %s16 = inlined_call_operand.vmem [shape: bf16[128,256], index: 16, kind: input, shape index: {}]
  %s17 = inlined_call_operand.vmem [shape: f32[1,256], index: 17, kind: input, shape index: {}]
  %s18 = inlined_call_operand.vmem [shape: f32[1,256], index: 18, kind: input, shape index: {}]
  %s19 = inlined_call_operand.vmem [shape: bf16[256,512], index: 19, kind: input, shape index: {}]
  %s20 = inlined_call_operand.vmem [shape: f32[1,512], index: 20, kind: input, shape index: {}]
  %s21 = inlined_call_operand.vmem [shape: f32[1,512], index: 21, kind: input, shape index: {}]
  %s22 = inlined_call_operand.vmem [shape: bf16[512,784], index: 22, kind: input, shape index: {}]
  %s23 = inlined_call_operand.vmem [shape: f32[1,784], index: 23, kind: input, shape index: {}]
  %s24 = inlined_call_operand.vmem [shape: f32[128,784], index: 24, kind: output, shape index: {}]
  %s25 = sld [smem:[#allocation0]]
  $region110: #{ae_forward.1} parent=0
    _
  %s27 = ssub.s32 1, %s25
  %s28 = scalar_select 0, %s27, %s25
  $region1: #{ae_forward.1} parent=0
    #allocation2 [shape = 'u8[512]{0}', space=smem, size = 0x200, scoped, tag = 'input window, operand 0, single buffered']
    #allocation3 [shape = 's32[1]{0}', space=sflag, size = 0x4, scoped, tag = 'scoped memory for ae_forward.1']
    %29 = vsyncpa [#allocation3], 0
    // Predicated region
    $region2: #{ae_forward.1} parent=1 // pred_check
      _
    $region3: #{ae_forward.1} parent=1 // pred_check_branch
      %31 = sbr.rel (0) target = $region5
    $region4: #{ae_forward.1} parent=1 // pred_region
      %33 = vsyncadd [#allocation3], 0
      %s35 = sshll.u32 %s0, 4
      %s36 = int_to_ptr.vmem [resolvable:$true] %s35
      %38 = dma.vmem_to_smem %s36, 16, [#allocation2], [#allocation3]
    $region5: #{ae_forward.1} parent=1 // pred_fallthru
      _
    // Predicated region
    $region6: #{ae_forward.1} parent=1 // pred_check
      _
    $region7: #{ae_forward.1} parent=1 // pred_check_branch
      %40 = sbr.rel (0) target = $region9
    $region8: #{ae_forward.1} parent=1 // pred_region
      _
    $region9: #{ae_forward.1} parent=1 // pred_fallthru
      _
    // Predicated region
    $region10: #{ae_forward.1} parent=1 // pred_check
      _
    $region11: #{ae_forward.1} parent=1 // pred_check_branch
      %42 = sbr.rel (0) target = $region13
    $region12: #{ae_forward.1} parent=1 // pred_region
      _
    $region13: #{ae_forward.1} parent=1 // pred_fallthru
      _
    // Predicated region
    $region14: #{ae_forward.1} parent=1 // pred_check
      _
    $region15: #{ae_forward.1} parent=1 // pred_check_branch
      %44 = sbr.rel (0) target = $region17
    $region16: #{ae_forward.1} parent=1 // pred_region
      _
    $region17: #{ae_forward.1} parent=1 // pred_fallthru
      _
    // Predicated region
    $region18: #{ae_forward.1} parent=1 // pred_check
      _
    $region19: #{ae_forward.1} parent=1 // pred_check_branch
      %46 = sbr.rel (0) target = $region21
    $region20: #{ae_forward.1} parent=1 // pred_region
      _
    $region21: #{ae_forward.1} parent=1 // pred_fallthru
      _
    // Predicated region
    $region22: #{ae_forward.1} parent=1 // pred_check
      _
    $region23: #{ae_forward.1} parent=1 // pred_check_branch
      %48 = sbr.rel (0) target = $region25
    $region24: #{ae_forward.1} parent=1 // pred_region
      _
    $region25: #{ae_forward.1} parent=1 // pred_fallthru
      _
    // Predicated region
    $region26: #{ae_forward.1} parent=1 // pred_check
      _
    $region27: #{ae_forward.1} parent=1 // pred_check_branch
      %50 = sbr.rel (0) target = $region29
    $region28: #{ae_forward.1} parent=1 // pred_region
      _
    $region29: #{ae_forward.1} parent=1 // pred_fallthru
      _
    // Predicated region
    $region30: #{ae_forward.1} parent=1 // pred_check
      _
    $region31: #{ae_forward.1} parent=1 // pred_check_branch
      %52 = sbr.rel (0) target = $region33
    $region32: #{ae_forward.1} parent=1 // pred_region
      _
    $region33: #{ae_forward.1} parent=1 // pred_fallthru
      _
    // Predicated region
    $region34: #{ae_forward.1} parent=1 // pred_check
      _
    $region35: #{ae_forward.1} parent=1 // pred_check_branch
      %54 = sbr.rel (0) target = $region37
    $region36: #{ae_forward.1} parent=1 // pred_region
      _
    $region37: #{ae_forward.1} parent=1 // pred_fallthru
      _
    // Predicated region
    $region38: #{ae_forward.1} parent=1 // pred_check
      _
    $region39: #{ae_forward.1} parent=1 // pred_check_branch
      %56 = sbr.rel (0) target = $region41
    $region40: #{ae_forward.1} parent=1 // pred_region
      _
    $region41: #{ae_forward.1} parent=1 // pred_fallthru
      _
    // Predicated region
    $region42: #{ae_forward.1} parent=1 // pred_check
      _
    $region43: #{ae_forward.1} parent=1 // pred_check_branch
      %58 = sbr.rel (0) target = $region45
    $region44: #{ae_forward.1} parent=1 // pred_region
      _
    $region45: #{ae_forward.1} parent=1 // pred_fallthru
      _
    // Predicated region
    $region46: #{ae_forward.1} parent=1 // pred_check
      _
    $region47: #{ae_forward.1} parent=1 // pred_check_branch
      %60 = sbr.rel (0) target = $region49
    $region48: #{ae_forward.1} parent=1 // pred_region
      _
    $region49: #{ae_forward.1} parent=1 // pred_fallthru
      _
    // Predicated region
    $region50: #{ae_forward.1} parent=1 // pred_check
      _
    $region51: #{ae_forward.1} parent=1 // pred_check_branch
      %62 = sbr.rel (0) target = $region53
    $region52: #{ae_forward.1} parent=1 // pred_region
      _
    $region53: #{ae_forward.1} parent=1 // pred_fallthru
      _
    // Predicated region
    $region54: #{ae_forward.1} parent=1 // pred_check
      _
    $region55: #{ae_forward.1} parent=1 // pred_check_branch
      %64 = sbr.rel (0) target = $region57
    $region56: #{ae_forward.1} parent=1 // pred_region
      _
    $region57: #{ae_forward.1} parent=1 // pred_fallthru
      _
    // Predicated region
    $region58: #{ae_forward.1} parent=1 // pred_check
      _
    $region59: #{ae_forward.1} parent=1 // pred_check_branch
      %66 = sbr.rel (0) target = $region61
    $region60: #{ae_forward.1} parent=1 // pred_region
      _
    $region61: #{ae_forward.1} parent=1 // pred_fallthru
      _
    // Predicated region
    $region62: #{ae_forward.1} parent=1 // pred_check
      _
    $region63: #{ae_forward.1} parent=1 // pred_check_branch
      %68 = sbr.rel (0) target = $region65
    $region64: #{ae_forward.1} parent=1 // pred_region
      _
    $region65: #{ae_forward.1} parent=1 // pred_fallthru
      _
    // Predicated region
    $region66: #{ae_forward.1} parent=1 // pred_check
      _
    $region67: #{ae_forward.1} parent=1 // pred_check_branch
      %70 = sbr.rel (0) target = $region69
    $region68: #{ae_forward.1} parent=1 // pred_region
      _
    $region69: #{ae_forward.1} parent=1 // pred_fallthru
      _
    // Predicated region
    $region70: #{ae_forward.1} parent=1 // pred_check
      _
    $region71: #{ae_forward.1} parent=1 // pred_check_branch
      %72 = sbr.rel (0) target = $region73
    $region72: #{ae_forward.1} parent=1 // pred_region
      _
    $region73: #{ae_forward.1} parent=1 // pred_fallthru
      _
    // Predicated region
    $region74: #{ae_forward.1} parent=1 // pred_check
      _
    $region75: #{ae_forward.1} parent=1 // pred_check_branch
      %74 = sbr.rel (0) target = $region77
    $region76: #{ae_forward.1} parent=1 // pred_region
      _
    $region77: #{ae_forward.1} parent=1 // pred_fallthru
      _
    // Predicated region
    $region78: #{ae_forward.1} parent=1 // pred_check
      _
    $region79: #{ae_forward.1} parent=1 // pred_check_branch
      %76 = sbr.rel (0) target = $region81
    $region80: #{ae_forward.1} parent=1 // pred_region
      _
    $region81: #{ae_forward.1} parent=1 // pred_fallthru
      _
    // Predicated region
    $region82: #{ae_forward.1} parent=1 // pred_check
      _
    $region83: #{ae_forward.1} parent=1 // pred_check_branch
      %78 = sbr.rel (0) target = $region85
    $region84: #{ae_forward.1} parent=1 // pred_region
      _
    $region85: #{ae_forward.1} parent=1 // pred_fallthru
      _
    // Predicated region
    $region86: #{ae_forward.1} parent=1 // pred_check
      _
    $region87: #{ae_forward.1} parent=1 // pred_check_branch
      %80 = sbr.rel (0) target = $region89
    $region88: #{ae_forward.1} parent=1 // pred_region
      _
    $region89: #{ae_forward.1} parent=1 // pred_fallthru
      _
    // Predicated region
    $region90: #{ae_forward.1} parent=1 // pred_check
      _
    $region91: #{ae_forward.1} parent=1 // pred_check_branch
      %82 = sbr.rel (0) target = $region93
    $region92: #{ae_forward.1} parent=1 // pred_region
      _
    $region93: #{ae_forward.1} parent=1 // pred_fallthru
      _
    // Predicated region
    $region94: #{ae_forward.1} parent=1 // pred_check
      _
    $region95: #{ae_forward.1} parent=1 // pred_check_branch
      %84 = sbr.rel (0) target = $region97
    $region96: #{ae_forward.1} parent=1 // pred_region
      _
    $region97: #{ae_forward.1} parent=1 // pred_fallthru
      _
    // Predicated region
    $region98: #{ae_forward.1} parent=1 // pred_check
      _
    $region99: #{ae_forward.1} parent=1 // pred_check_branch
      %86 = sbr.rel (0) target = $region101
    $region100: #{ae_forward.1} parent=1 // pred_region
      %88 = dma.done [#allocation3], 16
    $region101: #{ae_forward.1} parent=1 // pred_fallthru
      _
    %89 = sfence
    %v91 = vld [vmem:[%s1] sm:$0xff]
    %v92 = vld [vmem:[%s1 + $0x8] sm:$0xff]
    %v93 = vld [vmem:[%s1 + $0x10] sm:$0xff]
    %v94 = vld [vmem:[%s1 + $0x18] sm:$0xff]
    %v95 = vld [vmem:[%s1 + $0x20] sm:$0xff]
    %v96 = vld [vmem:[%s1 + $0x28] sm:$0xff]
    %v97 = vld [vmem:[%s1 + $0x30] sm:$0xff]
    %v98 = vld [vmem:[%s1 + $0x38] sm:$0xff]
    %v99 = vld [vmem:[%s1 + $0x40] sm:$0xff]
    %v100 = vld [vmem:[%s1 + $0x48] sm:$0xff]
    %v101 = vld [vmem:[%s1 + $0x50] sm:$0xff]
    %v102 = vld [vmem:[%s1 + $0x58] sm:$0xff]
    %v103 = vld [vmem:[%s1 + $0x60] sm:$0xff]
    %v104 = vld [vmem:[%s1 + $0x68] sm:$0xff]
    %v105 = vld [vmem:[%s1 + $0x70] sm:$0xff]
    %v106 = vld [vmem:[%s1 + $0x78] sm:$0xff]
    %v107 = vld [vmem:[%s1 + $0x80] sm:$0xff]
    %v108 = vld [vmem:[%s1 + $0x88] sm:$0xff]
    %v109 = vld [vmem:[%s1 + $0x90] sm:$0xff]
    %v110 = vld [vmem:[%s1 + $0x98] sm:$0xff]
    %v111 = vld [vmem:[%s1 + $0xa0] sm:$0xff]
    %v112 = vld [vmem:[%s1 + $0xa8] sm:$0xff]
    %v113 = vld [vmem:[%s1 + $0xb0] sm:$0xff]
    %v114 = vld [vmem:[%s1 + $0xb8] sm:$0xff]
    %v115 = vld [vmem:[%s1 + $0xc0] sm:$0xff]
    %v116 = vld [vmem:[%s1 + $0xc8] sm:$0xff]
    %v117 = vld [vmem:[%s1 + $0xd0] sm:$0xff]
    %v118 = vld [vmem:[%s1 + $0xd8] sm:$0xff]
    %v119 = vld [vmem:[%s1 + $0xe0] sm:$0xff]
    %v120 = vld [vmem:[%s1 + $0xe8] sm:$0xff]
    %v121 = vld [vmem:[%s1 + $0xf0] sm:$0xff]
    %v122 = vld [vmem:[%s1 + $0xf8] sm:$0xff]
    %v123 = vld [vmem:[%s1 + $0x100] sm:$0xff]
    %v124 = vld [vmem:[%s1 + $0x108] sm:$0xff]
    %v125 = vld [vmem:[%s1 + $0x110] sm:$0xff]
    %v126 = vld [vmem:[%s1 + $0x118] sm:$0xff]
    %v127 = vld [vmem:[%s1 + $0x120] sm:$0xff]
    %v128 = vld [vmem:[%s1 + $0x128] sm:$0xff]
    %v129 = vld [vmem:[%s1 + $0x130] sm:$0xff]
    %v130 = vld [vmem:[%s1 + $0x138] sm:$0xff]
    %v131 = vld [vmem:[%s1 + $0x140] sm:$0xff]
    %v132 = vld [vmem:[%s1 + $0x148] sm:$0xff]
    %v133 = vld [vmem:[%s1 + $0x150] sm:$0xff]
    %v134 = vld [vmem:[%s1 + $0x158] sm:$0xff]
    %v135 = vld [vmem:[%s1 + $0x160] sm:$0xff]
    %v136 = vld [vmem:[%s1 + $0x168] sm:$0xff]
    %v137 = vld [vmem:[%s1 + $0x170] sm:$0xff]
    %v138 = vld [vmem:[%s1 + $0x178] sm:$0xff]
    %v139 = vld [vmem:[%s1 + $0x180] sm:$0xff]
    %v140 = vld [vmem:[%s1 + $0x188] sm:$0xff]
    %v141 = vld [vmem:[%s1 + $0x190] sm:$0xff]
    %v142 = vld [vmem:[%s1 + $0x198] sm:$0xff]
    %v143 = vld [vmem:[%s1 + $0x1a0] sm:$0xff]
    %v144 = vld [vmem:[%s1 + $0x1a8] sm:$0xff]
    %v145 = vld [vmem:[%s1 + $0x1b0] sm:$0xff]
    %v146 = vld [vmem:[%s1 + $0x1b8] sm:$0xff]
    %v147 = vld [vmem:[%s1 + $0x1c0] sm:$0xff]
    %v148 = vld [vmem:[%s1 + $0x1c8] sm:$0xff]
    %v149 = vld [vmem:[%s1 + $0x1d0] sm:$0xff]
    %v150 = vld [vmem:[%s1 + $0x1d8] sm:$0xff]
    %v151 = vld [vmem:[%s1 + $0x1e0] sm:$0xff]
    %v152 = vld [vmem:[%s1 + $0x1e8] sm:$0xff]
    %v153 = vld [vmem:[%s1 + $0x1f0] sm:$0xff]
    %v154 = vld [vmem:[%s1 + $0x1f8] sm:$0xff]
    %v155 = vld [vmem:[%s1 + $0x200] sm:$0xff]
    %v156 = vld [vmem:[%s1 + $0x208] sm:$0xff]
    %v157 = vld [vmem:[%s1 + $0x210] sm:$0xff]
    %v158 = vld [vmem:[%s1 + $0x218] sm:$0xff]
    %v159 = vld [vmem:[%s1 + $0x220] sm:$0xff]
    %v160 = vld [vmem:[%s1 + $0x228] sm:$0xff]
    %v161 = vld [vmem:[%s1 + $0x230] sm:$0xff]
    %v162 = vld [vmem:[%s1 + $0x238] sm:$0xff]
    %v163 = vld [vmem:[%s1 + $0x240] sm:$0xff]
    %v164 = vld [vmem:[%s1 + $0x248] sm:$0xff]
    %v165 = vld [vmem:[%s1 + $0x250] sm:$0xff]
    %v166 = vld [vmem:[%s1 + $0x258] sm:$0xff]
    %v167 = vld [vmem:[%s1 + $0x260] sm:$0xff]
    %v168 = vld [vmem:[%s1 + $0x268] sm:$0xff]
    %v169 = vld [vmem:[%s1 + $0x270] sm:$0xff]
    %v170 = vld [vmem:[%s1 + $0x278] sm:$0xff]
    %v171 = vld [vmem:[%s1 + $0x280] sm:$0xff]
    %v172 = vld [vmem:[%s1 + $0x288] sm:$0xff]
    %v173 = vld [vmem:[%s1 + $0x290] sm:$0xff]
    %v174 = vld [vmem:[%s1 + $0x298] sm:$0xff]
    %v175 = vld [vmem:[%s1 + $0x2a0] sm:$0xff]
    %v176 = vld [vmem:[%s1 + $0x2a8] sm:$0xff]
    %v177 = vld [vmem:[%s1 + $0x2b0] sm:$0xff]
    %v178 = vld [vmem:[%s1 + $0x2b8] sm:$0xff]
    %v179 = vld [vmem:[%s1 + $0x2c0] sm:$0xff]
    %v180 = vld [vmem:[%s1 + $0x2c8] sm:$0xff]
    %v181 = vld [vmem:[%s1 + $0x2d0] sm:$0xff]
    %v182 = vld [vmem:[%s1 + $0x2d8] sm:$0xff]
    %v183 = vld [vmem:[%s1 + $0x2e0] sm:$0xff]
    %v184 = vld [vmem:[%s1 + $0x2e8] sm:$0xff]
    %v185 = vld [vmem:[%s1 + $0x2f0] sm:$0xff]
    %v186 = vld [vmem:[%s1 + $0x2f8] sm:$0xff]
    %v187 = vld [vmem:[%s1 + $0x300] sm:$0xff]
    %v188 = vld [vmem:[%s1 + $0x308] sm:$0xff]
    %v189 = vld [vmem:[%s1 + $0x310] sm:$0xff]
    %v190 = vld [vmem:[%s1 + $0x318] sm:$0xff]
    %v191 = vld [vmem:[%s1 + $0x320] sm:$0xff]
    %v192 = vld [vmem:[%s1 + $0x328] sm:$0xff]
    %v193 = vld [vmem:[%s1 + $0x330] sm:$0xff]
    %v194 = vld [vmem:[%s1 + $0x338] sm:$0xff]
    %v195 = vld [vmem:[%s1 + $0x340] sm:$0xff]
    %v196 = vld [vmem:[%s1 + $0x348] sm:$0xff]
    %v197 = vld [vmem:[%s1 + $0x350] sm:$0xff]
    %v198 = vld [vmem:[%s1 + $0x358] sm:$0xff]
    %v199 = vld [vmem:[%s1 + $0x360] sm:$0xff]
    %v200 = vld [vmem:[%s1 + $0x368] sm:$0xff]
    %v201 = vld [vmem:[%s1 + $0x370] sm:$0xff]
    %v202 = vld [vmem:[%s1 + $0x378] sm:$0xff]
    %s203 = sld [smem:[#allocation2]]
    %v204 = vpack.c.bf16 %v98, %v91
    %v205 = vpack.c.bf16 %v99, %v92
    %v206 = vpack.c.bf16 %v100, %v93
    %v207 = vpack.c.bf16 %v101, %v94
    %v208 = vpack.c.bf16 %v102, %v95
    %v209 = vpack.c.bf16 %v103, %v96
    %v210 = vpack.c.bf16 %v104, %v97
    %v211 = vpack.c.bf16 %v112, %v105
    %v212 = vpack.c.bf16 %v113, %v106
    %v213 = vpack.c.bf16 %v114, %v107
    %v214 = vpack.c.bf16 %v115, %v108
    %v215 = vpack.c.bf16 %v116, %v109
    %v216 = vpack.c.bf16 %v117, %v110
    %v217 = vpack.c.bf16 %v118, %v111
    %v218 = vpack.c.bf16 %v126, %v119
    %v219 = vpack.c.bf16 %v127, %v120
    %v220 = vpack.c.bf16 %v128, %v121
    %v221 = vpack.c.bf16 %v129, %v122
    %v222 = vpack.c.bf16 %v130, %v123
    %v223 = vpack.c.bf16 %v131, %v124
    %v224 = vpack.c.bf16 %v132, %v125
    %v225 = vpack.c.bf16 %v140, %v133
    %v226 = vpack.c.bf16 %v141, %v134
    %v227 = vpack.c.bf16 %v142, %v135
    %v228 = vpack.c.bf16 %v143, %v136
    %v229 = vpack.c.bf16 %v144, %v137
    %v230 = vpack.c.bf16 %v145, %v138
    %v231 = vpack.c.bf16 %v146, %v139
    %v232 = vpack.c.bf16 %v154, %v147
    %v233 = vpack.c.bf16 %v155, %v148
    %v234 = vpack.c.bf16 %v156, %v149
    %v235 = vpack.c.bf16 %v157, %v150
    %v236 = vpack.c.bf16 %v158, %v151
    %v237 = vpack.c.bf16 %v159, %v152
    %v238 = vpack.c.bf16 %v160, %v153
    %v239 = vpack.c.bf16 %v168, %v161
    %v240 = vpack.c.bf16 %v169, %v162
    %v241 = vpack.c.bf16 %v170, %v163
    %v242 = vpack.c.bf16 %v171, %v164
    %v243 = vpack.c.bf16 %v172, %v165
    %v244 = vpack.c.bf16 %v173, %v166
    %v245 = vpack.c.bf16 %v174, %v167
    %v246 = vpack.c.bf16 %v182, %v175
    %v247 = vpack.c.bf16 %v183, %v176
    %v248 = vpack.c.bf16 %v184, %v177
    %v249 = vpack.c.bf16 %v185, %v178
    %v250 = vpack.c.bf16 %v186, %v179
    %v251 = vpack.c.bf16 %v187, %v180
    %v252 = vpack.c.bf16 %v188, %v181
    %v253 = vpack.c.bf16 %v196, %v189
    %v254 = vpack.c.bf16 %v197, %v190
    %v255 = vpack.c.bf16 %v198, %v191
    %v256 = vpack.c.bf16 %v199, %v192
    %v257 = vpack.c.bf16 %v200, %v193
    %v258 = vpack.c.bf16 %v201, %v194
    %v259 = vpack.c.bf16 %v202, %v195
    %v260 = vld [vmem:[%s2] sm:$0xff]
    %v261 = vld [vmem:[%s2 + $0x8] sm:$0xff]
    %v262 = vld [vmem:[%s2 + $0x10] sm:$0xff]
    %v263 = vld [vmem:[%s2 + $0x18] sm:$0xff]
    %v264 = vld [vmem:[%s2 + $0x20] sm:$0xff]
    %v265 = vld [vmem:[%s2 + $0x28] sm:$0xff]
    %v266 = vld [vmem:[%s2 + $0x30] sm:$0xff]
    %v267 = vld [vmem:[%s2 + $0x38] sm:$0xff]
    %v268 = vld [vmem:[%s2 + $0x40] sm:$0xff]
    %v269 = vld [vmem:[%s2 + $0x48] sm:$0xff]
    %v270 = vld [vmem:[%s2 + $0x50] sm:$0xff]
    %v271 = vld [vmem:[%s2 + $0x58] sm:$0xff]
    %v272 = vld [vmem:[%s2 + $0x60] sm:$0xff]
    %v273 = vld [vmem:[%s2 + $0x68] sm:$0xff]
    %v274 = vld [vmem:[%s2 + $0x70] sm:$0xff]
    %v275 = vld [vmem:[%s2 + $0x78] sm:$0xff]
    %v276 = vld [vmem:[%s2 + $0x80] sm:$0xff]
    %v277 = vld [vmem:[%s2 + $0x88] sm:$0xff]
    %v278 = vld [vmem:[%s2 + $0x90] sm:$0xff]
    %v279 = vld [vmem:[%s2 + $0x98] sm:$0xff]
    %v280 = vld [vmem:[%s2 + $0xa0] sm:$0xff]
    %v281 = vld [vmem:[%s2 + $0xa8] sm:$0xff]
    %v282 = vld [vmem:[%s2 + $0xb0] sm:$0xff]
    %v283 = vld [vmem:[%s2 + $0xb8] sm:$0xff]
    %v284 = vld [vmem:[%s2 + $0xc0] sm:$0xff]
    %v285 = vld [vmem:[%s2 + $0xc8] sm:$0xff]
    %v286 = vld [vmem:[%s2 + $0xd0] sm:$0xff]
    %v287 = vld [vmem:[%s2 + $0xd8] sm:$0xff]
    %v288 = vld [vmem:[%s2 + $0xe0] sm:$0xff]
    %v289 = vld [vmem:[%s2 + $0xe8] sm:$0xff]
    %v290 = vld [vmem:[%s2 + $0xf0] sm:$0xff]
    %v291 = vld [vmem:[%s2 + $0xf8] sm:$0xff]
    %v292 = vld [vmem:[%s2 + $0x100] sm:$0xff]
    %v293 = vld [vmem:[%s2 + $0x108] sm:$0xff]
    %v294 = vld [vmem:[%s2 + $0x110] sm:$0xff]
    %v295 = vld [vmem:[%s2 + $0x118] sm:$0xff]
    %v296 = vld [vmem:[%s2 + $0x120] sm:$0xff]
    %v297 = vld [vmem:[%s2 + $0x128] sm:$0xff]
    %v298 = vld [vmem:[%s2 + $0x130] sm:$0xff]
    %v299 = vld [vmem:[%s2 + $0x138] sm:$0xff]
    %v300 = vld [vmem:[%s2 + $0x140] sm:$0xff]
    %v301 = vld [vmem:[%s2 + $0x148] sm:$0xff]
    %v302 = vld [vmem:[%s2 + $0x150] sm:$0xff]
    %v303 = vld [vmem:[%s2 + $0x158] sm:$0xff]
    %v304 = vld [vmem:[%s2 + $0x160] sm:$0xff]
    %v305 = vld [vmem:[%s2 + $0x168] sm:$0xff]
    %v306 = vld [vmem:[%s2 + $0x170] sm:$0xff]
    %v307 = vld [vmem:[%s2 + $0x178] sm:$0xff]
    %v308 = vld [vmem:[%s2 + $0x180] sm:$0xff]
    %v309 = vld [vmem:[%s2 + $0x188] sm:$0xff]
    %v310 = vld [vmem:[%s2 + $0x190] sm:$0xff]
    %v311 = vld [vmem:[%s2 + $0x198] sm:$0xff]
    %v312 = vld [vmem:[%s2 + $0x1a0] sm:$0xff]
    %v313 = vld [vmem:[%s2 + $0x1a8] sm:$0xff]
    %v314 = vld [vmem:[%s2 + $0x1b0] sm:$0xff]
    %v315 = vld [vmem:[%s2 + $0x1b8] sm:$0xff]
    %v316 = vld [vmem:[%s2 + $0x1c0] sm:$0xff]
    %v317 = vld [vmem:[%s2 + $0x1c8] sm:$0xff]
    %v318 = vld [vmem:[%s2 + $0x1d0] sm:$0xff]
    %v319 = vld [vmem:[%s2 + $0x1d8] sm:$0xff]
    %v320 = vld [vmem:[%s2 + $0x1e0] sm:$0xff]
    %v321 = vld [vmem:[%s2 + $0x1e8] sm:$0xff]
    %v322 = vld [vmem:[%s2 + $0x1f0] sm:$0xff]
    %v323 = vld [vmem:[%s2 + $0x1f8] sm:$0xff]
    %v324 = vld [vmem:[%s2 + $0x200] sm:$0xff]
    %v325 = vld [vmem:[%s2 + $0x208] sm:$0xff]
    %v326 = vld [vmem:[%s2 + $0x210] sm:$0xff]
    %v327 = vld [vmem:[%s2 + $0x218] sm:$0xff]
    %v328 = vld [vmem:[%s2 + $0x220] sm:$0xff]
    %v329 = vld [vmem:[%s2 + $0x228] sm:$0xff]
    %v330 = vld [vmem:[%s2 + $0x230] sm:$0xff]
    %v331 = vld [vmem:[%s2 + $0x238] sm:$0xff]
    %v332 = vld [vmem:[%s2 + $0x240] sm:$0xff]
    %v333 = vld [vmem:[%s2 + $0x248] sm:$0xff]
    %v334 = vld [vmem:[%s2 + $0x250] sm:$0xff]
    %v335 = vld [vmem:[%s2 + $0x258] sm:$0xff]
    %v336 = vld [vmem:[%s2 + $0x260] sm:$0xff]
    %v337 = vld [vmem:[%s2 + $0x268] sm:$0xff]
    %v338 = vld [vmem:[%s2 + $0x270] sm:$0xff]
    %v339 = vld [vmem:[%s2 + $0x278] sm:$0xff]
    %v340 = vld [vmem:[%s2 + $0x280] sm:$0xff]
    %v341 = vld [vmem:[%s2 + $0x288] sm:$0xff]
    %v342 = vld [vmem:[%s2 + $0x290] sm:$0xff]
    %v343 = vld [vmem:[%s2 + $0x298] sm:$0xff]
    %v344 = vld [vmem:[%s2 + $0x2a0] sm:$0xff]
    %v345 = vld [vmem:[%s2 + $0x2a8] sm:$0xff]
    %v346 = vld [vmem:[%s2 + $0x2b0] sm:$0xff]
    %v347 = vld [vmem:[%s2 + $0x2b8] sm:$0xff]
    %v348 = vld [vmem:[%s2 + $0x2c0] sm:$0xff]
    %v349 = vld [vmem:[%s2 + $0x2c8] sm:$0xff]
    %v350 = vld [vmem:[%s2 + $0x2d0] sm:$0xff]
    %v351 = vld [vmem:[%s2 + $0x2d8] sm:$0xff]
    %v352 = vld [vmem:[%s2 + $0x2e0] sm:$0xff]
    %v353 = vld [vmem:[%s2 + $0x2e8] sm:$0xff]
    %v354 = vld [vmem:[%s2 + $0x2f0] sm:$0xff]
    %v355 = vld [vmem:[%s2 + $0x2f8] sm:$0xff]
    %v356 = vld [vmem:[%s2 + $0x300] sm:$0xff]
    %v357 = vld [vmem:[%s2 + $0x308] sm:$0xff]
    %v358 = vld [vmem:[%s2 + $0x310] sm:$0xff]
    %v359 = vld [vmem:[%s2 + $0x318] sm:$0xff]
    %v360 = vld [vmem:[%s2 + $0x320] sm:$0xff]
    %v361 = vld [vmem:[%s2 + $0x328] sm:$0xff]
    %v362 = vld [vmem:[%s2 + $0x330] sm:$0xff]
    %v363 = vld [vmem:[%s2 + $0x338] sm:$0xff]
    %v364 = vld [vmem:[%s2 + $0x340] sm:$0xff]
    %v365 = vld [vmem:[%s2 + $0x348] sm:$0xff]
    %v366 = vld [vmem:[%s2 + $0x350] sm:$0xff]
    %v367 = vld [vmem:[%s2 + $0x358] sm:$0xff]
    %v368 = vld [vmem:[%s2 + $0x360] sm:$0xff]
    %v369 = vld [vmem:[%s2 + $0x368] sm:$0xff]
    %v370 = vld [vmem:[%s2 + $0x370] sm:$0xff]
    %v371 = vld [vmem:[%s2 + $0x378] sm:$0xff]
    %v372 = vld [vmem:[%s2 + $0x380] sm:$0xff]
    %v373 = vld [vmem:[%s2 + $0x388] sm:$0xff]
    %v374 = vld [vmem:[%s2 + $0x390] sm:$0xff]
    %v375 = vld [vmem:[%s2 + $0x398] sm:$0xff]
    %v376 = vld [vmem:[%s2 + $0x3a0] sm:$0xff]
    %v377 = vld [vmem:[%s2 + $0x3a8] sm:$0xff]
    %v378 = vld [vmem:[%s2 + $0x3b0] sm:$0xff]
    %v379 = vld [vmem:[%s2 + $0x3b8] sm:$0xff]
    %v380 = vld [vmem:[%s2 + $0x3c0] sm:$0xff]
    %v381 = vld [vmem:[%s2 + $0x3c8] sm:$0xff]
    %v382 = vld [vmem:[%s2 + $0x3d0] sm:$0xff]
    %v383 = vld [vmem:[%s2 + $0x3d8] sm:$0xff]
    %v384 = vld [vmem:[%s2 + $0x3e0] sm:$0xff]
    %v385 = vld [vmem:[%s2 + $0x3e8] sm:$0xff]
    %v386 = vld [vmem:[%s2 + $0x3f0] sm:$0xff]
    %v387 = vld [vmem:[%s2 + $0x3f8] sm:$0xff]
    %v388 = vld [vmem:[%s2 + $0x400] sm:$0xff]
    %v389 = vld [vmem:[%s2 + $0x408] sm:$0xff]
    %v390 = vld [vmem:[%s2 + $0x410] sm:$0xff]
    %v391 = vld [vmem:[%s2 + $0x418] sm:$0xff]
    %v392 = vld [vmem:[%s2 + $0x420] sm:$0xff]
    %v393 = vld [vmem:[%s2 + $0x428] sm:$0xff]
    %v394 = vld [vmem:[%s2 + $0x430] sm:$0xff]
    %v395 = vld [vmem:[%s2 + $0x438] sm:$0xff]
    %v396 = vld [vmem:[%s2 + $0x440] sm:$0xff]
    %v397 = vld [vmem:[%s2 + $0x448] sm:$0xff]
    %v398 = vld [vmem:[%s2 + $0x450] sm:$0xff]
    %v399 = vld [vmem:[%s2 + $0x458] sm:$0xff]
    %v400 = vld [vmem:[%s2 + $0x460] sm:$0xff]
    %v401 = vld [vmem:[%s2 + $0x468] sm:$0xff]
    %v402 = vld [vmem:[%s2 + $0x470] sm:$0xff]
    %v403 = vld [vmem:[%s2 + $0x478] sm:$0xff]
    %v404 = vld [vmem:[%s2 + $0x480] sm:$0xff]
    %v405 = vld [vmem:[%s2 + $0x488] sm:$0xff]
    %v406 = vld [vmem:[%s2 + $0x490] sm:$0xff]
    %v407 = vld [vmem:[%s2 + $0x498] sm:$0xff]
    %v408 = vld [vmem:[%s2 + $0x4a0] sm:$0xff]
    %v409 = vld [vmem:[%s2 + $0x4a8] sm:$0xff]
    %v410 = vld [vmem:[%s2 + $0x4b0] sm:$0xff]
    %v411 = vld [vmem:[%s2 + $0x4b8] sm:$0xff]
    %v412 = vld [vmem:[%s2 + $0x4c0] sm:$0xff]
    %v413 = vld [vmem:[%s2 + $0x4c8] sm:$0xff]
    %v414 = vld [vmem:[%s2 + $0x4d0] sm:$0xff]
    %v415 = vld [vmem:[%s2 + $0x4d8] sm:$0xff]
    %v416 = vld [vmem:[%s2 + $0x4e0] sm:$0xff]
    %v417 = vld [vmem:[%s2 + $0x4e8] sm:$0xff]
    %v418 = vld [vmem:[%s2 + $0x4f0] sm:$0xff]
    %v419 = vld [vmem:[%s2 + $0x4f8] sm:$0xff]
    %v420 = vld [vmem:[%s2 + $0x500] sm:$0xff]
    %v421 = vld [vmem:[%s2 + $0x508] sm:$0xff]
    %v422 = vld [vmem:[%s2 + $0x510] sm:$0xff]
    %v423 = vld [vmem:[%s2 + $0x518] sm:$0xff]
    %v424 = vld [vmem:[%s2 + $0x520] sm:$0xff]
    %v425 = vld [vmem:[%s2 + $0x528] sm:$0xff]
    %v426 = vld [vmem:[%s2 + $0x530] sm:$0xff]
    %v427 = vld [vmem:[%s2 + $0x538] sm:$0xff]
    %v428 = vld [vmem:[%s2 + $0x540] sm:$0xff]
    %v429 = vld [vmem:[%s2 + $0x548] sm:$0xff]
    %v430 = vld [vmem:[%s2 + $0x550] sm:$0xff]
    %v431 = vld [vmem:[%s2 + $0x558] sm:$0xff]
    %v432 = vld [vmem:[%s2 + $0x560] sm:$0xff]
    %v433 = vld [vmem:[%s2 + $0x568] sm:$0xff]
    %v434 = vld [vmem:[%s2 + $0x570] sm:$0xff]
    %v435 = vld [vmem:[%s2 + $0x578] sm:$0xff]
    %v436 = vld [vmem:[%s2 + $0x580] sm:$0xff]
    %v437 = vld [vmem:[%s2 + $0x588] sm:$0xff]
    %v438 = vld [vmem:[%s2 + $0x590] sm:$0xff]
    %v439 = vld [vmem:[%s2 + $0x598] sm:$0xff]
    %v440 = vld [vmem:[%s2 + $0x5a0] sm:$0xff]
    %v441 = vld [vmem:[%s2 + $0x5a8] sm:$0xff]
    %v442 = vld [vmem:[%s2 + $0x5b0] sm:$0xff]
    %v443 = vld [vmem:[%s2 + $0x5b8] sm:$0xff]
    %v444 = vld [vmem:[%s2 + $0x5c0] sm:$0xff]
    %v445 = vld [vmem:[%s2 + $0x5c8] sm:$0xff]
    %v446 = vld [vmem:[%s2 + $0x5d0] sm:$0xff]
    %v447 = vld [vmem:[%s2 + $0x5d8] sm:$0xff]
    %v448 = vld [vmem:[%s2 + $0x5e0] sm:$0xff]
    %v449 = vld [vmem:[%s2 + $0x5e8] sm:$0xff]
    %v450 = vld [vmem:[%s2 + $0x5f0] sm:$0xff]
    %v451 = vld [vmem:[%s2 + $0x5f8] sm:$0xff]
    %v452 = vld [vmem:[%s2 + $0x600] sm:$0xff]
    %v453 = vld [vmem:[%s2 + $0x608] sm:$0xff]
    %v454 = vld [vmem:[%s2 + $0x610] sm:$0xff]
    %v455 = vld [vmem:[%s2 + $0x618] sm:$0xff]
    %v652 = vunpack.c.l.b16 %v260
    %v653 = vunpack.c.h.b16 %v260
    %v654 = vunpack.c.l.b16 %v261
    %v655 = vunpack.c.h.b16 %v261
    %v656 = vunpack.c.l.b16 %v262
    %v657 = vunpack.c.h.b16 %v262
    %v658 = vunpack.c.l.b16 %v263
    %v659 = vunpack.c.h.b16 %v263
    %v660 = vunpack.c.l.b16 %v264
    %v661 = vunpack.c.h.b16 %v264
    %v662 = vunpack.c.l.b16 %v265
    %v663 = vunpack.c.h.b16 %v265
    %v664 = vunpack.c.l.b16 %v266
    %v665 = vunpack.c.h.b16 %v266
    %v666 = vunpack.c.l.b16 %v267
    %v667 = vunpack.c.h.b16 %v267
    %v668 = vunpack.c.l.b16 %v268
    %v669 = vunpack.c.h.b16 %v268
    %v670 = vunpack.c.l.b16 %v269
    %v671 = vunpack.c.h.b16 %v269
    %v672 = vunpack.c.l.b16 %v270
    %v673 = vunpack.c.h.b16 %v270
    %v674 = vunpack.c.l.b16 %v271
    %v675 = vunpack.c.h.b16 %v271
    %v676 = vunpack.c.l.b16 %v272
    %v677 = vunpack.c.h.b16 %v272
    %v678 = vunpack.c.l.b16 %v273
    %v679 = vunpack.c.h.b16 %v273
    %v680 = vunpack.c.l.b16 %v274
    %v681 = vunpack.c.h.b16 %v274
    %v682 = vunpack.c.l.b16 %v275
    %v683 = vunpack.c.h.b16 %v275
    %v684 = vunpack.c.l.b16 %v276
    %v685 = vunpack.c.h.b16 %v276
    %v686 = vunpack.c.l.b16 %v277
    %v687 = vunpack.c.h.b16 %v277
    %v688 = vunpack.c.l.b16 %v278
    %v689 = vunpack.c.h.b16 %v278
    %v690 = vunpack.c.l.b16 %v279
    %v691 = vunpack.c.h.b16 %v279
    %v692 = vunpack.c.l.b16 %v280
    %v693 = vunpack.c.h.b16 %v280
    %v694 = vunpack.c.l.b16 %v281
    %v695 = vunpack.c.h.b16 %v281
    %v696 = vunpack.c.l.b16 %v282
    %v697 = vunpack.c.h.b16 %v282
    %v698 = vunpack.c.l.b16 %v283
    %v699 = vunpack.c.h.b16 %v283
    %v700 = vunpack.c.l.b16 %v284
    %v701 = vunpack.c.h.b16 %v284
    %v702 = vunpack.c.l.b16 %v285
    %v703 = vunpack.c.h.b16 %v285
    %v704 = vunpack.c.l.b16 %v286
    %v705 = vunpack.c.h.b16 %v286
    %v706 = vunpack.c.l.b16 %v287
    %v707 = vunpack.c.h.b16 %v287
    %v708 = vunpack.c.l.b16 %v288
    %v709 = vunpack.c.h.b16 %v288
    %v710 = vunpack.c.l.b16 %v289
    %v711 = vunpack.c.h.b16 %v289
    %v712 = vunpack.c.l.b16 %v290
    %v713 = vunpack.c.h.b16 %v290
    %v714 = vunpack.c.l.b16 %v291
    %v715 = vunpack.c.h.b16 %v291
    %v716 = vunpack.c.l.b16 %v292
    %v717 = vunpack.c.h.b16 %v292
    %v718 = vunpack.c.l.b16 %v293
    %v719 = vunpack.c.h.b16 %v293
    %v720 = vunpack.c.l.b16 %v294
    %v721 = vunpack.c.h.b16 %v294
    %v722 = vunpack.c.l.b16 %v295
    %v723 = vunpack.c.h.b16 %v295
    %v724 = vunpack.c.l.b16 %v296
    %v725 = vunpack.c.h.b16 %v296
    %v726 = vunpack.c.l.b16 %v297
    %v727 = vunpack.c.h.b16 %v297
    %v728 = vunpack.c.l.b16 %v298
    %v729 = vunpack.c.h.b16 %v298
    %v730 = vunpack.c.l.b16 %v299
    %v731 = vunpack.c.h.b16 %v299
    %v732 = vunpack.c.l.b16 %v300
    %v733 = vunpack.c.h.b16 %v300
    %v734 = vunpack.c.l.b16 %v301
    %v735 = vunpack.c.h.b16 %v301
    %v736 = vunpack.c.l.b16 %v302
    %v737 = vunpack.c.h.b16 %v302
    %v738 = vunpack.c.l.b16 %v303
    %v739 = vunpack.c.h.b16 %v303
    %v740 = vunpack.c.l.b16 %v304
    %v741 = vunpack.c.h.b16 %v304
    %v742 = vunpack.c.l.b16 %v305
    %v743 = vunpack.c.h.b16 %v305
    %v744 = vunpack.c.l.b16 %v306
    %v745 = vunpack.c.h.b16 %v306
    %v746 = vunpack.c.l.b16 %v307
    %v747 = vunpack.c.h.b16 %v307
    %v748 = vunpack.c.l.b16 %v308
    %v749 = vunpack.c.h.b16 %v308
    %v750 = vunpack.c.l.b16 %v309
    %v751 = vunpack.c.h.b16 %v309
    %v752 = vunpack.c.l.b16 %v310
    %v753 = vunpack.c.h.b16 %v310
    %v754 = vunpack.c.l.b16 %v311
    %v755 = vunpack.c.h.b16 %v311
    %v756 = vunpack.c.l.b16 %v312
    %v757 = vunpack.c.h.b16 %v312
    %v758 = vunpack.c.l.b16 %v313
    %v759 = vunpack.c.h.b16 %v313
    %v760 = vunpack.c.l.b16 %v314
    %v761 = vunpack.c.h.b16 %v314
    %v762 = vunpack.c.l.b16 %v315
    %v763 = vunpack.c.h.b16 %v315
    %v764 = vunpack.c.l.b16 %v316
    %v765 = vunpack.c.h.b16 %v316
    %v766 = vunpack.c.l.b16 %v317
    %v767 = vunpack.c.h.b16 %v317
    %v768 = vunpack.c.l.b16 %v318
    %v769 = vunpack.c.h.b16 %v318
    %v770 = vunpack.c.l.b16 %v319
    %v771 = vunpack.c.h.b16 %v319
    %v772 = vunpack.c.l.b16 %v320
    %v773 = vunpack.c.h.b16 %v320
    %v774 = vunpack.c.l.b16 %v321
    %v775 = vunpack.c.h.b16 %v321
    %v776 = vunpack.c.l.b16 %v322
    %v777 = vunpack.c.h.b16 %v322
    %v778 = vunpack.c.l.b16 %v323
    %v779 = vunpack.c.h.b16 %v323
    %v780 = vunpack.c.l.b16 %v324
    %v781 = vunpack.c.h.b16 %v324
    %v782 = vunpack.c.l.b16 %v325
    %v783 = vunpack.c.h.b16 %v325
    %v784 = vunpack.c.l.b16 %v326
    %v785 = vunpack.c.h.b16 %v326
    %v786 = vunpack.c.l.b16 %v327
    %v787 = vunpack.c.h.b16 %v327
    %v788 = vunpack.c.l.b16 %v328
    %v789 = vunpack.c.h.b16 %v328
    %v790 = vunpack.c.l.b16 %v329
    %v791 = vunpack.c.h.b16 %v329
    %v792 = vunpack.c.l.b16 %v330
    %v793 = vunpack.c.h.b16 %v330
    %v794 = vunpack.c.l.b16 %v331
    %v795 = vunpack.c.h.b16 %v331
    %v796 = vunpack.c.l.b16 %v332
    %v797 = vunpack.c.h.b16 %v332
    %v798 = vunpack.c.l.b16 %v333
    %v799 = vunpack.c.h.b16 %v333
    %v800 = vunpack.c.l.b16 %v334
    %v801 = vunpack.c.h.b16 %v334
    %v802 = vunpack.c.l.b16 %v335
    %v803 = vunpack.c.h.b16 %v335
    %v804 = vunpack.c.l.b16 %v336
    %v805 = vunpack.c.h.b16 %v336
    %v806 = vunpack.c.l.b16 %v337
    %v807 = vunpack.c.h.b16 %v337
    %v808 = vunpack.c.l.b16 %v338
    %v809 = vunpack.c.h.b16 %v338
    %v810 = vunpack.c.l.b16 %v339
    %v811 = vunpack.c.h.b16 %v339
    %v812 = vunpack.c.l.b16 %v340
    %v813 = vunpack.c.h.b16 %v340
    %v814 = vunpack.c.l.b16 %v341
    %v815 = vunpack.c.h.b16 %v341
    %v816 = vunpack.c.l.b16 %v342
    %v817 = vunpack.c.h.b16 %v342
    %v818 = vunpack.c.l.b16 %v343
    %v819 = vunpack.c.h.b16 %v343
    %v820 = vunpack.c.l.b16 %v344
    %v821 = vunpack.c.h.b16 %v344
    %v822 = vunpack.c.l.b16 %v345
    %v823 = vunpack.c.h.b16 %v345
    %v824 = vunpack.c.l.b16 %v346
    %v825 = vunpack.c.h.b16 %v346
    %v826 = vunpack.c.l.b16 %v347
    %v827 = vunpack.c.h.b16 %v347
    %v828 = vunpack.c.l.b16 %v348
    %v829 = vunpack.c.h.b16 %v348
    %v830 = vunpack.c.l.b16 %v349
    %v831 = vunpack.c.h.b16 %v349
    %v832 = vunpack.c.l.b16 %v350
    %v833 = vunpack.c.h.b16 %v350
    %v834 = vunpack.c.l.b16 %v351
    %v835 = vunpack.c.h.b16 %v351
    %v836 = vunpack.c.l.b16 %v352
    %v837 = vunpack.c.h.b16 %v352
    %v838 = vunpack.c.l.b16 %v353
    %v839 = vunpack.c.h.b16 %v353
    %v840 = vunpack.c.l.b16 %v354
    %v841 = vunpack.c.h.b16 %v354
    %v842 = vunpack.c.l.b16 %v355
    %v843 = vunpack.c.h.b16 %v355
    %v844 = vunpack.c.l.b16 %v356
    %v845 = vunpack.c.h.b16 %v356
    %v846 = vunpack.c.l.b16 %v357
    %v847 = vunpack.c.h.b16 %v357
    %v848 = vunpack.c.l.b16 %v358
    %v849 = vunpack.c.h.b16 %v358
    %v850 = vunpack.c.l.b16 %v359
    %v851 = vunpack.c.h.b16 %v359
    %v852 = vunpack.c.l.b16 %v360
    %v853 = vunpack.c.h.b16 %v360
    %v854 = vunpack.c.l.b16 %v361
    %v855 = vunpack.c.h.b16 %v361
    %v856 = vunpack.c.l.b16 %v362
    %v857 = vunpack.c.h.b16 %v362
    %v858 = vunpack.c.l.b16 %v363
    %v859 = vunpack.c.h.b16 %v363
    %v860 = vunpack.c.l.b16 %v364
    %v861 = vunpack.c.h.b16 %v364
    %v862 = vunpack.c.l.b16 %v365
    %v863 = vunpack.c.h.b16 %v365
    %v864 = vunpack.c.l.b16 %v366
    %v865 = vunpack.c.h.b16 %v366
    %v866 = vunpack.c.l.b16 %v367
    %v867 = vunpack.c.h.b16 %v367
    %v868 = vunpack.c.l.b16 %v368
    %v869 = vunpack.c.h.b16 %v368
    %v870 = vunpack.c.l.b16 %v369
    %v871 = vunpack.c.h.b16 %v369
    %v872 = vunpack.c.l.b16 %v370
    %v873 = vunpack.c.h.b16 %v370
    %v874 = vunpack.c.l.b16 %v371
    %v875 = vunpack.c.h.b16 %v371
    %v876 = vunpack.c.l.b16 %v372
    %v877 = vunpack.c.h.b16 %v372
    %v878 = vunpack.c.l.b16 %v373
    %v879 = vunpack.c.h.b16 %v373
    %v880 = vunpack.c.l.b16 %v374
    %v881 = vunpack.c.h.b16 %v374
    %v882 = vunpack.c.l.b16 %v375
    %v883 = vunpack.c.h.b16 %v375
    %v884 = vunpack.c.l.b16 %v376
    %v885 = vunpack.c.h.b16 %v376
    %v886 = vunpack.c.l.b16 %v377
    %v887 = vunpack.c.h.b16 %v377
    %v888 = vunpack.c.l.b16 %v378
    %v889 = vunpack.c.h.b16 %v378
    %v890 = vunpack.c.l.b16 %v379
    %v891 = vunpack.c.h.b16 %v379
    %v892 = vunpack.c.l.b16 %v380
    %v893 = vunpack.c.h.b16 %v380
    %v894 = vunpack.c.l.b16 %v381
    %v895 = vunpack.c.h.b16 %v381
    %v896 = vunpack.c.l.b16 %v382
    %v897 = vunpack.c.h.b16 %v382
    %v898 = vunpack.c.l.b16 %v383
    %v899 = vunpack.c.h.b16 %v383
    %v900 = vunpack.c.l.b16 %v384
    %v901 = vunpack.c.h.b16 %v384
    %v902 = vunpack.c.l.b16 %v385
    %v903 = vunpack.c.h.b16 %v385
    %v904 = vunpack.c.l.b16 %v386
    %v905 = vunpack.c.h.b16 %v386
    %v906 = vunpack.c.l.b16 %v387
    %v907 = vunpack.c.h.b16 %v387
    %v908 = vunpack.c.l.b16 %v388
    %v909 = vunpack.c.h.b16 %v388
    %v910 = vunpack.c.l.b16 %v389
    %v911 = vunpack.c.h.b16 %v389
    %v912 = vunpack.c.l.b16 %v390
    %v913 = vunpack.c.h.b16 %v390
    %v914 = vunpack.c.l.b16 %v391
    %v915 = vunpack.c.h.b16 %v391
    %v916 = vunpack.c.l.b16 %v392
    %v917 = vunpack.c.h.b16 %v392
    %v918 = vunpack.c.l.b16 %v393
    %v919 = vunpack.c.h.b16 %v393
    %v920 = vunpack.c.l.b16 %v394
    %v921 = vunpack.c.h.b16 %v394
    %v922 = vunpack.c.l.b16 %v395
    %v923 = vunpack.c.h.b16 %v395
    %v924 = vunpack.c.l.b16 %v396
    %v925 = vunpack.c.h.b16 %v396
    %v926 = vunpack.c.l.b16 %v397
    %v927 = vunpack.c.h.b16 %v397
    %v928 = vunpack.c.l.b16 %v398
    %v929 = vunpack.c.h.b16 %v398
    %v930 = vunpack.c.l.b16 %v399
    %v931 = vunpack.c.h.b16 %v399
    %v932 = vunpack.c.l.b16 %v400
    %v933 = vunpack.c.h.b16 %v400
    %v934 = vunpack.c.l.b16 %v401
    %v935 = vunpack.c.h.b16 %v401
    %v936 = vunpack.c.l.b16 %v402
    %v937 = vunpack.c.h.b16 %v402
    %v938 = vunpack.c.l.b16 %v403
    %v939 = vunpack.c.h.b16 %v403
    %v940 = vunpack.c.l.b16 %v404
    %v941 = vunpack.c.h.b16 %v404
    %v942 = vunpack.c.l.b16 %v405
    %v943 = vunpack.c.h.b16 %v405
    %v944 = vunpack.c.l.b16 %v406
    %v945 = vunpack.c.h.b16 %v406
    %v946 = vunpack.c.l.b16 %v407
    %v947 = vunpack.c.h.b16 %v407
    %v948 = vunpack.c.l.b16 %v408
    %v949 = vunpack.c.h.b16 %v408
    %v950 = vunpack.c.l.b16 %v409
    %v951 = vunpack.c.h.b16 %v409
    %v952 = vunpack.c.l.b16 %v410
    %v953 = vunpack.c.h.b16 %v410
    %v954 = vunpack.c.l.b16 %v411
    %v955 = vunpack.c.h.b16 %v411
    %v956 = vunpack.c.l.b16 %v412
    %v957 = vunpack.c.h.b16 %v412
    %v958 = vunpack.c.l.b16 %v413
    %v959 = vunpack.c.h.b16 %v413
    %v960 = vunpack.c.l.b16 %v414
    %v961 = vunpack.c.h.b16 %v414
    %v962 = vunpack.c.l.b16 %v415
    %v963 = vunpack.c.h.b16 %v415
    %v964 = vunpack.c.l.b16 %v416
    %v965 = vunpack.c.h.b16 %v416
    %v966 = vunpack.c.l.b16 %v417
    %v967 = vunpack.c.h.b16 %v417
    %v968 = vunpack.c.l.b16 %v418
    %v969 = vunpack.c.h.b16 %v418
    %v970 = vunpack.c.l.b16 %v419
    %v971 = vunpack.c.h.b16 %v419
    %v972 = vunpack.c.l.b16 %v420
    %v973 = vunpack.c.h.b16 %v420
    %v974 = vunpack.c.l.b16 %v421
    %v975 = vunpack.c.h.b16 %v421
    %v976 = vunpack.c.l.b16 %v422
    %v977 = vunpack.c.h.b16 %v422
    %v978 = vunpack.c.l.b16 %v423
    %v979 = vunpack.c.h.b16 %v423
    %v980 = vunpack.c.l.b16 %v424
    %v981 = vunpack.c.h.b16 %v424
    %v982 = vunpack.c.l.b16 %v425
    %v983 = vunpack.c.h.b16 %v425
    %v984 = vunpack.c.l.b16 %v426
    %v985 = vunpack.c.h.b16 %v426
    %v986 = vunpack.c.l.b16 %v427
    %v987 = vunpack.c.h.b16 %v427
    %v988 = vunpack.c.l.b16 %v428
    %v989 = vunpack.c.h.b16 %v428
    %v990 = vunpack.c.l.b16 %v429
    %v991 = vunpack.c.h.b16 %v429
    %v992 = vunpack.c.l.b16 %v430
    %v993 = vunpack.c.h.b16 %v430
    %v994 = vunpack.c.l.b16 %v431
    %v995 = vunpack.c.h.b16 %v431
    %v996 = vunpack.c.l.b16 %v432
    %v997 = vunpack.c.h.b16 %v432
    %v998 = vunpack.c.l.b16 %v433
    %v999 = vunpack.c.h.b16 %v433
    %v1000 = vunpack.c.l.b16 %v434
    %v1001 = vunpack.c.h.b16 %v434
    %v1002 = vunpack.c.l.b16 %v435
    %v1003 = vunpack.c.h.b16 %v435
    %v1004 = vunpack.c.l.b16 %v436
    %v1005 = vunpack.c.h.b16 %v436
    %v1006 = vunpack.c.l.b16 %v437
    %v1007 = vunpack.c.h.b16 %v437
    %v1008 = vunpack.c.l.b16 %v438
    %v1009 = vunpack.c.h.b16 %v438
    %v1010 = vunpack.c.l.b16 %v439
    %v1011 = vunpack.c.h.b16 %v439
    %v1012 = vunpack.c.l.b16 %v440
    %v1013 = vunpack.c.h.b16 %v440
    %v1014 = vunpack.c.l.b16 %v441
    %v1015 = vunpack.c.h.b16 %v441
    %v1016 = vunpack.c.l.b16 %v442
    %v1017 = vunpack.c.h.b16 %v442
    %v1018 = vunpack.c.l.b16 %v443
    %v1019 = vunpack.c.h.b16 %v443
    %v1020 = vunpack.c.l.b16 %v444
    %v1021 = vunpack.c.h.b16 %v444
    %v1022 = vunpack.c.l.b16 %v445
    %v1023 = vunpack.c.h.b16 %v445
    %v1024 = vunpack.c.l.b16 %v446
    %v1025 = vunpack.c.h.b16 %v446
    %v1026 = vunpack.c.l.b16 %v447
    %v1027 = vunpack.c.h.b16 %v447
    %v1028 = vunpack.c.l.b16 %v448
    %v1029 = vunpack.c.h.b16 %v448
    %v1030 = vunpack.c.l.b16 %v449
    %v1031 = vunpack.c.h.b16 %v449
    %v1032 = vunpack.c.l.b16 %v450
    %v1033 = vunpack.c.h.b16 %v450
    %v1034 = vunpack.c.l.b16 %v451
    %v1035 = vunpack.c.h.b16 %v451
    %v1036 = vunpack.c.l.b16 %v452
    %v1037 = vunpack.c.h.b16 %v452
    %v1038 = vunpack.c.l.b16 %v453
    %v1039 = vunpack.c.h.b16 %v453
    %v1040 = vunpack.c.l.b16 %v454
    %v1041 = vunpack.c.h.b16 %v454
    %v1042 = vunpack.c.l.b16 %v455
    %v1043 = vunpack.c.h.b16 %v455
    %v1044 = vpack.c.b16 %v656, %v652
    %v1045 = vpack.c.b16 %v657, %v653
    %v1046 = vpack.c.b16 %v658, %v654
    %v1047 = vpack.c.b16 %v659, %v655
    %v1048 = vpack.c.b16 %v664, %v660
    %v1049 = vpack.c.b16 %v665, %v661
    %v1050 = vpack.c.b16 %v666, %v662
    %v1051 = vpack.c.b16 %v667, %v663
    %v1052 = vpack.c.b16 %v672, %v668
    %v1053 = vpack.c.b16 %v673, %v669
    %v1054 = vpack.c.b16 %v674, %v670
    %v1055 = vpack.c.b16 %v675, %v671
    %v1056 = vpack.c.b16 %v680, %v676
    %v1057 = vpack.c.b16 %v681, %v677
    %v1058 = vpack.c.b16 %v682, %v678
    %v1059 = vpack.c.b16 %v683, %v679
    %v1060 = vpack.c.b16 %v688, %v684
    %v1061 = vpack.c.b16 %v689, %v685
    %v1062 = vpack.c.b16 %v690, %v686
    %v1063 = vpack.c.b16 %v691, %v687
    %v1064 = vpack.c.b16 %v696, %v692
    %v1065 = vpack.c.b16 %v697, %v693
    %v1066 = vpack.c.b16 %v698, %v694
    %v1067 = vpack.c.b16 %v699, %v695
    %v1068 = vpack.c.b16 %v704, %v700
    %v1069 = vpack.c.b16 %v705, %v701
    %v1070 = vpack.c.b16 %v706, %v702
    %v1071 = vpack.c.b16 %v707, %v703
    %v1072 = vpack.c.b16 %v712, %v708
    %v1073 = vpack.c.b16 %v713, %v709
    %v1074 = vpack.c.b16 %v714, %v710
    %v1075 = vpack.c.b16 %v715, %v711
    %v1076 = vpack.c.b16 %v720, %v716
    %v1077 = vpack.c.b16 %v721, %v717
    %v1078 = vpack.c.b16 %v722, %v718
    %v1079 = vpack.c.b16 %v723, %v719
    %v1080 = vpack.c.b16 %v728, %v724
    %v1081 = vpack.c.b16 %v729, %v725
    %v1082 = vpack.c.b16 %v730, %v726
    %v1083 = vpack.c.b16 %v731, %v727
    %v1084 = vpack.c.b16 %v736, %v732
    %v1085 = vpack.c.b16 %v737, %v733
    %v1086 = vpack.c.b16 %v738, %v734
    %v1087 = vpack.c.b16 %v739, %v735
    %v1088 = vpack.c.b16 %v744, %v740
    %v1089 = vpack.c.b16 %v745, %v741
    %v1090 = vpack.c.b16 %v746, %v742
    %v1091 = vpack.c.b16 %v747, %v743
    %v1092 = vpack.c.b16 %v752, %v748
    %v1093 = vpack.c.b16 %v753, %v749
    %v1094 = vpack.c.b16 %v754, %v750
    %v1095 = vpack.c.b16 %v755, %v751
    %v1096 = vpack.c.b16 %v760, %v756
    %v1097 = vpack.c.b16 %v761, %v757
    %v1098 = vpack.c.b16 %v762, %v758
    %v1099 = vpack.c.b16 %v763, %v759
    %v1100 = vpack.c.b16 %v768, %v764
    %v1101 = vpack.c.b16 %v769, %v765
    %v1102 = vpack.c.b16 %v770, %v766
    %v1103 = vpack.c.b16 %v771, %v767
    %v1104 = vpack.c.b16 %v776, %v772
    %v1105 = vpack.c.b16 %v777, %v773
    %v1106 = vpack.c.b16 %v778, %v774
    %v1107 = vpack.c.b16 %v779, %v775
    %v1108 = vpack.c.b16 %v784, %v780
    %v1109 = vpack.c.b16 %v785, %v781
    %v1110 = vpack.c.b16 %v786, %v782
    %v1111 = vpack.c.b16 %v787, %v783
    %v1112 = vpack.c.b16 %v792, %v788
    %v1113 = vpack.c.b16 %v793, %v789
    %v1114 = vpack.c.b16 %v794, %v790
    %v1115 = vpack.c.b16 %v795, %v791
    %v1116 = vpack.c.b16 %v800, %v796
    %v1117 = vpack.c.b16 %v801, %v797
    %v1118 = vpack.c.b16 %v802, %v798
    %v1119 = vpack.c.b16 %v803, %v799
    %v1120 = vpack.c.b16 %v808, %v804
    %v1121 = vpack.c.b16 %v809, %v805
    %v1122 = vpack.c.b16 %v810, %v806
    %v1123 = vpack.c.b16 %v811, %v807
    %v1124 = vpack.c.b16 %v816, %v812
    %v1125 = vpack.c.b16 %v817, %v813
    %v1126 = vpack.c.b16 %v818, %v814
    %v1127 = vpack.c.b16 %v819, %v815
    %v1128 = vpack.c.b16 %v824, %v820
    %v1129 = vpack.c.b16 %v825, %v821
    %v1130 = vpack.c.b16 %v826, %v822
    %v1131 = vpack.c.b16 %v827, %v823
    %v1132 = vpack.c.b16 %v832, %v828
    %v1133 = vpack.c.b16 %v833, %v829
    %v1134 = vpack.c.b16 %v834, %v830
    %v1135 = vpack.c.b16 %v835, %v831
    %v1136 = vpack.c.b16 %v840, %v836
    %v1137 = vpack.c.b16 %v841, %v837
    %v1138 = vpack.c.b16 %v842, %v838
    %v1139 = vpack.c.b16 %v843, %v839
    %v1140 = vpack.c.b16 %v848, %v844
    %v1141 = vpack.c.b16 %v849, %v845
    %v1142 = vpack.c.b16 %v850, %v846
    %v1143 = vpack.c.b16 %v851, %v847
    %v1144 = vpack.c.b16 %v856, %v852
    %v1145 = vpack.c.b16 %v857, %v853
    %v1146 = vpack.c.b16 %v858, %v854
    %v1147 = vpack.c.b16 %v859, %v855
    %v1148 = vpack.c.b16 %v864, %v860
    %v1149 = vpack.c.b16 %v865, %v861
    %v1150 = vpack.c.b16 %v866, %v862
    %v1151 = vpack.c.b16 %v867, %v863
    %v1152 = vpack.c.b16 %v872, %v868
    %v1153 = vpack.c.b16 %v873, %v869
    %v1154 = vpack.c.b16 %v874, %v870
    %v1155 = vpack.c.b16 %v875, %v871
    %v1156 = vpack.c.b16 %v880, %v876
    %v1157 = vpack.c.b16 %v881, %v877
    %v1158 = vpack.c.b16 %v882, %v878
    %v1159 = vpack.c.b16 %v883, %v879
    %v1160 = vpack.c.b16 %v888, %v884
    %v1161 = vpack.c.b16 %v889, %v885
    %v1162 = vpack.c.b16 %v890, %v886
    %v1163 = vpack.c.b16 %v891, %v887
    %v1164 = vpack.c.b16 %v896, %v892
    %v1165 = vpack.c.b16 %v897, %v893
    %v1166 = vpack.c.b16 %v898, %v894
    %v1167 = vpack.c.b16 %v899, %v895
    %v1168 = vpack.c.b16 %v904, %v900
    %v1169 = vpack.c.b16 %v905, %v901
    %v1170 = vpack.c.b16 %v906, %v902
    %v1171 = vpack.c.b16 %v907, %v903
    %v1172 = vpack.c.b16 %v912, %v908
    %v1173 = vpack.c.b16 %v913, %v909
    %v1174 = vpack.c.b16 %v914, %v910
    %v1175 = vpack.c.b16 %v915, %v911
    %v1176 = vpack.c.b16 %v920, %v916
    %v1177 = vpack.c.b16 %v921, %v917
    %v1178 = vpack.c.b16 %v922, %v918
    %v1179 = vpack.c.b16 %v923, %v919
    %v1180 = vpack.c.b16 %v928, %v924
    %v1181 = vpack.c.b16 %v929, %v925
    %v1182 = vpack.c.b16 %v930, %v926
    %v1183 = vpack.c.b16 %v931, %v927
    %v1184 = vpack.c.b16 %v936, %v932
    %v1185 = vpack.c.b16 %v937, %v933
    %v1186 = vpack.c.b16 %v938, %v934
    %v1187 = vpack.c.b16 %v939, %v935
    %v1188 = vpack.c.b16 %v944, %v940
    %v1189 = vpack.c.b16 %v945, %v941
    %v1190 = vpack.c.b16 %v946, %v942
    %v1191 = vpack.c.b16 %v947, %v943
    %v1192 = vpack.c.b16 %v952, %v948
    %v1193 = vpack.c.b16 %v953, %v949
    %v1194 = vpack.c.b16 %v954, %v950
    %v1195 = vpack.c.b16 %v955, %v951
    %v1196 = vpack.c.b16 %v960, %v956
    %v1197 = vpack.c.b16 %v961, %v957
    %v1198 = vpack.c.b16 %v962, %v958
    %v1199 = vpack.c.b16 %v963, %v959
    %v1200 = vpack.c.b16 %v968, %v964
    %v1201 = vpack.c.b16 %v969, %v965
    %v1202 = vpack.c.b16 %v970, %v966
    %v1203 = vpack.c.b16 %v971, %v967
    %v1204 = vpack.c.b16 %v976, %v972
    %v1205 = vpack.c.b16 %v977, %v973
    %v1206 = vpack.c.b16 %v978, %v974
    %v1207 = vpack.c.b16 %v979, %v975
    %v1208 = vpack.c.b16 %v984, %v980
    %v1209 = vpack.c.b16 %v985, %v981
    %v1210 = vpack.c.b16 %v986, %v982
    %v1211 = vpack.c.b16 %v987, %v983
    %v1212 = vpack.c.b16 %v992, %v988
    %v1213 = vpack.c.b16 %v993, %v989
    %v1214 = vpack.c.b16 %v994, %v990
    %v1215 = vpack.c.b16 %v995, %v991
    %v1216 = vpack.c.b16 %v1000, %v996
    %v1217 = vpack.c.b16 %v1001, %v997
    %v1218 = vpack.c.b16 %v1002, %v998
    %v1219 = vpack.c.b16 %v1003, %v999
    %v1220 = vpack.c.b16 %v1008, %v1004
    %v1221 = vpack.c.b16 %v1009, %v1005
    %v1222 = vpack.c.b16 %v1010, %v1006
    %v1223 = vpack.c.b16 %v1011, %v1007
    %v1224 = vpack.c.b16 %v1016, %v1012
    %v1225 = vpack.c.b16 %v1017, %v1013
    %v1226 = vpack.c.b16 %v1018, %v1014
    %v1227 = vpack.c.b16 %v1019, %v1015
    %v1228 = vpack.c.b16 %v1024, %v1020
    %v1229 = vpack.c.b16 %v1025, %v1021
    %v1230 = vpack.c.b16 %v1026, %v1022
    %v1231 = vpack.c.b16 %v1027, %v1023
    %v1232 = vpack.c.b16 %v1032, %v1028
    %v1233 = vpack.c.b16 %v1033, %v1029
    %v1234 = vpack.c.b16 %v1034, %v1030
    %v1235 = vpack.c.b16 %v1035, %v1031
    %v1236 = vpack.c.b16 %v1040, %v1036
    %v1237 = vpack.c.b16 %v1041, %v1037
    %v1238 = vpack.c.b16 %v1042, %v1038
    %v1239 = vpack.c.b16 %v1043, %v1039
    %vm1436 = vcmask 130048
    %v1438 = vsel %vm1436, %v210, 0
    %v1441 = vsel %vm1436, %v217, 0
    %v1444 = vsel %vm1436, %v224, 0
    %v1447 = vsel %vm1436, %v231, 0
    %v1450 = vsel %vm1436, %v238, 0
    %v1453 = vsel %vm1436, %v245, 0
    %v1456 = vsel %vm1436, %v252, 0
    %v1459 = vsel %vm1436, %v259, 0
    %1461 = vmatpush.bf16.msra.mxu0 %v1072
    %1462 = vmatpush.bf16.msra.mxu0 %v1068
    %1463 = vmatpush.bf16.msra.mxu0 %v1064
    %1464 = vmatpush.bf16.msra.mxu0 %v1060
    %1465 = vmatpush.bf16.msra.mxu0 %v1056
    %1466 = vmatpush.bf16.msra.mxu0 %v1052
    %1467 = vmatpush.bf16.msra.mxu0 %v1048
    %1468 = vmatpush.bf16.msra.mxu0 %v1044
    %1469 = vmatmul.bf16.gmra.mxu0 %v204
    %v1470 = vpop.f32.mrf.mxu0
    %v1471 = vadd.f32 0.0, %v1470
    %v1472 = vpop.f32.mrf.mxu0
    %v1473 = vadd.f32 0.0, %v1472
    %1474 = vmatmul.bf16.gmra.mxu0 %v211
    %v1475 = vpop.f32.mrf.mxu0
    %v1476 = vadd.f32 0.0, %v1475
    %v1477 = vpop.f32.mrf.mxu0
    %v1478 = vadd.f32 0.0, %v1477
    %1479 = vmatmul.bf16.gmra.mxu0 %v218
    %v1480 = vpop.f32.mrf.mxu0
    %v1481 = vadd.f32 0.0, %v1480
    %v1482 = vpop.f32.mrf.mxu0
    %v1483 = vadd.f32 0.0, %v1482
    %1484 = vmatmul.bf16.gmra.mxu0 %v225
    %v1485 = vpop.f32.mrf.mxu0
    %v1486 = vadd.f32 0.0, %v1485
    %v1487 = vpop.f32.mrf.mxu0
    %v1488 = vadd.f32 0.0, %v1487
    %1489 = vmatmul.bf16.gmra.mxu0 %v232
    %v1490 = vpop.f32.mrf.mxu0
    %v1491 = vadd.f32 0.0, %v1490
    %v1492 = vpop.f32.mrf.mxu0
    %v1493 = vadd.f32 0.0, %v1492
    %1494 = vmatmul.bf16.gmra.mxu0 %v239
    %v1495 = vpop.f32.mrf.mxu0
    %v1496 = vadd.f32 0.0, %v1495
    %v1497 = vpop.f32.mrf.mxu0
    %v1498 = vadd.f32 0.0, %v1497
    %1499 = vmatmul.bf16.gmra.mxu0 %v246
    %v1500 = vpop.f32.mrf.mxu0
    %v1501 = vadd.f32 0.0, %v1500
    %v1502 = vpop.f32.mrf.mxu0
    %v1503 = vadd.f32 0.0, %v1502
    %1504 = vmatmul.bf16.gmra.mxu0 %v253
    %v1505 = vpop.f32.mrf.mxu0
    %v1506 = vadd.f32 0.0, %v1505
    %v1507 = vpop.f32.mrf.mxu0
    %v1508 = vadd.f32 0.0, %v1507
    %1509 = vdwg.mxu0
    %1510 = vmatpush.bf16.msra.mxu0 %v1104
    %1511 = vmatpush.bf16.msra.mxu0 %v1100
    %1512 = vmatpush.bf16.msra.mxu0 %v1096
    %1513 = vmatpush.bf16.msra.mxu0 %v1092
    %1514 = vmatpush.bf16.msra.mxu0 %v1088
    %1515 = vmatpush.bf16.msra.mxu0 %v1084
    %1516 = vmatpush.bf16.msra.mxu0 %v1080
    %1517 = vmatpush.bf16.msra.mxu0 %v1076
    %1518 = vmatmul.bf16.gmra.mxu0 %v205
    %v1519 = vpop.f32.mrf.mxu0
    %v1520 = vadd.f32 %v1471, %v1519
    %v1521 = vpop.f32.mrf.mxu0
    %v1522 = vadd.f32 %v1473, %v1521
    %1523 = vmatmul.bf16.gmra.mxu0 %v212
    %v1524 = vpop.f32.mrf.mxu0
    %v1525 = vadd.f32 %v1476, %v1524
    %v1526 = vpop.f32.mrf.mxu0
    %v1527 = vadd.f32 %v1478, %v1526
    %1528 = vmatmul.bf16.gmra.mxu0 %v219
    %v1529 = vpop.f32.mrf.mxu0
    %v1530 = vadd.f32 %v1481, %v1529
    %v1531 = vpop.f32.mrf.mxu0
    %v1532 = vadd.f32 %v1483, %v1531
    %1533 = vmatmul.bf16.gmra.mxu0 %v226
    %v1534 = vpop.f32.mrf.mxu0
    %v1535 = vadd.f32 %v1486, %v1534
    %v1536 = vpop.f32.mrf.mxu0
    %v1537 = vadd.f32 %v1488, %v1536
    %1538 = vmatmul.bf16.gmra.mxu0 %v233
    %v1539 = vpop.f32.mrf.mxu0
    %v1540 = vadd.f32 %v1491, %v1539
    %v1541 = vpop.f32.mrf.mxu0
    %v1542 = vadd.f32 %v1493, %v1541
    %1543 = vmatmul.bf16.gmra.mxu0 %v240
    %v1544 = vpop.f32.mrf.mxu0
    %v1545 = vadd.f32 %v1496, %v1544
    %v1546 = vpop.f32.mrf.mxu0
    %v1547 = vadd.f32 %v1498, %v1546
    %1548 = vmatmul.bf16.gmra.mxu0 %v247
    %v1549 = vpop.f32.mrf.mxu0
    %v1550 = vadd.f32 %v1501, %v1549
    %v1551 = vpop.f32.mrf.mxu0
    %v1552 = vadd.f32 %v1503, %v1551
    %1553 = vmatmul.bf16.gmra.mxu0 %v254
    %v1554 = vpop.f32.mrf.mxu0
    %v1555 = vadd.f32 %v1506, %v1554
    %v1556 = vpop.f32.mrf.mxu0
    %v1557 = vadd.f32 %v1508, %v1556
    %1558 = vdwg.mxu0
    %1559 = vmatpush.bf16.msra.mxu0 %v1136
    %1560 = vmatpush.bf16.msra.mxu0 %v1132
    %1561 = vmatpush.bf16.msra.mxu0 %v1128
    %1562 = vmatpush.bf16.msra.mxu0 %v1124
    %1563 = vmatpush.bf16.msra.mxu0 %v1120
    %1564 = vmatpush.bf16.msra.mxu0 %v1116
    %1565 = vmatpush.bf16.msra.mxu0 %v1112
    %1566 = vmatpush.bf16.msra.mxu0 %v1108
    %1567 = vmatmul.bf16.gmra.mxu0 %v206
    %v1568 = vpop.f32.mrf.mxu0
    %v1569 = vadd.f32 %v1520, %v1568
    %v1570 = vpop.f32.mrf.mxu0
    %v1571 = vadd.f32 %v1522, %v1570
    %1572 = vmatmul.bf16.gmra.mxu0 %v213
    %v1573 = vpop.f32.mrf.mxu0
    %v1574 = vadd.f32 %v1525, %v1573
    %v1575 = vpop.f32.mrf.mxu0
    %v1576 = vadd.f32 %v1527, %v1575
    %1577 = vmatmul.bf16.gmra.mxu0 %v220
    %v1578 = vpop.f32.mrf.mxu0
    %v1579 = vadd.f32 %v1530, %v1578
    %v1580 = vpop.f32.mrf.mxu0
    %v1581 = vadd.f32 %v1532, %v1580
    %1582 = vmatmul.bf16.gmra.mxu0 %v227
    %v1583 = vpop.f32.mrf.mxu0
    %v1584 = vadd.f32 %v1535, %v1583
    %v1585 = vpop.f32.mrf.mxu0
    %v1586 = vadd.f32 %v1537, %v1585
    %1587 = vmatmul.bf16.gmra.mxu0 %v234
    %v1588 = vpop.f32.mrf.mxu0
    %v1589 = vadd.f32 %v1540, %v1588
    %v1590 = vpop.f32.mrf.mxu0
    %v1591 = vadd.f32 %v1542, %v1590
    %1592 = vmatmul.bf16.gmra.mxu0 %v241
    %v1593 = vpop.f32.mrf.mxu0
    %v1594 = vadd.f32 %v1545, %v1593
    %v1595 = vpop.f32.mrf.mxu0
    %v1596 = vadd.f32 %v1547, %v1595
    %1597 = vmatmul.bf16.gmra.mxu0 %v248
    %v1598 = vpop.f32.mrf.mxu0
    %v1599 = vadd.f32 %v1550, %v1598
    %v1600 = vpop.f32.mrf.mxu0
    %v1601 = vadd.f32 %v1552, %v1600
    %1602 = vmatmul.bf16.gmra.mxu0 %v255
    %v1603 = vpop.f32.mrf.mxu0
    %v1604 = vadd.f32 %v1555, %v1603
    %v1605 = vpop.f32.mrf.mxu0
    %v1606 = vadd.f32 %v1557, %v1605
    %1607 = vdwg.mxu0
    %1608 = vmatpush.bf16.msra.mxu0 %v1168
    %1609 = vmatpush.bf16.msra.mxu0 %v1164
    %1610 = vmatpush.bf16.msra.mxu0 %v1160
    %1611 = vmatpush.bf16.msra.mxu0 %v1156
    %1612 = vmatpush.bf16.msra.mxu0 %v1152
    %1613 = vmatpush.bf16.msra.mxu0 %v1148
    %1614 = vmatpush.bf16.msra.mxu0 %v1144
    %1615 = vmatpush.bf16.msra.mxu0 %v1140
    %1616 = vmatmul.bf16.gmra.mxu0 %v207
    %v1617 = vpop.f32.mrf.mxu0
    %v1618 = vadd.f32 %v1569, %v1617
    %v1619 = vpop.f32.mrf.mxu0
    %v1620 = vadd.f32 %v1571, %v1619
    %1621 = vmatmul.bf16.gmra.mxu0 %v214
    %v1622 = vpop.f32.mrf.mxu0
    %v1623 = vadd.f32 %v1574, %v1622
    %v1624 = vpop.f32.mrf.mxu0
    %v1625 = vadd.f32 %v1576, %v1624
    %1626 = vmatmul.bf16.gmra.mxu0 %v221
    %v1627 = vpop.f32.mrf.mxu0
    %v1628 = vadd.f32 %v1579, %v1627
    %v1629 = vpop.f32.mrf.mxu0
    %v1630 = vadd.f32 %v1581, %v1629
    %1631 = vmatmul.bf16.gmra.mxu0 %v228
    %v1632 = vpop.f32.mrf.mxu0
    %v1633 = vadd.f32 %v1584, %v1632
    %v1634 = vpop.f32.mrf.mxu0
    %v1635 = vadd.f32 %v1586, %v1634
    %1636 = vmatmul.bf16.gmra.mxu0 %v235
    %v1637 = vpop.f32.mrf.mxu0
    %v1638 = vadd.f32 %v1589, %v1637
    %v1639 = vpop.f32.mrf.mxu0
    %v1640 = vadd.f32 %v1591, %v1639
    %1641 = vmatmul.bf16.gmra.mxu0 %v242
    %v1642 = vpop.f32.mrf.mxu0
    %v1643 = vadd.f32 %v1594, %v1642
    %v1644 = vpop.f32.mrf.mxu0
    %v1645 = vadd.f32 %v1596, %v1644
    %1646 = vmatmul.bf16.gmra.mxu0 %v249
    %v1647 = vpop.f32.mrf.mxu0
    %v1648 = vadd.f32 %v1599, %v1647
    %v1649 = vpop.f32.mrf.mxu0
    %v1650 = vadd.f32 %v1601, %v1649
    %1651 = vmatmul.bf16.gmra.mxu0 %v256
    %v1652 = vpop.f32.mrf.mxu0
    %v1653 = vadd.f32 %v1604, %v1652
    %v1654 = vpop.f32.mrf.mxu0
    %v1655 = vadd.f32 %v1606, %v1654
    %1656 = vdwg.mxu0
    %1657 = vmatpush.bf16.msra.mxu0 %v1200
    %1658 = vmatpush.bf16.msra.mxu0 %v1196
    %1659 = vmatpush.bf16.msra.mxu0 %v1192
    %1660 = vmatpush.bf16.msra.mxu0 %v1188
    %1661 = vmatpush.bf16.msra.mxu0 %v1184
    %1662 = vmatpush.bf16.msra.mxu0 %v1180
    %1663 = vmatpush.bf16.msra.mxu0 %v1176
    %1664 = vmatpush.bf16.msra.mxu0 %v1172
    %1665 = vmatmul.bf16.gmra.mxu0 %v208
    %v1666 = vpop.f32.mrf.mxu0
    %v1667 = vadd.f32 %v1618, %v1666
    %v1668 = vpop.f32.mrf.mxu0
    %v1669 = vadd.f32 %v1620, %v1668
    %1670 = vmatmul.bf16.gmra.mxu0 %v215
    %v1671 = vpop.f32.mrf.mxu0
    %v1672 = vadd.f32 %v1623, %v1671
    %v1673 = vpop.f32.mrf.mxu0
    %v1674 = vadd.f32 %v1625, %v1673
    %1675 = vmatmul.bf16.gmra.mxu0 %v222
    %v1676 = vpop.f32.mrf.mxu0
    %v1677 = vadd.f32 %v1628, %v1676
    %v1678 = vpop.f32.mrf.mxu0
    %v1679 = vadd.f32 %v1630, %v1678
    %1680 = vmatmul.bf16.gmra.mxu0 %v229
    %v1681 = vpop.f32.mrf.mxu0
    %v1682 = vadd.f32 %v1633, %v1681
    %v1683 = vpop.f32.mrf.mxu0
    %v1684 = vadd.f32 %v1635, %v1683
    %1685 = vmatmul.bf16.gmra.mxu0 %v236
    %v1686 = vpop.f32.mrf.mxu0
    %v1687 = vadd.f32 %v1638, %v1686
    %v1688 = vpop.f32.mrf.mxu0
    %v1689 = vadd.f32 %v1640, %v1688
    %1690 = vmatmul.bf16.gmra.mxu0 %v243
    %v1691 = vpop.f32.mrf.mxu0
    %v1692 = vadd.f32 %v1643, %v1691
    %v1693 = vpop.f32.mrf.mxu0
    %v1694 = vadd.f32 %v1645, %v1693
    %1695 = vmatmul.bf16.gmra.mxu0 %v250
    %v1696 = vpop.f32.mrf.mxu0
    %v1697 = vadd.f32 %v1648, %v1696
    %v1698 = vpop.f32.mrf.mxu0
    %v1699 = vadd.f32 %v1650, %v1698
    %1700 = vmatmul.bf16.gmra.mxu0 %v257
    %v1701 = vpop.f32.mrf.mxu0
    %v1702 = vadd.f32 %v1653, %v1701
    %v1703 = vpop.f32.mrf.mxu0
    %v1704 = vadd.f32 %v1655, %v1703
    %1705 = vdwg.mxu0
    %1706 = vmatpush.bf16.msra.mxu0 %v1232
    %1707 = vmatpush.bf16.msra.mxu0 %v1228
    %1708 = vmatpush.bf16.msra.mxu0 %v1224
    %1709 = vmatpush.bf16.msra.mxu0 %v1220
    %1710 = vmatpush.bf16.msra.mxu0 %v1216
    %1711 = vmatpush.bf16.msra.mxu0 %v1212
    %1712 = vmatpush.bf16.msra.mxu0 %v1208
    %1713 = vmatpush.bf16.msra.mxu0 %v1204
    %1714 = vmatmul.bf16.gmra.mxu0 %v209
    %v1715 = vpop.f32.mrf.mxu0
    %v1716 = vadd.f32 %v1667, %v1715
    %v1717 = vpop.f32.mrf.mxu0
    %v1718 = vadd.f32 %v1669, %v1717
    %1719 = vmatmul.bf16.gmra.mxu0 %v216
    %v1720 = vpop.f32.mrf.mxu0
    %v1721 = vadd.f32 %v1672, %v1720
    %v1722 = vpop.f32.mrf.mxu0
    %v1723 = vadd.f32 %v1674, %v1722
    %1724 = vmatmul.bf16.gmra.mxu0 %v223
    %v1725 = vpop.f32.mrf.mxu0
    %v1726 = vadd.f32 %v1677, %v1725
    %v1727 = vpop.f32.mrf.mxu0
    %v1728 = vadd.f32 %v1679, %v1727
    %1729 = vmatmul.bf16.gmra.mxu0 %v230
    %v1730 = vpop.f32.mrf.mxu0
    %v1731 = vadd.f32 %v1682, %v1730
    %v1732 = vpop.f32.mrf.mxu0
    %v1733 = vadd.f32 %v1684, %v1732
    %1734 = vmatmul.bf16.gmra.mxu0 %v237
    %v1735 = vpop.f32.mrf.mxu0
    %v1736 = vadd.f32 %v1687, %v1735
    %v1737 = vpop.f32.mrf.mxu0
    %v1738 = vadd.f32 %v1689, %v1737
    %1739 = vmatmul.bf16.gmra.mxu0 %v244
    %v1740 = vpop.f32.mrf.mxu0
    %v1741 = vadd.f32 %v1692, %v1740
    %v1742 = vpop.f32.mrf.mxu0
    %v1743 = vadd.f32 %v1694, %v1742
    %1744 = vmatmul.bf16.gmra.mxu0 %v251
    %v1745 = vpop.f32.mrf.mxu0
    %v1746 = vadd.f32 %v1697, %v1745
    %v1747 = vpop.f32.mrf.mxu0
    %v1748 = vadd.f32 %v1699, %v1747
    %1749 = vmatmul.bf16.gmra.mxu0 %v258
    %v1750 = vpop.f32.mrf.mxu0
    %v1751 = vadd.f32 %v1702, %v1750
    %v1752 = vpop.f32.mrf.mxu0
    %v1753 = vadd.f32 %v1704, %v1752
    %1754 = vdwg.mxu0
    %1755 = vmatpush.bf16.msra.mxu0 0
    %1756 = vmatpush.bf16.msra.mxu0 0
    %1757 = vmatpush.bf16.msra.mxu0 0
    %1758 = vmatpush.bf16.msra.mxu0 0
    %1759 = vmatpush.bf16.msra.mxu0 0
    %1760 = vmatpush.bf16.msra.mxu0 0
    %1761 = vmatpush.bf16.msra.mxu0 0
    %1762 = vmatpush.bf16.msra.mxu0 %v1236
    %1763 = vmatmul.bf16.gmra.mxu0 %v1438
    %v1764 = vpop.f32.mrf.mxu0
    %v1765 = vadd.f32 %v1716, %v1764
    %v1766 = vpop.f32.mrf.mxu0
    %v1767 = vadd.f32 %v1718, %v1766
    %1768 = vmatmul.bf16.gmra.mxu0 %v1441
    %v1769 = vpop.f32.mrf.mxu0
    %v1770 = vadd.f32 %v1721, %v1769
    %v1771 = vpop.f32.mrf.mxu0
    %v1772 = vadd.f32 %v1723, %v1771
    %1773 = vmatmul.bf16.gmra.mxu0 %v1444
    %v1774 = vpop.f32.mrf.mxu0
    %v1775 = vadd.f32 %v1726, %v1774
    %v1776 = vpop.f32.mrf.mxu0
    %v1777 = vadd.f32 %v1728, %v1776
    %1778 = vmatmul.bf16.gmra.mxu0 %v1447
    %v1779 = vpop.f32.mrf.mxu0
    %v1780 = vadd.f32 %v1731, %v1779
    %v1781 = vpop.f32.mrf.mxu0
    %v1782 = vadd.f32 %v1733, %v1781
    %1783 = vmatmul.bf16.gmra.mxu0 %v1450
    %v1784 = vpop.f32.mrf.mxu0
    %v1785 = vadd.f32 %v1736, %v1784
    %v1786 = vpop.f32.mrf.mxu0
    %v1787 = vadd.f32 %v1738, %v1786
    %1788 = vmatmul.bf16.gmra.mxu0 %v1453
    %v1789 = vpop.f32.mrf.mxu0
    %v1790 = vadd.f32 %v1741, %v1789
    %v1791 = vpop.f32.mrf.mxu0
    %v1792 = vadd.f32 %v1743, %v1791
    %1793 = vmatmul.bf16.gmra.mxu0 %v1456
    %v1794 = vpop.f32.mrf.mxu0
    %v1795 = vadd.f32 %v1746, %v1794
    %v1796 = vpop.f32.mrf.mxu0
    %v1797 = vadd.f32 %v1748, %v1796
    %1798 = vmatmul.bf16.gmra.mxu0 %v1459
    %v1799 = vpop.f32.mrf.mxu0
    %v1800 = vadd.f32 %v1751, %v1799
    %v1801 = vpop.f32.mrf.mxu0
    %v1802 = vadd.f32 %v1753, %v1801
    %1803 = vdwg.mxu0
    %1804 = vmatpush.bf16.msra.mxu0 %v1073
    %1805 = vmatpush.bf16.msra.mxu0 %v1069
    %1806 = vmatpush.bf16.msra.mxu0 %v1065
    %1807 = vmatpush.bf16.msra.mxu0 %v1061
    %1808 = vmatpush.bf16.msra.mxu0 %v1057
    %1809 = vmatpush.bf16.msra.mxu0 %v1053
    %1810 = vmatpush.bf16.msra.mxu0 %v1049
    %1811 = vmatpush.bf16.msra.mxu0 %v1045
    %1812 = vmatmul.bf16.gmra.mxu0 %v204
    %v1813 = vpop.f32.mrf.mxu0
    %v1814 = vadd.f32 0.0, %v1813
    %v1815 = vpop.f32.mrf.mxu0
    %v1816 = vadd.f32 0.0, %v1815
    %1817 = vmatmul.bf16.gmra.mxu0 %v211
    %v1818 = vpop.f32.mrf.mxu0
    %v1819 = vadd.f32 0.0, %v1818
    %v1820 = vpop.f32.mrf.mxu0
    %v1821 = vadd.f32 0.0, %v1820
    %1822 = vmatmul.bf16.gmra.mxu0 %v218
    %v1823 = vpop.f32.mrf.mxu0
    %v1824 = vadd.f32 0.0, %v1823
    %v1825 = vpop.f32.mrf.mxu0
    %v1826 = vadd.f32 0.0, %v1825
    %1827 = vmatmul.bf16.gmra.mxu0 %v225
    %v1828 = vpop.f32.mrf.mxu0
    %v1829 = vadd.f32 0.0, %v1828
    %v1830 = vpop.f32.mrf.mxu0
    %v1831 = vadd.f32 0.0, %v1830
    %1832 = vmatmul.bf16.gmra.mxu0 %v232
    %v1833 = vpop.f32.mrf.mxu0
    %v1834 = vadd.f32 0.0, %v1833
    %v1835 = vpop.f32.mrf.mxu0
    %v1836 = vadd.f32 0.0, %v1835
    %1837 = vmatmul.bf16.gmra.mxu0 %v239
    %v1838 = vpop.f32.mrf.mxu0
    %v1839 = vadd.f32 0.0, %v1838
    %v1840 = vpop.f32.mrf.mxu0
    %v1841 = vadd.f32 0.0, %v1840
    %1842 = vmatmul.bf16.gmra.mxu0 %v246
    %v1843 = vpop.f32.mrf.mxu0
    %v1844 = vadd.f32 0.0, %v1843
    %v1845 = vpop.f32.mrf.mxu0
    %v1846 = vadd.f32 0.0, %v1845
    %1847 = vmatmul.bf16.gmra.mxu0 %v253
    %v1848 = vpop.f32.mrf.mxu0
    %v1849 = vadd.f32 0.0, %v1848
    %v1850 = vpop.f32.mrf.mxu0
    %v1851 = vadd.f32 0.0, %v1850
    %1852 = vdwg.mxu0
    %1853 = vmatpush.bf16.msra.mxu0 %v1105
    %1854 = vmatpush.bf16.msra.mxu0 %v1101
    %1855 = vmatpush.bf16.msra.mxu0 %v1097
    %1856 = vmatpush.bf16.msra.mxu0 %v1093
    %1857 = vmatpush.bf16.msra.mxu0 %v1089
    %1858 = vmatpush.bf16.msra.mxu0 %v1085
    %1859 = vmatpush.bf16.msra.mxu0 %v1081
    %1860 = vmatpush.bf16.msra.mxu0 %v1077
    %1861 = vmatmul.bf16.gmra.mxu0 %v205
    %v1862 = vpop.f32.mrf.mxu0
    %v1863 = vadd.f32 %v1814, %v1862
    %v1864 = vpop.f32.mrf.mxu0
    %v1865 = vadd.f32 %v1816, %v1864
    %1866 = vmatmul.bf16.gmra.mxu0 %v212
    %v1867 = vpop.f32.mrf.mxu0
    %v1868 = vadd.f32 %v1819, %v1867
    %v1869 = vpop.f32.mrf.mxu0
    %v1870 = vadd.f32 %v1821, %v1869
    %1871 = vmatmul.bf16.gmra.mxu0 %v219
    %v1872 = vpop.f32.mrf.mxu0
    %v1873 = vadd.f32 %v1824, %v1872
    %v1874 = vpop.f32.mrf.mxu0
    %v1875 = vadd.f32 %v1826, %v1874
    %1876 = vmatmul.bf16.gmra.mxu0 %v226
    %v1877 = vpop.f32.mrf.mxu0
    %v1878 = vadd.f32 %v1829, %v1877
    %v1879 = vpop.f32.mrf.mxu0
    %v1880 = vadd.f32 %v1831, %v1879
    %1881 = vmatmul.bf16.gmra.mxu0 %v233
    %v1882 = vpop.f32.mrf.mxu0
    %v1883 = vadd.f32 %v1834, %v1882
    %v1884 = vpop.f32.mrf.mxu0
    %v1885 = vadd.f32 %v1836, %v1884
    %1886 = vmatmul.bf16.gmra.mxu0 %v240
    %v1887 = vpop.f32.mrf.mxu0
    %v1888 = vadd.f32 %v1839, %v1887
    %v1889 = vpop.f32.mrf.mxu0
    %v1890 = vadd.f32 %v1841, %v1889
    %1891 = vmatmul.bf16.gmra.mxu0 %v247
    %v1892 = vpop.f32.mrf.mxu0
    %v1893 = vadd.f32 %v1844, %v1892
    %v1894 = vpop.f32.mrf.mxu0
    %v1895 = vadd.f32 %v1846, %v1894
    %1896 = vmatmul.bf16.gmra.mxu0 %v254
    %v1897 = vpop.f32.mrf.mxu0
    %v1898 = vadd.f32 %v1849, %v1897
    %v1899 = vpop.f32.mrf.mxu0
    %v1900 = vadd.f32 %v1851, %v1899
    %1901 = vdwg.mxu0
    %1902 = vmatpush.bf16.msra.mxu0 %v1137
    %1903 = vmatpush.bf16.msra.mxu0 %v1133
    %1904 = vmatpush.bf16.msra.mxu0 %v1129
    %1905 = vmatpush.bf16.msra.mxu0 %v1125
    %1906 = vmatpush.bf16.msra.mxu0 %v1121
    %1907 = vmatpush.bf16.msra.mxu0 %v1117
    %1908 = vmatpush.bf16.msra.mxu0 %v1113
    %1909 = vmatpush.bf16.msra.mxu0 %v1109
    %1910 = vmatmul.bf16.gmra.mxu0 %v206
    %v1911 = vpop.f32.mrf.mxu0
    %v1912 = vadd.f32 %v1863, %v1911
    %v1913 = vpop.f32.mrf.mxu0
    %v1914 = vadd.f32 %v1865, %v1913
    %1915 = vmatmul.bf16.gmra.mxu0 %v213
    %v1916 = vpop.f32.mrf.mxu0
    %v1917 = vadd.f32 %v1868, %v1916
    %v1918 = vpop.f32.mrf.mxu0
    %v1919 = vadd.f32 %v1870, %v1918
    %1920 = vmatmul.bf16.gmra.mxu0 %v220
    %v1921 = vpop.f32.mrf.mxu0
    %v1922 = vadd.f32 %v1873, %v1921
    %v1923 = vpop.f32.mrf.mxu0
    %v1924 = vadd.f32 %v1875, %v1923
    %1925 = vmatmul.bf16.gmra.mxu0 %v227
    %v1926 = vpop.f32.mrf.mxu0
    %v1927 = vadd.f32 %v1878, %v1926
    %v1928 = vpop.f32.mrf.mxu0
    %v1929 = vadd.f32 %v1880, %v1928
    %1930 = vmatmul.bf16.gmra.mxu0 %v234
    %v1931 = vpop.f32.mrf.mxu0
    %v1932 = vadd.f32 %v1883, %v1931
    %v1933 = vpop.f32.mrf.mxu0
    %v1934 = vadd.f32 %v1885, %v1933
    %1935 = vmatmul.bf16.gmra.mxu0 %v241
    %v1936 = vpop.f32.mrf.mxu0
    %v1937 = vadd.f32 %v1888, %v1936
    %v1938 = vpop.f32.mrf.mxu0
    %v1939 = vadd.f32 %v1890, %v1938
    %1940 = vmatmul.bf16.gmra.mxu0 %v248
    %v1941 = vpop.f32.mrf.mxu0
    %v1942 = vadd.f32 %v1893, %v1941
    %v1943 = vpop.f32.mrf.mxu0
    %v1944 = vadd.f32 %v1895, %v1943
    %1945 = vmatmul.bf16.gmra.mxu0 %v255
    %v1946 = vpop.f32.mrf.mxu0
    %v1947 = vadd.f32 %v1898, %v1946
    %v1948 = vpop.f32.mrf.mxu0
    %v1949 = vadd.f32 %v1900, %v1948
    %1950 = vdwg.mxu0
    %1951 = vmatpush.bf16.msra.mxu0 %v1169
    %1952 = vmatpush.bf16.msra.mxu0 %v1165
    %1953 = vmatpush.bf16.msra.mxu0 %v1161
    %1954 = vmatpush.bf16.msra.mxu0 %v1157
    %1955 = vmatpush.bf16.msra.mxu0 %v1153
    %1956 = vmatpush.bf16.msra.mxu0 %v1149
    %1957 = vmatpush.bf16.msra.mxu0 %v1145
    %1958 = vmatpush.bf16.msra.mxu0 %v1141
    %1959 = vmatmul.bf16.gmra.mxu0 %v207
    %v1960 = vpop.f32.mrf.mxu0
    %v1961 = vadd.f32 %v1912, %v1960
    %v1962 = vpop.f32.mrf.mxu0
    %v1963 = vadd.f32 %v1914, %v1962
    %1964 = vmatmul.bf16.gmra.mxu0 %v214
    %v1965 = vpop.f32.mrf.mxu0
    %v1966 = vadd.f32 %v1917, %v1965
    %v1967 = vpop.f32.mrf.mxu0
    %v1968 = vadd.f32 %v1919, %v1967
    %1969 = vmatmul.bf16.gmra.mxu0 %v221
    %v1970 = vpop.f32.mrf.mxu0
    %v1971 = vadd.f32 %v1922, %v1970
    %v1972 = vpop.f32.mrf.mxu0
    %v1973 = vadd.f32 %v1924, %v1972
    %1974 = vmatmul.bf16.gmra.mxu0 %v228
    %v1975 = vpop.f32.mrf.mxu0
    %v1976 = vadd.f32 %v1927, %v1975
    %v1977 = vpop.f32.mrf.mxu0
    %v1978 = vadd.f32 %v1929, %v1977
    %1979 = vmatmul.bf16.gmra.mxu0 %v235
    %v1980 = vpop.f32.mrf.mxu0
    %v1981 = vadd.f32 %v1932, %v1980
    %v1982 = vpop.f32.mrf.mxu0
    %v1983 = vadd.f32 %v1934, %v1982
    %1984 = vmatmul.bf16.gmra.mxu0 %v242
    %v1985 = vpop.f32.mrf.mxu0
    %v1986 = vadd.f32 %v1937, %v1985
    %v1987 = vpop.f32.mrf.mxu0
    %v1988 = vadd.f32 %v1939, %v1987
    %1989 = vmatmul.bf16.gmra.mxu0 %v249
    %v1990 = vpop.f32.mrf.mxu0
    %v1991 = vadd.f32 %v1942, %v1990
    %v1992 = vpop.f32.mrf.mxu0
    %v1993 = vadd.f32 %v1944, %v1992
    %1994 = vmatmul.bf16.gmra.mxu0 %v256
    %v1995 = vpop.f32.mrf.mxu0
    %v1996 = vadd.f32 %v1947, %v1995
    %v1997 = vpop.f32.mrf.mxu0
    %v1998 = vadd.f32 %v1949, %v1997
    %1999 = vdwg.mxu0
    %2000 = vmatpush.bf16.msra.mxu0 %v1201
    %2001 = vmatpush.bf16.msra.mxu0 %v1197
    %2002 = vmatpush.bf16.msra.mxu0 %v1193
    %2003 = vmatpush.bf16.msra.mxu0 %v1189
    %2004 = vmatpush.bf16.msra.mxu0 %v1185
    %2005 = vmatpush.bf16.msra.mxu0 %v1181
    %2006 = vmatpush.bf16.msra.mxu0 %v1177
    %2007 = vmatpush.bf16.msra.mxu0 %v1173
    %2008 = vmatmul.bf16.gmra.mxu0 %v208
    %v2009 = vpop.f32.mrf.mxu0
    %v2010 = vadd.f32 %v1961, %v2009
    %v2011 = vpop.f32.mrf.mxu0
    %v2012 = vadd.f32 %v1963, %v2011
    %2013 = vmatmul.bf16.gmra.mxu0 %v215
    %v2014 = vpop.f32.mrf.mxu0
    %v2015 = vadd.f32 %v1966, %v2014
    %v2016 = vpop.f32.mrf.mxu0
    %v2017 = vadd.f32 %v1968, %v2016
    %2018 = vmatmul.bf16.gmra.mxu0 %v222
    %v2019 = vpop.f32.mrf.mxu0
    %v2020 = vadd.f32 %v1971, %v2019
    %v2021 = vpop.f32.mrf.mxu0
    %v2022 = vadd.f32 %v1973, %v2021
    %2023 = vmatmul.bf16.gmra.mxu0 %v229
    %v2024 = vpop.f32.mrf.mxu0
    %v2025 = vadd.f32 %v1976, %v2024
    %v2026 = vpop.f32.mrf.mxu0
    %v2027 = vadd.f32 %v1978, %v2026
    %2028 = vmatmul.bf16.gmra.mxu0 %v236
    %v2029 = vpop.f32.mrf.mxu0
    %v2030 = vadd.f32 %v1981, %v2029
    %v2031 = vpop.f32.mrf.mxu0
    %v2032 = vadd.f32 %v1983, %v2031
    %2033 = vmatmul.bf16.gmra.mxu0 %v243
    %v2034 = vpop.f32.mrf.mxu0
    %v2035 = vadd.f32 %v1986, %v2034
    %v2036 = vpop.f32.mrf.mxu0
    %v2037 = vadd.f32 %v1988, %v2036
    %2038 = vmatmul.bf16.gmra.mxu0 %v250
    %v2039 = vpop.f32.mrf.mxu0
    %v2040 = vadd.f32 %v1991, %v2039
    %v2041 = vpop.f32.mrf.mxu0
    %v2042 = vadd.f32 %v1993, %v2041
    %2043 = vmatmul.bf16.gmra.mxu0 %v257
    %v2044 = vpop.f32.mrf.mxu0
    %v2045 = vadd.f32 %v1996, %v2044
    %v2046 = vpop.f32.mrf.mxu0
    %v2047 = vadd.f32 %v1998, %v2046
    %2048 = vdwg.mxu0
    %2049 = vmatpush.bf16.msra.mxu0 %v1233
    %2050 = vmatpush.bf16.msra.mxu0 %v1229
    %2051 = vmatpush.bf16.msra.mxu0 %v1225
    %2052 = vmatpush.bf16.msra.mxu0 %v1221
    %2053 = vmatpush.bf16.msra.mxu0 %v1217
    %2054 = vmatpush.bf16.msra.mxu0 %v1213
    %2055 = vmatpush.bf16.msra.mxu0 %v1209
    %2056 = vmatpush.bf16.msra.mxu0 %v1205
    %2057 = vmatmul.bf16.gmra.mxu0 %v209
    %v2058 = vpop.f32.mrf.mxu0
    %v2059 = vadd.f32 %v2010, %v2058
    %v2060 = vpop.f32.mrf.mxu0
    %v2061 = vadd.f32 %v2012, %v2060
    %2062 = vmatmul.bf16.gmra.mxu0 %v216
    %v2063 = vpop.f32.mrf.mxu0
    %v2064 = vadd.f32 %v2015, %v2063
    %v2065 = vpop.f32.mrf.mxu0
    %v2066 = vadd.f32 %v2017, %v2065
    %2067 = vmatmul.bf16.gmra.mxu0 %v223
    %v2068 = vpop.f32.mrf.mxu0
    %v2069 = vadd.f32 %v2020, %v2068
    %v2070 = vpop.f32.mrf.mxu0
    %v2071 = vadd.f32 %v2022, %v2070
    %2072 = vmatmul.bf16.gmra.mxu0 %v230
    %v2073 = vpop.f32.mrf.mxu0
    %v2074 = vadd.f32 %v2025, %v2073
    %v2075 = vpop.f32.mrf.mxu0
    %v2076 = vadd.f32 %v2027, %v2075
    %2077 = vmatmul.bf16.gmra.mxu0 %v237
    %v2078 = vpop.f32.mrf.mxu0
    %v2079 = vadd.f32 %v2030, %v2078
    %v2080 = vpop.f32.mrf.mxu0
    %v2081 = vadd.f32 %v2032, %v2080
    %2082 = vmatmul.bf16.gmra.mxu0 %v244
    %v2083 = vpop.f32.mrf.mxu0
    %v2084 = vadd.f32 %v2035, %v2083
    %v2085 = vpop.f32.mrf.mxu0
    %v2086 = vadd.f32 %v2037, %v2085
    %2087 = vmatmul.bf16.gmra.mxu0 %v251
    %v2088 = vpop.f32.mrf.mxu0
    %v2089 = vadd.f32 %v2040, %v2088
    %v2090 = vpop.f32.mrf.mxu0
    %v2091 = vadd.f32 %v2042, %v2090
    %2092 = vmatmul.bf16.gmra.mxu0 %v258
    %v2093 = vpop.f32.mrf.mxu0
    %v2094 = vadd.f32 %v2045, %v2093
    %v2095 = vpop.f32.mrf.mxu0
    %v2096 = vadd.f32 %v2047, %v2095
    %2097 = vdwg.mxu0
    %2098 = vmatpush.bf16.msra.mxu0 0
    %2099 = vmatpush.bf16.msra.mxu0 0
    %2100 = vmatpush.bf16.msra.mxu0 0
    %2101 = vmatpush.bf16.msra.mxu0 0
    %2102 = vmatpush.bf16.msra.mxu0 0
    %2103 = vmatpush.bf16.msra.mxu0 0
    %2104 = vmatpush.bf16.msra.mxu0 0
    %2105 = vmatpush.bf16.msra.mxu0 %v1237
    %2106 = vmatmul.bf16.gmra.mxu0 %v1438
    %v2107 = vpop.f32.mrf.mxu0
    %v2108 = vadd.f32 %v2059, %v2107
    %v2109 = vpop.f32.mrf.mxu0
    %v2110 = vadd.f32 %v2061, %v2109
    %2111 = vmatmul.bf16.gmra.mxu0 %v1441
    %v2112 = vpop.f32.mrf.mxu0
    %v2113 = vadd.f32 %v2064, %v2112
    %v2114 = vpop.f32.mrf.mxu0
    %v2115 = vadd.f32 %v2066, %v2114
    %2116 = vmatmul.bf16.gmra.mxu0 %v1444
    %v2117 = vpop.f32.mrf.mxu0
    %v2118 = vadd.f32 %v2069, %v2117
    %v2119 = vpop.f32.mrf.mxu0
    %v2120 = vadd.f32 %v2071, %v2119
    %2121 = vmatmul.bf16.gmra.mxu0 %v1447
    %v2122 = vpop.f32.mrf.mxu0
    %v2123 = vadd.f32 %v2074, %v2122
    %v2124 = vpop.f32.mrf.mxu0
    %v2125 = vadd.f32 %v2076, %v2124
    %2126 = vmatmul.bf16.gmra.mxu0 %v1450
    %v2127 = vpop.f32.mrf.mxu0
    %v2128 = vadd.f32 %v2079, %v2127
    %v2129 = vpop.f32.mrf.mxu0
    %v2130 = vadd.f32 %v2081, %v2129
    %2131 = vmatmul.bf16.gmra.mxu0 %v1453
    %v2132 = vpop.f32.mrf.mxu0
    %v2133 = vadd.f32 %v2084, %v2132
    %v2134 = vpop.f32.mrf.mxu0
    %v2135 = vadd.f32 %v2086, %v2134
    %2136 = vmatmul.bf16.gmra.mxu0 %v1456
    %v2137 = vpop.f32.mrf.mxu0
    %v2138 = vadd.f32 %v2089, %v2137
    %v2139 = vpop.f32.mrf.mxu0
    %v2140 = vadd.f32 %v2091, %v2139
    %2141 = vmatmul.bf16.gmra.mxu0 %v1459
    %v2142 = vpop.f32.mrf.mxu0
    %v2143 = vadd.f32 %v2094, %v2142
    %v2144 = vpop.f32.mrf.mxu0
    %v2145 = vadd.f32 %v2096, %v2144
    %2146 = vdwg.mxu0
    %2147 = vmatpush.bf16.msra.mxu0 %v1074
    %2148 = vmatpush.bf16.msra.mxu0 %v1070
    %2149 = vmatpush.bf16.msra.mxu0 %v1066
    %2150 = vmatpush.bf16.msra.mxu0 %v1062
    %2151 = vmatpush.bf16.msra.mxu0 %v1058
    %2152 = vmatpush.bf16.msra.mxu0 %v1054
    %2153 = vmatpush.bf16.msra.mxu0 %v1050
    %2154 = vmatpush.bf16.msra.mxu0 %v1046
    %2155 = vmatmul.bf16.gmra.mxu0 %v204
    %v2156 = vpop.f32.mrf.mxu0
    %v2157 = vadd.f32 0.0, %v2156
    %v2158 = vpop.f32.mrf.mxu0
    %v2159 = vadd.f32 0.0, %v2158
    %2160 = vmatmul.bf16.gmra.mxu0 %v211
    %v2161 = vpop.f32.mrf.mxu0
    %v2162 = vadd.f32 0.0, %v2161
    %v2163 = vpop.f32.mrf.mxu0
    %v2164 = vadd.f32 0.0, %v2163
    %2165 = vmatmul.bf16.gmra.mxu0 %v218
    %v2166 = vpop.f32.mrf.mxu0
    %v2167 = vadd.f32 0.0, %v2166
    %v2168 = vpop.f32.mrf.mxu0
    %v2169 = vadd.f32 0.0, %v2168
    %2170 = vmatmul.bf16.gmra.mxu0 %v225
    %v2171 = vpop.f32.mrf.mxu0
    %v2172 = vadd.f32 0.0, %v2171
    %v2173 = vpop.f32.mrf.mxu0
    %v2174 = vadd.f32 0.0, %v2173
    %2175 = vmatmul.bf16.gmra.mxu0 %v232
    %v2176 = vpop.f32.mrf.mxu0
    %v2177 = vadd.f32 0.0, %v2176
    %v2178 = vpop.f32.mrf.mxu0
    %v2179 = vadd.f32 0.0, %v2178
    %2180 = vmatmul.bf16.gmra.mxu0 %v239
    %v2181 = vpop.f32.mrf.mxu0
    %v2182 = vadd.f32 0.0, %v2181
    %v2183 = vpop.f32.mrf.mxu0
    %v2184 = vadd.f32 0.0, %v2183
    %2185 = vmatmul.bf16.gmra.mxu0 %v246
    %v2186 = vpop.f32.mrf.mxu0
    %v2187 = vadd.f32 0.0, %v2186
    %v2188 = vpop.f32.mrf.mxu0
    %v2189 = vadd.f32 0.0, %v2188
    %2190 = vmatmul.bf16.gmra.mxu0 %v253
    %v2191 = vpop.f32.mrf.mxu0
    %v2192 = vadd.f32 0.0, %v2191
    %v2193 = vpop.f32.mrf.mxu0
    %v2194 = vadd.f32 0.0, %v2193
    %2195 = vdwg.mxu0
    %2196 = vmatpush.bf16.msra.mxu0 %v1106
    %2197 = vmatpush.bf16.msra.mxu0 %v1102
    %2198 = vmatpush.bf16.msra.mxu0 %v1098
    %2199 = vmatpush.bf16.msra.mxu0 %v1094
    %2200 = vmatpush.bf16.msra.mxu0 %v1090
    %2201 = vmatpush.bf16.msra.mxu0 %v1086
    %2202 = vmatpush.bf16.msra.mxu0 %v1082
    %2203 = vmatpush.bf16.msra.mxu0 %v1078
    %2204 = vmatmul.bf16.gmra.mxu0 %v205
    %v2205 = vpop.f32.mrf.mxu0
    %v2206 = vadd.f32 %v2157, %v2205
    %v2207 = vpop.f32.mrf.mxu0
    %v2208 = vadd.f32 %v2159, %v2207
    %2209 = vmatmul.bf16.gmra.mxu0 %v212
    %v2210 = vpop.f32.mrf.mxu0
    %v2211 = vadd.f32 %v2162, %v2210
    %v2212 = vpop.f32.mrf.mxu0
    %v2213 = vadd.f32 %v2164, %v2212
    %2214 = vmatmul.bf16.gmra.mxu0 %v219
    %v2215 = vpop.f32.mrf.mxu0
    %v2216 = vadd.f32 %v2167, %v2215
    %v2217 = vpop.f32.mrf.mxu0
    %v2218 = vadd.f32 %v2169, %v2217
    %2219 = vmatmul.bf16.gmra.mxu0 %v226
    %v2220 = vpop.f32.mrf.mxu0
    %v2221 = vadd.f32 %v2172, %v2220
    %v2222 = vpop.f32.mrf.mxu0
    %v2223 = vadd.f32 %v2174, %v2222
    %2224 = vmatmul.bf16.gmra.mxu0 %v233
    %v2225 = vpop.f32.mrf.mxu0
    %v2226 = vadd.f32 %v2177, %v2225
    %v2227 = vpop.f32.mrf.mxu0
    %v2228 = vadd.f32 %v2179, %v2227
    %2229 = vmatmul.bf16.gmra.mxu0 %v240
    %v2230 = vpop.f32.mrf.mxu0
    %v2231 = vadd.f32 %v2182, %v2230
    %v2232 = vpop.f32.mrf.mxu0
    %v2233 = vadd.f32 %v2184, %v2232
    %2234 = vmatmul.bf16.gmra.mxu0 %v247
    %v2235 = vpop.f32.mrf.mxu0
    %v2236 = vadd.f32 %v2187, %v2235
    %v2237 = vpop.f32.mrf.mxu0
    %v2238 = vadd.f32 %v2189, %v2237
    %2239 = vmatmul.bf16.gmra.mxu0 %v254
    %v2240 = vpop.f32.mrf.mxu0
    %v2241 = vadd.f32 %v2192, %v2240
    %v2242 = vpop.f32.mrf.mxu0
    %v2243 = vadd.f32 %v2194, %v2242
    %2244 = vdwg.mxu0
    %2245 = vmatpush.bf16.msra.mxu0 %v1138
    %2246 = vmatpush.bf16.msra.mxu0 %v1134
    %2247 = vmatpush.bf16.msra.mxu0 %v1130
    %2248 = vmatpush.bf16.msra.mxu0 %v1126
    %2249 = vmatpush.bf16.msra.mxu0 %v1122
    %2250 = vmatpush.bf16.msra.mxu0 %v1118
    %2251 = vmatpush.bf16.msra.mxu0 %v1114
    %2252 = vmatpush.bf16.msra.mxu0 %v1110
    %2253 = vmatmul.bf16.gmra.mxu0 %v206
    %v2254 = vpop.f32.mrf.mxu0
    %v2255 = vadd.f32 %v2206, %v2254
    %v2256 = vpop.f32.mrf.mxu0
    %v2257 = vadd.f32 %v2208, %v2256
    %2258 = vmatmul.bf16.gmra.mxu0 %v213
    %v2259 = vpop.f32.mrf.mxu0
    %v2260 = vadd.f32 %v2211, %v2259
    %v2261 = vpop.f32.mrf.mxu0
    %v2262 = vadd.f32 %v2213, %v2261
    %2263 = vmatmul.bf16.gmra.mxu0 %v220
    %v2264 = vpop.f32.mrf.mxu0
    %v2265 = vadd.f32 %v2216, %v2264
    %v2266 = vpop.f32.mrf.mxu0
    %v2267 = vadd.f32 %v2218, %v2266
    %2268 = vmatmul.bf16.gmra.mxu0 %v227
    %v2269 = vpop.f32.mrf.mxu0
    %v2270 = vadd.f32 %v2221, %v2269
    %v2271 = vpop.f32.mrf.mxu0
    %v2272 = vadd.f32 %v2223, %v2271
    %2273 = vmatmul.bf16.gmra.mxu0 %v234
    %v2274 = vpop.f32.mrf.mxu0
    %v2275 = vadd.f32 %v2226, %v2274
    %v2276 = vpop.f32.mrf.mxu0
    %v2277 = vadd.f32 %v2228, %v2276
    %2278 = vmatmul.bf16.gmra.mxu0 %v241
    %v2279 = vpop.f32.mrf.mxu0
    %v2280 = vadd.f32 %v2231, %v2279
    %v2281 = vpop.f32.mrf.mxu0
    %v2282 = vadd.f32 %v2233, %v2281
    %2283 = vmatmul.bf16.gmra.mxu0 %v248
    %v2284 = vpop.f32.mrf.mxu0
    %v2285 = vadd.f32 %v2236, %v2284
    %v2286 = vpop.f32.mrf.mxu0
    %v2287 = vadd.f32 %v2238, %v2286
    %2288 = vmatmul.bf16.gmra.mxu0 %v255
    %v2289 = vpop.f32.mrf.mxu0
    %v2290 = vadd.f32 %v2241, %v2289
    %v2291 = vpop.f32.mrf.mxu0
    %v2292 = vadd.f32 %v2243, %v2291
    %2293 = vdwg.mxu0
    %2294 = vmatpush.bf16.msra.mxu0 %v1170
    %2295 = vmatpush.bf16.msra.mxu0 %v1166
    %2296 = vmatpush.bf16.msra.mxu0 %v1162
    %2297 = vmatpush.bf16.msra.mxu0 %v1158
    %2298 = vmatpush.bf16.msra.mxu0 %v1154
    %2299 = vmatpush.bf16.msra.mxu0 %v1150
    %2300 = vmatpush.bf16.msra.mxu0 %v1146
    %2301 = vmatpush.bf16.msra.mxu0 %v1142
    %2302 = vmatmul.bf16.gmra.mxu0 %v207
    %v2303 = vpop.f32.mrf.mxu0
    %v2304 = vadd.f32 %v2255, %v2303
    %v2305 = vpop.f32.mrf.mxu0
    %v2306 = vadd.f32 %v2257, %v2305
    %2307 = vmatmul.bf16.gmra.mxu0 %v214
    %v2308 = vpop.f32.mrf.mxu0
    %v2309 = vadd.f32 %v2260, %v2308
    %v2310 = vpop.f32.mrf.mxu0
    %v2311 = vadd.f32 %v2262, %v2310
    %2312 = vmatmul.bf16.gmra.mxu0 %v221
    %v2313 = vpop.f32.mrf.mxu0
    %v2314 = vadd.f32 %v2265, %v2313
    %v2315 = vpop.f32.mrf.mxu0
    %v2316 = vadd.f32 %v2267, %v2315
    %2317 = vmatmul.bf16.gmra.mxu0 %v228
    %v2318 = vpop.f32.mrf.mxu0
    %v2319 = vadd.f32 %v2270, %v2318
    %v2320 = vpop.f32.mrf.mxu0
    %v2321 = vadd.f32 %v2272, %v2320
    %2322 = vmatmul.bf16.gmra.mxu0 %v235
    %v2323 = vpop.f32.mrf.mxu0
    %v2324 = vadd.f32 %v2275, %v2323
    %v2325 = vpop.f32.mrf.mxu0
    %v2326 = vadd.f32 %v2277, %v2325
    %2327 = vmatmul.bf16.gmra.mxu0 %v242
    %v2328 = vpop.f32.mrf.mxu0
    %v2329 = vadd.f32 %v2280, %v2328
    %v2330 = vpop.f32.mrf.mxu0
    %v2331 = vadd.f32 %v2282, %v2330
    %2332 = vmatmul.bf16.gmra.mxu0 %v249
    %v2333 = vpop.f32.mrf.mxu0
    %v2334 = vadd.f32 %v2285, %v2333
    %v2335 = vpop.f32.mrf.mxu0
    %v2336 = vadd.f32 %v2287, %v2335
    %2337 = vmatmul.bf16.gmra.mxu0 %v256
    %v2338 = vpop.f32.mrf.mxu0
    %v2339 = vadd.f32 %v2290, %v2338
    %v2340 = vpop.f32.mrf.mxu0
    %v2341 = vadd.f32 %v2292, %v2340
    %2342 = vdwg.mxu0
    %2343 = vmatpush.bf16.msra.mxu0 %v1202
    %2344 = vmatpush.bf16.msra.mxu0 %v1198
    %2345 = vmatpush.bf16.msra.mxu0 %v1194
    %2346 = vmatpush.bf16.msra.mxu0 %v1190
    %2347 = vmatpush.bf16.msra.mxu0 %v1186
    %2348 = vmatpush.bf16.msra.mxu0 %v1182
    %2349 = vmatpush.bf16.msra.mxu0 %v1178
    %2350 = vmatpush.bf16.msra.mxu0 %v1174
    %2351 = vmatmul.bf16.gmra.mxu0 %v208
    %v2352 = vpop.f32.mrf.mxu0
    %v2353 = vadd.f32 %v2304, %v2352
    %v2354 = vpop.f32.mrf.mxu0
    %v2355 = vadd.f32 %v2306, %v2354
    %2356 = vmatmul.bf16.gmra.mxu0 %v215
    %v2357 = vpop.f32.mrf.mxu0
    %v2358 = vadd.f32 %v2309, %v2357
    %v2359 = vpop.f32.mrf.mxu0
    %v2360 = vadd.f32 %v2311, %v2359
    %2361 = vmatmul.bf16.gmra.mxu0 %v222
    %v2362 = vpop.f32.mrf.mxu0
    %v2363 = vadd.f32 %v2314, %v2362
    %v2364 = vpop.f32.mrf.mxu0
    %v2365 = vadd.f32 %v2316, %v2364
    %2366 = vmatmul.bf16.gmra.mxu0 %v229
    %v2367 = vpop.f32.mrf.mxu0
    %v2368 = vadd.f32 %v2319, %v2367
    %v2369 = vpop.f32.mrf.mxu0
    %v2370 = vadd.f32 %v2321, %v2369
    %2371 = vmatmul.bf16.gmra.mxu0 %v236
    %v2372 = vpop.f32.mrf.mxu0
    %v2373 = vadd.f32 %v2324, %v2372
    %v2374 = vpop.f32.mrf.mxu0
    %v2375 = vadd.f32 %v2326, %v2374
    %2376 = vmatmul.bf16.gmra.mxu0 %v243
    %v2377 = vpop.f32.mrf.mxu0
    %v2378 = vadd.f32 %v2329, %v2377
    %v2379 = vpop.f32.mrf.mxu0
    %v2380 = vadd.f32 %v2331, %v2379
    %2381 = vmatmul.bf16.gmra.mxu0 %v250
    %v2382 = vpop.f32.mrf.mxu0
    %v2383 = vadd.f32 %v2334, %v2382
    %v2384 = vpop.f32.mrf.mxu0
    %v2385 = vadd.f32 %v2336, %v2384
    %2386 = vmatmul.bf16.gmra.mxu0 %v257
    %v2387 = vpop.f32.mrf.mxu0
    %v2388 = vadd.f32 %v2339, %v2387
    %v2389 = vpop.f32.mrf.mxu0
    %v2390 = vadd.f32 %v2341, %v2389
    %2391 = vdwg.mxu0
    %2392 = vmatpush.bf16.msra.mxu0 %v1234
    %2393 = vmatpush.bf16.msra.mxu0 %v1230
    %2394 = vmatpush.bf16.msra.mxu0 %v1226
    %2395 = vmatpush.bf16.msra.mxu0 %v1222
    %2396 = vmatpush.bf16.msra.mxu0 %v1218
    %2397 = vmatpush.bf16.msra.mxu0 %v1214
    %2398 = vmatpush.bf16.msra.mxu0 %v1210
    %2399 = vmatpush.bf16.msra.mxu0 %v1206
    %2400 = vmatmul.bf16.gmra.mxu0 %v209
    %v2401 = vpop.f32.mrf.mxu0
    %v2402 = vadd.f32 %v2353, %v2401
    %v2403 = vpop.f32.mrf.mxu0
    %v2404 = vadd.f32 %v2355, %v2403
    %2405 = vmatmul.bf16.gmra.mxu0 %v216
    %v2406 = vpop.f32.mrf.mxu0
    %v2407 = vadd.f32 %v2358, %v2406
    %v2408 = vpop.f32.mrf.mxu0
    %v2409 = vadd.f32 %v2360, %v2408
    %2410 = vmatmul.bf16.gmra.mxu0 %v223
    %v2411 = vpop.f32.mrf.mxu0
    %v2412 = vadd.f32 %v2363, %v2411
    %v2413 = vpop.f32.mrf.mxu0
    %v2414 = vadd.f32 %v2365, %v2413
    %2415 = vmatmul.bf16.gmra.mxu0 %v230
    %v2416 = vpop.f32.mrf.mxu0
    %v2417 = vadd.f32 %v2368, %v2416
    %v2418 = vpop.f32.mrf.mxu0
    %v2419 = vadd.f32 %v2370, %v2418
    %2420 = vmatmul.bf16.gmra.mxu0 %v237
    %v2421 = vpop.f32.mrf.mxu0
    %v2422 = vadd.f32 %v2373, %v2421
    %v2423 = vpop.f32.mrf.mxu0
    %v2424 = vadd.f32 %v2375, %v2423
    %2425 = vmatmul.bf16.gmra.mxu0 %v244
    %v2426 = vpop.f32.mrf.mxu0
    %v2427 = vadd.f32 %v2378, %v2426
    %v2428 = vpop.f32.mrf.mxu0
    %v2429 = vadd.f32 %v2380, %v2428
    %2430 = vmatmul.bf16.gmra.mxu0 %v251
    %v2431 = vpop.f32.mrf.mxu0
    %v2432 = vadd.f32 %v2383, %v2431
    %v2433 = vpop.f32.mrf.mxu0
    %v2434 = vadd.f32 %v2385, %v2433
    %2435 = vmatmul.bf16.gmra.mxu0 %v258
    %v2436 = vpop.f32.mrf.mxu0
    %v2437 = vadd.f32 %v2388, %v2436
    %v2438 = vpop.f32.mrf.mxu0
    %v2439 = vadd.f32 %v2390, %v2438
    %2440 = vdwg.mxu0
    %2441 = vmatpush.bf16.msra.mxu0 0
    %2442 = vmatpush.bf16.msra.mxu0 0
    %2443 = vmatpush.bf16.msra.mxu0 0
    %2444 = vmatpush.bf16.msra.mxu0 0
    %2445 = vmatpush.bf16.msra.mxu0 0
    %2446 = vmatpush.bf16.msra.mxu0 0
    %2447 = vmatpush.bf16.msra.mxu0 0
    %2448 = vmatpush.bf16.msra.mxu0 %v1238
    %2449 = vmatmul.bf16.gmra.mxu0 %v1438
    %v2450 = vpop.f32.mrf.mxu0
    %v2451 = vadd.f32 %v2402, %v2450
    %v2452 = vpop.f32.mrf.mxu0
    %v2453 = vadd.f32 %v2404, %v2452
    %2454 = vmatmul.bf16.gmra.mxu0 %v1441
    %v2455 = vpop.f32.mrf.mxu0
    %v2456 = vadd.f32 %v2407, %v2455
    %v2457 = vpop.f32.mrf.mxu0
    %v2458 = vadd.f32 %v2409, %v2457
    %2459 = vmatmul.bf16.gmra.mxu0 %v1444
    %v2460 = vpop.f32.mrf.mxu0
    %v2461 = vadd.f32 %v2412, %v2460
    %v2462 = vpop.f32.mrf.mxu0
    %v2463 = vadd.f32 %v2414, %v2462
    %2464 = vmatmul.bf16.gmra.mxu0 %v1447
    %v2465 = vpop.f32.mrf.mxu0
    %v2466 = vadd.f32 %v2417, %v2465
    %v2467 = vpop.f32.mrf.mxu0
    %v2468 = vadd.f32 %v2419, %v2467
    %2469 = vmatmul.bf16.gmra.mxu0 %v1450
    %v2470 = vpop.f32.mrf.mxu0
    %v2471 = vadd.f32 %v2422, %v2470
    %v2472 = vpop.f32.mrf.mxu0
    %v2473 = vadd.f32 %v2424, %v2472
    %2474 = vmatmul.bf16.gmra.mxu0 %v1453
    %v2475 = vpop.f32.mrf.mxu0
    %v2476 = vadd.f32 %v2427, %v2475
    %v2477 = vpop.f32.mrf.mxu0
    %v2478 = vadd.f32 %v2429, %v2477
    %2479 = vmatmul.bf16.gmra.mxu0 %v1456
    %v2480 = vpop.f32.mrf.mxu0
    %v2481 = vadd.f32 %v2432, %v2480
    %v2482 = vpop.f32.mrf.mxu0
    %v2483 = vadd.f32 %v2434, %v2482
    %2484 = vmatmul.bf16.gmra.mxu0 %v1459
    %v2485 = vpop.f32.mrf.mxu0
    %v2486 = vadd.f32 %v2437, %v2485
    %v2487 = vpop.f32.mrf.mxu0
    %v2488 = vadd.f32 %v2439, %v2487
    %2489 = vdwg.mxu0
    %2490 = vmatpush.bf16.msra.mxu0 %v1075
    %2491 = vmatpush.bf16.msra.mxu0 %v1071
    %2492 = vmatpush.bf16.msra.mxu0 %v1067
    %2493 = vmatpush.bf16.msra.mxu0 %v1063
    %2494 = vmatpush.bf16.msra.mxu0 %v1059
    %2495 = vmatpush.bf16.msra.mxu0 %v1055
    %2496 = vmatpush.bf16.msra.mxu0 %v1051
    %2497 = vmatpush.bf16.msra.mxu0 %v1047
    %2498 = vmatmul.bf16.gmra.mxu0 %v204
    %v2499 = vpop.f32.mrf.mxu0
    %v2500 = vadd.f32 0.0, %v2499
    %v2501 = vpop.f32.mrf.mxu0
    %v2502 = vadd.f32 0.0, %v2501
    %2503 = vmatmul.bf16.gmra.mxu0 %v211
    %v2504 = vpop.f32.mrf.mxu0
    %v2505 = vadd.f32 0.0, %v2504
    %v2506 = vpop.f32.mrf.mxu0
    %v2507 = vadd.f32 0.0, %v2506
    %2508 = vmatmul.bf16.gmra.mxu0 %v218
    %v2509 = vpop.f32.mrf.mxu0
    %v2510 = vadd.f32 0.0, %v2509
    %v2511 = vpop.f32.mrf.mxu0
    %v2512 = vadd.f32 0.0, %v2511
    %2513 = vmatmul.bf16.gmra.mxu0 %v225
    %v2514 = vpop.f32.mrf.mxu0
    %v2515 = vadd.f32 0.0, %v2514
    %v2516 = vpop.f32.mrf.mxu0
    %v2517 = vadd.f32 0.0, %v2516
    %2518 = vmatmul.bf16.gmra.mxu0 %v232
    %v2519 = vpop.f32.mrf.mxu0
    %v2520 = vadd.f32 0.0, %v2519
    %v2521 = vpop.f32.mrf.mxu0
    %v2522 = vadd.f32 0.0, %v2521
    %2523 = vmatmul.bf16.gmra.mxu0 %v239
    %v2524 = vpop.f32.mrf.mxu0
    %v2525 = vadd.f32 0.0, %v2524
    %v2526 = vpop.f32.mrf.mxu0
    %v2527 = vadd.f32 0.0, %v2526
    %2528 = vmatmul.bf16.gmra.mxu0 %v246
    %v2529 = vpop.f32.mrf.mxu0
    %v2530 = vadd.f32 0.0, %v2529
    %v2531 = vpop.f32.mrf.mxu0
    %v2532 = vadd.f32 0.0, %v2531
    %2533 = vmatmul.bf16.gmra.mxu0 %v253
    %v2534 = vpop.f32.mrf.mxu0
    %v2535 = vadd.f32 0.0, %v2534
    %v2536 = vpop.f32.mrf.mxu0
    %v2537 = vadd.f32 0.0, %v2536
    %2538 = vdwg.mxu0
    %2539 = vmatpush.bf16.msra.mxu0 %v1107
    %2540 = vmatpush.bf16.msra.mxu0 %v1103
    %2541 = vmatpush.bf16.msra.mxu0 %v1099
    %2542 = vmatpush.bf16.msra.mxu0 %v1095
    %2543 = vmatpush.bf16.msra.mxu0 %v1091
    %2544 = vmatpush.bf16.msra.mxu0 %v1087
    %2545 = vmatpush.bf16.msra.mxu0 %v1083
    %2546 = vmatpush.bf16.msra.mxu0 %v1079
    %2547 = vmatmul.bf16.gmra.mxu0 %v205
    %v2548 = vpop.f32.mrf.mxu0
    %v2549 = vadd.f32 %v2500, %v2548
    %v2550 = vpop.f32.mrf.mxu0
    %v2551 = vadd.f32 %v2502, %v2550
    %2552 = vmatmul.bf16.gmra.mxu0 %v212
    %v2553 = vpop.f32.mrf.mxu0
    %v2554 = vadd.f32 %v2505, %v2553
    %v2555 = vpop.f32.mrf.mxu0
    %v2556 = vadd.f32 %v2507, %v2555
    %2557 = vmatmul.bf16.gmra.mxu0 %v219
    %v2558 = vpop.f32.mrf.mxu0
    %v2559 = vadd.f32 %v2510, %v2558
    %v2560 = vpop.f32.mrf.mxu0
    %v2561 = vadd.f32 %v2512, %v2560
    %2562 = vmatmul.bf16.gmra.mxu0 %v226
    %v2563 = vpop.f32.mrf.mxu0
    %v2564 = vadd.f32 %v2515, %v2563
    %v2565 = vpop.f32.mrf.mxu0
    %v2566 = vadd.f32 %v2517, %v2565
    %2567 = vmatmul.bf16.gmra.mxu0 %v233
    %v2568 = vpop.f32.mrf.mxu0
    %v2569 = vadd.f32 %v2520, %v2568
    %v2570 = vpop.f32.mrf.mxu0
    %v2571 = vadd.f32 %v2522, %v2570
    %2572 = vmatmul.bf16.gmra.mxu0 %v240
    %v2573 = vpop.f32.mrf.mxu0
    %v2574 = vadd.f32 %v2525, %v2573
    %v2575 = vpop.f32.mrf.mxu0
    %v2576 = vadd.f32 %v2527, %v2575
    %2577 = vmatmul.bf16.gmra.mxu0 %v247
    %v2578 = vpop.f32.mrf.mxu0
    %v2579 = vadd.f32 %v2530, %v2578
    %v2580 = vpop.f32.mrf.mxu0
    %v2581 = vadd.f32 %v2532, %v2580
    %2582 = vmatmul.bf16.gmra.mxu0 %v254
    %v2583 = vpop.f32.mrf.mxu0
    %v2584 = vadd.f32 %v2535, %v2583
    %v2585 = vpop.f32.mrf.mxu0
    %v2586 = vadd.f32 %v2537, %v2585
    %2587 = vdwg.mxu0
    %2588 = vmatpush.bf16.msra.mxu0 %v1139
    %2589 = vmatpush.bf16.msra.mxu0 %v1135
    %2590 = vmatpush.bf16.msra.mxu0 %v1131
    %2591 = vmatpush.bf16.msra.mxu0 %v1127
    %2592 = vmatpush.bf16.msra.mxu0 %v1123
    %2593 = vmatpush.bf16.msra.mxu0 %v1119
    %2594 = vmatpush.bf16.msra.mxu0 %v1115
    %2595 = vmatpush.bf16.msra.mxu0 %v1111
    %2596 = vmatmul.bf16.gmra.mxu0 %v206
    %v2597 = vpop.f32.mrf.mxu0
    %v2598 = vadd.f32 %v2549, %v2597
    %v2599 = vpop.f32.mrf.mxu0
    %v2600 = vadd.f32 %v2551, %v2599
    %2601 = vmatmul.bf16.gmra.mxu0 %v213
    %v2602 = vpop.f32.mrf.mxu0
    %v2603 = vadd.f32 %v2554, %v2602
    %v2604 = vpop.f32.mrf.mxu0
    %v2605 = vadd.f32 %v2556, %v2604
    %2606 = vmatmul.bf16.gmra.mxu0 %v220
    %v2607 = vpop.f32.mrf.mxu0
    %v2608 = vadd.f32 %v2559, %v2607
    %v2609 = vpop.f32.mrf.mxu0
    %v2610 = vadd.f32 %v2561, %v2609
    %2611 = vmatmul.bf16.gmra.mxu0 %v227
    %v2612 = vpop.f32.mrf.mxu0
    %v2613 = vadd.f32 %v2564, %v2612
    %v2614 = vpop.f32.mrf.mxu0
    %v2615 = vadd.f32 %v2566, %v2614
    %2616 = vmatmul.bf16.gmra.mxu0 %v234
    %v2617 = vpop.f32.mrf.mxu0
    %v2618 = vadd.f32 %v2569, %v2617
    %v2619 = vpop.f32.mrf.mxu0
    %v2620 = vadd.f32 %v2571, %v2619
    %2621 = vmatmul.bf16.gmra.mxu0 %v241
    %v2622 = vpop.f32.mrf.mxu0
    %v2623 = vadd.f32 %v2574, %v2622
    %v2624 = vpop.f32.mrf.mxu0
    %v2625 = vadd.f32 %v2576, %v2624
    %2626 = vmatmul.bf16.gmra.mxu0 %v248
    %v2627 = vpop.f32.mrf.mxu0
    %v2628 = vadd.f32 %v2579, %v2627
    %v2629 = vpop.f32.mrf.mxu0
    %v2630 = vadd.f32 %v2581, %v2629
    %2631 = vmatmul.bf16.gmra.mxu0 %v255
    %v2632 = vpop.f32.mrf.mxu0
    %v2633 = vadd.f32 %v2584, %v2632
    %v2634 = vpop.f32.mrf.mxu0
    %v2635 = vadd.f32 %v2586, %v2634
    %2636 = vdwg.mxu0
    %2637 = vmatpush.bf16.msra.mxu0 %v1171
    %2638 = vmatpush.bf16.msra.mxu0 %v1167
    %2639 = vmatpush.bf16.msra.mxu0 %v1163
    %2640 = vmatpush.bf16.msra.mxu0 %v1159
    %2641 = vmatpush.bf16.msra.mxu0 %v1155
    %2642 = vmatpush.bf16.msra.mxu0 %v1151
    %2643 = vmatpush.bf16.msra.mxu0 %v1147
    %2644 = vmatpush.bf16.msra.mxu0 %v1143
    %2645 = vmatmul.bf16.gmra.mxu0 %v207
    %v2646 = vpop.f32.mrf.mxu0
    %v2647 = vadd.f32 %v2598, %v2646
    %v2648 = vpop.f32.mrf.mxu0
    %v2649 = vadd.f32 %v2600, %v2648
    %2650 = vmatmul.bf16.gmra.mxu0 %v214
    %v2651 = vpop.f32.mrf.mxu0
    %v2652 = vadd.f32 %v2603, %v2651
    %v2653 = vpop.f32.mrf.mxu0
    %v2654 = vadd.f32 %v2605, %v2653
    %2655 = vmatmul.bf16.gmra.mxu0 %v221
    %v2656 = vpop.f32.mrf.mxu0
    %v2657 = vadd.f32 %v2608, %v2656
    %v2658 = vpop.f32.mrf.mxu0
    %v2659 = vadd.f32 %v2610, %v2658
    %2660 = vmatmul.bf16.gmra.mxu0 %v228
    %v2661 = vpop.f32.mrf.mxu0
    %v2662 = vadd.f32 %v2613, %v2661
    %v2663 = vpop.f32.mrf.mxu0
    %v2664 = vadd.f32 %v2615, %v2663
    %2665 = vmatmul.bf16.gmra.mxu0 %v235
    %v2666 = vpop.f32.mrf.mxu0
    %v2667 = vadd.f32 %v2618, %v2666
    %v2668 = vpop.f32.mrf.mxu0
    %v2669 = vadd.f32 %v2620, %v2668
    %2670 = vmatmul.bf16.gmra.mxu0 %v242
    %v2671 = vpop.f32.mrf.mxu0
    %v2672 = vadd.f32 %v2623, %v2671
    %v2673 = vpop.f32.mrf.mxu0
    %v2674 = vadd.f32 %v2625, %v2673
    %2675 = vmatmul.bf16.gmra.mxu0 %v249
    %v2676 = vpop.f32.mrf.mxu0
    %v2677 = vadd.f32 %v2628, %v2676
    %v2678 = vpop.f32.mrf.mxu0
    %v2679 = vadd.f32 %v2630, %v2678
    %2680 = vmatmul.bf16.gmra.mxu0 %v256
    %v2681 = vpop.f32.mrf.mxu0
    %v2682 = vadd.f32 %v2633, %v2681
    %v2683 = vpop.f32.mrf.mxu0
    %v2684 = vadd.f32 %v2635, %v2683
    %2685 = vdwg.mxu0
    %2686 = vmatpush.bf16.msra.mxu0 %v1203
    %2687 = vmatpush.bf16.msra.mxu0 %v1199
    %2688 = vmatpush.bf16.msra.mxu0 %v1195
    %2689 = vmatpush.bf16.msra.mxu0 %v1191
    %2690 = vmatpush.bf16.msra.mxu0 %v1187
    %2691 = vmatpush.bf16.msra.mxu0 %v1183
    %2692 = vmatpush.bf16.msra.mxu0 %v1179
    %2693 = vmatpush.bf16.msra.mxu0 %v1175
    %2694 = vmatmul.bf16.gmra.mxu0 %v208
    %v2695 = vpop.f32.mrf.mxu0
    %v2696 = vadd.f32 %v2647, %v2695
    %v2697 = vpop.f32.mrf.mxu0
    %v2698 = vadd.f32 %v2649, %v2697
    %2699 = vmatmul.bf16.gmra.mxu0 %v215
    %v2700 = vpop.f32.mrf.mxu0
    %v2701 = vadd.f32 %v2652, %v2700
    %v2702 = vpop.f32.mrf.mxu0
    %v2703 = vadd.f32 %v2654, %v2702
    %2704 = vmatmul.bf16.gmra.mxu0 %v222
    %v2705 = vpop.f32.mrf.mxu0
    %v2706 = vadd.f32 %v2657, %v2705
    %v2707 = vpop.f32.mrf.mxu0
    %v2708 = vadd.f32 %v2659, %v2707
    %2709 = vmatmul.bf16.gmra.mxu0 %v229
    %v2710 = vpop.f32.mrf.mxu0
    %v2711 = vadd.f32 %v2662, %v2710
    %v2712 = vpop.f32.mrf.mxu0
    %v2713 = vadd.f32 %v2664, %v2712
    %2714 = vmatmul.bf16.gmra.mxu0 %v236
    %v2715 = vpop.f32.mrf.mxu0
    %v2716 = vadd.f32 %v2667, %v2715
    %v2717 = vpop.f32.mrf.mxu0
    %v2718 = vadd.f32 %v2669, %v2717
    %2719 = vmatmul.bf16.gmra.mxu0 %v243
    %v2720 = vpop.f32.mrf.mxu0
    %v2721 = vadd.f32 %v2672, %v2720
    %v2722 = vpop.f32.mrf.mxu0
    %v2723 = vadd.f32 %v2674, %v2722
    %2724 = vmatmul.bf16.gmra.mxu0 %v250
    %v2725 = vpop.f32.mrf.mxu0
    %v2726 = vadd.f32 %v2677, %v2725
    %v2727 = vpop.f32.mrf.mxu0
    %v2728 = vadd.f32 %v2679, %v2727
    %2729 = vmatmul.bf16.gmra.mxu0 %v257
    %v2730 = vpop.f32.mrf.mxu0
    %v2731 = vadd.f32 %v2682, %v2730
    %v2732 = vpop.f32.mrf.mxu0
    %v2733 = vadd.f32 %v2684, %v2732
    %2734 = vdwg.mxu0
    %2735 = vmatpush.bf16.msra.mxu0 %v1235
    %2736 = vmatpush.bf16.msra.mxu0 %v1231
    %2737 = vmatpush.bf16.msra.mxu0 %v1227
    %2738 = vmatpush.bf16.msra.mxu0 %v1223
    %2739 = vmatpush.bf16.msra.mxu0 %v1219
    %2740 = vmatpush.bf16.msra.mxu0 %v1215
    %2741 = vmatpush.bf16.msra.mxu0 %v1211
    %2742 = vmatpush.bf16.msra.mxu0 %v1207
    %2743 = vmatmul.bf16.gmra.mxu0 %v209
    %v2744 = vpop.f32.mrf.mxu0
    %v2745 = vadd.f32 %v2696, %v2744
    %v2746 = vpop.f32.mrf.mxu0
    %v2747 = vadd.f32 %v2698, %v2746
    %2748 = vmatmul.bf16.gmra.mxu0 %v216
    %v2749 = vpop.f32.mrf.mxu0
    %v2750 = vadd.f32 %v2701, %v2749
    %v2751 = vpop.f32.mrf.mxu0
    %v2752 = vadd.f32 %v2703, %v2751
    %2753 = vmatmul.bf16.gmra.mxu0 %v223
    %v2754 = vpop.f32.mrf.mxu0
    %v2755 = vadd.f32 %v2706, %v2754
    %v2756 = vpop.f32.mrf.mxu0
    %v2757 = vadd.f32 %v2708, %v2756
    %2758 = vmatmul.bf16.gmra.mxu0 %v230
    %v2759 = vpop.f32.mrf.mxu0
    %v2760 = vadd.f32 %v2711, %v2759
    %v2761 = vpop.f32.mrf.mxu0
    %v2762 = vadd.f32 %v2713, %v2761
    %2763 = vmatmul.bf16.gmra.mxu0 %v237
    %v2764 = vpop.f32.mrf.mxu0
    %v2765 = vadd.f32 %v2716, %v2764
    %v2766 = vpop.f32.mrf.mxu0
    %v2767 = vadd.f32 %v2718, %v2766
    %2768 = vmatmul.bf16.gmra.mxu0 %v244
    %v2769 = vpop.f32.mrf.mxu0
    %v2770 = vadd.f32 %v2721, %v2769
    %v2771 = vpop.f32.mrf.mxu0
    %v2772 = vadd.f32 %v2723, %v2771
    %2773 = vmatmul.bf16.gmra.mxu0 %v251
    %v2774 = vpop.f32.mrf.mxu0
    %v2775 = vadd.f32 %v2726, %v2774
    %v2776 = vpop.f32.mrf.mxu0
    %v2777 = vadd.f32 %v2728, %v2776
    %2778 = vmatmul.bf16.gmra.mxu0 %v258
    %v2779 = vpop.f32.mrf.mxu0
    %v2780 = vadd.f32 %v2731, %v2779
    %v2781 = vpop.f32.mrf.mxu0
    %v2782 = vadd.f32 %v2733, %v2781
    %2783 = vdwg.mxu0
    %2784 = vmatpush.bf16.msra.mxu0 0
    %2785 = vmatpush.bf16.msra.mxu0 0
    %2786 = vmatpush.bf16.msra.mxu0 0
    %2787 = vmatpush.bf16.msra.mxu0 0
    %2788 = vmatpush.bf16.msra.mxu0 0
    %2789 = vmatpush.bf16.msra.mxu0 0
    %2790 = vmatpush.bf16.msra.mxu0 0
    %2791 = vmatpush.bf16.msra.mxu0 %v1239
    %2792 = vmatmul.bf16.gmra.mxu0 %v1438
    %v2793 = vpop.f32.mrf.mxu0
    %v2794 = vadd.f32 %v2745, %v2793
    %v2795 = vpop.f32.mrf.mxu0
    %v2796 = vadd.f32 %v2747, %v2795
    %2797 = vmatmul.bf16.gmra.mxu0 %v1441
    %v2798 = vpop.f32.mrf.mxu0
    %v2799 = vadd.f32 %v2750, %v2798
    %v2800 = vpop.f32.mrf.mxu0
    %v2801 = vadd.f32 %v2752, %v2800
    %2802 = vmatmul.bf16.gmra.mxu0 %v1444
    %v2803 = vpop.f32.mrf.mxu0
    %v2804 = vadd.f32 %v2755, %v2803
    %v2805 = vpop.f32.mrf.mxu0
    %v2806 = vadd.f32 %v2757, %v2805
    %2807 = vmatmul.bf16.gmra.mxu0 %v1447
    %v2808 = vpop.f32.mrf.mxu0
    %v2809 = vadd.f32 %v2760, %v2808
    %v2810 = vpop.f32.mrf.mxu0
    %v2811 = vadd.f32 %v2762, %v2810
    %2812 = vmatmul.bf16.gmra.mxu0 %v1450
    %v2813 = vpop.f32.mrf.mxu0
    %v2814 = vadd.f32 %v2765, %v2813
    %v2815 = vpop.f32.mrf.mxu0
    %v2816 = vadd.f32 %v2767, %v2815
    %2817 = vmatmul.bf16.gmra.mxu0 %v1453
    %v2818 = vpop.f32.mrf.mxu0
    %v2819 = vadd.f32 %v2770, %v2818
    %v2820 = vpop.f32.mrf.mxu0
    %v2821 = vadd.f32 %v2772, %v2820
    %2822 = vmatmul.bf16.gmra.mxu0 %v1456
    %v2823 = vpop.f32.mrf.mxu0
    %v2824 = vadd.f32 %v2775, %v2823
    %v2825 = vpop.f32.mrf.mxu0
    %v2826 = vadd.f32 %v2777, %v2825
    %2827 = vmatmul.bf16.gmra.mxu0 %v1459
    %v2828 = vpop.f32.mrf.mxu0
    %v2829 = vadd.f32 %v2780, %v2828
    %v2830 = vpop.f32.mrf.mxu0
    %v2831 = vadd.f32 %v2782, %v2830
    %2832 = vdwg.mxu0
    %v2833 = vadd.f32 %v1765, %v1767
    %v2834 = vadd.f32 %v2833, %v1770
    %v2835 = vadd.f32 %v2834, %v1772
    %v2836 = vadd.f32 %v2835, %v1775
    %v2837 = vadd.f32 %v2836, %v1777
    %v2838 = vadd.f32 %v2837, %v1780
    %v2839 = vadd.f32 %v2838, %v1782
    %v2840 = vadd.f32 %v2839, %v1785
    %v2841 = vadd.f32 %v2840, %v1787
    %v2842 = vadd.f32 %v2841, %v1790
    %v2843 = vadd.f32 %v2842, %v1792
    %v2844 = vadd.f32 %v2843, %v1795
    %v2845 = vadd.f32 %v2844, %v1797
    %v2846 = vadd.f32 %v2845, %v1800
    %v2847 = vadd.f32 %v2846, %v1802
    %v2848 = vrot.slane %v2847, 4
    %v2849 = vadd.f32 %v2847, %v2848
    %v2850 = vrot.slane %v2849, 2
    %v2851 = vadd.f32 %v2849, %v2850
    %v2852 = vrot.slane %v2851, 1
    %v2853 = vadd.f32 %v2851, %v2852
    %v2854 = vadd.f32 %v2108, %v2110
    %v2855 = vadd.f32 %v2854, %v2113
    %v2856 = vadd.f32 %v2855, %v2115
    %v2857 = vadd.f32 %v2856, %v2118
    %v2858 = vadd.f32 %v2857, %v2120
    %v2859 = vadd.f32 %v2858, %v2123
    %v2860 = vadd.f32 %v2859, %v2125
    %v2861 = vadd.f32 %v2860, %v2128
    %v2862 = vadd.f32 %v2861, %v2130
    %v2863 = vadd.f32 %v2862, %v2133
    %v2864 = vadd.f32 %v2863, %v2135
    %v2865 = vadd.f32 %v2864, %v2138
    %v2866 = vadd.f32 %v2865, %v2140
    %v2867 = vadd.f32 %v2866, %v2143
    %v2868 = vadd.f32 %v2867, %v2145
    %v2869 = vrot.slane %v2868, 4
    %v2870 = vadd.f32 %v2868, %v2869
    %v2871 = vrot.slane %v2870, 2
    %v2872 = vadd.f32 %v2870, %v2871
    %v2873 = vrot.slane %v2872, 1
    %v2874 = vadd.f32 %v2872, %v2873
    %v2875 = vadd.f32 %v2451, %v2453
    %v2876 = vadd.f32 %v2875, %v2456
    %v2877 = vadd.f32 %v2876, %v2458
    %v2878 = vadd.f32 %v2877, %v2461
    %v2879 = vadd.f32 %v2878, %v2463
    %v2880 = vadd.f32 %v2879, %v2466
    %v2881 = vadd.f32 %v2880, %v2468
    %v2882 = vadd.f32 %v2881, %v2471
    %v2883 = vadd.f32 %v2882, %v2473
    %v2884 = vadd.f32 %v2883, %v2476
    %v2885 = vadd.f32 %v2884, %v2478
    %v2886 = vadd.f32 %v2885, %v2481
    %v2887 = vadd.f32 %v2886, %v2483
    %v2888 = vadd.f32 %v2887, %v2486
    %v2889 = vadd.f32 %v2888, %v2488
    %v2890 = vrot.slane %v2889, 4
    %v2891 = vadd.f32 %v2889, %v2890
    %v2892 = vrot.slane %v2891, 2
    %v2893 = vadd.f32 %v2891, %v2892
    %v2894 = vrot.slane %v2893, 1
    %v2895 = vadd.f32 %v2893, %v2894
    %v2896 = vadd.f32 %v2794, %v2796
    %v2897 = vadd.f32 %v2896, %v2799
    %v2898 = vadd.f32 %v2897, %v2801
    %v2899 = vadd.f32 %v2898, %v2804
    %v2900 = vadd.f32 %v2899, %v2806
    %v2901 = vadd.f32 %v2900, %v2809
    %v2902 = vadd.f32 %v2901, %v2811
    %v2903 = vadd.f32 %v2902, %v2814
    %v2904 = vadd.f32 %v2903, %v2816
    %v2905 = vadd.f32 %v2904, %v2819
    %v2906 = vadd.f32 %v2905, %v2821
    %v2907 = vadd.f32 %v2906, %v2824
    %v2908 = vadd.f32 %v2907, %v2826
    %v2909 = vadd.f32 %v2908, %v2829
    %v2910 = vadd.f32 %v2909, %v2831
    %v2911 = vrot.slane %v2910, 4
    %v2912 = vadd.f32 %v2910, %v2911
    %v2913 = vrot.slane %v2912, 2
    %v2914 = vadd.f32 %v2912, %v2913
    %v2915 = vrot.slane %v2914, 1
    %v2916 = vadd.f32 %v2914, %v2915
    %v2917 = vrcp.pop 128.0
    %v2918 = vmul.f32 128.0, %v2917
    %v2919 = vsub.f32 1.0, %v2918
    %v2920 = vmul.f32 %v2917, %v2919
    %v2921 = vadd.f32 %v2917, %v2920
    %vm2922 = vweird.f32 %v2917
    %v2923 = vsel %vm2922, %v2917, %v2921
    %v2924 = vmul.f32 %v2853, %v2923
    %v2925 = vmul.f32 %v2874, %v2923
    %v2926 = vmul.f32 %v2895, %v2923
    %v2927 = vmul.f32 %v2916, %v2923
    %v2928 = vsub.f32 %v1765, %v2924
    %v2929 = vsub.f32 %v2108, %v2925
    %v2930 = vsub.f32 %v2451, %v2926
    %v2931 = vsub.f32 %v2794, %v2927
    %v2932 = vsub.f32 %v1767, %v2924
    %v2933 = vsub.f32 %v2110, %v2925
    %v2934 = vsub.f32 %v2453, %v2926
    %v2935 = vsub.f32 %v2796, %v2927
    %v2936 = vsub.f32 %v1770, %v2924
    %v2937 = vsub.f32 %v2113, %v2925
    %v2938 = vsub.f32 %v2456, %v2926
    %v2939 = vsub.f32 %v2799, %v2927
    %v2940 = vsub.f32 %v1772, %v2924
    %v2941 = vsub.f32 %v2115, %v2925
    %v2942 = vsub.f32 %v2458, %v2926
    %v2943 = vsub.f32 %v2801, %v2927
    %v2944 = vsub.f32 %v1775, %v2924
    %v2945 = vsub.f32 %v2118, %v2925
    %v2946 = vsub.f32 %v2461, %v2926
    %v2947 = vsub.f32 %v2804, %v2927
    %v2948 = vsub.f32 %v1777, %v2924
    %v2949 = vsub.f32 %v2120, %v2925
    %v2950 = vsub.f32 %v2463, %v2926
    %v2951 = vsub.f32 %v2806, %v2927
    %v2952 = vsub.f32 %v1780, %v2924
    %v2953 = vsub.f32 %v2123, %v2925
    %v2954 = vsub.f32 %v2466, %v2926
    %v2955 = vsub.f32 %v2809, %v2927
    %v2956 = vsub.f32 %v1782, %v2924
    %v2957 = vsub.f32 %v2125, %v2925
    %v2958 = vsub.f32 %v2468, %v2926
    %v2959 = vsub.f32 %v2811, %v2927
    %v2960 = vsub.f32 %v1785, %v2924
    %v2961 = vsub.f32 %v2128, %v2925
    %v2962 = vsub.f32 %v2471, %v2926
    %v2963 = vsub.f32 %v2814, %v2927
    %v2964 = vsub.f32 %v1787, %v2924
    %v2965 = vsub.f32 %v2130, %v2925
    %v2966 = vsub.f32 %v2473, %v2926
    %v2967 = vsub.f32 %v2816, %v2927
    %v2968 = vsub.f32 %v1790, %v2924
    %v2969 = vsub.f32 %v2133, %v2925
    %v2970 = vsub.f32 %v2476, %v2926
    %v2971 = vsub.f32 %v2819, %v2927
    %v2972 = vsub.f32 %v1792, %v2924
    %v2973 = vsub.f32 %v2135, %v2925
    %v2974 = vsub.f32 %v2478, %v2926
    %v2975 = vsub.f32 %v2821, %v2927
    %v2976 = vsub.f32 %v1795, %v2924
    %v2977 = vsub.f32 %v2138, %v2925
    %v2978 = vsub.f32 %v2481, %v2926
    %v2979 = vsub.f32 %v2824, %v2927
    %v2980 = vsub.f32 %v1797, %v2924
    %v2981 = vsub.f32 %v2140, %v2925
    %v2982 = vsub.f32 %v2483, %v2926
    %v2983 = vsub.f32 %v2826, %v2927
    %v2984 = vsub.f32 %v1800, %v2924
    %v2985 = vsub.f32 %v2143, %v2925
    %v2986 = vsub.f32 %v2486, %v2926
    %v2987 = vsub.f32 %v2829, %v2927
    %v2988 = vsub.f32 %v1802, %v2924
    %v2989 = vsub.f32 %v2145, %v2925
    %v2990 = vsub.f32 %v2488, %v2926
    %v2991 = vsub.f32 %v2831, %v2927
    %v2992 = vmul.f32 %v2928, %v2928
    %v2993 = vmul.f32 %v2929, %v2929
    %v2994 = vmul.f32 %v2930, %v2930
    %v2995 = vmul.f32 %v2931, %v2931
    %v2996 = vmul.f32 %v2932, %v2932
    %v2997 = vmul.f32 %v2933, %v2933
    %v2998 = vmul.f32 %v2934, %v2934
    %v2999 = vmul.f32 %v2935, %v2935
    %v3000 = vmul.f32 %v2936, %v2936
    %v3001 = vmul.f32 %v2937, %v2937
    %v3002 = vmul.f32 %v2938, %v2938
    %v3003 = vmul.f32 %v2939, %v2939
    %v3004 = vmul.f32 %v2940, %v2940
    %v3005 = vmul.f32 %v2941, %v2941
    %v3006 = vmul.f32 %v2942, %v2942
    %v3007 = vmul.f32 %v2943, %v2943
    %v3008 = vmul.f32 %v2944, %v2944
    %v3009 = vmul.f32 %v2945, %v2945
    %v3010 = vmul.f32 %v2946, %v2946
    %v3011 = vmul.f32 %v2947, %v2947
    %v3012 = vmul.f32 %v2948, %v2948
    %v3013 = vmul.f32 %v2949, %v2949
    %v3014 = vmul.f32 %v2950, %v2950
    %v3015 = vmul.f32 %v2951, %v2951
    %v3016 = vmul.f32 %v2952, %v2952
    %v3017 = vmul.f32 %v2953, %v2953
    %v3018 = vmul.f32 %v2954, %v2954
    %v3019 = vmul.f32 %v2955, %v2955
    %v3020 = vmul.f32 %v2956, %v2956
    %v3021 = vmul.f32 %v2957, %v2957
    %v3022 = vmul.f32 %v2958, %v2958
    %v3023 = vmul.f32 %v2959, %v2959
    %v3024 = vmul.f32 %v2960, %v2960
    %v3025 = vmul.f32 %v2961, %v2961
    %v3026 = vmul.f32 %v2962, %v2962
    %v3027 = vmul.f32 %v2963, %v2963
    %v3028 = vmul.f32 %v2964, %v2964
    %v3029 = vmul.f32 %v2965, %v2965
    %v3030 = vmul.f32 %v2966, %v2966
    %v3031 = vmul.f32 %v2967, %v2967
    %v3032 = vmul.f32 %v2968, %v2968
    %v3033 = vmul.f32 %v2969, %v2969
    %v3034 = vmul.f32 %v2970, %v2970
    %v3035 = vmul.f32 %v2971, %v2971
    %v3036 = vmul.f32 %v2972, %v2972
    %v3037 = vmul.f32 %v2973, %v2973
    %v3038 = vmul.f32 %v2974, %v2974
    %v3039 = vmul.f32 %v2975, %v2975
    %v3040 = vmul.f32 %v2976, %v2976
    %v3041 = vmul.f32 %v2977, %v2977
    %v3042 = vmul.f32 %v2978, %v2978
    %v3043 = vmul.f32 %v2979, %v2979
    %v3044 = vmul.f32 %v2980, %v2980
    %v3045 = vmul.f32 %v2981, %v2981
    %v3046 = vmul.f32 %v2982, %v2982
    %v3047 = vmul.f32 %v2983, %v2983
    %v3048 = vmul.f32 %v2984, %v2984
    %v3049 = vmul.f32 %v2985, %v2985
    %v3050 = vmul.f32 %v2986, %v2986
    %v3051 = vmul.f32 %v2987, %v2987
    %v3052 = vmul.f32 %v2988, %v2988
    %v3053 = vmul.f32 %v2989, %v2989
    %v3054 = vmul.f32 %v2990, %v2990
    %v3055 = vmul.f32 %v2991, %v2991
    %v3056 = vadd.f32 %v2992, %v2996
    %v3057 = vadd.f32 %v3056, %v3000
    %v3058 = vadd.f32 %v3057, %v3004
    %v3059 = vadd.f32 %v3058, %v3008
    %v3060 = vadd.f32 %v3059, %v3012
    %v3061 = vadd.f32 %v3060, %v3016
    %v3062 = vadd.f32 %v3061, %v3020
    %v3063 = vadd.f32 %v3062, %v3024
    %v3064 = vadd.f32 %v3063, %v3028
    %v3065 = vadd.f32 %v3064, %v3032
    %v3066 = vadd.f32 %v3065, %v3036
    %v3067 = vadd.f32 %v3066, %v3040
    %v3068 = vadd.f32 %v3067, %v3044
    %v3069 = vadd.f32 %v3068, %v3048
    %v3070 = vadd.f32 %v3069, %v3052
    %v3071 = vrot.slane %v3070, 4
    %v3072 = vadd.f32 %v3070, %v3071
    %v3073 = vrot.slane %v3072, 2
    %v3074 = vadd.f32 %v3072, %v3073
    %v3075 = vrot.slane %v3074, 1
    %v3076 = vadd.f32 %v3074, %v3075
    %v3077 = vadd.f32 %v2993, %v2997
    %v3078 = vadd.f32 %v3077, %v3001
    %v3079 = vadd.f32 %v3078, %v3005
    %v3080 = vadd.f32 %v3079, %v3009
    %v3081 = vadd.f32 %v3080, %v3013
    %v3082 = vadd.f32 %v3081, %v3017
    %v3083 = vadd.f32 %v3082, %v3021
    %v3084 = vadd.f32 %v3083, %v3025
    %v3085 = vadd.f32 %v3084, %v3029
    %v3086 = vadd.f32 %v3085, %v3033
    %v3087 = vadd.f32 %v3086, %v3037
    %v3088 = vadd.f32 %v3087, %v3041
    %v3089 = vadd.f32 %v3088, %v3045
    %v3090 = vadd.f32 %v3089, %v3049
    %v3091 = vadd.f32 %v3090, %v3053
    %v3092 = vrot.slane %v3091, 4
    %v3093 = vadd.f32 %v3091, %v3092
    %v3094 = vrot.slane %v3093, 2
    %v3095 = vadd.f32 %v3093, %v3094
    %v3096 = vrot.slane %v3095, 1
    %v3097 = vadd.f32 %v3095, %v3096
    %v3098 = vadd.f32 %v2994, %v2998
    %v3099 = vadd.f32 %v3098, %v3002
    %v3100 = vadd.f32 %v3099, %v3006
    %v3101 = vadd.f32 %v3100, %v3010
    %v3102 = vadd.f32 %v3101, %v3014
    %v3103 = vadd.f32 %v3102, %v3018
    %v3104 = vadd.f32 %v3103, %v3022
    %v3105 = vadd.f32 %v3104, %v3026
    %v3106 = vadd.f32 %v3105, %v3030
    %v3107 = vadd.f32 %v3106, %v3034
    %v3108 = vadd.f32 %v3107, %v3038
    %v3109 = vadd.f32 %v3108, %v3042
    %v3110 = vadd.f32 %v3109, %v3046
    %v3111 = vadd.f32 %v3110, %v3050
    %v3112 = vadd.f32 %v3111, %v3054
    %v3113 = vrot.slane %v3112, 4
    %v3114 = vadd.f32 %v3112, %v3113
    %v3115 = vrot.slane %v3114, 2
    %v3116 = vadd.f32 %v3114, %v3115
    %v3117 = vrot.slane %v3116, 1
    %v3118 = vadd.f32 %v3116, %v3117
    %v3119 = vadd.f32 %v2995, %v2999
    %v3120 = vadd.f32 %v3119, %v3003
    %v3121 = vadd.f32 %v3120, %v3007
    %v3122 = vadd.f32 %v3121, %v3011
    %v3123 = vadd.f32 %v3122, %v3015
    %v3124 = vadd.f32 %v3123, %v3019
    %v3125 = vadd.f32 %v3124, %v3023
    %v3126 = vadd.f32 %v3125, %v3027
    %v3127 = vadd.f32 %v3126, %v3031
    %v3128 = vadd.f32 %v3127, %v3035
    %v3129 = vadd.f32 %v3128, %v3039
    %v3130 = vadd.f32 %v3129, %v3043
    %v3131 = vadd.f32 %v3130, %v3047
    %v3132 = vadd.f32 %v3131, %v3051
    %v3133 = vadd.f32 %v3132, %v3055
    %v3134 = vrot.slane %v3133, 4
    %v3135 = vadd.f32 %v3133, %v3134
    %v3136 = vrot.slane %v3135, 2
    %v3137 = vadd.f32 %v3135, %v3136
    %v3138 = vrot.slane %v3137, 1
    %v3139 = vadd.f32 %v3137, %v3138
    %v3140 = vmul.f32 %v3076, %v2923
    %v3141 = vmul.f32 %v3097, %v2923
    %v3142 = vmul.f32 %v3118, %v2923
    %v3143 = vmul.f32 %v3139, %v2923
    %v3144 = vld [vmem:[%s3] sm:$0xf]
    %v3145 = vadd.f32 %v3140, 1e-05
    %v3146 = vadd.f32 %v3141, 1e-05
    %v3147 = vadd.f32 %v3142, 1e-05
    %v3148 = vadd.f32 %v3143, 1e-05
    %v3149 = vrsqrt.pop %v3145
    %v3150 = vmul.f32 %v3149, %v3145
    %v3151 = vmul.f32 %v3150, %v3149
    %v3152 = vmul.f32 0.5, %v3151
    %v3153 = vsub.f32 1.5, %v3152
    %v3154 = vmul.f32 %v3149, %v3153
    %vm3155 = vweird.f32 %v3145
    %vm3156 = vweird.f32 %v3149
    %vm3157 = vmor %vm3155, %vm3156
    %v3158 = vsel %vm3157, %v3149, %v3154
    %v3159 = vrsqrt.pop %v3146
    %v3160 = vmul.f32 %v3159, %v3146
    %v3161 = vmul.f32 %v3160, %v3159
    %v3162 = vmul.f32 0.5, %v3161
    %v3163 = vsub.f32 1.5, %v3162
    %v3164 = vmul.f32 %v3159, %v3163
    %vm3165 = vweird.f32 %v3146
    %vm3166 = vweird.f32 %v3159
    %vm3167 = vmor %vm3165, %vm3166
    %v3168 = vsel %vm3167, %v3159, %v3164
    %v3169 = vrsqrt.pop %v3147
    %v3170 = vmul.f32 %v3169, %v3147
    %v3171 = vmul.f32 %v3170, %v3169
    %v3172 = vmul.f32 0.5, %v3171
    %v3173 = vsub.f32 1.5, %v3172
    %v3174 = vmul.f32 %v3169, %v3173
    %vm3175 = vweird.f32 %v3147
    %vm3176 = vweird.f32 %v3169
    %vm3177 = vmor %vm3175, %vm3176
    %v3178 = vsel %vm3177, %v3169, %v3174
    %v3179 = vrsqrt.pop %v3148
    %v3180 = vmul.f32 %v3179, %v3148
    %v3181 = vmul.f32 %v3180, %v3179
    %v3182 = vmul.f32 0.5, %v3181
    %v3183 = vsub.f32 1.5, %v3182
    %v3184 = vmul.f32 %v3179, %v3183
    %vm3185 = vweird.f32 %v3148
    %vm3186 = vweird.f32 %v3179
    %vm3187 = vmor %vm3185, %vm3186
    %v3188 = vsel %vm3187, %v3179, %v3184
    %v3193 = vrot.slane %v3168, 7
    %v3194 = vrot.slane %v3178, 6
    %v3195 = vrot.slane %v3188, 5
    %vm3196 = vcmask 1040384
    %v3197 = vsel %vm3196, %v3158, %v3193
    %vm3198 = vcmask 1042434
    %v3199 = vsel %vm3198, %v3194, %v3195
    %vm3200 = vcmask 1041408
    %v3201 = vsel %vm3200, %v3197, %v3199
    %v3203 = vmul.f32 %v3144, %v3201
    %v3205 = vperm.slane %v3203, 0
    %v3206 = vperm.slane %v3203, 1
    %v3207 = vperm.slane %v3203, 2
    %v3208 = vperm.slane %v3203, 3
    %v3213 = vmul.f32 %v2928, %v3205
    %v3214 = vmul.f32 %v2929, %v3206
    %v3215 = vmul.f32 %v2930, %v3207
    %v3216 = vmul.f32 %v2931, %v3208
    %v3217 = vmul.f32 %v2932, %v3205
    %v3218 = vmul.f32 %v2933, %v3206
    %v3219 = vmul.f32 %v2934, %v3207
    %v3220 = vmul.f32 %v2935, %v3208
    %v3221 = vmul.f32 %v2936, %v3205
    %v3222 = vmul.f32 %v2937, %v3206
    %v3223 = vmul.f32 %v2938, %v3207
    %v3224 = vmul.f32 %v2939, %v3208
    %v3225 = vmul.f32 %v2940, %v3205
    %v3226 = vmul.f32 %v2941, %v3206
    %v3227 = vmul.f32 %v2942, %v3207
    %v3228 = vmul.f32 %v2943, %v3208
    %v3229 = vmul.f32 %v2944, %v3205
    %v3230 = vmul.f32 %v2945, %v3206
    %v3231 = vmul.f32 %v2946, %v3207
    %v3232 = vmul.f32 %v2947, %v3208
    %v3233 = vmul.f32 %v2948, %v3205
    %v3234 = vmul.f32 %v2949, %v3206
    %v3235 = vmul.f32 %v2950, %v3207
    %v3236 = vmul.f32 %v2951, %v3208
    %v3237 = vmul.f32 %v2952, %v3205
    %v3238 = vmul.f32 %v2953, %v3206
    %v3239 = vmul.f32 %v2954, %v3207
    %v3240 = vmul.f32 %v2955, %v3208
    %v3241 = vmul.f32 %v2956, %v3205
    %v3242 = vmul.f32 %v2957, %v3206
    %v3243 = vmul.f32 %v2958, %v3207
    %v3244 = vmul.f32 %v2959, %v3208
    %v3245 = vmul.f32 %v2960, %v3205
    %v3246 = vmul.f32 %v2961, %v3206
    %v3247 = vmul.f32 %v2962, %v3207
    %v3248 = vmul.f32 %v2963, %v3208
    %v3249 = vmul.f32 %v2964, %v3205
    %v3250 = vmul.f32 %v2965, %v3206
    %v3251 = vmul.f32 %v2966, %v3207
    %v3252 = vmul.f32 %v2967, %v3208
    %v3253 = vmul.f32 %v2968, %v3205
    %v3254 = vmul.f32 %v2969, %v3206
    %v3255 = vmul.f32 %v2970, %v3207
    %v3256 = vmul.f32 %v2971, %v3208
    %v3257 = vmul.f32 %v2972, %v3205
    %v3258 = vmul.f32 %v2973, %v3206
    %v3259 = vmul.f32 %v2974, %v3207
    %v3260 = vmul.f32 %v2975, %v3208
    %v3261 = vmul.f32 %v2976, %v3205
    %v3262 = vmul.f32 %v2977, %v3206
    %v3263 = vmul.f32 %v2978, %v3207
    %v3264 = vmul.f32 %v2979, %v3208
    %v3265 = vmul.f32 %v2980, %v3205
    %v3266 = vmul.f32 %v2981, %v3206
    %v3267 = vmul.f32 %v2982, %v3207
    %v3268 = vmul.f32 %v2983, %v3208
    %v3269 = vmul.f32 %v2984, %v3205
    %v3270 = vmul.f32 %v2985, %v3206
    %v3271 = vmul.f32 %v2986, %v3207
    %v3272 = vmul.f32 %v2987, %v3208
    %v3273 = vmul.f32 %v2988, %v3205
    %v3274 = vmul.f32 %v2989, %v3206
    %v3275 = vmul.f32 %v2990, %v3207
    %v3276 = vmul.f32 %v2991, %v3208
    %v3277 = vld [vmem:[%s4] sm:$0xf]
    %v3279 = vperm.slane %v3277, 0
    %v3280 = vperm.slane %v3277, 1
    %v3281 = vperm.slane %v3277, 2
    %v3282 = vperm.slane %v3277, 3
    %v3287 = vadd.f32 %v3213, %v3279
    %v3288 = vadd.f32 %v3214, %v3280
    %v3289 = vadd.f32 %v3215, %v3281
    %v3290 = vadd.f32 %v3216, %v3282
    %v3291 = vadd.f32 %v3217, %v3279
    %v3292 = vadd.f32 %v3218, %v3280
    %v3293 = vadd.f32 %v3219, %v3281
    %v3294 = vadd.f32 %v3220, %v3282
    %v3295 = vadd.f32 %v3221, %v3279
    %v3296 = vadd.f32 %v3222, %v3280
    %v3297 = vadd.f32 %v3223, %v3281
    %v3298 = vadd.f32 %v3224, %v3282
    %v3299 = vadd.f32 %v3225, %v3279
    %v3300 = vadd.f32 %v3226, %v3280
    %v3301 = vadd.f32 %v3227, %v3281
    %v3302 = vadd.f32 %v3228, %v3282
    %v3303 = vadd.f32 %v3229, %v3279
    %v3304 = vadd.f32 %v3230, %v3280
    %v3305 = vadd.f32 %v3231, %v3281
    %v3306 = vadd.f32 %v3232, %v3282
    %v3307 = vadd.f32 %v3233, %v3279
    %v3308 = vadd.f32 %v3234, %v3280
    %v3309 = vadd.f32 %v3235, %v3281
    %v3310 = vadd.f32 %v3236, %v3282
    %v3311 = vadd.f32 %v3237, %v3279
    %v3312 = vadd.f32 %v3238, %v3280
    %v3313 = vadd.f32 %v3239, %v3281
    %v3314 = vadd.f32 %v3240, %v3282
    %v3315 = vadd.f32 %v3241, %v3279
    %v3316 = vadd.f32 %v3242, %v3280
    %v3317 = vadd.f32 %v3243, %v3281
    %v3318 = vadd.f32 %v3244, %v3282
    %v3319 = vadd.f32 %v3245, %v3279
    %v3320 = vadd.f32 %v3246, %v3280
    %v3321 = vadd.f32 %v3247, %v3281
    %v3322 = vadd.f32 %v3248, %v3282
    %v3323 = vadd.f32 %v3249, %v3279
    %v3324 = vadd.f32 %v3250, %v3280
    %v3325 = vadd.f32 %v3251, %v3281
    %v3326 = vadd.f32 %v3252, %v3282
    %v3327 = vadd.f32 %v3253, %v3279
    %v3328 = vadd.f32 %v3254, %v3280
    %v3329 = vadd.f32 %v3255, %v3281
    %v3330 = vadd.f32 %v3256, %v3282
    %v3331 = vadd.f32 %v3257, %v3279
    %v3332 = vadd.f32 %v3258, %v3280
    %v3333 = vadd.f32 %v3259, %v3281
    %v3334 = vadd.f32 %v3260, %v3282
    %v3335 = vadd.f32 %v3261, %v3279
    %v3336 = vadd.f32 %v3262, %v3280
    %v3337 = vadd.f32 %v3263, %v3281
    %v3338 = vadd.f32 %v3264, %v3282
    %v3339 = vadd.f32 %v3265, %v3279
    %v3340 = vadd.f32 %v3266, %v3280
    %v3341 = vadd.f32 %v3267, %v3281
    %v3342 = vadd.f32 %v3268, %v3282
    %v3343 = vadd.f32 %v3269, %v3279
    %v3344 = vadd.f32 %v3270, %v3280
    %v3345 = vadd.f32 %v3271, %v3281
    %v3346 = vadd.f32 %v3272, %v3282
    %v3347 = vadd.f32 %v3273, %v3279
    %v3348 = vadd.f32 %v3274, %v3280
    %v3349 = vadd.f32 %v3275, %v3281
    %v3350 = vadd.f32 %v3276, %v3282
    %vm3351 = vcmp.ge.f32.partialorder %v3287, 0.0
    %vm3352 = vcmp.ge.f32.partialorder %v3288, 0.0
    %vm3353 = vcmp.ge.f32.partialorder %v3289, 0.0
    %vm3354 = vcmp.ge.f32.partialorder %v3290, 0.0
    %vm3355 = vcmp.ge.f32.partialorder %v3291, 0.0
    %vm3356 = vcmp.ge.f32.partialorder %v3292, 0.0
    %vm3357 = vcmp.ge.f32.partialorder %v3293, 0.0
    %vm3358 = vcmp.ge.f32.partialorder %v3294, 0.0
    %vm3359 = vcmp.ge.f32.partialorder %v3295, 0.0
    %vm3360 = vcmp.ge.f32.partialorder %v3296, 0.0
    %vm3361 = vcmp.ge.f32.partialorder %v3297, 0.0
    %vm3362 = vcmp.ge.f32.partialorder %v3298, 0.0
    %vm3363 = vcmp.ge.f32.partialorder %v3299, 0.0
    %vm3364 = vcmp.ge.f32.partialorder %v3300, 0.0
    %vm3365 = vcmp.ge.f32.partialorder %v3301, 0.0
    %vm3366 = vcmp.ge.f32.partialorder %v3302, 0.0
    %vm3367 = vcmp.ge.f32.partialorder %v3303, 0.0
    %vm3368 = vcmp.ge.f32.partialorder %v3304, 0.0
    %vm3369 = vcmp.ge.f32.partialorder %v3305, 0.0
    %vm3370 = vcmp.ge.f32.partialorder %v3306, 0.0
    %vm3371 = vcmp.ge.f32.partialorder %v3307, 0.0
    %vm3372 = vcmp.ge.f32.partialorder %v3308, 0.0
    %vm3373 = vcmp.ge.f32.partialorder %v3309, 0.0
    %vm3374 = vcmp.ge.f32.partialorder %v3310, 0.0
    %vm3375 = vcmp.ge.f32.partialorder %v3311, 0.0
    %vm3376 = vcmp.ge.f32.partialorder %v3312, 0.0
    %vm3377 = vcmp.ge.f32.partialorder %v3313, 0.0
    %vm3378 = vcmp.ge.f32.partialorder %v3314, 0.0
    %vm3379 = vcmp.ge.f32.partialorder %v3315, 0.0
    %vm3380 = vcmp.ge.f32.partialorder %v3316, 0.0
    %vm3381 = vcmp.ge.f32.partialorder %v3317, 0.0
    %vm3382 = vcmp.ge.f32.partialorder %v3318, 0.0
    %vm3383 = vcmp.ge.f32.partialorder %v3319, 0.0
    %vm3384 = vcmp.ge.f32.partialorder %v3320, 0.0
    %vm3385 = vcmp.ge.f32.partialorder %v3321, 0.0
    %vm3386 = vcmp.ge.f32.partialorder %v3322, 0.0
    %vm3387 = vcmp.ge.f32.partialorder %v3323, 0.0
    %vm3388 = vcmp.ge.f32.partialorder %v3324, 0.0
    %vm3389 = vcmp.ge.f32.partialorder %v3325, 0.0
    %vm3390 = vcmp.ge.f32.partialorder %v3326, 0.0
    %vm3391 = vcmp.ge.f32.partialorder %v3327, 0.0
    %vm3392 = vcmp.ge.f32.partialorder %v3328, 0.0
    %vm3393 = vcmp.ge.f32.partialorder %v3329, 0.0
    %vm3394 = vcmp.ge.f32.partialorder %v3330, 0.0
    %vm3395 = vcmp.ge.f32.partialorder %v3331, 0.0
    %vm3396 = vcmp.ge.f32.partialorder %v3332, 0.0
    %vm3397 = vcmp.ge.f32.partialorder %v3333, 0.0
    %vm3398 = vcmp.ge.f32.partialorder %v3334, 0.0
    %vm3399 = vcmp.ge.f32.partialorder %v3335, 0.0
    %vm3400 = vcmp.ge.f32.partialorder %v3336, 0.0
    %vm3401 = vcmp.ge.f32.partialorder %v3337, 0.0
    %vm3402 = vcmp.ge.f32.partialorder %v3338, 0.0
    %vm3403 = vcmp.ge.f32.partialorder %v3339, 0.0
    %vm3404 = vcmp.ge.f32.partialorder %v3340, 0.0
    %vm3405 = vcmp.ge.f32.partialorder %v3341, 0.0
    %vm3406 = vcmp.ge.f32.partialorder %v3342, 0.0
    %vm3407 = vcmp.ge.f32.partialorder %v3343, 0.0
    %vm3408 = vcmp.ge.f32.partialorder %v3344, 0.0
    %vm3409 = vcmp.ge.f32.partialorder %v3345, 0.0
    %vm3410 = vcmp.ge.f32.partialorder %v3346, 0.0
    %vm3411 = vcmp.ge.f32.partialorder %v3347, 0.0
    %vm3412 = vcmp.ge.f32.partialorder %v3348, 0.0
    %vm3413 = vcmp.ge.f32.partialorder %v3349, 0.0
    %vm3414 = vcmp.ge.f32.partialorder %v3350, 0.0
    %v3415 = vstv %s203
    %v3416 = vmul.f32 %v3415, %v3287
    %v3417 = vmul.f32 %v3415, %v3288
    %v3418 = vmul.f32 %v3415, %v3289
    %v3419 = vmul.f32 %v3415, %v3290
    %v3420 = vmul.f32 %v3415, %v3291
    %v3421 = vmul.f32 %v3415, %v3292
    %v3422 = vmul.f32 %v3415, %v3293
    %v3423 = vmul.f32 %v3415, %v3294
    %v3424 = vmul.f32 %v3415, %v3295
    %v3425 = vmul.f32 %v3415, %v3296
    %v3426 = vmul.f32 %v3415, %v3297
    %v3427 = vmul.f32 %v3415, %v3298
    %v3428 = vmul.f32 %v3415, %v3299
    %v3429 = vmul.f32 %v3415, %v3300
    %v3430 = vmul.f32 %v3415, %v3301
    %v3431 = vmul.f32 %v3415, %v3302
    %v3432 = vmul.f32 %v3415, %v3303
    %v3433 = vmul.f32 %v3415, %v3304
    %v3434 = vmul.f32 %v3415, %v3305
    %v3435 = vmul.f32 %v3415, %v3306
    %v3436 = vmul.f32 %v3415, %v3307
    %v3437 = vmul.f32 %v3415, %v3308
    %v3438 = vmul.f32 %v3415, %v3309
    %v3439 = vmul.f32 %v3415, %v3310
    %v3440 = vmul.f32 %v3415, %v3311
    %v3441 = vmul.f32 %v3415, %v3312
    %v3442 = vmul.f32 %v3415, %v3313
    %v3443 = vmul.f32 %v3415, %v3314
    %v3444 = vmul.f32 %v3415, %v3315
    %v3445 = vmul.f32 %v3415, %v3316
    %v3446 = vmul.f32 %v3415, %v3317
    %v3447 = vmul.f32 %v3415, %v3318
    %v3448 = vmul.f32 %v3415, %v3319
    %v3449 = vmul.f32 %v3415, %v3320
    %v3450 = vmul.f32 %v3415, %v3321
    %v3451 = vmul.f32 %v3415, %v3322
    %v3452 = vmul.f32 %v3415, %v3323
    %v3453 = vmul.f32 %v3415, %v3324
    %v3454 = vmul.f32 %v3415, %v3325
    %v3455 = vmul.f32 %v3415, %v3326
    %v3456 = vmul.f32 %v3415, %v3327
    %v3457 = vmul.f32 %v3415, %v3328
    %v3458 = vmul.f32 %v3415, %v3329
    %v3459 = vmul.f32 %v3415, %v3330
    %v3460 = vmul.f32 %v3415, %v3331
    %v3461 = vmul.f32 %v3415, %v3332
    %v3462 = vmul.f32 %v3415, %v3333
    %v3463 = vmul.f32 %v3415, %v3334
    %v3464 = vmul.f32 %v3415, %v3335
    %v3465 = vmul.f32 %v3415, %v3336
    %v3466 = vmul.f32 %v3415, %v3337
    %v3467 = vmul.f32 %v3415, %v3338
    %v3468 = vmul.f32 %v3415, %v3339
    %v3469 = vmul.f32 %v3415, %v3340
    %v3470 = vmul.f32 %v3415, %v3341
    %v3471 = vmul.f32 %v3415, %v3342
    %v3472 = vmul.f32 %v3415, %v3343
    %v3473 = vmul.f32 %v3415, %v3344
    %v3474 = vmul.f32 %v3415, %v3345
    %v3475 = vmul.f32 %v3415, %v3346
    %v3476 = vmul.f32 %v3415, %v3347
    %v3477 = vmul.f32 %v3415, %v3348
    %v3478 = vmul.f32 %v3415, %v3349
    %v3479 = vmul.f32 %v3415, %v3350
    %v3480 = vsel %vm3351, %v3287, %v3416
    %v3481 = vsel %vm3352, %v3288, %v3417
    %v3482 = vsel %vm3353, %v3289, %v3418
    %v3483 = vsel %vm3354, %v3290, %v3419
    %v3484 = vsel %vm3355, %v3291, %v3420
    %v3485 = vsel %vm3356, %v3292, %v3421
    %v3486 = vsel %vm3357, %v3293, %v3422
    %v3487 = vsel %vm3358, %v3294, %v3423
    %v3488 = vsel %vm3359, %v3295, %v3424
    %v3489 = vsel %vm3360, %v3296, %v3425
    %v3490 = vsel %vm3361, %v3297, %v3426
    %v3491 = vsel %vm3362, %v3298, %v3427
    %v3492 = vsel %vm3363, %v3299, %v3428
    %v3493 = vsel %vm3364, %v3300, %v3429
    %v3494 = vsel %vm3365, %v3301, %v3430
    %v3495 = vsel %vm3366, %v3302, %v3431
    %v3496 = vsel %vm3367, %v3303, %v3432
    %v3497 = vsel %vm3368, %v3304, %v3433
    %v3498 = vsel %vm3369, %v3305, %v3434
    %v3499 = vsel %vm3370, %v3306, %v3435
    %v3500 = vsel %vm3371, %v3307, %v3436
    %v3501 = vsel %vm3372, %v3308, %v3437
    %v3502 = vsel %vm3373, %v3309, %v3438
    %v3503 = vsel %vm3374, %v3310, %v3439
    %v3504 = vsel %vm3375, %v3311, %v3440
    %v3505 = vsel %vm3376, %v3312, %v3441
    %v3506 = vsel %vm3377, %v3313, %v3442
    %v3507 = vsel %vm3378, %v3314, %v3443
    %v3508 = vsel %vm3379, %v3315, %v3444
    %v3509 = vsel %vm3380, %v3316, %v3445
    %v3510 = vsel %vm3381, %v3317, %v3446
    %v3511 = vsel %vm3382, %v3318, %v3447
    %v3512 = vsel %vm3383, %v3319, %v3448
    %v3513 = vsel %vm3384, %v3320, %v3449
    %v3514 = vsel %vm3385, %v3321, %v3450
    %v3515 = vsel %vm3386, %v3322, %v3451
    %v3516 = vsel %vm3387, %v3323, %v3452
    %v3517 = vsel %vm3388, %v3324, %v3453
    %v3518 = vsel %vm3389, %v3325, %v3454
    %v3519 = vsel %vm3390, %v3326, %v3455
    %v3520 = vsel %vm3391, %v3327, %v3456
    %v3521 = vsel %vm3392, %v3328, %v3457
    %v3522 = vsel %vm3393, %v3329, %v3458
    %v3523 = vsel %vm3394, %v3330, %v3459
    %v3524 = vsel %vm3395, %v3331, %v3460
    %v3525 = vsel %vm3396, %v3332, %v3461
    %v3526 = vsel %vm3397, %v3333, %v3462
    %v3527 = vsel %vm3398, %v3334, %v3463
    %v3528 = vsel %vm3399, %v3335, %v3464
    %v3529 = vsel %vm3400, %v3336, %v3465
    %v3530 = vsel %vm3401, %v3337, %v3466
    %v3531 = vsel %vm3402, %v3338, %v3467
    %v3532 = vsel %vm3403, %v3339, %v3468
    %v3533 = vsel %vm3404, %v3340, %v3469
    %v3534 = vsel %vm3405, %v3341, %v3470
    %v3535 = vsel %vm3406, %v3342, %v3471
    %v3536 = vsel %vm3407, %v3343, %v3472
    %v3537 = vsel %vm3408, %v3344, %v3473
    %v3538 = vsel %vm3409, %v3345, %v3474
    %v3539 = vsel %vm3410, %v3346, %v3475
    %v3540 = vsel %vm3411, %v3347, %v3476
    %v3541 = vsel %vm3412, %v3348, %v3477
    %v3542 = vsel %vm3413, %v3349, %v3478
    %v3543 = vsel %vm3414, %v3350, %v3479
    %s3544 = sld [smem:[#allocation2 + $0x1]]
    %v3545 = vpack.c.bf16 %v3484, %v3480
    %v3546 = vpack.c.bf16 %v3485, %v3481
    %v3547 = vpack.c.bf16 %v3486, %v3482
    %v3548 = vpack.c.bf16 %v3487, %v3483
    %v3549 = vpack.c.bf16 %v3492, %v3488
    %v3550 = vpack.c.bf16 %v3493, %v3489
    %v3551 = vpack.c.bf16 %v3494, %v3490
    %v3552 = vpack.c.bf16 %v3495, %v3491
    %v3553 = vpack.c.bf16 %v3500, %v3496
    %v3554 = vpack.c.bf16 %v3501, %v3497
    %v3555 = vpack.c.bf16 %v3502, %v3498
    %v3556 = vpack.c.bf16 %v3503, %v3499
    %v3557 = vpack.c.bf16 %v3508, %v3504
    %v3558 = vpack.c.bf16 %v3509, %v3505
    %v3559 = vpack.c.bf16 %v3510, %v3506
    %v3560 = vpack.c.bf16 %v3511, %v3507
    %v3561 = vpack.c.bf16 %v3516, %v3512
    %v3562 = vpack.c.bf16 %v3517, %v3513
    %v3563 = vpack.c.bf16 %v3518, %v3514
    %v3564 = vpack.c.bf16 %v3519, %v3515
    %v3565 = vpack.c.bf16 %v3524, %v3520
    %v3566 = vpack.c.bf16 %v3525, %v3521
    %v3567 = vpack.c.bf16 %v3526, %v3522
    %v3568 = vpack.c.bf16 %v3527, %v3523
    %v3569 = vpack.c.bf16 %v3532, %v3528
    %v3570 = vpack.c.bf16 %v3533, %v3529
    %v3571 = vpack.c.bf16 %v3534, %v3530
    %v3572 = vpack.c.bf16 %v3535, %v3531
    %v3573 = vpack.c.bf16 %v3540, %v3536
    %v3574 = vpack.c.bf16 %v3541, %v3537
    %v3575 = vpack.c.bf16 %v3542, %v3538
    %v3576 = vpack.c.bf16 %v3543, %v3539
    %v3577 = vld [vmem:[%s5] sm:$0xff]
    %v3578 = vld [vmem:[%s5 + $0x8] sm:$0xff]
    %v3579 = vld [vmem:[%s5 + $0x10] sm:$0xff]
    %v3580 = vld [vmem:[%s5 + $0x18] sm:$0xff]
    %v3581 = vld [vmem:[%s5 + $0x20] sm:$0xff]
    %v3582 = vld [vmem:[%s5 + $0x28] sm:$0xff]
    %v3583 = vld [vmem:[%s5 + $0x30] sm:$0xff]
    %v3584 = vld [vmem:[%s5 + $0x38] sm:$0xff]
    %v3585 = vld [vmem:[%s5 + $0x40] sm:$0xff]
    %v3586 = vld [vmem:[%s5 + $0x48] sm:$0xff]
    %v3587 = vld [vmem:[%s5 + $0x50] sm:$0xff]
    %v3588 = vld [vmem:[%s5 + $0x58] sm:$0xff]
    %v3589 = vld [vmem:[%s5 + $0x60] sm:$0xff]
    %v3590 = vld [vmem:[%s5 + $0x68] sm:$0xff]
    %v3591 = vld [vmem:[%s5 + $0x70] sm:$0xff]
    %v3592 = vld [vmem:[%s5 + $0x78] sm:$0xff]
    %v3593 = vld [vmem:[%s5 + $0x80] sm:$0xff]
    %v3594 = vld [vmem:[%s5 + $0x88] sm:$0xff]
    %v3595 = vld [vmem:[%s5 + $0x90] sm:$0xff]
    %v3596 = vld [vmem:[%s5 + $0x98] sm:$0xff]
    %v3597 = vld [vmem:[%s5 + $0xa0] sm:$0xff]
    %v3598 = vld [vmem:[%s5 + $0xa8] sm:$0xff]
    %v3599 = vld [vmem:[%s5 + $0xb0] sm:$0xff]
    %v3600 = vld [vmem:[%s5 + $0xb8] sm:$0xff]
    %v3601 = vld [vmem:[%s5 + $0xc0] sm:$0xff]
    %v3602 = vld [vmem:[%s5 + $0xc8] sm:$0xff]
    %v3603 = vld [vmem:[%s5 + $0xd0] sm:$0xff]
    %v3604 = vld [vmem:[%s5 + $0xd8] sm:$0xff]
    %v3605 = vld [vmem:[%s5 + $0xe0] sm:$0xff]
    %v3606 = vld [vmem:[%s5 + $0xe8] sm:$0xff]
    %v3607 = vld [vmem:[%s5 + $0xf0] sm:$0xff]
    %v3608 = vld [vmem:[%s5 + $0xf8] sm:$0xff]
    %v3609 = vld [vmem:[%s5 + $0x100] sm:$0xff]
    %v3610 = vld [vmem:[%s5 + $0x108] sm:$0xff]
    %v3611 = vld [vmem:[%s5 + $0x110] sm:$0xff]
    %v3612 = vld [vmem:[%s5 + $0x118] sm:$0xff]
    %v3613 = vld [vmem:[%s5 + $0x120] sm:$0xff]
    %v3614 = vld [vmem:[%s5 + $0x128] sm:$0xff]
    %v3615 = vld [vmem:[%s5 + $0x130] sm:$0xff]
    %v3616 = vld [vmem:[%s5 + $0x138] sm:$0xff]
    %v3617 = vld [vmem:[%s5 + $0x140] sm:$0xff]
    %v3618 = vld [vmem:[%s5 + $0x148] sm:$0xff]
    %v3619 = vld [vmem:[%s5 + $0x150] sm:$0xff]
    %v3620 = vld [vmem:[%s5 + $0x158] sm:$0xff]
    %v3621 = vld [vmem:[%s5 + $0x160] sm:$0xff]
    %v3622 = vld [vmem:[%s5 + $0x168] sm:$0xff]
    %v3623 = vld [vmem:[%s5 + $0x170] sm:$0xff]
    %v3624 = vld [vmem:[%s5 + $0x178] sm:$0xff]
    %v3625 = vld [vmem:[%s5 + $0x180] sm:$0xff]
    %v3626 = vld [vmem:[%s5 + $0x188] sm:$0xff]
    %v3627 = vld [vmem:[%s5 + $0x190] sm:$0xff]
    %v3628 = vld [vmem:[%s5 + $0x198] sm:$0xff]
    %v3629 = vld [vmem:[%s5 + $0x1a0] sm:$0xff]
    %v3630 = vld [vmem:[%s5 + $0x1a8] sm:$0xff]
    %v3631 = vld [vmem:[%s5 + $0x1b0] sm:$0xff]
    %v3632 = vld [vmem:[%s5 + $0x1b8] sm:$0xff]
    %v3633 = vld [vmem:[%s5 + $0x1c0] sm:$0xff]
    %v3634 = vld [vmem:[%s5 + $0x1c8] sm:$0xff]
    %v3635 = vld [vmem:[%s5 + $0x1d0] sm:$0xff]
    %v3636 = vld [vmem:[%s5 + $0x1d8] sm:$0xff]
    %v3637 = vld [vmem:[%s5 + $0x1e0] sm:$0xff]
    %v3638 = vld [vmem:[%s5 + $0x1e8] sm:$0xff]
    %v3639 = vld [vmem:[%s5 + $0x1f0] sm:$0xff]
    %v3640 = vld [vmem:[%s5 + $0x1f8] sm:$0xff]
    %v3705 = vunpack.c.l.b16 %v3577
    %v3706 = vunpack.c.h.b16 %v3577
    %v3707 = vunpack.c.l.b16 %v3578
    %v3708 = vunpack.c.h.b16 %v3578
    %v3709 = vunpack.c.l.b16 %v3579
    %v3710 = vunpack.c.h.b16 %v3579
    %v3711 = vunpack.c.l.b16 %v3580
    %v3712 = vunpack.c.h.b16 %v3580
    %v3713 = vunpack.c.l.b16 %v3581
    %v3714 = vunpack.c.h.b16 %v3581
    %v3715 = vunpack.c.l.b16 %v3582
    %v3716 = vunpack.c.h.b16 %v3582
    %v3717 = vunpack.c.l.b16 %v3583
    %v3718 = vunpack.c.h.b16 %v3583
    %v3719 = vunpack.c.l.b16 %v3584
    %v3720 = vunpack.c.h.b16 %v3584
    %v3721 = vunpack.c.l.b16 %v3585
    %v3722 = vunpack.c.h.b16 %v3585
    %v3723 = vunpack.c.l.b16 %v3586
    %v3724 = vunpack.c.h.b16 %v3586
    %v3725 = vunpack.c.l.b16 %v3587
    %v3726 = vunpack.c.h.b16 %v3587
    %v3727 = vunpack.c.l.b16 %v3588
    %v3728 = vunpack.c.h.b16 %v3588
    %v3729 = vunpack.c.l.b16 %v3589
    %v3730 = vunpack.c.h.b16 %v3589
    %v3731 = vunpack.c.l.b16 %v3590
    %v3732 = vunpack.c.h.b16 %v3590
    %v3733 = vunpack.c.l.b16 %v3591
    %v3734 = vunpack.c.h.b16 %v3591
    %v3735 = vunpack.c.l.b16 %v3592
    %v3736 = vunpack.c.h.b16 %v3592
    %v3737 = vunpack.c.l.b16 %v3593
    %v3738 = vunpack.c.h.b16 %v3593
    %v3739 = vunpack.c.l.b16 %v3594
    %v3740 = vunpack.c.h.b16 %v3594
    %v3741 = vunpack.c.l.b16 %v3595
    %v3742 = vunpack.c.h.b16 %v3595
    %v3743 = vunpack.c.l.b16 %v3596
    %v3744 = vunpack.c.h.b16 %v3596
    %v3745 = vunpack.c.l.b16 %v3597
    %v3746 = vunpack.c.h.b16 %v3597
    %v3747 = vunpack.c.l.b16 %v3598
    %v3748 = vunpack.c.h.b16 %v3598
    %v3749 = vunpack.c.l.b16 %v3599
    %v3750 = vunpack.c.h.b16 %v3599
    %v3751 = vunpack.c.l.b16 %v3600
    %v3752 = vunpack.c.h.b16 %v3600
    %v3753 = vunpack.c.l.b16 %v3601
    %v3754 = vunpack.c.h.b16 %v3601
    %v3755 = vunpack.c.l.b16 %v3602
    %v3756 = vunpack.c.h.b16 %v3602
    %v3757 = vunpack.c.l.b16 %v3603
    %v3758 = vunpack.c.h.b16 %v3603
    %v3759 = vunpack.c.l.b16 %v3604
    %v3760 = vunpack.c.h.b16 %v3604
    %v3761 = vunpack.c.l.b16 %v3605
    %v3762 = vunpack.c.h.b16 %v3605
    %v3763 = vunpack.c.l.b16 %v3606
    %v3764 = vunpack.c.h.b16 %v3606
    %v3765 = vunpack.c.l.b16 %v3607
    %v3766 = vunpack.c.h.b16 %v3607
    %v3767 = vunpack.c.l.b16 %v3608
    %v3768 = vunpack.c.h.b16 %v3608
    %v3769 = vunpack.c.l.b16 %v3609
    %v3770 = vunpack.c.h.b16 %v3609
    %v3771 = vunpack.c.l.b16 %v3610
    %v3772 = vunpack.c.h.b16 %v3610
    %v3773 = vunpack.c.l.b16 %v3611
    %v3774 = vunpack.c.h.b16 %v3611
    %v3775 = vunpack.c.l.b16 %v3612
    %v3776 = vunpack.c.h.b16 %v3612
    %v3777 = vunpack.c.l.b16 %v3613
    %v3778 = vunpack.c.h.b16 %v3613
    %v3779 = vunpack.c.l.b16 %v3614
    %v3780 = vunpack.c.h.b16 %v3614
    %v3781 = vunpack.c.l.b16 %v3615
    %v3782 = vunpack.c.h.b16 %v3615
    %v3783 = vunpack.c.l.b16 %v3616
    %v3784 = vunpack.c.h.b16 %v3616
    %v3785 = vunpack.c.l.b16 %v3617
    %v3786 = vunpack.c.h.b16 %v3617
    %v3787 = vunpack.c.l.b16 %v3618
    %v3788 = vunpack.c.h.b16 %v3618
    %v3789 = vunpack.c.l.b16 %v3619
    %v3790 = vunpack.c.h.b16 %v3619
    %v3791 = vunpack.c.l.b16 %v3620
    %v3792 = vunpack.c.h.b16 %v3620
    %v3793 = vunpack.c.l.b16 %v3621
    %v3794 = vunpack.c.h.b16 %v3621
    %v3795 = vunpack.c.l.b16 %v3622
    %v3796 = vunpack.c.h.b16 %v3622
    %v3797 = vunpack.c.l.b16 %v3623
    %v3798 = vunpack.c.h.b16 %v3623
    %v3799 = vunpack.c.l.b16 %v3624
    %v3800 = vunpack.c.h.b16 %v3624
    %v3801 = vunpack.c.l.b16 %v3625
    %v3802 = vunpack.c.h.b16 %v3625
    %v3803 = vunpack.c.l.b16 %v3626
    %v3804 = vunpack.c.h.b16 %v3626
    %v3805 = vunpack.c.l.b16 %v3627
    %v3806 = vunpack.c.h.b16 %v3627
    %v3807 = vunpack.c.l.b16 %v3628
    %v3808 = vunpack.c.h.b16 %v3628
    %v3809 = vunpack.c.l.b16 %v3629
    %v3810 = vunpack.c.h.b16 %v3629
    %v3811 = vunpack.c.l.b16 %v3630
    %v3812 = vunpack.c.h.b16 %v3630
    %v3813 = vunpack.c.l.b16 %v3631
    %v3814 = vunpack.c.h.b16 %v3631
    %v3815 = vunpack.c.l.b16 %v3632
    %v3816 = vunpack.c.h.b16 %v3632
    %v3817 = vunpack.c.l.b16 %v3633
    %v3818 = vunpack.c.h.b16 %v3633
    %v3819 = vunpack.c.l.b16 %v3634
    %v3820 = vunpack.c.h.b16 %v3634
    %v3821 = vunpack.c.l.b16 %v3635
    %v3822 = vunpack.c.h.b16 %v3635
    %v3823 = vunpack.c.l.b16 %v3636
    %v3824 = vunpack.c.h.b16 %v3636
    %v3825 = vunpack.c.l.b16 %v3637
    %v3826 = vunpack.c.h.b16 %v3637
    %v3827 = vunpack.c.l.b16 %v3638
    %v3828 = vunpack.c.h.b16 %v3638
    %v3829 = vunpack.c.l.b16 %v3639
    %v3830 = vunpack.c.h.b16 %v3639
    %v3831 = vunpack.c.l.b16 %v3640
    %v3832 = vunpack.c.h.b16 %v3640
    %v3833 = vpack.c.b16 %v3707, %v3705
    %v3834 = vpack.c.b16 %v3708, %v3706
    %v3835 = vpack.c.b16 %v3711, %v3709
    %v3836 = vpack.c.b16 %v3712, %v3710
    %v3837 = vpack.c.b16 %v3715, %v3713
    %v3838 = vpack.c.b16 %v3716, %v3714
    %v3839 = vpack.c.b16 %v3719, %v3717
    %v3840 = vpack.c.b16 %v3720, %v3718
    %v3841 = vpack.c.b16 %v3723, %v3721
    %v3842 = vpack.c.b16 %v3724, %v3722
    %v3843 = vpack.c.b16 %v3727, %v3725
    %v3844 = vpack.c.b16 %v3728, %v3726
    %v3845 = vpack.c.b16 %v3731, %v3729
    %v3846 = vpack.c.b16 %v3732, %v3730
    %v3847 = vpack.c.b16 %v3735, %v3733
    %v3848 = vpack.c.b16 %v3736, %v3734
    %v3849 = vpack.c.b16 %v3739, %v3737
    %v3850 = vpack.c.b16 %v3740, %v3738
    %v3851 = vpack.c.b16 %v3743, %v3741
    %v3852 = vpack.c.b16 %v3744, %v3742
    %v3853 = vpack.c.b16 %v3747, %v3745
    %v3854 = vpack.c.b16 %v3748, %v3746
    %v3855 = vpack.c.b16 %v3751, %v3749
    %v3856 = vpack.c.b16 %v3752, %v3750
    %v3857 = vpack.c.b16 %v3755, %v3753
    %v3858 = vpack.c.b16 %v3756, %v3754
    %v3859 = vpack.c.b16 %v3759, %v3757
    %v3860 = vpack.c.b16 %v3760, %v3758
    %v3861 = vpack.c.b16 %v3763, %v3761
    %v3862 = vpack.c.b16 %v3764, %v3762
    %v3863 = vpack.c.b16 %v3767, %v3765
    %v3864 = vpack.c.b16 %v3768, %v3766
    %v3865 = vpack.c.b16 %v3771, %v3769
    %v3866 = vpack.c.b16 %v3772, %v3770
    %v3867 = vpack.c.b16 %v3775, %v3773
    %v3868 = vpack.c.b16 %v3776, %v3774
    %v3869 = vpack.c.b16 %v3779, %v3777
    %v3870 = vpack.c.b16 %v3780, %v3778
    %v3871 = vpack.c.b16 %v3783, %v3781
    %v3872 = vpack.c.b16 %v3784, %v3782
    %v3873 = vpack.c.b16 %v3787, %v3785
    %v3874 = vpack.c.b16 %v3788, %v3786
    %v3875 = vpack.c.b16 %v3791, %v3789
    %v3876 = vpack.c.b16 %v3792, %v3790
    %v3877 = vpack.c.b16 %v3795, %v3793
    %v3878 = vpack.c.b16 %v3796, %v3794
    %v3879 = vpack.c.b16 %v3799, %v3797
    %v3880 = vpack.c.b16 %v3800, %v3798
    %v3881 = vpack.c.b16 %v3803, %v3801
    %v3882 = vpack.c.b16 %v3804, %v3802
    %v3883 = vpack.c.b16 %v3807, %v3805
    %v3884 = vpack.c.b16 %v3808, %v3806
    %v3885 = vpack.c.b16 %v3811, %v3809
    %v3886 = vpack.c.b16 %v3812, %v3810
    %v3887 = vpack.c.b16 %v3815, %v3813
    %v3888 = vpack.c.b16 %v3816, %v3814
    %v3889 = vpack.c.b16 %v3819, %v3817
    %v3890 = vpack.c.b16 %v3820, %v3818
    %v3891 = vpack.c.b16 %v3823, %v3821
    %v3892 = vpack.c.b16 %v3824, %v3822
    %v3893 = vpack.c.b16 %v3827, %v3825
    %v3894 = vpack.c.b16 %v3828, %v3826
    %v3895 = vpack.c.b16 %v3831, %v3829
    %v3896 = vpack.c.b16 %v3832, %v3830
    %3961 = vmatpush.bf16.msra.mxu0 %v3847
    %3962 = vmatpush.bf16.msra.mxu0 %v3845
    %3963 = vmatpush.bf16.msra.mxu0 %v3843
    %3964 = vmatpush.bf16.msra.mxu0 %v3841
    %3965 = vmatpush.bf16.msra.mxu0 %v3839
    %3966 = vmatpush.bf16.msra.mxu0 %v3837
    %3967 = vmatpush.bf16.msra.mxu0 %v3835
    %3968 = vmatpush.bf16.msra.mxu0 %v3833
    %3969 = vmatmul.bf16.gmra.mxu0 %v3545
    %v3970 = vpop.f32.mrf.mxu0
    %v3971 = vadd.f32 0.0, %v3970
    %v3972 = vpop.f32.mrf.mxu0
    %v3973 = vadd.f32 0.0, %v3972
    %3974 = vmatmul.bf16.gmra.mxu0 %v3549
    %v3975 = vpop.f32.mrf.mxu0
    %v3976 = vadd.f32 0.0, %v3975
    %v3977 = vpop.f32.mrf.mxu0
    %v3978 = vadd.f32 0.0, %v3977
    %3979 = vmatmul.bf16.gmra.mxu0 %v3553
    %v3980 = vpop.f32.mrf.mxu0
    %v3981 = vadd.f32 0.0, %v3980
    %v3982 = vpop.f32.mrf.mxu0
    %v3983 = vadd.f32 0.0, %v3982
    %3984 = vmatmul.bf16.gmra.mxu0 %v3557
    %v3985 = vpop.f32.mrf.mxu0
    %v3986 = vadd.f32 0.0, %v3985
    %v3987 = vpop.f32.mrf.mxu0
    %v3988 = vadd.f32 0.0, %v3987
    %3989 = vmatmul.bf16.gmra.mxu0 %v3561
    %v3990 = vpop.f32.mrf.mxu0
    %v3991 = vadd.f32 0.0, %v3990
    %v3992 = vpop.f32.mrf.mxu0
    %v3993 = vadd.f32 0.0, %v3992
    %3994 = vmatmul.bf16.gmra.mxu0 %v3565
    %v3995 = vpop.f32.mrf.mxu0
    %v3996 = vadd.f32 0.0, %v3995
    %v3997 = vpop.f32.mrf.mxu0
    %v3998 = vadd.f32 0.0, %v3997
    %3999 = vmatmul.bf16.gmra.mxu0 %v3569
    %v4000 = vpop.f32.mrf.mxu0
    %v4001 = vadd.f32 0.0, %v4000
    %v4002 = vpop.f32.mrf.mxu0
    %v4003 = vadd.f32 0.0, %v4002
    %4004 = vmatmul.bf16.gmra.mxu0 %v3573
    %v4005 = vpop.f32.mrf.mxu0
    %v4006 = vadd.f32 0.0, %v4005
    %v4007 = vpop.f32.mrf.mxu0
    %v4008 = vadd.f32 0.0, %v4007
    %4009 = vdwg.mxu0
    %4010 = vmatpush.bf16.msra.mxu0 %v3863
    %4011 = vmatpush.bf16.msra.mxu0 %v3861
    %4012 = vmatpush.bf16.msra.mxu0 %v3859
    %4013 = vmatpush.bf16.msra.mxu0 %v3857
    %4014 = vmatpush.bf16.msra.mxu0 %v3855
    %4015 = vmatpush.bf16.msra.mxu0 %v3853
    %4016 = vmatpush.bf16.msra.mxu0 %v3851
    %4017 = vmatpush.bf16.msra.mxu0 %v3849
    %4018 = vmatmul.bf16.gmra.mxu0 %v3546
    %v4019 = vpop.f32.mrf.mxu0
    %v4020 = vadd.f32 %v3971, %v4019
    %v4021 = vpop.f32.mrf.mxu0
    %v4022 = vadd.f32 %v3973, %v4021
    %4023 = vmatmul.bf16.gmra.mxu0 %v3550
    %v4024 = vpop.f32.mrf.mxu0
    %v4025 = vadd.f32 %v3976, %v4024
    %v4026 = vpop.f32.mrf.mxu0
    %v4027 = vadd.f32 %v3978, %v4026
    %4028 = vmatmul.bf16.gmra.mxu0 %v3554
    %v4029 = vpop.f32.mrf.mxu0
    %v4030 = vadd.f32 %v3981, %v4029
    %v4031 = vpop.f32.mrf.mxu0
    %v4032 = vadd.f32 %v3983, %v4031
    %4033 = vmatmul.bf16.gmra.mxu0 %v3558
    %v4034 = vpop.f32.mrf.mxu0
    %v4035 = vadd.f32 %v3986, %v4034
    %v4036 = vpop.f32.mrf.mxu0
    %v4037 = vadd.f32 %v3988, %v4036
    %4038 = vmatmul.bf16.gmra.mxu0 %v3562
    %v4039 = vpop.f32.mrf.mxu0
    %v4040 = vadd.f32 %v3991, %v4039
    %v4041 = vpop.f32.mrf.mxu0
    %v4042 = vadd.f32 %v3993, %v4041
    %4043 = vmatmul.bf16.gmra.mxu0 %v3566
    %v4044 = vpop.f32.mrf.mxu0
    %v4045 = vadd.f32 %v3996, %v4044
    %v4046 = vpop.f32.mrf.mxu0
    %v4047 = vadd.f32 %v3998, %v4046
    %4048 = vmatmul.bf16.gmra.mxu0 %v3570
    %v4049 = vpop.f32.mrf.mxu0
    %v4050 = vadd.f32 %v4001, %v4049
    %v4051 = vpop.f32.mrf.mxu0
    %v4052 = vadd.f32 %v4003, %v4051
    %4053 = vmatmul.bf16.gmra.mxu0 %v3574
    %v4054 = vpop.f32.mrf.mxu0
    %v4055 = vadd.f32 %v4006, %v4054
    %v4056 = vpop.f32.mrf.mxu0
    %v4057 = vadd.f32 %v4008, %v4056
    %4058 = vdwg.mxu0
    %4059 = vmatpush.bf16.msra.mxu0 %v3879
    %4060 = vmatpush.bf16.msra.mxu0 %v3877
    %4061 = vmatpush.bf16.msra.mxu0 %v3875
    %4062 = vmatpush.bf16.msra.mxu0 %v3873
    %4063 = vmatpush.bf16.msra.mxu0 %v3871
    %4064 = vmatpush.bf16.msra.mxu0 %v3869
    %4065 = vmatpush.bf16.msra.mxu0 %v3867
    %4066 = vmatpush.bf16.msra.mxu0 %v3865
    %4067 = vmatmul.bf16.gmra.mxu0 %v3547
    %v4068 = vpop.f32.mrf.mxu0
    %v4069 = vadd.f32 %v4020, %v4068
    %v4070 = vpop.f32.mrf.mxu0
    %v4071 = vadd.f32 %v4022, %v4070
    %4072 = vmatmul.bf16.gmra.mxu0 %v3551
    %v4073 = vpop.f32.mrf.mxu0
    %v4074 = vadd.f32 %v4025, %v4073
    %v4075 = vpop.f32.mrf.mxu0
    %v4076 = vadd.f32 %v4027, %v4075
    %4077 = vmatmul.bf16.gmra.mxu0 %v3555
    %v4078 = vpop.f32.mrf.mxu0
    %v4079 = vadd.f32 %v4030, %v4078
    %v4080 = vpop.f32.mrf.mxu0
    %v4081 = vadd.f32 %v4032, %v4080
    %4082 = vmatmul.bf16.gmra.mxu0 %v3559
    %v4083 = vpop.f32.mrf.mxu0
    %v4084 = vadd.f32 %v4035, %v4083
    %v4085 = vpop.f32.mrf.mxu0
    %v4086 = vadd.f32 %v4037, %v4085
    %4087 = vmatmul.bf16.gmra.mxu0 %v3563
    %v4088 = vpop.f32.mrf.mxu0
    %v4089 = vadd.f32 %v4040, %v4088
    %v4090 = vpop.f32.mrf.mxu0
    %v4091 = vadd.f32 %v4042, %v4090
    %4092 = vmatmul.bf16.gmra.mxu0 %v3567
    %v4093 = vpop.f32.mrf.mxu0
    %v4094 = vadd.f32 %v4045, %v4093
    %v4095 = vpop.f32.mrf.mxu0
    %v4096 = vadd.f32 %v4047, %v4095
    %4097 = vmatmul.bf16.gmra.mxu0 %v3571
    %v4098 = vpop.f32.mrf.mxu0
    %v4099 = vadd.f32 %v4050, %v4098
    %v4100 = vpop.f32.mrf.mxu0
    %v4101 = vadd.f32 %v4052, %v4100
    %4102 = vmatmul.bf16.gmra.mxu0 %v3575
    %v4103 = vpop.f32.mrf.mxu0
    %v4104 = vadd.f32 %v4055, %v4103
    %v4105 = vpop.f32.mrf.mxu0
    %v4106 = vadd.f32 %v4057, %v4105
    %4107 = vdwg.mxu0
    %4108 = vmatpush.bf16.msra.mxu0 %v3895
    %4109 = vmatpush.bf16.msra.mxu0 %v3893
    %4110 = vmatpush.bf16.msra.mxu0 %v3891
    %4111 = vmatpush.bf16.msra.mxu0 %v3889
    %4112 = vmatpush.bf16.msra.mxu0 %v3887
    %4113 = vmatpush.bf16.msra.mxu0 %v3885
    %4114 = vmatpush.bf16.msra.mxu0 %v3883
    %4115 = vmatpush.bf16.msra.mxu0 %v3881
    %4116 = vmatmul.bf16.gmra.mxu0 %v3548
    %v4117 = vpop.f32.mrf.mxu0
    %v4118 = vadd.f32 %v4069, %v4117
    %v4119 = vpop.f32.mrf.mxu0
    %v4120 = vadd.f32 %v4071, %v4119
    %4121 = vmatmul.bf16.gmra.mxu0 %v3552
    %v4122 = vpop.f32.mrf.mxu0
    %v4123 = vadd.f32 %v4074, %v4122
    %v4124 = vpop.f32.mrf.mxu0
    %v4125 = vadd.f32 %v4076, %v4124
    %4126 = vmatmul.bf16.gmra.mxu0 %v3556
    %v4127 = vpop.f32.mrf.mxu0
    %v4128 = vadd.f32 %v4079, %v4127
    %v4129 = vpop.f32.mrf.mxu0
    %v4130 = vadd.f32 %v4081, %v4129
    %4131 = vmatmul.bf16.gmra.mxu0 %v3560
    %v4132 = vpop.f32.mrf.mxu0
    %v4133 = vadd.f32 %v4084, %v4132
    %v4134 = vpop.f32.mrf.mxu0
    %v4135 = vadd.f32 %v4086, %v4134
    %4136 = vmatmul.bf16.gmra.mxu0 %v3564
    %v4137 = vpop.f32.mrf.mxu0
    %v4138 = vadd.f32 %v4089, %v4137
    %v4139 = vpop.f32.mrf.mxu0
    %v4140 = vadd.f32 %v4091, %v4139
    %4141 = vmatmul.bf16.gmra.mxu0 %v3568
    %v4142 = vpop.f32.mrf.mxu0
    %v4143 = vadd.f32 %v4094, %v4142
    %v4144 = vpop.f32.mrf.mxu0
    %v4145 = vadd.f32 %v4096, %v4144
    %4146 = vmatmul.bf16.gmra.mxu0 %v3572
    %v4147 = vpop.f32.mrf.mxu0
    %v4148 = vadd.f32 %v4099, %v4147
    %v4149 = vpop.f32.mrf.mxu0
    %v4150 = vadd.f32 %v4101, %v4149
    %4151 = vmatmul.bf16.gmra.mxu0 %v3576
    %v4152 = vpop.f32.mrf.mxu0
    %v4153 = vadd.f32 %v4104, %v4152
    %v4154 = vpop.f32.mrf.mxu0
    %v4155 = vadd.f32 %v4106, %v4154
    %4156 = vdwg.mxu0
    %4157 = vmatpush.bf16.msra.mxu0 %v3848
    %4158 = vmatpush.bf16.msra.mxu0 %v3846
    %4159 = vmatpush.bf16.msra.mxu0 %v3844
    %4160 = vmatpush.bf16.msra.mxu0 %v3842
    %4161 = vmatpush.bf16.msra.mxu0 %v3840
    %4162 = vmatpush.bf16.msra.mxu0 %v3838
    %4163 = vmatpush.bf16.msra.mxu0 %v3836
    %4164 = vmatpush.bf16.msra.mxu0 %v3834
    %4165 = vmatmul.bf16.gmra.mxu0 %v3545
    %v4166 = vpop.f32.mrf.mxu0
    %v4167 = vadd.f32 0.0, %v4166
    %v4168 = vpop.f32.mrf.mxu0
    %v4169 = vadd.f32 0.0, %v4168
    %4170 = vmatmul.bf16.gmra.mxu0 %v3549
    %v4171 = vpop.f32.mrf.mxu0
    %v4172 = vadd.f32 0.0, %v4171
    %v4173 = vpop.f32.mrf.mxu0
    %v4174 = vadd.f32 0.0, %v4173
    %4175 = vmatmul.bf16.gmra.mxu0 %v3553
    %v4176 = vpop.f32.mrf.mxu0
    %v4177 = vadd.f32 0.0, %v4176
    %v4178 = vpop.f32.mrf.mxu0
    %v4179 = vadd.f32 0.0, %v4178
    %4180 = vmatmul.bf16.gmra.mxu0 %v3557
    %v4181 = vpop.f32.mrf.mxu0
    %v4182 = vadd.f32 0.0, %v4181
    %v4183 = vpop.f32.mrf.mxu0
    %v4184 = vadd.f32 0.0, %v4183
    %4185 = vmatmul.bf16.gmra.mxu0 %v3561
    %v4186 = vpop.f32.mrf.mxu0
    %v4187 = vadd.f32 0.0, %v4186
    %v4188 = vpop.f32.mrf.mxu0
    %v4189 = vadd.f32 0.0, %v4188
    %4190 = vmatmul.bf16.gmra.mxu0 %v3565
    %v4191 = vpop.f32.mrf.mxu0
    %v4192 = vadd.f32 0.0, %v4191
    %v4193 = vpop.f32.mrf.mxu0
    %v4194 = vadd.f32 0.0, %v4193
    %4195 = vmatmul.bf16.gmra.mxu0 %v3569
    %v4196 = vpop.f32.mrf.mxu0
    %v4197 = vadd.f32 0.0, %v4196
    %v4198 = vpop.f32.mrf.mxu0
    %v4199 = vadd.f32 0.0, %v4198
    %4200 = vmatmul.bf16.gmra.mxu0 %v3573
    %v4201 = vpop.f32.mrf.mxu0
    %v4202 = vadd.f32 0.0, %v4201
    %v4203 = vpop.f32.mrf.mxu0
    %v4204 = vadd.f32 0.0, %v4203
    %4205 = vdwg.mxu0
    %4206 = vmatpush.bf16.msra.mxu0 %v3864
    %4207 = vmatpush.bf16.msra.mxu0 %v3862
    %4208 = vmatpush.bf16.msra.mxu0 %v3860
    %4209 = vmatpush.bf16.msra.mxu0 %v3858
    %4210 = vmatpush.bf16.msra.mxu0 %v3856
    %4211 = vmatpush.bf16.msra.mxu0 %v3854
    %4212 = vmatpush.bf16.msra.mxu0 %v3852
    %4213 = vmatpush.bf16.msra.mxu0 %v3850
    %4214 = vmatmul.bf16.gmra.mxu0 %v3546
    %v4215 = vpop.f32.mrf.mxu0
    %v4216 = vadd.f32 %v4167, %v4215
    %v4217 = vpop.f32.mrf.mxu0
    %v4218 = vadd.f32 %v4169, %v4217
    %4219 = vmatmul.bf16.gmra.mxu0 %v3550
    %v4220 = vpop.f32.mrf.mxu0
    %v4221 = vadd.f32 %v4172, %v4220
    %v4222 = vpop.f32.mrf.mxu0
    %v4223 = vadd.f32 %v4174, %v4222
    %4224 = vmatmul.bf16.gmra.mxu0 %v3554
    %v4225 = vpop.f32.mrf.mxu0
    %v4226 = vadd.f32 %v4177, %v4225
    %v4227 = vpop.f32.mrf.mxu0
    %v4228 = vadd.f32 %v4179, %v4227
    %4229 = vmatmul.bf16.gmra.mxu0 %v3558
    %v4230 = vpop.f32.mrf.mxu0
    %v4231 = vadd.f32 %v4182, %v4230
    %v4232 = vpop.f32.mrf.mxu0
    %v4233 = vadd.f32 %v4184, %v4232
    %4234 = vmatmul.bf16.gmra.mxu0 %v3562
    %v4235 = vpop.f32.mrf.mxu0
    %v4236 = vadd.f32 %v4187, %v4235
    %v4237 = vpop.f32.mrf.mxu0
    %v4238 = vadd.f32 %v4189, %v4237
    %4239 = vmatmul.bf16.gmra.mxu0 %v3566
    %v4240 = vpop.f32.mrf.mxu0
    %v4241 = vadd.f32 %v4192, %v4240
    %v4242 = vpop.f32.mrf.mxu0
    %v4243 = vadd.f32 %v4194, %v4242
    %4244 = vmatmul.bf16.gmra.mxu0 %v3570
    %v4245 = vpop.f32.mrf.mxu0
    %v4246 = vadd.f32 %v4197, %v4245
    %v4247 = vpop.f32.mrf.mxu0
    %v4248 = vadd.f32 %v4199, %v4247
    %4249 = vmatmul.bf16.gmra.mxu0 %v3574
    %v4250 = vpop.f32.mrf.mxu0
    %v4251 = vadd.f32 %v4202, %v4250
    %v4252 = vpop.f32.mrf.mxu0
    %v4253 = vadd.f32 %v4204, %v4252
    %4254 = vdwg.mxu0
    %4255 = vmatpush.bf16.msra.mxu0 %v3880
    %4256 = vmatpush.bf16.msra.mxu0 %v3878
    %4257 = vmatpush.bf16.msra.mxu0 %v3876
    %4258 = vmatpush.bf16.msra.mxu0 %v3874
    %4259 = vmatpush.bf16.msra.mxu0 %v3872
    %4260 = vmatpush.bf16.msra.mxu0 %v3870
    %4261 = vmatpush.bf16.msra.mxu0 %v3868
    %4262 = vmatpush.bf16.msra.mxu0 %v3866
    %4263 = vmatmul.bf16.gmra.mxu0 %v3547
    %v4264 = vpop.f32.mrf.mxu0
    %v4265 = vadd.f32 %v4216, %v4264
    %v4266 = vpop.f32.mrf.mxu0
    %v4267 = vadd.f32 %v4218, %v4266
    %4268 = vmatmul.bf16.gmra.mxu0 %v3551
    %v4269 = vpop.f32.mrf.mxu0
    %v4270 = vadd.f32 %v4221, %v4269
    %v4271 = vpop.f32.mrf.mxu0
    %v4272 = vadd.f32 %v4223, %v4271
    %4273 = vmatmul.bf16.gmra.mxu0 %v3555
    %v4274 = vpop.f32.mrf.mxu0
    %v4275 = vadd.f32 %v4226, %v4274
    %v4276 = vpop.f32.mrf.mxu0
    %v4277 = vadd.f32 %v4228, %v4276
    %4278 = vmatmul.bf16.gmra.mxu0 %v3559
    %v4279 = vpop.f32.mrf.mxu0
    %v4280 = vadd.f32 %v4231, %v4279
    %v4281 = vpop.f32.mrf.mxu0
    %v4282 = vadd.f32 %v4233, %v4281
    %4283 = vmatmul.bf16.gmra.mxu0 %v3563
    %v4284 = vpop.f32.mrf.mxu0
    %v4285 = vadd.f32 %v4236, %v4284
    %v4286 = vpop.f32.mrf.mxu0
    %v4287 = vadd.f32 %v4238, %v4286
    %4288 = vmatmul.bf16.gmra.mxu0 %v3567
    %v4289 = vpop.f32.mrf.mxu0
    %v4290 = vadd.f32 %v4241, %v4289
    %v4291 = vpop.f32.mrf.mxu0
    %v4292 = vadd.f32 %v4243, %v4291
    %4293 = vmatmul.bf16.gmra.mxu0 %v3571
    %v4294 = vpop.f32.mrf.mxu0
    %v4295 = vadd.f32 %v4246, %v4294
    %v4296 = vpop.f32.mrf.mxu0
    %v4297 = vadd.f32 %v4248, %v4296
    %4298 = vmatmul.bf16.gmra.mxu0 %v3575
    %v4299 = vpop.f32.mrf.mxu0
    %v4300 = vadd.f32 %v4251, %v4299
    %v4301 = vpop.f32.mrf.mxu0
    %v4302 = vadd.f32 %v4253, %v4301
    %4303 = vdwg.mxu0
    %4304 = vmatpush.bf16.msra.mxu0 %v3896
    %4305 = vmatpush.bf16.msra.mxu0 %v3894
    %4306 = vmatpush.bf16.msra.mxu0 %v3892
    %4307 = vmatpush.bf16.msra.mxu0 %v3890
    %4308 = vmatpush.bf16.msra.mxu0 %v3888
    %4309 = vmatpush.bf16.msra.mxu0 %v3886
    %4310 = vmatpush.bf16.msra.mxu0 %v3884
    %4311 = vmatpush.bf16.msra.mxu0 %v3882
    %4312 = vmatmul.bf16.gmra.mxu0 %v3548
    %v4313 = vpop.f32.mrf.mxu0
    %v4314 = vadd.f32 %v4265, %v4313
    %v4315 = vpop.f32.mrf.mxu0
    %v4316 = vadd.f32 %v4267, %v4315
    %4317 = vmatmul.bf16.gmra.mxu0 %v3552
    %v4318 = vpop.f32.mrf.mxu0
    %v4319 = vadd.f32 %v4270, %v4318
    %v4320 = vpop.f32.mrf.mxu0
    %v4321 = vadd.f32 %v4272, %v4320
    %4322 = vmatmul.bf16.gmra.mxu0 %v3556
    %v4323 = vpop.f32.mrf.mxu0
    %v4324 = vadd.f32 %v4275, %v4323
    %v4325 = vpop.f32.mrf.mxu0
    %v4326 = vadd.f32 %v4277, %v4325
    %4327 = vmatmul.bf16.gmra.mxu0 %v3560
    %v4328 = vpop.f32.mrf.mxu0
    %v4329 = vadd.f32 %v4280, %v4328
    %v4330 = vpop.f32.mrf.mxu0
    %v4331 = vadd.f32 %v4282, %v4330
    %4332 = vmatmul.bf16.gmra.mxu0 %v3564
    %v4333 = vpop.f32.mrf.mxu0
    %v4334 = vadd.f32 %v4285, %v4333
    %v4335 = vpop.f32.mrf.mxu0
    %v4336 = vadd.f32 %v4287, %v4335
    %4337 = vmatmul.bf16.gmra.mxu0 %v3568
    %v4338 = vpop.f32.mrf.mxu0
    %v4339 = vadd.f32 %v4290, %v4338
    %v4340 = vpop.f32.mrf.mxu0
    %v4341 = vadd.f32 %v4292, %v4340
    %4342 = vmatmul.bf16.gmra.mxu0 %v3572
    %v4343 = vpop.f32.mrf.mxu0
    %v4344 = vadd.f32 %v4295, %v4343
    %v4345 = vpop.f32.mrf.mxu0
    %v4346 = vadd.f32 %v4297, %v4345
    %4347 = vmatmul.bf16.gmra.mxu0 %v3576
    %v4348 = vpop.f32.mrf.mxu0
    %v4349 = vadd.f32 %v4300, %v4348
    %v4350 = vpop.f32.mrf.mxu0
    %v4351 = vadd.f32 %v4302, %v4350
    %4352 = vdwg.mxu0
    %v4353 = vadd.f32 %v4118, %v4120
    %v4354 = vadd.f32 %v4353, %v4123
    %v4355 = vadd.f32 %v4354, %v4125
    %v4356 = vadd.f32 %v4355, %v4128
    %v4357 = vadd.f32 %v4356, %v4130
    %v4358 = vadd.f32 %v4357, %v4133
    %v4359 = vadd.f32 %v4358, %v4135
    %v4360 = vadd.f32 %v4359, %v4138
    %v4361 = vadd.f32 %v4360, %v4140
    %v4362 = vadd.f32 %v4361, %v4143
    %v4363 = vadd.f32 %v4362, %v4145
    %v4364 = vadd.f32 %v4363, %v4148
    %v4365 = vadd.f32 %v4364, %v4150
    %v4366 = vadd.f32 %v4365, %v4153
    %v4367 = vadd.f32 %v4366, %v4155
    %v4368 = vrot.slane %v4367, 4
    %v4369 = vadd.f32 %v4367, %v4368
    %v4370 = vrot.slane %v4369, 2
    %v4371 = vadd.f32 %v4369, %v4370
    %v4372 = vrot.slane %v4371, 1
    %v4373 = vadd.f32 %v4371, %v4372
    %v4374 = vadd.f32 %v4314, %v4316
    %v4375 = vadd.f32 %v4374, %v4319
    %v4376 = vadd.f32 %v4375, %v4321
    %v4377 = vadd.f32 %v4376, %v4324
    %v4378 = vadd.f32 %v4377, %v4326
    %v4379 = vadd.f32 %v4378, %v4329
    %v4380 = vadd.f32 %v4379, %v4331
    %v4381 = vadd.f32 %v4380, %v4334
    %v4382 = vadd.f32 %v4381, %v4336
    %v4383 = vadd.f32 %v4382, %v4339
    %v4384 = vadd.f32 %v4383, %v4341
    %v4385 = vadd.f32 %v4384, %v4344
    %v4386 = vadd.f32 %v4385, %v4346
    %v4387 = vadd.f32 %v4386, %v4349
    %v4388 = vadd.f32 %v4387, %v4351
    %v4389 = vrot.slane %v4388, 4
    %v4390 = vadd.f32 %v4388, %v4389
    %v4391 = vrot.slane %v4390, 2
    %v4392 = vadd.f32 %v4390, %v4391
    %v4393 = vrot.slane %v4392, 1
    %v4394 = vadd.f32 %v4392, %v4393
    %v4395 = vmul.f32 %v4373, %v2923
    %v4396 = vmul.f32 %v4394, %v2923
    %v4397 = vsub.f32 %v4118, %v4395
    %v4398 = vsub.f32 %v4314, %v4396
    %v4399 = vsub.f32 %v4120, %v4395
    %v4400 = vsub.f32 %v4316, %v4396
    %v4401 = vsub.f32 %v4123, %v4395
    %v4402 = vsub.f32 %v4319, %v4396
    %v4403 = vsub.f32 %v4125, %v4395
    %v4404 = vsub.f32 %v4321, %v4396
    %v4405 = vsub.f32 %v4128, %v4395
    %v4406 = vsub.f32 %v4324, %v4396
    %v4407 = vsub.f32 %v4130, %v4395
    %v4408 = vsub.f32 %v4326, %v4396
    %v4409 = vsub.f32 %v4133, %v4395
    %v4410 = vsub.f32 %v4329, %v4396
    %v4411 = vsub.f32 %v4135, %v4395
    %v4412 = vsub.f32 %v4331, %v4396
    %v4413 = vsub.f32 %v4138, %v4395
    %v4414 = vsub.f32 %v4334, %v4396
    %v4415 = vsub.f32 %v4140, %v4395
    %v4416 = vsub.f32 %v4336, %v4396
    %v4417 = vsub.f32 %v4143, %v4395
    %v4418 = vsub.f32 %v4339, %v4396
    %v4419 = vsub.f32 %v4145, %v4395
    %v4420 = vsub.f32 %v4341, %v4396
    %v4421 = vsub.f32 %v4148, %v4395
    %v4422 = vsub.f32 %v4344, %v4396
    %v4423 = vsub.f32 %v4150, %v4395
    %v4424 = vsub.f32 %v4346, %v4396
    %v4425 = vsub.f32 %v4153, %v4395
    %v4426 = vsub.f32 %v4349, %v4396
    %v4427 = vsub.f32 %v4155, %v4395
    %v4428 = vsub.f32 %v4351, %v4396
    %v4429 = vmul.f32 %v4397, %v4397
    %v4430 = vmul.f32 %v4398, %v4398
    %v4431 = vmul.f32 %v4399, %v4399
    %v4432 = vmul.f32 %v4400, %v4400
    %v4433 = vmul.f32 %v4401, %v4401
    %v4434 = vmul.f32 %v4402, %v4402
    %v4435 = vmul.f32 %v4403, %v4403
    %v4436 = vmul.f32 %v4404, %v4404
    %v4437 = vmul.f32 %v4405, %v4405
    %v4438 = vmul.f32 %v4406, %v4406
    %v4439 = vmul.f32 %v4407, %v4407
    %v4440 = vmul.f32 %v4408, %v4408
    %v4441 = vmul.f32 %v4409, %v4409
    %v4442 = vmul.f32 %v4410, %v4410
    %v4443 = vmul.f32 %v4411, %v4411
    %v4444 = vmul.f32 %v4412, %v4412
    %v4445 = vmul.f32 %v4413, %v4413
    %v4446 = vmul.f32 %v4414, %v4414
    %v4447 = vmul.f32 %v4415, %v4415
    %v4448 = vmul.f32 %v4416, %v4416
    %v4449 = vmul.f32 %v4417, %v4417
    %v4450 = vmul.f32 %v4418, %v4418
    %v4451 = vmul.f32 %v4419, %v4419
    %v4452 = vmul.f32 %v4420, %v4420
    %v4453 = vmul.f32 %v4421, %v4421
    %v4454 = vmul.f32 %v4422, %v4422
    %v4455 = vmul.f32 %v4423, %v4423
    %v4456 = vmul.f32 %v4424, %v4424
    %v4457 = vmul.f32 %v4425, %v4425
    %v4458 = vmul.f32 %v4426, %v4426
    %v4459 = vmul.f32 %v4427, %v4427
    %v4460 = vmul.f32 %v4428, %v4428
    %v4461 = vadd.f32 %v4429, %v4431
    %v4462 = vadd.f32 %v4461, %v4433
    %v4463 = vadd.f32 %v4462, %v4435
    %v4464 = vadd.f32 %v4463, %v4437
    %v4465 = vadd.f32 %v4464, %v4439
    %v4466 = vadd.f32 %v4465, %v4441
    %v4467 = vadd.f32 %v4466, %v4443
    %v4468 = vadd.f32 %v4467, %v4445
    %v4469 = vadd.f32 %v4468, %v4447
    %v4470 = vadd.f32 %v4469, %v4449
    %v4471 = vadd.f32 %v4470, %v4451
    %v4472 = vadd.f32 %v4471, %v4453
    %v4473 = vadd.f32 %v4472, %v4455
    %v4474 = vadd.f32 %v4473, %v4457
    %v4475 = vadd.f32 %v4474, %v4459
    %v4476 = vrot.slane %v4475, 4
    %v4477 = vadd.f32 %v4475, %v4476
    %v4478 = vrot.slane %v4477, 2
    %v4479 = vadd.f32 %v4477, %v4478
    %v4480 = vrot.slane %v4479, 1
    %v4481 = vadd.f32 %v4479, %v4480
    %v4482 = vadd.f32 %v4430, %v4432
    %v4483 = vadd.f32 %v4482, %v4434
    %v4484 = vadd.f32 %v4483, %v4436
    %v4485 = vadd.f32 %v4484, %v4438
    %v4486 = vadd.f32 %v4485, %v4440
    %v4487 = vadd.f32 %v4486, %v4442
    %v4488 = vadd.f32 %v4487, %v4444
    %v4489 = vadd.f32 %v4488, %v4446
    %v4490 = vadd.f32 %v4489, %v4448
    %v4491 = vadd.f32 %v4490, %v4450
    %v4492 = vadd.f32 %v4491, %v4452
    %v4493 = vadd.f32 %v4492, %v4454
    %v4494 = vadd.f32 %v4493, %v4456
    %v4495 = vadd.f32 %v4494, %v4458
    %v4496 = vadd.f32 %v4495, %v4460
    %v4497 = vrot.slane %v4496, 4
    %v4498 = vadd.f32 %v4496, %v4497
    %v4499 = vrot.slane %v4498, 2
    %v4500 = vadd.f32 %v4498, %v4499
    %v4501 = vrot.slane %v4500, 1
    %v4502 = vadd.f32 %v4500, %v4501
    %v4503 = vmul.f32 %v4481, %v2923
    %v4504 = vmul.f32 %v4502, %v2923
    %v4505 = vld [vmem:[%s6] sm:$0x3]
    %v4506 = vadd.f32 %v4503, 1e-05
    %v4507 = vadd.f32 %v4504, 1e-05
    %v4508 = vrsqrt.pop %v4506
    %v4509 = vmul.f32 %v4508, %v4506
    %v4510 = vmul.f32 %v4509, %v4508
    %v4511 = vmul.f32 0.5, %v4510
    %v4512 = vsub.f32 1.5, %v4511
    %v4513 = vmul.f32 %v4508, %v4512
    %vm4514 = vweird.f32 %v4506
    %vm4515 = vweird.f32 %v4508
    %vm4516 = vmor %vm4514, %vm4515
    %v4517 = vsel %vm4516, %v4508, %v4513
    %v4518 = vrsqrt.pop %v4507
    %v4519 = vmul.f32 %v4518, %v4507
    %v4520 = vmul.f32 %v4519, %v4518
    %v4521 = vmul.f32 0.5, %v4520
    %v4522 = vsub.f32 1.5, %v4521
    %v4523 = vmul.f32 %v4518, %v4522
    %vm4524 = vweird.f32 %v4507
    %vm4525 = vweird.f32 %v4518
    %vm4526 = vmor %vm4524, %vm4525
    %v4527 = vsel %vm4526, %v4518, %v4523
    %v4530 = vrot.slane %v4527, 7
    %v4531 = vsel %vm3196, %v4517, %v4530
    %v4533 = vmul.f32 %v4505, %v4531
    %v4535 = vperm.slane %v4533, 0
    %v4536 = vperm.slane %v4533, 1
    %v4539 = vmul.f32 %v4397, %v4535
    %v4540 = vmul.f32 %v4398, %v4536
    %v4541 = vmul.f32 %v4399, %v4535
    %v4542 = vmul.f32 %v4400, %v4536
    %v4543 = vmul.f32 %v4401, %v4535
    %v4544 = vmul.f32 %v4402, %v4536
    %v4545 = vmul.f32 %v4403, %v4535
    %v4546 = vmul.f32 %v4404, %v4536
    %v4547 = vmul.f32 %v4405, %v4535
    %v4548 = vmul.f32 %v4406, %v4536
    %v4549 = vmul.f32 %v4407, %v4535
    %v4550 = vmul.f32 %v4408, %v4536
    %v4551 = vmul.f32 %v4409, %v4535
    %v4552 = vmul.f32 %v4410, %v4536
    %v4553 = vmul.f32 %v4411, %v4535
    %v4554 = vmul.f32 %v4412, %v4536
    %v4555 = vmul.f32 %v4413, %v4535
    %v4556 = vmul.f32 %v4414, %v4536
    %v4557 = vmul.f32 %v4415, %v4535
    %v4558 = vmul.f32 %v4416, %v4536
    %v4559 = vmul.f32 %v4417, %v4535
    %v4560 = vmul.f32 %v4418, %v4536
    %v4561 = vmul.f32 %v4419, %v4535
    %v4562 = vmul.f32 %v4420, %v4536
    %v4563 = vmul.f32 %v4421, %v4535
    %v4564 = vmul.f32 %v4422, %v4536
    %v4565 = vmul.f32 %v4423, %v4535
    %v4566 = vmul.f32 %v4424, %v4536
    %v4567 = vmul.f32 %v4425, %v4535
    %v4568 = vmul.f32 %v4426, %v4536
    %v4569 = vmul.f32 %v4427, %v4535
    %v4570 = vmul.f32 %v4428, %v4536
    %v4571 = vld [vmem:[%s7] sm:$0x3]
    %v4573 = vperm.slane %v4571, 0
    %v4574 = vperm.slane %v4571, 1
    %v4577 = vadd.f32 %v4539, %v4573
    %v4578 = vadd.f32 %v4540, %v4574
    %v4579 = vadd.f32 %v4541, %v4573
    %v4580 = vadd.f32 %v4542, %v4574
    %v4581 = vadd.f32 %v4543, %v4573
    %v4582 = vadd.f32 %v4544, %v4574
    %v4583 = vadd.f32 %v4545, %v4573
    %v4584 = vadd.f32 %v4546, %v4574
    %v4585 = vadd.f32 %v4547, %v4573
    %v4586 = vadd.f32 %v4548, %v4574
    %v4587 = vadd.f32 %v4549, %v4573
    %v4588 = vadd.f32 %v4550, %v4574
    %v4589 = vadd.f32 %v4551, %v4573
    %v4590 = vadd.f32 %v4552, %v4574
    %v4591 = vadd.f32 %v4553, %v4573
    %v4592 = vadd.f32 %v4554, %v4574
    %v4593 = vadd.f32 %v4555, %v4573
    %v4594 = vadd.f32 %v4556, %v4574
    %v4595 = vadd.f32 %v4557, %v4573
    %v4596 = vadd.f32 %v4558, %v4574
    %v4597 = vadd.f32 %v4559, %v4573
    %v4598 = vadd.f32 %v4560, %v4574
    %v4599 = vadd.f32 %v4561, %v4573
    %v4600 = vadd.f32 %v4562, %v4574
    %v4601 = vadd.f32 %v4563, %v4573
    %v4602 = vadd.f32 %v4564, %v4574
    %v4603 = vadd.f32 %v4565, %v4573
    %v4604 = vadd.f32 %v4566, %v4574
    %v4605 = vadd.f32 %v4567, %v4573
    %v4606 = vadd.f32 %v4568, %v4574
    %v4607 = vadd.f32 %v4569, %v4573
    %v4608 = vadd.f32 %v4570, %v4574
    %vm4609 = vcmp.ge.f32.partialorder %v4577, 0.0
    %vm4610 = vcmp.ge.f32.partialorder %v4578, 0.0
    %vm4611 = vcmp.ge.f32.partialorder %v4579, 0.0
    %vm4612 = vcmp.ge.f32.partialorder %v4580, 0.0
    %vm4613 = vcmp.ge.f32.partialorder %v4581, 0.0
    %vm4614 = vcmp.ge.f32.partialorder %v4582, 0.0
    %vm4615 = vcmp.ge.f32.partialorder %v4583, 0.0
    %vm4616 = vcmp.ge.f32.partialorder %v4584, 0.0
    %vm4617 = vcmp.ge.f32.partialorder %v4585, 0.0
    %vm4618 = vcmp.ge.f32.partialorder %v4586, 0.0
    %vm4619 = vcmp.ge.f32.partialorder %v4587, 0.0
    %vm4620 = vcmp.ge.f32.partialorder %v4588, 0.0
    %vm4621 = vcmp.ge.f32.partialorder %v4589, 0.0
    %vm4622 = vcmp.ge.f32.partialorder %v4590, 0.0
    %vm4623 = vcmp.ge.f32.partialorder %v4591, 0.0
    %vm4624 = vcmp.ge.f32.partialorder %v4592, 0.0
    %vm4625 = vcmp.ge.f32.partialorder %v4593, 0.0
    %vm4626 = vcmp.ge.f32.partialorder %v4594, 0.0
    %vm4627 = vcmp.ge.f32.partialorder %v4595, 0.0
    %vm4628 = vcmp.ge.f32.partialorder %v4596, 0.0
    %vm4629 = vcmp.ge.f32.partialorder %v4597, 0.0
    %vm4630 = vcmp.ge.f32.partialorder %v4598, 0.0
    %vm4631 = vcmp.ge.f32.partialorder %v4599, 0.0
    %vm4632 = vcmp.ge.f32.partialorder %v4600, 0.0
    %vm4633 = vcmp.ge.f32.partialorder %v4601, 0.0
    %vm4634 = vcmp.ge.f32.partialorder %v4602, 0.0
    %vm4635 = vcmp.ge.f32.partialorder %v4603, 0.0
    %vm4636 = vcmp.ge.f32.partialorder %v4604, 0.0
    %vm4637 = vcmp.ge.f32.partialorder %v4605, 0.0
    %vm4638 = vcmp.ge.f32.partialorder %v4606, 0.0
    %vm4639 = vcmp.ge.f32.partialorder %v4607, 0.0
    %vm4640 = vcmp.ge.f32.partialorder %v4608, 0.0
    %v4641 = vstv %s3544
    %v4642 = vmul.f32 %v4641, %v4577
    %v4643 = vmul.f32 %v4641, %v4578
    %v4644 = vmul.f32 %v4641, %v4579
    %v4645 = vmul.f32 %v4641, %v4580
    %v4646 = vmul.f32 %v4641, %v4581
    %v4647 = vmul.f32 %v4641, %v4582
    %v4648 = vmul.f32 %v4641, %v4583
    %v4649 = vmul.f32 %v4641, %v4584
    %v4650 = vmul.f32 %v4641, %v4585
    %v4651 = vmul.f32 %v4641, %v4586
    %v4652 = vmul.f32 %v4641, %v4587
    %v4653 = vmul.f32 %v4641, %v4588
    %v4654 = vmul.f32 %v4641, %v4589
    %v4655 = vmul.f32 %v4641, %v4590
    %v4656 = vmul.f32 %v4641, %v4591
    %v4657 = vmul.f32 %v4641, %v4592
    %v4658 = vmul.f32 %v4641, %v4593
    %v4659 = vmul.f32 %v4641, %v4594
    %v4660 = vmul.f32 %v4641, %v4595
    %v4661 = vmul.f32 %v4641, %v4596
    %v4662 = vmul.f32 %v4641, %v4597
    %v4663 = vmul.f32 %v4641, %v4598
    %v4664 = vmul.f32 %v4641, %v4599
    %v4665 = vmul.f32 %v4641, %v4600
    %v4666 = vmul.f32 %v4641, %v4601
    %v4667 = vmul.f32 %v4641, %v4602
    %v4668 = vmul.f32 %v4641, %v4603
    %v4669 = vmul.f32 %v4641, %v4604
    %v4670 = vmul.f32 %v4641, %v4605
    %v4671 = vmul.f32 %v4641, %v4606
    %v4672 = vmul.f32 %v4641, %v4607
    %v4673 = vmul.f32 %v4641, %v4608
    %v4674 = vsel %vm4609, %v4577, %v4642
    %v4675 = vsel %vm4610, %v4578, %v4643
    %v4676 = vsel %vm4611, %v4579, %v4644
    %v4677 = vsel %vm4612, %v4580, %v4645
    %v4678 = vsel %vm4613, %v4581, %v4646
    %v4679 = vsel %vm4614, %v4582, %v4647
    %v4680 = vsel %vm4615, %v4583, %v4648
    %v4681 = vsel %vm4616, %v4584, %v4649
    %v4682 = vsel %vm4617, %v4585, %v4650
    %v4683 = vsel %vm4618, %v4586, %v4651
    %v4684 = vsel %vm4619, %v4587, %v4652
    %v4685 = vsel %vm4620, %v4588, %v4653
    %v4686 = vsel %vm4621, %v4589, %v4654
    %v4687 = vsel %vm4622, %v4590, %v4655
    %v4688 = vsel %vm4623, %v4591, %v4656
    %v4689 = vsel %vm4624, %v4592, %v4657
    %v4690 = vsel %vm4625, %v4593, %v4658
    %v4691 = vsel %vm4626, %v4594, %v4659
    %v4692 = vsel %vm4627, %v4595, %v4660
    %v4693 = vsel %vm4628, %v4596, %v4661
    %v4694 = vsel %vm4629, %v4597, %v4662
    %v4695 = vsel %vm4630, %v4598, %v4663
    %v4696 = vsel %vm4631, %v4599, %v4664
    %v4697 = vsel %vm4632, %v4600, %v4665
    %v4698 = vsel %vm4633, %v4601, %v4666
    %v4699 = vsel %vm4634, %v4602, %v4667
    %v4700 = vsel %vm4635, %v4603, %v4668
    %v4701 = vsel %vm4636, %v4604, %v4669
    %v4702 = vsel %vm4637, %v4605, %v4670
    %v4703 = vsel %vm4638, %v4606, %v4671
    %v4704 = vsel %vm4639, %v4607, %v4672
    %v4705 = vsel %vm4640, %v4608, %v4673
    %s4706 = sld [smem:[#allocation2 + $0x2]]
    %v4707 = vpack.c.bf16 %v4676, %v4674
    %v4708 = vpack.c.bf16 %v4677, %v4675
    %v4709 = vpack.c.bf16 %v4680, %v4678
    %v4710 = vpack.c.bf16 %v4681, %v4679
    %v4711 = vpack.c.bf16 %v4684, %v4682
    %v4712 = vpack.c.bf16 %v4685, %v4683
    %v4713 = vpack.c.bf16 %v4688, %v4686
    %v4714 = vpack.c.bf16 %v4689, %v4687
    %v4715 = vpack.c.bf16 %v4692, %v4690
    %v4716 = vpack.c.bf16 %v4693, %v4691
    %v4717 = vpack.c.bf16 %v4696, %v4694
    %v4718 = vpack.c.bf16 %v4697, %v4695
    %v4719 = vpack.c.bf16 %v4700, %v4698
    %v4720 = vpack.c.bf16 %v4701, %v4699
    %v4721 = vpack.c.bf16 %v4704, %v4702
    %v4722 = vpack.c.bf16 %v4705, %v4703
    %v4723 = vld [vmem:[%s8] sm:$0xf]
    %v4724 = vld [vmem:[%s8 + $0x4] sm:$0xf]
    %v4725 = vld [vmem:[%s8 + $0x8] sm:$0xf]
    %v4726 = vld [vmem:[%s8 + $0xc] sm:$0xf]
    %v4727 = vld [vmem:[%s8 + $0x10] sm:$0xf]
    %v4728 = vld [vmem:[%s8 + $0x14] sm:$0xf]
    %v4729 = vld [vmem:[%s8 + $0x18] sm:$0xf]
    %v4730 = vld [vmem:[%s8 + $0x1c] sm:$0xf]
    %v4731 = vld [vmem:[%s8 + $0x20] sm:$0xf]
    %v4732 = vld [vmem:[%s8 + $0x24] sm:$0xf]
    %v4733 = vld [vmem:[%s8 + $0x28] sm:$0xf]
    %v4734 = vld [vmem:[%s8 + $0x2c] sm:$0xf]
    %v4735 = vld [vmem:[%s8 + $0x30] sm:$0xf]
    %v4736 = vld [vmem:[%s8 + $0x34] sm:$0xf]
    %v4737 = vld [vmem:[%s8 + $0x38] sm:$0xf]
    %v4738 = vld [vmem:[%s8 + $0x3c] sm:$0xf]
    %v4739 = vld [vmem:[%s8 + $0x40] sm:$0xf]
    %v4740 = vld [vmem:[%s8 + $0x44] sm:$0xf]
    %v4741 = vld [vmem:[%s8 + $0x48] sm:$0xf]
    %v4742 = vld [vmem:[%s8 + $0x4c] sm:$0xf]
    %v4743 = vld [vmem:[%s8 + $0x50] sm:$0xf]
    %v4744 = vld [vmem:[%s8 + $0x54] sm:$0xf]
    %v4745 = vld [vmem:[%s8 + $0x58] sm:$0xf]
    %v4746 = vld [vmem:[%s8 + $0x5c] sm:$0xf]
    %v4747 = vld [vmem:[%s8 + $0x60] sm:$0xf]
    %v4748 = vld [vmem:[%s8 + $0x64] sm:$0xf]
    %v4749 = vld [vmem:[%s8 + $0x68] sm:$0xf]
    %v4750 = vld [vmem:[%s8 + $0x6c] sm:$0xf]
    %v4751 = vld [vmem:[%s8 + $0x70] sm:$0xf]
    %v4752 = vld [vmem:[%s8 + $0x74] sm:$0xf]
    %v4753 = vld [vmem:[%s8 + $0x78] sm:$0xf]
    %v4754 = vld [vmem:[%s8 + $0x7c] sm:$0xf]
    %v4787 = vunpack.c.l.b16 %v4723
    %v4788 = vunpack.c.l.b16 %v4724
    %v4789 = vunpack.c.l.b16 %v4725
    %v4790 = vunpack.c.l.b16 %v4726
    %v4791 = vunpack.c.l.b16 %v4727
    %v4792 = vunpack.c.l.b16 %v4728
    %v4793 = vunpack.c.l.b16 %v4729
    %v4794 = vunpack.c.l.b16 %v4730
    %v4795 = vunpack.c.l.b16 %v4731
    %v4796 = vunpack.c.l.b16 %v4732
    %v4797 = vunpack.c.l.b16 %v4733
    %v4798 = vunpack.c.l.b16 %v4734
    %v4799 = vunpack.c.l.b16 %v4735
    %v4800 = vunpack.c.l.b16 %v4736
    %v4801 = vunpack.c.l.b16 %v4737
    %v4802 = vunpack.c.l.b16 %v4738
    %v4803 = vunpack.c.l.b16 %v4739
    %v4804 = vunpack.c.l.b16 %v4740
    %v4805 = vunpack.c.l.b16 %v4741
    %v4806 = vunpack.c.l.b16 %v4742
    %v4807 = vunpack.c.l.b16 %v4743
    %v4808 = vunpack.c.l.b16 %v4744
    %v4809 = vunpack.c.l.b16 %v4745
    %v4810 = vunpack.c.l.b16 %v4746
    %v4811 = vunpack.c.l.b16 %v4747
    %v4812 = vunpack.c.l.b16 %v4748
    %v4813 = vunpack.c.l.b16 %v4749
    %v4814 = vunpack.c.l.b16 %v4750
    %v4815 = vunpack.c.l.b16 %v4751
    %v4816 = vunpack.c.l.b16 %v4752
    %v4817 = vunpack.c.l.b16 %v4753
    %v4818 = vunpack.c.l.b16 %v4754
    %v4819 = vpack.c.b16 %v4788, %v4787
    %v4820 = vpack.c.b16 %v4790, %v4789
    %v4821 = vpack.c.b16 %v4792, %v4791
    %v4822 = vpack.c.b16 %v4794, %v4793
    %v4823 = vpack.c.b16 %v4796, %v4795
    %v4824 = vpack.c.b16 %v4798, %v4797
    %v4825 = vpack.c.b16 %v4800, %v4799
    %v4826 = vpack.c.b16 %v4802, %v4801
    %v4827 = vpack.c.b16 %v4804, %v4803
    %v4828 = vpack.c.b16 %v4806, %v4805
    %v4829 = vpack.c.b16 %v4808, %v4807
    %v4830 = vpack.c.b16 %v4810, %v4809
    %v4831 = vpack.c.b16 %v4812, %v4811
    %v4832 = vpack.c.b16 %v4814, %v4813
    %v4833 = vpack.c.b16 %v4816, %v4815
    %v4834 = vpack.c.b16 %v4818, %v4817
    %4851 = vmatpush.bf16.msra.mxu0 %v4826
    %4852 = vmatpush.bf16.msra.mxu0 %v4825
    %4853 = vmatpush.bf16.msra.mxu0 %v4824
    %4854 = vmatpush.bf16.msra.mxu0 %v4823
    %4855 = vmatpush.bf16.msra.mxu0 %v4822
    %4856 = vmatpush.bf16.msra.mxu0 %v4821
    %4857 = vmatpush.bf16.msra.mxu0 %v4820
    %4858 = vmatpush.bf16.msra.mxu0 %v4819
    %4859 = vmatmul.bf16.gmra.mxu0 %v4707
    %v4860 = vpop.f32.mrf.mxu0
    %v4861 = vadd.f32 0.0, %v4860
    %v4862 = vpop.f32.mrf.mxu0
    %v4863 = vadd.f32 0.0, %v4862
    %4864 = vmatmul.bf16.gmra.mxu0 %v4709
    %v4865 = vpop.f32.mrf.mxu0
    %v4866 = vadd.f32 0.0, %v4865
    %v4867 = vpop.f32.mrf.mxu0
    %v4868 = vadd.f32 0.0, %v4867
    %4869 = vmatmul.bf16.gmra.mxu0 %v4711
    %v4870 = vpop.f32.mrf.mxu0
    %v4871 = vadd.f32 0.0, %v4870
    %v4872 = vpop.f32.mrf.mxu0
    %v4873 = vadd.f32 0.0, %v4872
    %4874 = vmatmul.bf16.gmra.mxu0 %v4713
    %v4875 = vpop.f32.mrf.mxu0
    %v4876 = vadd.f32 0.0, %v4875
    %v4877 = vpop.f32.mrf.mxu0
    %v4878 = vadd.f32 0.0, %v4877
    %4879 = vmatmul.bf16.gmra.mxu0 %v4715
    %v4880 = vpop.f32.mrf.mxu0
    %v4881 = vadd.f32 0.0, %v4880
    %v4882 = vpop.f32.mrf.mxu0
    %v4883 = vadd.f32 0.0, %v4882
    %4884 = vmatmul.bf16.gmra.mxu0 %v4717
    %v4885 = vpop.f32.mrf.mxu0
    %v4886 = vadd.f32 0.0, %v4885
    %v4887 = vpop.f32.mrf.mxu0
    %v4888 = vadd.f32 0.0, %v4887
    %4889 = vmatmul.bf16.gmra.mxu0 %v4719
    %v4890 = vpop.f32.mrf.mxu0
    %v4891 = vadd.f32 0.0, %v4890
    %v4892 = vpop.f32.mrf.mxu0
    %v4893 = vadd.f32 0.0, %v4892
    %4894 = vmatmul.bf16.gmra.mxu0 %v4721
    %v4895 = vpop.f32.mrf.mxu0
    %v4896 = vadd.f32 0.0, %v4895
    %v4897 = vpop.f32.mrf.mxu0
    %v4898 = vadd.f32 0.0, %v4897
    %4899 = vdwg.mxu0
    %4900 = vmatpush.bf16.msra.mxu0 %v4834
    %4901 = vmatpush.bf16.msra.mxu0 %v4833
    %4902 = vmatpush.bf16.msra.mxu0 %v4832
    %4903 = vmatpush.bf16.msra.mxu0 %v4831
    %4904 = vmatpush.bf16.msra.mxu0 %v4830
    %4905 = vmatpush.bf16.msra.mxu0 %v4829
    %4906 = vmatpush.bf16.msra.mxu0 %v4828
    %4907 = vmatpush.bf16.msra.mxu0 %v4827
    %4908 = vmatmul.bf16.gmra.mxu0 %v4708
    %v4909 = vpop.f32.mrf.mxu0
    %v4910 = vadd.f32 %v4861, %v4909
    %v4911 = vpop.f32.mrf.mxu0
    %v4912 = vadd.f32 %v4863, %v4911
    %4913 = vmatmul.bf16.gmra.mxu0 %v4710
    %v4914 = vpop.f32.mrf.mxu0
    %v4915 = vadd.f32 %v4866, %v4914
    %v4916 = vpop.f32.mrf.mxu0
    %v4917 = vadd.f32 %v4868, %v4916
    %4918 = vmatmul.bf16.gmra.mxu0 %v4712
    %v4919 = vpop.f32.mrf.mxu0
    %v4920 = vadd.f32 %v4871, %v4919
    %v4921 = vpop.f32.mrf.mxu0
    %v4922 = vadd.f32 %v4873, %v4921
    %4923 = vmatmul.bf16.gmra.mxu0 %v4714
    %v4924 = vpop.f32.mrf.mxu0
    %v4925 = vadd.f32 %v4876, %v4924
    %v4926 = vpop.f32.mrf.mxu0
    %v4927 = vadd.f32 %v4878, %v4926
    %4928 = vmatmul.bf16.gmra.mxu0 %v4716
    %v4929 = vpop.f32.mrf.mxu0
    %v4930 = vadd.f32 %v4881, %v4929
    %v4931 = vpop.f32.mrf.mxu0
    %v4932 = vadd.f32 %v4883, %v4931
    %4933 = vmatmul.bf16.gmra.mxu0 %v4718
    %v4934 = vpop.f32.mrf.mxu0
    %v4935 = vadd.f32 %v4886, %v4934
    %v4936 = vpop.f32.mrf.mxu0
    %v4937 = vadd.f32 %v4888, %v4936
    %4938 = vmatmul.bf16.gmra.mxu0 %v4720
    %v4939 = vpop.f32.mrf.mxu0
    %v4940 = vadd.f32 %v4891, %v4939
    %v4941 = vpop.f32.mrf.mxu0
    %v4942 = vadd.f32 %v4893, %v4941
    %4943 = vmatmul.bf16.gmra.mxu0 %v4722
    %v4944 = vpop.f32.mrf.mxu0
    %v4945 = vadd.f32 %v4896, %v4944
    %v4946 = vpop.f32.mrf.mxu0
    %v4947 = vadd.f32 %v4898, %v4946
    %4948 = vdwg.mxu0
    %v4949 = vadd.f32 %v4910, %v4912
    %v4950 = vadd.f32 %v4949, %v4915
    %v4951 = vadd.f32 %v4950, %v4917
    %v4952 = vadd.f32 %v4951, %v4920
    %v4953 = vadd.f32 %v4952, %v4922
    %v4954 = vadd.f32 %v4953, %v4925
    %v4955 = vadd.f32 %v4954, %v4927
    %v4956 = vadd.f32 %v4955, %v4930
    %v4957 = vadd.f32 %v4956, %v4932
    %v4958 = vadd.f32 %v4957, %v4935
    %v4959 = vadd.f32 %v4958, %v4937
    %v4960 = vadd.f32 %v4959, %v4940
    %v4961 = vadd.f32 %v4960, %v4942
    %v4962 = vadd.f32 %v4961, %v4945
    %v4963 = vadd.f32 %v4962, %v4947
    %v4964 = vrot.slane %v4963, 4
    %v4965 = vadd.f32 %v4963, %v4964
    %v4966 = vrot.slane %v4965, 2
    %v4967 = vadd.f32 %v4965, %v4966
    %v4968 = vrot.slane %v4967, 1
    %v4969 = vadd.f32 %v4967, %v4968
    %v4970 = vmul.f32 %v4969, %v2923
    %v4971 = vsub.f32 %v4910, %v4970
    %v4972 = vsub.f32 %v4912, %v4970
    %v4973 = vsub.f32 %v4915, %v4970
    %v4974 = vsub.f32 %v4917, %v4970
    %v4975 = vsub.f32 %v4920, %v4970
    %v4976 = vsub.f32 %v4922, %v4970
    %v4977 = vsub.f32 %v4925, %v4970
    %v4978 = vsub.f32 %v4927, %v4970
    %v4979 = vsub.f32 %v4930, %v4970
    %v4980 = vsub.f32 %v4932, %v4970
    %v4981 = vsub.f32 %v4935, %v4970
    %v4982 = vsub.f32 %v4937, %v4970
    %v4983 = vsub.f32 %v4940, %v4970
    %v4984 = vsub.f32 %v4942, %v4970
    %v4985 = vsub.f32 %v4945, %v4970
    %v4986 = vsub.f32 %v4947, %v4970
    %v4987 = vmul.f32 %v4971, %v4971
    %v4988 = vmul.f32 %v4972, %v4972
    %v4989 = vmul.f32 %v4973, %v4973
    %v4990 = vmul.f32 %v4974, %v4974
    %v4991 = vmul.f32 %v4975, %v4975
    %v4992 = vmul.f32 %v4976, %v4976
    %v4993 = vmul.f32 %v4977, %v4977
    %v4994 = vmul.f32 %v4978, %v4978
    %v4995 = vmul.f32 %v4979, %v4979
    %v4996 = vmul.f32 %v4980, %v4980
    %v4997 = vmul.f32 %v4981, %v4981
    %v4998 = vmul.f32 %v4982, %v4982
    %v4999 = vmul.f32 %v4983, %v4983
    %v5000 = vmul.f32 %v4984, %v4984
    %v5001 = vmul.f32 %v4985, %v4985
    %v5002 = vmul.f32 %v4986, %v4986
    %v5003 = vadd.f32 %v4987, %v4988
    %v5004 = vadd.f32 %v5003, %v4989
    %v5005 = vadd.f32 %v5004, %v4990
    %v5006 = vadd.f32 %v5005, %v4991
    %v5007 = vadd.f32 %v5006, %v4992
    %v5008 = vadd.f32 %v5007, %v4993
    %v5009 = vadd.f32 %v5008, %v4994
    %v5010 = vadd.f32 %v5009, %v4995
    %v5011 = vadd.f32 %v5010, %v4996
    %v5012 = vadd.f32 %v5011, %v4997
    %v5013 = vadd.f32 %v5012, %v4998
    %v5014 = vadd.f32 %v5013, %v4999
    %v5015 = vadd.f32 %v5014, %v5000
    %v5016 = vadd.f32 %v5015, %v5001
    %v5017 = vadd.f32 %v5016, %v5002
    %v5018 = vrot.slane %v5017, 4
    %v5019 = vadd.f32 %v5017, %v5018
    %v5020 = vrot.slane %v5019, 2
    %v5021 = vadd.f32 %v5019, %v5020
    %v5022 = vrot.slane %v5021, 1
    %v5023 = vadd.f32 %v5021, %v5022
    %v5024 = vmul.f32 %v5023, %v2923
    %v5025 = vld [vmem:[%s9] sm:$0x1]
    %v5026 = vadd.f32 %v5024, 1e-05
    %v5027 = vrsqrt.pop %v5026
    %v5028 = vmul.f32 %v5027, %v5026
    %v5029 = vmul.f32 %v5028, %v5027
    %v5030 = vmul.f32 0.5, %v5029
    %v5031 = vsub.f32 1.5, %v5030
    %v5032 = vmul.f32 %v5027, %v5031
    %vm5033 = vweird.f32 %v5026
    %vm5034 = vweird.f32 %v5027
    %vm5035 = vmor %vm5033, %vm5034
    %v5036 = vsel %vm5035, %v5027, %v5032
    %v5037 = vmul.f32 %v5025, %v5036
    %v5039 = vperm.slane %v5037, 0
    %v5041 = vmul.f32 %v4971, %v5039
    %v5042 = vmul.f32 %v4972, %v5039
    %v5043 = vmul.f32 %v4973, %v5039
    %v5044 = vmul.f32 %v4974, %v5039
    %v5045 = vmul.f32 %v4975, %v5039
    %v5046 = vmul.f32 %v4976, %v5039
    %v5047 = vmul.f32 %v4977, %v5039
    %v5048 = vmul.f32 %v4978, %v5039
    %v5049 = vmul.f32 %v4979, %v5039
    %v5050 = vmul.f32 %v4980, %v5039
    %v5051 = vmul.f32 %v4981, %v5039
    %v5052 = vmul.f32 %v4982, %v5039
    %v5053 = vmul.f32 %v4983, %v5039
    %v5054 = vmul.f32 %v4984, %v5039
    %v5055 = vmul.f32 %v4985, %v5039
    %v5056 = vmul.f32 %v4986, %v5039
    %v5057 = vld [vmem:[%s10] sm:$0x1]
    %v5059 = vperm.slane %v5057, 0
    %v5061 = vadd.f32 %v5041, %v5059
    %v5062 = vadd.f32 %v5042, %v5059
    %v5063 = vadd.f32 %v5043, %v5059
    %v5064 = vadd.f32 %v5044, %v5059
    %v5065 = vadd.f32 %v5045, %v5059
    %v5066 = vadd.f32 %v5046, %v5059
    %v5067 = vadd.f32 %v5047, %v5059
    %v5068 = vadd.f32 %v5048, %v5059
    %v5069 = vadd.f32 %v5049, %v5059
    %v5070 = vadd.f32 %v5050, %v5059
    %v5071 = vadd.f32 %v5051, %v5059
    %v5072 = vadd.f32 %v5052, %v5059
    %v5073 = vadd.f32 %v5053, %v5059
    %v5074 = vadd.f32 %v5054, %v5059
    %v5075 = vadd.f32 %v5055, %v5059
    %v5076 = vadd.f32 %v5056, %v5059
    %vm5077 = vcmp.ge.f32.partialorder %v5061, 0.0
    %vm5078 = vcmp.ge.f32.partialorder %v5062, 0.0
    %vm5079 = vcmp.ge.f32.partialorder %v5063, 0.0
    %vm5080 = vcmp.ge.f32.partialorder %v5064, 0.0
    %vm5081 = vcmp.ge.f32.partialorder %v5065, 0.0
    %vm5082 = vcmp.ge.f32.partialorder %v5066, 0.0
    %vm5083 = vcmp.ge.f32.partialorder %v5067, 0.0
    %vm5084 = vcmp.ge.f32.partialorder %v5068, 0.0
    %vm5085 = vcmp.ge.f32.partialorder %v5069, 0.0
    %vm5086 = vcmp.ge.f32.partialorder %v5070, 0.0
    %vm5087 = vcmp.ge.f32.partialorder %v5071, 0.0
    %vm5088 = vcmp.ge.f32.partialorder %v5072, 0.0
    %vm5089 = vcmp.ge.f32.partialorder %v5073, 0.0
    %vm5090 = vcmp.ge.f32.partialorder %v5074, 0.0
    %vm5091 = vcmp.ge.f32.partialorder %v5075, 0.0
    %vm5092 = vcmp.ge.f32.partialorder %v5076, 0.0
    %v5093 = vstv %s4706
    %v5094 = vmul.f32 %v5093, %v5061
    %v5095 = vmul.f32 %v5093, %v5062
    %v5096 = vmul.f32 %v5093, %v5063
    %v5097 = vmul.f32 %v5093, %v5064
    %v5098 = vmul.f32 %v5093, %v5065
    %v5099 = vmul.f32 %v5093, %v5066
    %v5100 = vmul.f32 %v5093, %v5067
    %v5101 = vmul.f32 %v5093, %v5068
    %v5102 = vmul.f32 %v5093, %v5069
    %v5103 = vmul.f32 %v5093, %v5070
    %v5104 = vmul.f32 %v5093, %v5071
    %v5105 = vmul.f32 %v5093, %v5072
    %v5106 = vmul.f32 %v5093, %v5073
    %v5107 = vmul.f32 %v5093, %v5074
    %v5108 = vmul.f32 %v5093, %v5075
    %v5109 = vmul.f32 %v5093, %v5076
    %v5110 = vsel %vm5077, %v5061, %v5094
    %v5111 = vsel %vm5078, %v5062, %v5095
    %v5112 = vsel %vm5079, %v5063, %v5096
    %v5113 = vsel %vm5080, %v5064, %v5097
    %v5114 = vsel %vm5081, %v5065, %v5098
    %v5115 = vsel %vm5082, %v5066, %v5099
    %v5116 = vsel %vm5083, %v5067, %v5100
    %v5117 = vsel %vm5084, %v5068, %v5101
    %v5118 = vsel %vm5085, %v5069, %v5102
    %v5119 = vsel %vm5086, %v5070, %v5103
    %v5120 = vsel %vm5087, %v5071, %v5104
    %v5121 = vsel %vm5088, %v5072, %v5105
    %v5122 = vsel %vm5089, %v5073, %v5106
    %v5123 = vsel %vm5090, %v5074, %v5107
    %v5124 = vsel %vm5091, %v5075, %v5108
    %v5125 = vsel %vm5092, %v5076, %v5109
    %v5126 = vpack.c.bf16 %v5111, %v5110
    %v5127 = vpack.c.bf16 %v5113, %v5112
    %v5128 = vpack.c.bf16 %v5115, %v5114
    %v5129 = vpack.c.bf16 %v5117, %v5116
    %v5130 = vpack.c.bf16 %v5119, %v5118
    %v5131 = vpack.c.bf16 %v5121, %v5120
    %v5132 = vpack.c.bf16 %v5123, %v5122
    %v5133 = vpack.c.bf16 %v5125, %v5124
    %v5134 = vld [vmem:[%s11] sm:$0xf]
    %v5135 = vld [vmem:[%s11 + $0x4] sm:$0xf]
    %v5136 = vld [vmem:[%s11 + $0x8] sm:$0xf]
    %v5137 = vld [vmem:[%s11 + $0xc] sm:$0xf]
    %v5138 = vld [vmem:[%s11 + $0x10] sm:$0xf]
    %v5139 = vld [vmem:[%s11 + $0x14] sm:$0xf]
    %v5140 = vld [vmem:[%s11 + $0x18] sm:$0xf]
    %v5141 = vld [vmem:[%s11 + $0x1c] sm:$0xf]
    %v5142 = vld [vmem:[%s11 + $0x20] sm:$0xf]
    %v5143 = vld [vmem:[%s11 + $0x24] sm:$0xf]
    %v5144 = vld [vmem:[%s11 + $0x28] sm:$0xf]
    %v5145 = vld [vmem:[%s11 + $0x2c] sm:$0xf]
    %v5146 = vld [vmem:[%s11 + $0x30] sm:$0xf]
    %v5147 = vld [vmem:[%s11 + $0x34] sm:$0xf]
    %v5148 = vld [vmem:[%s11 + $0x38] sm:$0xf]
    %v5149 = vld [vmem:[%s11 + $0x3c] sm:$0xf]
    %v5150 = vld [vmem:[%s12] sm:$0x1]
    %v5152 = vperm.slane %v5150, 0
    %v5170 = vunpack.c.l.b16 %v5134
    %v5171 = vunpack.c.l.b16 %v5135
    %v5172 = vunpack.c.l.b16 %v5136
    %v5173 = vunpack.c.l.b16 %v5137
    %v5174 = vunpack.c.l.b16 %v5138
    %v5175 = vunpack.c.l.b16 %v5139
    %v5176 = vunpack.c.l.b16 %v5140
    %v5177 = vunpack.c.l.b16 %v5141
    %v5178 = vunpack.c.l.b16 %v5142
    %v5179 = vunpack.c.l.b16 %v5143
    %v5180 = vunpack.c.l.b16 %v5144
    %v5181 = vunpack.c.l.b16 %v5145
    %v5182 = vunpack.c.l.b16 %v5146
    %v5183 = vunpack.c.l.b16 %v5147
    %v5184 = vunpack.c.l.b16 %v5148
    %v5185 = vunpack.c.l.b16 %v5149
    %v5186 = vpack.c.b16 %v5171, %v5170
    %v5187 = vpack.c.b16 %v5173, %v5172
    %v5188 = vpack.c.b16 %v5175, %v5174
    %v5189 = vpack.c.b16 %v5177, %v5176
    %v5190 = vpack.c.b16 %v5179, %v5178
    %v5191 = vpack.c.b16 %v5181, %v5180
    %v5192 = vpack.c.b16 %v5183, %v5182
    %v5193 = vpack.c.b16 %v5185, %v5184
    %5202 = vmatpush.bf16.msra.mxu0 %v5193
    %5203 = vmatpush.bf16.msra.mxu0 %v5192
    %5204 = vmatpush.bf16.msra.mxu0 %v5191
    %5205 = vmatpush.bf16.msra.mxu0 %v5190
    %5206 = vmatpush.bf16.msra.mxu0 %v5189
    %5207 = vmatpush.bf16.msra.mxu0 %v5188
    %5208 = vmatpush.bf16.msra.mxu0 %v5187
    %5209 = vmatpush.bf16.msra.mxu0 %v5186
    %5210 = vmatmul.bf16.gmra.mxu0 %v5126
    %v5211 = vpop.f32.mrf.mxu0
    %v5212 = vadd.f32 %v5152, %v5211
    %v5213 = vpop.f32.mrf.mxu0
    %v5214 = vadd.f32 %v5152, %v5213
    %5215 = vmatmul.bf16.gmra.mxu0 %v5127
    %v5216 = vpop.f32.mrf.mxu0
    %v5217 = vadd.f32 %v5152, %v5216
    %v5218 = vpop.f32.mrf.mxu0
    %v5219 = vadd.f32 %v5152, %v5218
    %5220 = vmatmul.bf16.gmra.mxu0 %v5128
    %v5221 = vpop.f32.mrf.mxu0
    %v5222 = vadd.f32 %v5152, %v5221
    %v5223 = vpop.f32.mrf.mxu0
    %v5224 = vadd.f32 %v5152, %v5223
    %5225 = vmatmul.bf16.gmra.mxu0 %v5129
    %v5226 = vpop.f32.mrf.mxu0
    %v5227 = vadd.f32 %v5152, %v5226
    %v5228 = vpop.f32.mrf.mxu0
    %v5229 = vadd.f32 %v5152, %v5228
    %5230 = vmatmul.bf16.gmra.mxu0 %v5130
    %v5231 = vpop.f32.mrf.mxu0
    %v5232 = vadd.f32 %v5152, %v5231
    %v5233 = vpop.f32.mrf.mxu0
    %v5234 = vadd.f32 %v5152, %v5233
    %5235 = vmatmul.bf16.gmra.mxu0 %v5131
    %v5236 = vpop.f32.mrf.mxu0
    %v5237 = vadd.f32 %v5152, %v5236
    %v5238 = vpop.f32.mrf.mxu0
    %v5239 = vadd.f32 %v5152, %v5238
    %5240 = vmatmul.bf16.gmra.mxu0 %v5132
    %v5241 = vpop.f32.mrf.mxu0
    %v5242 = vadd.f32 %v5152, %v5241
    %v5243 = vpop.f32.mrf.mxu0
    %v5244 = vadd.f32 %v5152, %v5243
    %5245 = vmatmul.bf16.gmra.mxu0 %v5133
    %v5246 = vpop.f32.mrf.mxu0
    %v5247 = vadd.f32 %v5152, %v5246
    %v5248 = vpop.f32.mrf.mxu0
    %v5249 = vadd.f32 %v5152, %v5248
    %5250 = vdwg.mxu0
    %s5251 = sld [smem:[#allocation2 + $0x3]]
    %v5252 = vpack.c.bf16 %v5214, %v5212
    %v5253 = vpack.c.bf16 %v5219, %v5217
    %v5254 = vpack.c.bf16 %v5224, %v5222
    %v5255 = vpack.c.bf16 %v5229, %v5227
    %v5256 = vpack.c.bf16 %v5234, %v5232
    %v5257 = vpack.c.bf16 %v5239, %v5237
    %v5258 = vpack.c.bf16 %v5244, %v5242
    %v5259 = vpack.c.bf16 %v5249, %v5247
    %v5260 = vld [vmem:[%s13] sm:$0xf]
    %v5261 = vld [vmem:[%s13 + $0x4] sm:$0xf]
    %v5262 = vld [vmem:[%s13 + $0x8] sm:$0xf]
    %v5263 = vld [vmem:[%s13 + $0xc] sm:$0xf]
    %v5268 = vunpack.c.l.b16 %v5260
    %v5269 = vunpack.c.l.b16 %v5261
    %v5270 = vunpack.c.l.b16 %v5262
    %v5271 = vunpack.c.l.b16 %v5263
    %v5272 = vpack.c.b16 %v5269, %v5268
    %v5273 = vpack.c.b16 %v5271, %v5270
    %vm5276 = vcmask 261120
    %v5278 = vsel %vm5276, %v5252, 0
    %v5281 = vsel %vm5276, %v5253, 0
    %v5284 = vsel %vm5276, %v5254, 0
    %v5287 = vsel %vm5276, %v5255, 0
    %v5290 = vsel %vm5276, %v5256, 0
    %v5293 = vsel %vm5276, %v5257, 0
    %v5296 = vsel %vm5276, %v5258, 0
    %v5299 = vsel %vm5276, %v5259, 0
    %5301 = vmatpush.bf16.msra.mxu0 0
    %5302 = vmatpush.bf16.msra.mxu0 0
    %5303 = vmatpush.bf16.msra.mxu0 0
    %5304 = vmatpush.bf16.msra.mxu0 0
    %5305 = vmatpush.bf16.msra.mxu0 0
    %5306 = vmatpush.bf16.msra.mxu0 0
    %5307 = vmatpush.bf16.msra.mxu0 %v5273
    %5308 = vmatpush.bf16.msra.mxu0 %v5272
    %5309 = vmatmul.bf16.gmra.mxu0 %v5278
    %v5310 = vpop.f32.mrf.mxu0
    %v5311 = vadd.f32 0.0, %v5310
    %v5312 = vpop.f32.mrf.mxu0
    %v5313 = vadd.f32 0.0, %v5312
    %5314 = vmatmul.bf16.gmra.mxu0 %v5281
    %v5315 = vpop.f32.mrf.mxu0
    %v5316 = vadd.f32 0.0, %v5315
    %v5317 = vpop.f32.mrf.mxu0
    %v5318 = vadd.f32 0.0, %v5317
    %5319 = vmatmul.bf16.gmra.mxu0 %v5284
    %v5320 = vpop.f32.mrf.mxu0
    %v5321 = vadd.f32 0.0, %v5320
    %v5322 = vpop.f32.mrf.mxu0
    %v5323 = vadd.f32 0.0, %v5322
    %5324 = vmatmul.bf16.gmra.mxu0 %v5287
    %v5325 = vpop.f32.mrf.mxu0
    %v5326 = vadd.f32 0.0, %v5325
    %v5327 = vpop.f32.mrf.mxu0
    %v5328 = vadd.f32 0.0, %v5327
    %5329 = vmatmul.bf16.gmra.mxu0 %v5290
    %v5330 = vpop.f32.mrf.mxu0
    %v5331 = vadd.f32 0.0, %v5330
    %v5332 = vpop.f32.mrf.mxu0
    %v5333 = vadd.f32 0.0, %v5332
    %5334 = vmatmul.bf16.gmra.mxu0 %v5293
    %v5335 = vpop.f32.mrf.mxu0
    %v5336 = vadd.f32 0.0, %v5335
    %v5337 = vpop.f32.mrf.mxu0
    %v5338 = vadd.f32 0.0, %v5337
    %5339 = vmatmul.bf16.gmra.mxu0 %v5296
    %v5340 = vpop.f32.mrf.mxu0
    %v5341 = vadd.f32 0.0, %v5340
    %v5342 = vpop.f32.mrf.mxu0
    %v5343 = vadd.f32 0.0, %v5342
    %5344 = vmatmul.bf16.gmra.mxu0 %v5299
    %v5345 = vpop.f32.mrf.mxu0
    %v5346 = vadd.f32 0.0, %v5345
    %v5347 = vpop.f32.mrf.mxu0
    %v5348 = vadd.f32 0.0, %v5347
    %5349 = vdwg.mxu0
    %v5350 = vadd.f32 %v5311, %v5313
    %v5351 = vadd.f32 %v5350, %v5316
    %v5352 = vadd.f32 %v5351, %v5318
    %v5353 = vadd.f32 %v5352, %v5321
    %v5354 = vadd.f32 %v5353, %v5323
    %v5355 = vadd.f32 %v5354, %v5326
    %v5356 = vadd.f32 %v5355, %v5328
    %v5357 = vadd.f32 %v5356, %v5331
    %v5358 = vadd.f32 %v5357, %v5333
    %v5359 = vadd.f32 %v5358, %v5336
    %v5360 = vadd.f32 %v5359, %v5338
    %v5361 = vadd.f32 %v5360, %v5341
    %v5362 = vadd.f32 %v5361, %v5343
    %v5363 = vadd.f32 %v5362, %v5346
    %v5364 = vadd.f32 %v5363, %v5348
    %v5365 = vrot.slane %v5364, 4
    %v5366 = vadd.f32 %v5364, %v5365
    %v5367 = vrot.slane %v5366, 2
    %v5368 = vadd.f32 %v5366, %v5367
    %v5369 = vrot.slane %v5368, 1
    %v5370 = vadd.f32 %v5368, %v5369
    %v5371 = vmul.f32 %v5370, %v2923
    %v5372 = vsub.f32 %v5311, %v5371
    %v5373 = vsub.f32 %v5313, %v5371
    %v5374 = vsub.f32 %v5316, %v5371
    %v5375 = vsub.f32 %v5318, %v5371
    %v5376 = vsub.f32 %v5321, %v5371
    %v5377 = vsub.f32 %v5323, %v5371
    %v5378 = vsub.f32 %v5326, %v5371
    %v5379 = vsub.f32 %v5328, %v5371
    %v5380 = vsub.f32 %v5331, %v5371
    %v5381 = vsub.f32 %v5333, %v5371
    %v5382 = vsub.f32 %v5336, %v5371
    %v5383 = vsub.f32 %v5338, %v5371
    %v5384 = vsub.f32 %v5341, %v5371
    %v5385 = vsub.f32 %v5343, %v5371
    %v5386 = vsub.f32 %v5346, %v5371
    %v5387 = vsub.f32 %v5348, %v5371
    %v5388 = vmul.f32 %v5372, %v5372
    %v5389 = vmul.f32 %v5373, %v5373
    %v5390 = vmul.f32 %v5374, %v5374
    %v5391 = vmul.f32 %v5375, %v5375
    %v5392 = vmul.f32 %v5376, %v5376
    %v5393 = vmul.f32 %v5377, %v5377
    %v5394 = vmul.f32 %v5378, %v5378
    %v5395 = vmul.f32 %v5379, %v5379
    %v5396 = vmul.f32 %v5380, %v5380
    %v5397 = vmul.f32 %v5381, %v5381
    %v5398 = vmul.f32 %v5382, %v5382
    %v5399 = vmul.f32 %v5383, %v5383
    %v5400 = vmul.f32 %v5384, %v5384
    %v5401 = vmul.f32 %v5385, %v5385
    %v5402 = vmul.f32 %v5386, %v5386
    %v5403 = vmul.f32 %v5387, %v5387
    %v5404 = vadd.f32 %v5388, %v5389
    %v5405 = vadd.f32 %v5404, %v5390
    %v5406 = vadd.f32 %v5405, %v5391
    %v5407 = vadd.f32 %v5406, %v5392
    %v5408 = vadd.f32 %v5407, %v5393
    %v5409 = vadd.f32 %v5408, %v5394
    %v5410 = vadd.f32 %v5409, %v5395
    %v5411 = vadd.f32 %v5410, %v5396
    %v5412 = vadd.f32 %v5411, %v5397
    %v5413 = vadd.f32 %v5412, %v5398
    %v5414 = vadd.f32 %v5413, %v5399
    %v5415 = vadd.f32 %v5414, %v5400
    %v5416 = vadd.f32 %v5415, %v5401
    %v5417 = vadd.f32 %v5416, %v5402
    %v5418 = vadd.f32 %v5417, %v5403
    %v5419 = vrot.slane %v5418, 4
    %v5420 = vadd.f32 %v5418, %v5419
    %v5421 = vrot.slane %v5420, 2
    %v5422 = vadd.f32 %v5420, %v5421
    %v5423 = vrot.slane %v5422, 1
    %v5424 = vadd.f32 %v5422, %v5423
    %v5425 = vmul.f32 %v5424, %v2923
    %v5426 = vld [vmem:[%s14] sm:$0x1]
    %v5427 = vadd.f32 %v5425, 1e-05
    %v5428 = vrsqrt.pop %v5427
    %v5429 = vmul.f32 %v5428, %v5427
    %v5430 = vmul.f32 %v5429, %v5428
    %v5431 = vmul.f32 0.5, %v5430
    %v5432 = vsub.f32 1.5, %v5431
    %v5433 = vmul.f32 %v5428, %v5432
    %vm5434 = vweird.f32 %v5427
    %vm5435 = vweird.f32 %v5428
    %vm5436 = vmor %vm5434, %vm5435
    %v5437 = vsel %vm5436, %v5428, %v5433
    %v5438 = vmul.f32 %v5426, %v5437
    %v5440 = vperm.slane %v5438, 0
    %v5442 = vmul.f32 %v5372, %v5440
    %v5443 = vmul.f32 %v5373, %v5440
    %v5444 = vmul.f32 %v5374, %v5440
    %v5445 = vmul.f32 %v5375, %v5440
    %v5446 = vmul.f32 %v5376, %v5440
    %v5447 = vmul.f32 %v5377, %v5440
    %v5448 = vmul.f32 %v5378, %v5440
    %v5449 = vmul.f32 %v5379, %v5440
    %v5450 = vmul.f32 %v5380, %v5440
    %v5451 = vmul.f32 %v5381, %v5440
    %v5452 = vmul.f32 %v5382, %v5440
    %v5453 = vmul.f32 %v5383, %v5440
    %v5454 = vmul.f32 %v5384, %v5440
    %v5455 = vmul.f32 %v5385, %v5440
    %v5456 = vmul.f32 %v5386, %v5440
    %v5457 = vmul.f32 %v5387, %v5440
    %v5458 = vld [vmem:[%s15] sm:$0x1]
    %v5460 = vperm.slane %v5458, 0
    %v5462 = vadd.f32 %v5442, %v5460
    %v5463 = vadd.f32 %v5443, %v5460
    %v5464 = vadd.f32 %v5444, %v5460
    %v5465 = vadd.f32 %v5445, %v5460
    %v5466 = vadd.f32 %v5446, %v5460
    %v5467 = vadd.f32 %v5447, %v5460
    %v5468 = vadd.f32 %v5448, %v5460
    %v5469 = vadd.f32 %v5449, %v5460
    %v5470 = vadd.f32 %v5450, %v5460
    %v5471 = vadd.f32 %v5451, %v5460
    %v5472 = vadd.f32 %v5452, %v5460
    %v5473 = vadd.f32 %v5453, %v5460
    %v5474 = vadd.f32 %v5454, %v5460
    %v5475 = vadd.f32 %v5455, %v5460
    %v5476 = vadd.f32 %v5456, %v5460
    %v5477 = vadd.f32 %v5457, %v5460
    %vm5478 = vcmp.ge.f32.partialorder %v5462, 0.0
    %vm5479 = vcmp.ge.f32.partialorder %v5463, 0.0
    %vm5480 = vcmp.ge.f32.partialorder %v5464, 0.0
    %vm5481 = vcmp.ge.f32.partialorder %v5465, 0.0
    %vm5482 = vcmp.ge.f32.partialorder %v5466, 0.0
    %vm5483 = vcmp.ge.f32.partialorder %v5467, 0.0
    %vm5484 = vcmp.ge.f32.partialorder %v5468, 0.0
    %vm5485 = vcmp.ge.f32.partialorder %v5469, 0.0
    %vm5486 = vcmp.ge.f32.partialorder %v5470, 0.0
    %vm5487 = vcmp.ge.f32.partialorder %v5471, 0.0
    %vm5488 = vcmp.ge.f32.partialorder %v5472, 0.0
    %vm5489 = vcmp.ge.f32.partialorder %v5473, 0.0
    %vm5490 = vcmp.ge.f32.partialorder %v5474, 0.0
    %vm5491 = vcmp.ge.f32.partialorder %v5475, 0.0
    %vm5492 = vcmp.ge.f32.partialorder %v5476, 0.0
    %vm5493 = vcmp.ge.f32.partialorder %v5477, 0.0
    %v5494 = vstv %s5251
    %v5495 = vmul.f32 %v5494, %v5462
    %v5496 = vmul.f32 %v5494, %v5463
    %v5497 = vmul.f32 %v5494, %v5464
    %v5498 = vmul.f32 %v5494, %v5465
    %v5499 = vmul.f32 %v5494, %v5466
    %v5500 = vmul.f32 %v5494, %v5467
    %v5501 = vmul.f32 %v5494, %v5468
    %v5502 = vmul.f32 %v5494, %v5469
    %v5503 = vmul.f32 %v5494, %v5470
    %v5504 = vmul.f32 %v5494, %v5471
    %v5505 = vmul.f32 %v5494, %v5472
    %v5506 = vmul.f32 %v5494, %v5473
    %v5507 = vmul.f32 %v5494, %v5474
    %v5508 = vmul.f32 %v5494, %v5475
    %v5509 = vmul.f32 %v5494, %v5476
    %v5510 = vmul.f32 %v5494, %v5477
    %v5511 = vsel %vm5478, %v5462, %v5495
    %v5512 = vsel %vm5479, %v5463, %v5496
    %v5513 = vsel %vm5480, %v5464, %v5497
    %v5514 = vsel %vm5481, %v5465, %v5498
    %v5515 = vsel %vm5482, %v5466, %v5499
    %v5516 = vsel %vm5483, %v5467, %v5500
    %v5517 = vsel %vm5484, %v5468, %v5501
    %v5518 = vsel %vm5485, %v5469, %v5502
    %v5519 = vsel %vm5486, %v5470, %v5503
    %v5520 = vsel %vm5487, %v5471, %v5504
    %v5521 = vsel %vm5488, %v5472, %v5505
    %v5522 = vsel %vm5489, %v5473, %v5506
    %v5523 = vsel %vm5490, %v5474, %v5507
    %v5524 = vsel %vm5491, %v5475, %v5508
    %v5525 = vsel %vm5492, %v5476, %v5509
    %v5526 = vsel %vm5493, %v5477, %v5510
    %s5527 = sld [smem:[#allocation2 + $0x4]]
    %v5528 = vpack.c.bf16 %v5512, %v5511
    %v5529 = vpack.c.bf16 %v5514, %v5513
    %v5530 = vpack.c.bf16 %v5516, %v5515
    %v5531 = vpack.c.bf16 %v5518, %v5517
    %v5532 = vpack.c.bf16 %v5520, %v5519
    %v5533 = vpack.c.bf16 %v5522, %v5521
    %v5534 = vpack.c.bf16 %v5524, %v5523
    %v5535 = vpack.c.bf16 %v5526, %v5525
    %v5536 = vld [vmem:[%s16] sm:$0xff]
    %v5537 = vld [vmem:[%s16 + $0x8] sm:$0xff]
    %v5538 = vld [vmem:[%s16 + $0x10] sm:$0xff]
    %v5539 = vld [vmem:[%s16 + $0x18] sm:$0xff]
    %v5540 = vld [vmem:[%s16 + $0x20] sm:$0xff]
    %v5541 = vld [vmem:[%s16 + $0x28] sm:$0xff]
    %v5542 = vld [vmem:[%s16 + $0x30] sm:$0xff]
    %v5543 = vld [vmem:[%s16 + $0x38] sm:$0xff]
    %v5544 = vld [vmem:[%s16 + $0x40] sm:$0xff]
    %v5545 = vld [vmem:[%s16 + $0x48] sm:$0xff]
    %v5546 = vld [vmem:[%s16 + $0x50] sm:$0xff]
    %v5547 = vld [vmem:[%s16 + $0x58] sm:$0xff]
    %v5548 = vld [vmem:[%s16 + $0x60] sm:$0xff]
    %v5549 = vld [vmem:[%s16 + $0x68] sm:$0xff]
    %v5550 = vld [vmem:[%s16 + $0x70] sm:$0xff]
    %v5551 = vld [vmem:[%s16 + $0x78] sm:$0xff]
    %v5568 = vunpack.c.l.b16 %v5536
    %v5569 = vunpack.c.h.b16 %v5536
    %v5570 = vunpack.c.l.b16 %v5537
    %v5571 = vunpack.c.h.b16 %v5537
    %v5572 = vunpack.c.l.b16 %v5538
    %v5573 = vunpack.c.h.b16 %v5538
    %v5574 = vunpack.c.l.b16 %v5539
    %v5575 = vunpack.c.h.b16 %v5539
    %v5576 = vunpack.c.l.b16 %v5540
    %v5577 = vunpack.c.h.b16 %v5540
    %v5578 = vunpack.c.l.b16 %v5541
    %v5579 = vunpack.c.h.b16 %v5541
    %v5580 = vunpack.c.l.b16 %v5542
    %v5581 = vunpack.c.h.b16 %v5542
    %v5582 = vunpack.c.l.b16 %v5543
    %v5583 = vunpack.c.h.b16 %v5543
    %v5584 = vunpack.c.l.b16 %v5544
    %v5585 = vunpack.c.h.b16 %v5544
    %v5586 = vunpack.c.l.b16 %v5545
    %v5587 = vunpack.c.h.b16 %v5545
    %v5588 = vunpack.c.l.b16 %v5546
    %v5589 = vunpack.c.h.b16 %v5546
    %v5590 = vunpack.c.l.b16 %v5547
    %v5591 = vunpack.c.h.b16 %v5547
    %v5592 = vunpack.c.l.b16 %v5548
    %v5593 = vunpack.c.h.b16 %v5548
    %v5594 = vunpack.c.l.b16 %v5549
    %v5595 = vunpack.c.h.b16 %v5549
    %v5596 = vunpack.c.l.b16 %v5550
    %v5597 = vunpack.c.h.b16 %v5550
    %v5598 = vunpack.c.l.b16 %v5551
    %v5599 = vunpack.c.h.b16 %v5551
    %v5600 = vpack.c.b16 %v5570, %v5568
    %v5601 = vpack.c.b16 %v5571, %v5569
    %v5602 = vpack.c.b16 %v5574, %v5572
    %v5603 = vpack.c.b16 %v5575, %v5573
    %v5604 = vpack.c.b16 %v5578, %v5576
    %v5605 = vpack.c.b16 %v5579, %v5577
    %v5606 = vpack.c.b16 %v5582, %v5580
    %v5607 = vpack.c.b16 %v5583, %v5581
    %v5608 = vpack.c.b16 %v5586, %v5584
    %v5609 = vpack.c.b16 %v5587, %v5585
    %v5610 = vpack.c.b16 %v5590, %v5588
    %v5611 = vpack.c.b16 %v5591, %v5589
    %v5612 = vpack.c.b16 %v5594, %v5592
    %v5613 = vpack.c.b16 %v5595, %v5593
    %v5614 = vpack.c.b16 %v5598, %v5596
    %v5615 = vpack.c.b16 %v5599, %v5597
    %5632 = vmatpush.bf16.msra.mxu0 %v5614
    %5633 = vmatpush.bf16.msra.mxu0 %v5612
    %5634 = vmatpush.bf16.msra.mxu0 %v5610
    %5635 = vmatpush.bf16.msra.mxu0 %v5608
    %5636 = vmatpush.bf16.msra.mxu0 %v5606
    %5637 = vmatpush.bf16.msra.mxu0 %v5604
    %5638 = vmatpush.bf16.msra.mxu0 %v5602
    %5639 = vmatpush.bf16.msra.mxu0 %v5600
    %5640 = vmatmul.bf16.gmra.mxu0 %v5528
    %v5641 = vpop.f32.mrf.mxu0
    %v5642 = vadd.f32 0.0, %v5641
    %v5643 = vpop.f32.mrf.mxu0
    %v5644 = vadd.f32 0.0, %v5643
    %5645 = vmatmul.bf16.gmra.mxu0 %v5529
    %v5646 = vpop.f32.mrf.mxu0
    %v5647 = vadd.f32 0.0, %v5646
    %v5648 = vpop.f32.mrf.mxu0
    %v5649 = vadd.f32 0.0, %v5648
    %5650 = vmatmul.bf16.gmra.mxu0 %v5530
    %v5651 = vpop.f32.mrf.mxu0
    %v5652 = vadd.f32 0.0, %v5651
    %v5653 = vpop.f32.mrf.mxu0
    %v5654 = vadd.f32 0.0, %v5653
    %5655 = vmatmul.bf16.gmra.mxu0 %v5531
    %v5656 = vpop.f32.mrf.mxu0
    %v5657 = vadd.f32 0.0, %v5656
    %v5658 = vpop.f32.mrf.mxu0
    %v5659 = vadd.f32 0.0, %v5658
    %5660 = vmatmul.bf16.gmra.mxu0 %v5532
    %v5661 = vpop.f32.mrf.mxu0
    %v5662 = vadd.f32 0.0, %v5661
    %v5663 = vpop.f32.mrf.mxu0
    %v5664 = vadd.f32 0.0, %v5663
    %5665 = vmatmul.bf16.gmra.mxu0 %v5533
    %v5666 = vpop.f32.mrf.mxu0
    %v5667 = vadd.f32 0.0, %v5666
    %v5668 = vpop.f32.mrf.mxu0
    %v5669 = vadd.f32 0.0, %v5668
    %5670 = vmatmul.bf16.gmra.mxu0 %v5534
    %v5671 = vpop.f32.mrf.mxu0
    %v5672 = vadd.f32 0.0, %v5671
    %v5673 = vpop.f32.mrf.mxu0
    %v5674 = vadd.f32 0.0, %v5673
    %5675 = vmatmul.bf16.gmra.mxu0 %v5535
    %v5676 = vpop.f32.mrf.mxu0
    %v5677 = vadd.f32 0.0, %v5676
    %v5678 = vpop.f32.mrf.mxu0
    %v5679 = vadd.f32 0.0, %v5678
    %5680 = vdwg.mxu0
    %5681 = vmatpush.bf16.msra.mxu0 %v5615
    %5682 = vmatpush.bf16.msra.mxu0 %v5613
    %5683 = vmatpush.bf16.msra.mxu0 %v5611
    %5684 = vmatpush.bf16.msra.mxu0 %v5609
    %5685 = vmatpush.bf16.msra.mxu0 %v5607
    %5686 = vmatpush.bf16.msra.mxu0 %v5605
    %5687 = vmatpush.bf16.msra.mxu0 %v5603
    %5688 = vmatpush.bf16.msra.mxu0 %v5601
    %5689 = vmatmul.bf16.gmra.mxu0 %v5528
    %v5690 = vpop.f32.mrf.mxu0
    %v5691 = vadd.f32 0.0, %v5690
    %v5692 = vpop.f32.mrf.mxu0
    %v5693 = vadd.f32 0.0, %v5692
    %5694 = vmatmul.bf16.gmra.mxu0 %v5529
    %v5695 = vpop.f32.mrf.mxu0
    %v5696 = vadd.f32 0.0, %v5695
    %v5697 = vpop.f32.mrf.mxu0
    %v5698 = vadd.f32 0.0, %v5697
    %5699 = vmatmul.bf16.gmra.mxu0 %v5530
    %v5700 = vpop.f32.mrf.mxu0
    %v5701 = vadd.f32 0.0, %v5700
    %v5702 = vpop.f32.mrf.mxu0
    %v5703 = vadd.f32 0.0, %v5702
    %5704 = vmatmul.bf16.gmra.mxu0 %v5531
    %v5705 = vpop.f32.mrf.mxu0
    %v5706 = vadd.f32 0.0, %v5705
    %v5707 = vpop.f32.mrf.mxu0
    %v5708 = vadd.f32 0.0, %v5707
    %5709 = vmatmul.bf16.gmra.mxu0 %v5532
    %v5710 = vpop.f32.mrf.mxu0
    %v5711 = vadd.f32 0.0, %v5710
    %v5712 = vpop.f32.mrf.mxu0
    %v5713 = vadd.f32 0.0, %v5712
    %5714 = vmatmul.bf16.gmra.mxu0 %v5533
    %v5715 = vpop.f32.mrf.mxu0
    %v5716 = vadd.f32 0.0, %v5715
    %v5717 = vpop.f32.mrf.mxu0
    %v5718 = vadd.f32 0.0, %v5717
    %5719 = vmatmul.bf16.gmra.mxu0 %v5534
    %v5720 = vpop.f32.mrf.mxu0
    %v5721 = vadd.f32 0.0, %v5720
    %v5722 = vpop.f32.mrf.mxu0
    %v5723 = vadd.f32 0.0, %v5722
    %5724 = vmatmul.bf16.gmra.mxu0 %v5535
    %v5725 = vpop.f32.mrf.mxu0
    %v5726 = vadd.f32 0.0, %v5725
    %v5727 = vpop.f32.mrf.mxu0
    %v5728 = vadd.f32 0.0, %v5727
    %5729 = vdwg.mxu0
    %v5730 = vadd.f32 %v5642, %v5644
    %v5731 = vadd.f32 %v5730, %v5647
    %v5732 = vadd.f32 %v5731, %v5649
    %v5733 = vadd.f32 %v5732, %v5652
    %v5734 = vadd.f32 %v5733, %v5654
    %v5735 = vadd.f32 %v5734, %v5657
    %v5736 = vadd.f32 %v5735, %v5659
    %v5737 = vadd.f32 %v5736, %v5662
    %v5738 = vadd.f32 %v5737, %v5664
    %v5739 = vadd.f32 %v5738, %v5667
    %v5740 = vadd.f32 %v5739, %v5669
    %v5741 = vadd.f32 %v5740, %v5672
    %v5742 = vadd.f32 %v5741, %v5674
    %v5743 = vadd.f32 %v5742, %v5677
    %v5744 = vadd.f32 %v5743, %v5679
    %v5745 = vrot.slane %v5744, 4
    %v5746 = vadd.f32 %v5744, %v5745
    %v5747 = vrot.slane %v5746, 2
    %v5748 = vadd.f32 %v5746, %v5747
    %v5749 = vrot.slane %v5748, 1
    %v5750 = vadd.f32 %v5748, %v5749
    %v5751 = vadd.f32 %v5691, %v5693
    %v5752 = vadd.f32 %v5751, %v5696
    %v5753 = vadd.f32 %v5752, %v5698
    %v5754 = vadd.f32 %v5753, %v5701
    %v5755 = vadd.f32 %v5754, %v5703
    %v5756 = vadd.f32 %v5755, %v5706
    %v5757 = vadd.f32 %v5756, %v5708
    %v5758 = vadd.f32 %v5757, %v5711
    %v5759 = vadd.f32 %v5758, %v5713
    %v5760 = vadd.f32 %v5759, %v5716
    %v5761 = vadd.f32 %v5760, %v5718
    %v5762 = vadd.f32 %v5761, %v5721
    %v5763 = vadd.f32 %v5762, %v5723
    %v5764 = vadd.f32 %v5763, %v5726
    %v5765 = vadd.f32 %v5764, %v5728
    %v5766 = vrot.slane %v5765, 4
    %v5767 = vadd.f32 %v5765, %v5766
    %v5768 = vrot.slane %v5767, 2
    %v5769 = vadd.f32 %v5767, %v5768
    %v5770 = vrot.slane %v5769, 1
    %v5771 = vadd.f32 %v5769, %v5770
    %v5772 = vmul.f32 %v5750, %v2923
    %v5773 = vmul.f32 %v5771, %v2923
    %v5774 = vsub.f32 %v5642, %v5772
    %v5775 = vsub.f32 %v5691, %v5773
    %v5776 = vsub.f32 %v5644, %v5772
    %v5777 = vsub.f32 %v5693, %v5773
    %v5778 = vsub.f32 %v5647, %v5772
    %v5779 = vsub.f32 %v5696, %v5773
    %v5780 = vsub.f32 %v5649, %v5772
    %v5781 = vsub.f32 %v5698, %v5773
    %v5782 = vsub.f32 %v5652, %v5772
    %v5783 = vsub.f32 %v5701, %v5773
    %v5784 = vsub.f32 %v5654, %v5772
    %v5785 = vsub.f32 %v5703, %v5773
    %v5786 = vsub.f32 %v5657, %v5772
    %v5787 = vsub.f32 %v5706, %v5773
    %v5788 = vsub.f32 %v5659, %v5772
    %v5789 = vsub.f32 %v5708, %v5773
    %v5790 = vsub.f32 %v5662, %v5772
    %v5791 = vsub.f32 %v5711, %v5773
    %v5792 = vsub.f32 %v5664, %v5772
    %v5793 = vsub.f32 %v5713, %v5773
    %v5794 = vsub.f32 %v5667, %v5772
    %v5795 = vsub.f32 %v5716, %v5773
    %v5796 = vsub.f32 %v5669, %v5772
    %v5797 = vsub.f32 %v5718, %v5773
    %v5798 = vsub.f32 %v5672, %v5772
    %v5799 = vsub.f32 %v5721, %v5773
    %v5800 = vsub.f32 %v5674, %v5772
    %v5801 = vsub.f32 %v5723, %v5773
    %v5802 = vsub.f32 %v5677, %v5772
    %v5803 = vsub.f32 %v5726, %v5773
    %v5804 = vsub.f32 %v5679, %v5772
    %v5805 = vsub.f32 %v5728, %v5773
    %v5806 = vmul.f32 %v5774, %v5774
    %v5807 = vmul.f32 %v5775, %v5775
    %v5808 = vmul.f32 %v5776, %v5776
    %v5809 = vmul.f32 %v5777, %v5777
    %v5810 = vmul.f32 %v5778, %v5778
    %v5811 = vmul.f32 %v5779, %v5779
    %v5812 = vmul.f32 %v5780, %v5780
    %v5813 = vmul.f32 %v5781, %v5781
    %v5814 = vmul.f32 %v5782, %v5782
    %v5815 = vmul.f32 %v5783, %v5783
    %v5816 = vmul.f32 %v5784, %v5784
    %v5817 = vmul.f32 %v5785, %v5785
    %v5818 = vmul.f32 %v5786, %v5786
    %v5819 = vmul.f32 %v5787, %v5787
    %v5820 = vmul.f32 %v5788, %v5788
    %v5821 = vmul.f32 %v5789, %v5789
    %v5822 = vmul.f32 %v5790, %v5790
    %v5823 = vmul.f32 %v5791, %v5791
    %v5824 = vmul.f32 %v5792, %v5792
    %v5825 = vmul.f32 %v5793, %v5793
    %v5826 = vmul.f32 %v5794, %v5794
    %v5827 = vmul.f32 %v5795, %v5795
    %v5828 = vmul.f32 %v5796, %v5796
    %v5829 = vmul.f32 %v5797, %v5797
    %v5830 = vmul.f32 %v5798, %v5798
    %v5831 = vmul.f32 %v5799, %v5799
    %v5832 = vmul.f32 %v5800, %v5800
    %v5833 = vmul.f32 %v5801, %v5801
    %v5834 = vmul.f32 %v5802, %v5802
    %v5835 = vmul.f32 %v5803, %v5803
    %v5836 = vmul.f32 %v5804, %v5804
    %v5837 = vmul.f32 %v5805, %v5805
    %v5838 = vadd.f32 %v5806, %v5808
    %v5839 = vadd.f32 %v5838, %v5810
    %v5840 = vadd.f32 %v5839, %v5812
    %v5841 = vadd.f32 %v5840, %v5814
    %v5842 = vadd.f32 %v5841, %v5816
    %v5843 = vadd.f32 %v5842, %v5818
    %v5844 = vadd.f32 %v5843, %v5820
    %v5845 = vadd.f32 %v5844, %v5822
    %v5846 = vadd.f32 %v5845, %v5824
    %v5847 = vadd.f32 %v5846, %v5826
    %v5848 = vadd.f32 %v5847, %v5828
    %v5849 = vadd.f32 %v5848, %v5830
    %v5850 = vadd.f32 %v5849, %v5832
    %v5851 = vadd.f32 %v5850, %v5834
    %v5852 = vadd.f32 %v5851, %v5836
    %v5853 = vrot.slane %v5852, 4
    %v5854 = vadd.f32 %v5852, %v5853
    %v5855 = vrot.slane %v5854, 2
    %v5856 = vadd.f32 %v5854, %v5855
    %v5857 = vrot.slane %v5856, 1
    %v5858 = vadd.f32 %v5856, %v5857
    %v5859 = vadd.f32 %v5807, %v5809
    %v5860 = vadd.f32 %v5859, %v5811
    %v5861 = vadd.f32 %v5860, %v5813
    %v5862 = vadd.f32 %v5861, %v5815
    %v5863 = vadd.f32 %v5862, %v5817
    %v5864 = vadd.f32 %v5863, %v5819
    %v5865 = vadd.f32 %v5864, %v5821
    %v5866 = vadd.f32 %v5865, %v5823
    %v5867 = vadd.f32 %v5866, %v5825
    %v5868 = vadd.f32 %v5867, %v5827
    %v5869 = vadd.f32 %v5868, %v5829
    %v5870 = vadd.f32 %v5869, %v5831
    %v5871 = vadd.f32 %v5870, %v5833
    %v5872 = vadd.f32 %v5871, %v5835
    %v5873 = vadd.f32 %v5872, %v5837
    %v5874 = vrot.slane %v5873, 4
    %v5875 = vadd.f32 %v5873, %v5874
    %v5876 = vrot.slane %v5875, 2
    %v5877 = vadd.f32 %v5875, %v5876
    %v5878 = vrot.slane %v5877, 1
    %v5879 = vadd.f32 %v5877, %v5878
    %v5880 = vmul.f32 %v5858, %v2923
    %v5881 = vmul.f32 %v5879, %v2923
    %v5882 = vld [vmem:[%s17] sm:$0x3]
    %v5883 = vadd.f32 %v5880, 1e-05
    %v5884 = vadd.f32 %v5881, 1e-05
    %v5885 = vrsqrt.pop %v5883
    %v5886 = vmul.f32 %v5885, %v5883
    %v5887 = vmul.f32 %v5886, %v5885
    %v5888 = vmul.f32 0.5, %v5887
    %v5889 = vsub.f32 1.5, %v5888
    %v5890 = vmul.f32 %v5885, %v5889
    %vm5891 = vweird.f32 %v5883
    %vm5892 = vweird.f32 %v5885
    %vm5893 = vmor %vm5891, %vm5892
    %v5894 = vsel %vm5893, %v5885, %v5890
    %v5895 = vrsqrt.pop %v5884
    %v5896 = vmul.f32 %v5895, %v5884
    %v5897 = vmul.f32 %v5896, %v5895
    %v5898 = vmul.f32 0.5, %v5897
    %v5899 = vsub.f32 1.5, %v5898
    %v5900 = vmul.f32 %v5895, %v5899
    %vm5901 = vweird.f32 %v5884
    %vm5902 = vweird.f32 %v5895
    %vm5903 = vmor %vm5901, %vm5902
    %v5904 = vsel %vm5903, %v5895, %v5900
    %v5907 = vrot.slane %v5904, 7
    %v5908 = vsel %vm3196, %v5894, %v5907
    %v5910 = vmul.f32 %v5882, %v5908
    %v5912 = vperm.slane %v5910, 0
    %v5913 = vperm.slane %v5910, 1
    %v5916 = vmul.f32 %v5774, %v5912
    %v5917 = vmul.f32 %v5775, %v5913
    %v5918 = vmul.f32 %v5776, %v5912
    %v5919 = vmul.f32 %v5777, %v5913
    %v5920 = vmul.f32 %v5778, %v5912
    %v5921 = vmul.f32 %v5779, %v5913
    %v5922 = vmul.f32 %v5780, %v5912
    %v5923 = vmul.f32 %v5781, %v5913
    %v5924 = vmul.f32 %v5782, %v5912
    %v5925 = vmul.f32 %v5783, %v5913
    %v5926 = vmul.f32 %v5784, %v5912
    %v5927 = vmul.f32 %v5785, %v5913
    %v5928 = vmul.f32 %v5786, %v5912
    %v5929 = vmul.f32 %v5787, %v5913
    %v5930 = vmul.f32 %v5788, %v5912
    %v5931 = vmul.f32 %v5789, %v5913
    %v5932 = vmul.f32 %v5790, %v5912
    %v5933 = vmul.f32 %v5791, %v5913
    %v5934 = vmul.f32 %v5792, %v5912
    %v5935 = vmul.f32 %v5793, %v5913
    %v5936 = vmul.f32 %v5794, %v5912
    %v5937 = vmul.f32 %v5795, %v5913
    %v5938 = vmul.f32 %v5796, %v5912
    %v5939 = vmul.f32 %v5797, %v5913
    %v5940 = vmul.f32 %v5798, %v5912
    %v5941 = vmul.f32 %v5799, %v5913
    %v5942 = vmul.f32 %v5800, %v5912
    %v5943 = vmul.f32 %v5801, %v5913
    %v5944 = vmul.f32 %v5802, %v5912
    %v5945 = vmul.f32 %v5803, %v5913
    %v5946 = vmul.f32 %v5804, %v5912
    %v5947 = vmul.f32 %v5805, %v5913
    %v5948 = vld [vmem:[%s18] sm:$0x3]
    %v5950 = vperm.slane %v5948, 0
    %v5951 = vperm.slane %v5948, 1
    %v5954 = vadd.f32 %v5916, %v5950
    %v5955 = vadd.f32 %v5917, %v5951
    %v5956 = vadd.f32 %v5918, %v5950
    %v5957 = vadd.f32 %v5919, %v5951
    %v5958 = vadd.f32 %v5920, %v5950
    %v5959 = vadd.f32 %v5921, %v5951
    %v5960 = vadd.f32 %v5922, %v5950
    %v5961 = vadd.f32 %v5923, %v5951
    %v5962 = vadd.f32 %v5924, %v5950
    %v5963 = vadd.f32 %v5925, %v5951
    %v5964 = vadd.f32 %v5926, %v5950
    %v5965 = vadd.f32 %v5927, %v5951
    %v5966 = vadd.f32 %v5928, %v5950
    %v5967 = vadd.f32 %v5929, %v5951
    %v5968 = vadd.f32 %v5930, %v5950
    %v5969 = vadd.f32 %v5931, %v5951
    %v5970 = vadd.f32 %v5932, %v5950
    %v5971 = vadd.f32 %v5933, %v5951
    %v5972 = vadd.f32 %v5934, %v5950
    %v5973 = vadd.f32 %v5935, %v5951
    %v5974 = vadd.f32 %v5936, %v5950
    %v5975 = vadd.f32 %v5937, %v5951
    %v5976 = vadd.f32 %v5938, %v5950
    %v5977 = vadd.f32 %v5939, %v5951
    %v5978 = vadd.f32 %v5940, %v5950
    %v5979 = vadd.f32 %v5941, %v5951
    %v5980 = vadd.f32 %v5942, %v5950
    %v5981 = vadd.f32 %v5943, %v5951
    %v5982 = vadd.f32 %v5944, %v5950
    %v5983 = vadd.f32 %v5945, %v5951
    %v5984 = vadd.f32 %v5946, %v5950
    %v5985 = vadd.f32 %v5947, %v5951
    %vm5986 = vcmp.ge.f32.partialorder %v5954, 0.0
    %vm5987 = vcmp.ge.f32.partialorder %v5955, 0.0
    %vm5988 = vcmp.ge.f32.partialorder %v5956, 0.0
    %vm5989 = vcmp.ge.f32.partialorder %v5957, 0.0
    %vm5990 = vcmp.ge.f32.partialorder %v5958, 0.0
    %vm5991 = vcmp.ge.f32.partialorder %v5959, 0.0
    %vm5992 = vcmp.ge.f32.partialorder %v5960, 0.0
    %vm5993 = vcmp.ge.f32.partialorder %v5961, 0.0
    %vm5994 = vcmp.ge.f32.partialorder %v5962, 0.0
    %vm5995 = vcmp.ge.f32.partialorder %v5963, 0.0
    %vm5996 = vcmp.ge.f32.partialorder %v5964, 0.0
    %vm5997 = vcmp.ge.f32.partialorder %v5965, 0.0
    %vm5998 = vcmp.ge.f32.partialorder %v5966, 0.0
    %vm5999 = vcmp.ge.f32.partialorder %v5967, 0.0
    %vm6000 = vcmp.ge.f32.partialorder %v5968, 0.0
    %vm6001 = vcmp.ge.f32.partialorder %v5969, 0.0
    %vm6002 = vcmp.ge.f32.partialorder %v5970, 0.0
    %vm6003 = vcmp.ge.f32.partialorder %v5971, 0.0
    %vm6004 = vcmp.ge.f32.partialorder %v5972, 0.0
    %vm6005 = vcmp.ge.f32.partialorder %v5973, 0.0
    %vm6006 = vcmp.ge.f32.partialorder %v5974, 0.0
    %vm6007 = vcmp.ge.f32.partialorder %v5975, 0.0
    %vm6008 = vcmp.ge.f32.partialorder %v5976, 0.0
    %vm6009 = vcmp.ge.f32.partialorder %v5977, 0.0
    %vm6010 = vcmp.ge.f32.partialorder %v5978, 0.0
    %vm6011 = vcmp.ge.f32.partialorder %v5979, 0.0
    %vm6012 = vcmp.ge.f32.partialorder %v5980, 0.0
    %vm6013 = vcmp.ge.f32.partialorder %v5981, 0.0
    %vm6014 = vcmp.ge.f32.partialorder %v5982, 0.0
    %vm6015 = vcmp.ge.f32.partialorder %v5983, 0.0
    %vm6016 = vcmp.ge.f32.partialorder %v5984, 0.0
    %vm6017 = vcmp.ge.f32.partialorder %v5985, 0.0
    %v6018 = vstv %s5527
    %v6019 = vmul.f32 %v6018, %v5954
    %v6020 = vmul.f32 %v6018, %v5955
    %v6021 = vmul.f32 %v6018, %v5956
    %v6022 = vmul.f32 %v6018, %v5957
    %v6023 = vmul.f32 %v6018, %v5958
    %v6024 = vmul.f32 %v6018, %v5959
    %v6025 = vmul.f32 %v6018, %v5960
    %v6026 = vmul.f32 %v6018, %v5961
    %v6027 = vmul.f32 %v6018, %v5962
    %v6028 = vmul.f32 %v6018, %v5963
    %v6029 = vmul.f32 %v6018, %v5964
    %v6030 = vmul.f32 %v6018, %v5965
    %v6031 = vmul.f32 %v6018, %v5966
    %v6032 = vmul.f32 %v6018, %v5967
    %v6033 = vmul.f32 %v6018, %v5968
    %v6034 = vmul.f32 %v6018, %v5969
    %v6035 = vmul.f32 %v6018, %v5970
    %v6036 = vmul.f32 %v6018, %v5971
    %v6037 = vmul.f32 %v6018, %v5972
    %v6038 = vmul.f32 %v6018, %v5973
    %v6039 = vmul.f32 %v6018, %v5974
    %v6040 = vmul.f32 %v6018, %v5975
    %v6041 = vmul.f32 %v6018, %v5976
    %v6042 = vmul.f32 %v6018, %v5977
    %v6043 = vmul.f32 %v6018, %v5978
    %v6044 = vmul.f32 %v6018, %v5979
    %v6045 = vmul.f32 %v6018, %v5980
    %v6046 = vmul.f32 %v6018, %v5981
    %v6047 = vmul.f32 %v6018, %v5982
    %v6048 = vmul.f32 %v6018, %v5983
    %v6049 = vmul.f32 %v6018, %v5984
    %v6050 = vmul.f32 %v6018, %v5985
    %v6051 = vsel %vm5986, %v5954, %v6019
    %v6052 = vsel %vm5987, %v5955, %v6020
    %v6053 = vsel %vm5988, %v5956, %v6021
    %v6054 = vsel %vm5989, %v5957, %v6022
    %v6055 = vsel %vm5990, %v5958, %v6023
    %v6056 = vsel %vm5991, %v5959, %v6024
    %v6057 = vsel %vm5992, %v5960, %v6025
    %v6058 = vsel %vm5993, %v5961, %v6026
    %v6059 = vsel %vm5994, %v5962, %v6027
    %v6060 = vsel %vm5995, %v5963, %v6028
    %v6061 = vsel %vm5996, %v5964, %v6029
    %v6062 = vsel %vm5997, %v5965, %v6030
    %v6063 = vsel %vm5998, %v5966, %v6031
    %v6064 = vsel %vm5999, %v5967, %v6032
    %v6065 = vsel %vm6000, %v5968, %v6033
    %v6066 = vsel %vm6001, %v5969, %v6034
    %v6067 = vsel %vm6002, %v5970, %v6035
    %v6068 = vsel %vm6003, %v5971, %v6036
    %v6069 = vsel %vm6004, %v5972, %v6037
    %v6070 = vsel %vm6005, %v5973, %v6038
    %v6071 = vsel %vm6006, %v5974, %v6039
    %v6072 = vsel %vm6007, %v5975, %v6040
    %v6073 = vsel %vm6008, %v5976, %v6041
    %v6074 = vsel %vm6009, %v5977, %v6042
    %v6075 = vsel %vm6010, %v5978, %v6043
    %v6076 = vsel %vm6011, %v5979, %v6044
    %v6077 = vsel %vm6012, %v5980, %v6045
    %v6078 = vsel %vm6013, %v5981, %v6046
    %v6079 = vsel %vm6014, %v5982, %v6047
    %v6080 = vsel %vm6015, %v5983, %v6048
    %v6081 = vsel %vm6016, %v5984, %v6049
    %v6082 = vsel %vm6017, %v5985, %v6050
    %s6083 = sld [smem:[#allocation2 + $0x5]]
    %v6084 = vpack.c.bf16 %v6053, %v6051
    %v6085 = vpack.c.bf16 %v6054, %v6052
    %v6086 = vpack.c.bf16 %v6057, %v6055
    %v6087 = vpack.c.bf16 %v6058, %v6056
    %v6088 = vpack.c.bf16 %v6061, %v6059
    %v6089 = vpack.c.bf16 %v6062, %v6060
    %v6090 = vpack.c.bf16 %v6065, %v6063
    %v6091 = vpack.c.bf16 %v6066, %v6064
    %v6092 = vpack.c.bf16 %v6069, %v6067
    %v6093 = vpack.c.bf16 %v6070, %v6068
    %v6094 = vpack.c.bf16 %v6073, %v6071
    %v6095 = vpack.c.bf16 %v6074, %v6072
    %v6096 = vpack.c.bf16 %v6077, %v6075
    %v6097 = vpack.c.bf16 %v6078, %v6076
    %v6098 = vpack.c.bf16 %v6081, %v6079
    %v6099 = vpack.c.bf16 %v6082, %v6080
    %v6100 = vld [vmem:[%s19] sm:$0xff]
    %v6101 = vld [vmem:[%s19 + $0x8] sm:$0xff]
    %v6102 = vld [vmem:[%s19 + $0x10] sm:$0xff]
    %v6103 = vld [vmem:[%s19 + $0x18] sm:$0xff]
    %v6104 = vld [vmem:[%s19 + $0x20] sm:$0xff]
    %v6105 = vld [vmem:[%s19 + $0x28] sm:$0xff]
    %v6106 = vld [vmem:[%s19 + $0x30] sm:$0xff]
    %v6107 = vld [vmem:[%s19 + $0x38] sm:$0xff]
    %v6108 = vld [vmem:[%s19 + $0x40] sm:$0xff]
    %v6109 = vld [vmem:[%s19 + $0x48] sm:$0xff]
    %v6110 = vld [vmem:[%s19 + $0x50] sm:$0xff]
    %v6111 = vld [vmem:[%s19 + $0x58] sm:$0xff]
    %v6112 = vld [vmem:[%s19 + $0x60] sm:$0xff]
    %v6113 = vld [vmem:[%s19 + $0x68] sm:$0xff]
    %v6114 = vld [vmem:[%s19 + $0x70] sm:$0xff]
    %v6115 = vld [vmem:[%s19 + $0x78] sm:$0xff]
    %v6116 = vld [vmem:[%s19 + $0x80] sm:$0xff]
    %v6117 = vld [vmem:[%s19 + $0x88] sm:$0xff]
    %v6118 = vld [vmem:[%s19 + $0x90] sm:$0xff]
    %v6119 = vld [vmem:[%s19 + $0x98] sm:$0xff]
    %v6120 = vld [vmem:[%s19 + $0xa0] sm:$0xff]
    %v6121 = vld [vmem:[%s19 + $0xa8] sm:$0xff]
    %v6122 = vld [vmem:[%s19 + $0xb0] sm:$0xff]
    %v6123 = vld [vmem:[%s19 + $0xb8] sm:$0xff]
    %v6124 = vld [vmem:[%s19 + $0xc0] sm:$0xff]
    %v6125 = vld [vmem:[%s19 + $0xc8] sm:$0xff]
    %v6126 = vld [vmem:[%s19 + $0xd0] sm:$0xff]
    %v6127 = vld [vmem:[%s19 + $0xd8] sm:$0xff]
    %v6128 = vld [vmem:[%s19 + $0xe0] sm:$0xff]
    %v6129 = vld [vmem:[%s19 + $0xe8] sm:$0xff]
    %v6130 = vld [vmem:[%s19 + $0xf0] sm:$0xff]
    %v6131 = vld [vmem:[%s19 + $0xf8] sm:$0xff]
    %v6132 = vld [vmem:[%s19 + $0x100] sm:$0xff]
    %v6133 = vld [vmem:[%s19 + $0x108] sm:$0xff]
    %v6134 = vld [vmem:[%s19 + $0x110] sm:$0xff]
    %v6135 = vld [vmem:[%s19 + $0x118] sm:$0xff]
    %v6136 = vld [vmem:[%s19 + $0x120] sm:$0xff]
    %v6137 = vld [vmem:[%s19 + $0x128] sm:$0xff]
    %v6138 = vld [vmem:[%s19 + $0x130] sm:$0xff]
    %v6139 = vld [vmem:[%s19 + $0x138] sm:$0xff]
    %v6140 = vld [vmem:[%s19 + $0x140] sm:$0xff]
    %v6141 = vld [vmem:[%s19 + $0x148] sm:$0xff]
    %v6142 = vld [vmem:[%s19 + $0x150] sm:$0xff]
    %v6143 = vld [vmem:[%s19 + $0x158] sm:$0xff]
    %v6144 = vld [vmem:[%s19 + $0x160] sm:$0xff]
    %v6145 = vld [vmem:[%s19 + $0x168] sm:$0xff]
    %v6146 = vld [vmem:[%s19 + $0x170] sm:$0xff]
    %v6147 = vld [vmem:[%s19 + $0x178] sm:$0xff]
    %v6148 = vld [vmem:[%s19 + $0x180] sm:$0xff]
    %v6149 = vld [vmem:[%s19 + $0x188] sm:$0xff]
    %v6150 = vld [vmem:[%s19 + $0x190] sm:$0xff]
    %v6151 = vld [vmem:[%s19 + $0x198] sm:$0xff]
    %v6152 = vld [vmem:[%s19 + $0x1a0] sm:$0xff]
    %v6153 = vld [vmem:[%s19 + $0x1a8] sm:$0xff]
    %v6154 = vld [vmem:[%s19 + $0x1b0] sm:$0xff]
    %v6155 = vld [vmem:[%s19 + $0x1b8] sm:$0xff]
    %v6156 = vld [vmem:[%s19 + $0x1c0] sm:$0xff]
    %v6157 = vld [vmem:[%s19 + $0x1c8] sm:$0xff]
    %v6158 = vld [vmem:[%s19 + $0x1d0] sm:$0xff]
    %v6159 = vld [vmem:[%s19 + $0x1d8] sm:$0xff]
    %v6160 = vld [vmem:[%s19 + $0x1e0] sm:$0xff]
    %v6161 = vld [vmem:[%s19 + $0x1e8] sm:$0xff]
    %v6162 = vld [vmem:[%s19 + $0x1f0] sm:$0xff]
    %v6163 = vld [vmem:[%s19 + $0x1f8] sm:$0xff]
    %v6228 = vunpack.c.l.b16 %v6100
    %v6229 = vunpack.c.h.b16 %v6100
    %v6230 = vunpack.c.l.b16 %v6101
    %v6231 = vunpack.c.h.b16 %v6101
    %v6232 = vunpack.c.l.b16 %v6102
    %v6233 = vunpack.c.h.b16 %v6102
    %v6234 = vunpack.c.l.b16 %v6103
    %v6235 = vunpack.c.h.b16 %v6103
    %v6236 = vunpack.c.l.b16 %v6104
    %v6237 = vunpack.c.h.b16 %v6104
    %v6238 = vunpack.c.l.b16 %v6105
    %v6239 = vunpack.c.h.b16 %v6105
    %v6240 = vunpack.c.l.b16 %v6106
    %v6241 = vunpack.c.h.b16 %v6106
    %v6242 = vunpack.c.l.b16 %v6107
    %v6243 = vunpack.c.h.b16 %v6107
    %v6244 = vunpack.c.l.b16 %v6108
    %v6245 = vunpack.c.h.b16 %v6108
    %v6246 = vunpack.c.l.b16 %v6109
    %v6247 = vunpack.c.h.b16 %v6109
    %v6248 = vunpack.c.l.b16 %v6110
    %v6249 = vunpack.c.h.b16 %v6110
    %v6250 = vunpack.c.l.b16 %v6111
    %v6251 = vunpack.c.h.b16 %v6111
    %v6252 = vunpack.c.l.b16 %v6112
    %v6253 = vunpack.c.h.b16 %v6112
    %v6254 = vunpack.c.l.b16 %v6113
    %v6255 = vunpack.c.h.b16 %v6113
    %v6256 = vunpack.c.l.b16 %v6114
    %v6257 = vunpack.c.h.b16 %v6114
    %v6258 = vunpack.c.l.b16 %v6115
    %v6259 = vunpack.c.h.b16 %v6115
    %v6260 = vunpack.c.l.b16 %v6116
    %v6261 = vunpack.c.h.b16 %v6116
    %v6262 = vunpack.c.l.b16 %v6117
    %v6263 = vunpack.c.h.b16 %v6117
    %v6264 = vunpack.c.l.b16 %v6118
    %v6265 = vunpack.c.h.b16 %v6118
    %v6266 = vunpack.c.l.b16 %v6119
    %v6267 = vunpack.c.h.b16 %v6119
    %v6268 = vunpack.c.l.b16 %v6120
    %v6269 = vunpack.c.h.b16 %v6120
    %v6270 = vunpack.c.l.b16 %v6121
    %v6271 = vunpack.c.h.b16 %v6121
    %v6272 = vunpack.c.l.b16 %v6122
    %v6273 = vunpack.c.h.b16 %v6122
    %v6274 = vunpack.c.l.b16 %v6123
    %v6275 = vunpack.c.h.b16 %v6123
    %v6276 = vunpack.c.l.b16 %v6124
    %v6277 = vunpack.c.h.b16 %v6124
    %v6278 = vunpack.c.l.b16 %v6125
    %v6279 = vunpack.c.h.b16 %v6125
    %v6280 = vunpack.c.l.b16 %v6126
    %v6281 = vunpack.c.h.b16 %v6126
    %v6282 = vunpack.c.l.b16 %v6127
    %v6283 = vunpack.c.h.b16 %v6127
    %v6284 = vunpack.c.l.b16 %v6128
    %v6285 = vunpack.c.h.b16 %v6128
    %v6286 = vunpack.c.l.b16 %v6129
    %v6287 = vunpack.c.h.b16 %v6129
    %v6288 = vunpack.c.l.b16 %v6130
    %v6289 = vunpack.c.h.b16 %v6130
    %v6290 = vunpack.c.l.b16 %v6131
    %v6291 = vunpack.c.h.b16 %v6131
    %v6292 = vunpack.c.l.b16 %v6132
    %v6293 = vunpack.c.h.b16 %v6132
    %v6294 = vunpack.c.l.b16 %v6133
    %v6295 = vunpack.c.h.b16 %v6133
    %v6296 = vunpack.c.l.b16 %v6134
    %v6297 = vunpack.c.h.b16 %v6134
    %v6298 = vunpack.c.l.b16 %v6135
    %v6299 = vunpack.c.h.b16 %v6135
    %v6300 = vunpack.c.l.b16 %v6136
    %v6301 = vunpack.c.h.b16 %v6136
    %v6302 = vunpack.c.l.b16 %v6137
    %v6303 = vunpack.c.h.b16 %v6137
    %v6304 = vunpack.c.l.b16 %v6138
    %v6305 = vunpack.c.h.b16 %v6138
    %v6306 = vunpack.c.l.b16 %v6139
    %v6307 = vunpack.c.h.b16 %v6139
    %v6308 = vunpack.c.l.b16 %v6140
    %v6309 = vunpack.c.h.b16 %v6140
    %v6310 = vunpack.c.l.b16 %v6141
    %v6311 = vunpack.c.h.b16 %v6141
    %v6312 = vunpack.c.l.b16 %v6142
    %v6313 = vunpack.c.h.b16 %v6142
    %v6314 = vunpack.c.l.b16 %v6143
    %v6315 = vunpack.c.h.b16 %v6143
    %v6316 = vunpack.c.l.b16 %v6144
    %v6317 = vunpack.c.h.b16 %v6144
    %v6318 = vunpack.c.l.b16 %v6145
    %v6319 = vunpack.c.h.b16 %v6145
    %v6320 = vunpack.c.l.b16 %v6146
    %v6321 = vunpack.c.h.b16 %v6146
    %v6322 = vunpack.c.l.b16 %v6147
    %v6323 = vunpack.c.h.b16 %v6147
    %v6324 = vunpack.c.l.b16 %v6148
    %v6325 = vunpack.c.h.b16 %v6148
    %v6326 = vunpack.c.l.b16 %v6149
    %v6327 = vunpack.c.h.b16 %v6149
    %v6328 = vunpack.c.l.b16 %v6150
    %v6329 = vunpack.c.h.b16 %v6150
    %v6330 = vunpack.c.l.b16 %v6151
    %v6331 = vunpack.c.h.b16 %v6151
    %v6332 = vunpack.c.l.b16 %v6152
    %v6333 = vunpack.c.h.b16 %v6152
    %v6334 = vunpack.c.l.b16 %v6153
    %v6335 = vunpack.c.h.b16 %v6153
    %v6336 = vunpack.c.l.b16 %v6154
    %v6337 = vunpack.c.h.b16 %v6154
    %v6338 = vunpack.c.l.b16 %v6155
    %v6339 = vunpack.c.h.b16 %v6155
    %v6340 = vunpack.c.l.b16 %v6156
    %v6341 = vunpack.c.h.b16 %v6156
    %v6342 = vunpack.c.l.b16 %v6157
    %v6343 = vunpack.c.h.b16 %v6157
    %v6344 = vunpack.c.l.b16 %v6158
    %v6345 = vunpack.c.h.b16 %v6158
    %v6346 = vunpack.c.l.b16 %v6159
    %v6347 = vunpack.c.h.b16 %v6159
    %v6348 = vunpack.c.l.b16 %v6160
    %v6349 = vunpack.c.h.b16 %v6160
    %v6350 = vunpack.c.l.b16 %v6161
    %v6351 = vunpack.c.h.b16 %v6161
    %v6352 = vunpack.c.l.b16 %v6162
    %v6353 = vunpack.c.h.b16 %v6162
    %v6354 = vunpack.c.l.b16 %v6163
    %v6355 = vunpack.c.h.b16 %v6163
    %v6356 = vpack.c.b16 %v6232, %v6228
    %v6357 = vpack.c.b16 %v6233, %v6229
    %v6358 = vpack.c.b16 %v6234, %v6230
    %v6359 = vpack.c.b16 %v6235, %v6231
    %v6360 = vpack.c.b16 %v6240, %v6236
    %v6361 = vpack.c.b16 %v6241, %v6237
    %v6362 = vpack.c.b16 %v6242, %v6238
    %v6363 = vpack.c.b16 %v6243, %v6239
    %v6364 = vpack.c.b16 %v6248, %v6244
    %v6365 = vpack.c.b16 %v6249, %v6245
    %v6366 = vpack.c.b16 %v6250, %v6246
    %v6367 = vpack.c.b16 %v6251, %v6247
    %v6368 = vpack.c.b16 %v6256, %v6252
    %v6369 = vpack.c.b16 %v6257, %v6253
    %v6370 = vpack.c.b16 %v6258, %v6254
    %v6371 = vpack.c.b16 %v6259, %v6255
    %v6372 = vpack.c.b16 %v6264, %v6260
    %v6373 = vpack.c.b16 %v6265, %v6261
    %v6374 = vpack.c.b16 %v6266, %v6262
    %v6375 = vpack.c.b16 %v6267, %v6263
    %v6376 = vpack.c.b16 %v6272, %v6268
    %v6377 = vpack.c.b16 %v6273, %v6269
    %v6378 = vpack.c.b16 %v6274, %v6270
    %v6379 = vpack.c.b16 %v6275, %v6271
    %v6380 = vpack.c.b16 %v6280, %v6276
    %v6381 = vpack.c.b16 %v6281, %v6277
    %v6382 = vpack.c.b16 %v6282, %v6278
    %v6383 = vpack.c.b16 %v6283, %v6279
    %v6384 = vpack.c.b16 %v6288, %v6284
    %v6385 = vpack.c.b16 %v6289, %v6285
    %v6386 = vpack.c.b16 %v6290, %v6286
    %v6387 = vpack.c.b16 %v6291, %v6287
    %v6388 = vpack.c.b16 %v6296, %v6292
    %v6389 = vpack.c.b16 %v6297, %v6293
    %v6390 = vpack.c.b16 %v6298, %v6294
    %v6391 = vpack.c.b16 %v6299, %v6295
    %v6392 = vpack.c.b16 %v6304, %v6300
    %v6393 = vpack.c.b16 %v6305, %v6301
    %v6394 = vpack.c.b16 %v6306, %v6302
    %v6395 = vpack.c.b16 %v6307, %v6303
    %v6396 = vpack.c.b16 %v6312, %v6308
    %v6397 = vpack.c.b16 %v6313, %v6309
    %v6398 = vpack.c.b16 %v6314, %v6310
    %v6399 = vpack.c.b16 %v6315, %v6311
    %v6400 = vpack.c.b16 %v6320, %v6316
    %v6401 = vpack.c.b16 %v6321, %v6317
    %v6402 = vpack.c.b16 %v6322, %v6318
    %v6403 = vpack.c.b16 %v6323, %v6319
    %v6404 = vpack.c.b16 %v6328, %v6324
    %v6405 = vpack.c.b16 %v6329, %v6325
    %v6406 = vpack.c.b16 %v6330, %v6326
    %v6407 = vpack.c.b16 %v6331, %v6327
    %v6408 = vpack.c.b16 %v6336, %v6332
    %v6409 = vpack.c.b16 %v6337, %v6333
    %v6410 = vpack.c.b16 %v6338, %v6334
    %v6411 = vpack.c.b16 %v6339, %v6335
    %v6412 = vpack.c.b16 %v6344, %v6340
    %v6413 = vpack.c.b16 %v6345, %v6341
    %v6414 = vpack.c.b16 %v6346, %v6342
    %v6415 = vpack.c.b16 %v6347, %v6343
    %v6416 = vpack.c.b16 %v6352, %v6348
    %v6417 = vpack.c.b16 %v6353, %v6349
    %v6418 = vpack.c.b16 %v6354, %v6350
    %v6419 = vpack.c.b16 %v6355, %v6351
    %6484 = vmatpush.bf16.msra.mxu0 %v6384
    %6485 = vmatpush.bf16.msra.mxu0 %v6380
    %6486 = vmatpush.bf16.msra.mxu0 %v6376
    %6487 = vmatpush.bf16.msra.mxu0 %v6372
    %6488 = vmatpush.bf16.msra.mxu0 %v6368
    %6489 = vmatpush.bf16.msra.mxu0 %v6364
    %6490 = vmatpush.bf16.msra.mxu0 %v6360
    %6491 = vmatpush.bf16.msra.mxu0 %v6356
    %6492 = vmatmul.bf16.gmra.mxu0 %v6084
    %v6493 = vpop.f32.mrf.mxu0
    %v6494 = vadd.f32 0.0, %v6493
    %v6495 = vpop.f32.mrf.mxu0
    %v6496 = vadd.f32 0.0, %v6495
    %6497 = vmatmul.bf16.gmra.mxu0 %v6086
    %v6498 = vpop.f32.mrf.mxu0
    %v6499 = vadd.f32 0.0, %v6498
    %v6500 = vpop.f32.mrf.mxu0
    %v6501 = vadd.f32 0.0, %v6500
    %6502 = vmatmul.bf16.gmra.mxu0 %v6088
    %v6503 = vpop.f32.mrf.mxu0
    %v6504 = vadd.f32 0.0, %v6503
    %v6505 = vpop.f32.mrf.mxu0
    %v6506 = vadd.f32 0.0, %v6505
    %6507 = vmatmul.bf16.gmra.mxu0 %v6090
    %v6508 = vpop.f32.mrf.mxu0
    %v6509 = vadd.f32 0.0, %v6508
    %v6510 = vpop.f32.mrf.mxu0
    %v6511 = vadd.f32 0.0, %v6510
    %6512 = vmatmul.bf16.gmra.mxu0 %v6092
    %v6513 = vpop.f32.mrf.mxu0
    %v6514 = vadd.f32 0.0, %v6513
    %v6515 = vpop.f32.mrf.mxu0
    %v6516 = vadd.f32 0.0, %v6515
    %6517 = vmatmul.bf16.gmra.mxu0 %v6094
    %v6518 = vpop.f32.mrf.mxu0
    %v6519 = vadd.f32 0.0, %v6518
    %v6520 = vpop.f32.mrf.mxu0
    %v6521 = vadd.f32 0.0, %v6520
    %6522 = vmatmul.bf16.gmra.mxu0 %v6096
    %v6523 = vpop.f32.mrf.mxu0
    %v6524 = vadd.f32 0.0, %v6523
    %v6525 = vpop.f32.mrf.mxu0
    %v6526 = vadd.f32 0.0, %v6525
    %6527 = vmatmul.bf16.gmra.mxu0 %v6098
    %v6528 = vpop.f32.mrf.mxu0
    %v6529 = vadd.f32 0.0, %v6528
    %v6530 = vpop.f32.mrf.mxu0
    %v6531 = vadd.f32 0.0, %v6530
    %6532 = vdwg.mxu0
    %6533 = vmatpush.bf16.msra.mxu0 %v6416
    %6534 = vmatpush.bf16.msra.mxu0 %v6412
    %6535 = vmatpush.bf16.msra.mxu0 %v6408
    %6536 = vmatpush.bf16.msra.mxu0 %v6404
    %6537 = vmatpush.bf16.msra.mxu0 %v6400
    %6538 = vmatpush.bf16.msra.mxu0 %v6396
    %6539 = vmatpush.bf16.msra.mxu0 %v6392
    %6540 = vmatpush.bf16.msra.mxu0 %v6388
    %6541 = vmatmul.bf16.gmra.mxu0 %v6085
    %v6542 = vpop.f32.mrf.mxu0
    %v6543 = vadd.f32 %v6494, %v6542
    %v6544 = vpop.f32.mrf.mxu0
    %v6545 = vadd.f32 %v6496, %v6544
    %6546 = vmatmul.bf16.gmra.mxu0 %v6087
    %v6547 = vpop.f32.mrf.mxu0
    %v6548 = vadd.f32 %v6499, %v6547
    %v6549 = vpop.f32.mrf.mxu0
    %v6550 = vadd.f32 %v6501, %v6549
    %6551 = vmatmul.bf16.gmra.mxu0 %v6089
    %v6552 = vpop.f32.mrf.mxu0
    %v6553 = vadd.f32 %v6504, %v6552
    %v6554 = vpop.f32.mrf.mxu0
    %v6555 = vadd.f32 %v6506, %v6554
    %6556 = vmatmul.bf16.gmra.mxu0 %v6091
    %v6557 = vpop.f32.mrf.mxu0
    %v6558 = vadd.f32 %v6509, %v6557
    %v6559 = vpop.f32.mrf.mxu0
    %v6560 = vadd.f32 %v6511, %v6559
    %6561 = vmatmul.bf16.gmra.mxu0 %v6093
    %v6562 = vpop.f32.mrf.mxu0
    %v6563 = vadd.f32 %v6514, %v6562
    %v6564 = vpop.f32.mrf.mxu0
    %v6565 = vadd.f32 %v6516, %v6564
    %6566 = vmatmul.bf16.gmra.mxu0 %v6095
    %v6567 = vpop.f32.mrf.mxu0
    %v6568 = vadd.f32 %v6519, %v6567
    %v6569 = vpop.f32.mrf.mxu0
    %v6570 = vadd.f32 %v6521, %v6569
    %6571 = vmatmul.bf16.gmra.mxu0 %v6097
    %v6572 = vpop.f32.mrf.mxu0
    %v6573 = vadd.f32 %v6524, %v6572
    %v6574 = vpop.f32.mrf.mxu0
    %v6575 = vadd.f32 %v6526, %v6574
    %6576 = vmatmul.bf16.gmra.mxu0 %v6099
    %v6577 = vpop.f32.mrf.mxu0
    %v6578 = vadd.f32 %v6529, %v6577
    %v6579 = vpop.f32.mrf.mxu0
    %v6580 = vadd.f32 %v6531, %v6579
    %6581 = vdwg.mxu0
    %6582 = vmatpush.bf16.msra.mxu0 %v6385
    %6583 = vmatpush.bf16.msra.mxu0 %v6381
    %6584 = vmatpush.bf16.msra.mxu0 %v6377
    %6585 = vmatpush.bf16.msra.mxu0 %v6373
    %6586 = vmatpush.bf16.msra.mxu0 %v6369
    %6587 = vmatpush.bf16.msra.mxu0 %v6365
    %6588 = vmatpush.bf16.msra.mxu0 %v6361
    %6589 = vmatpush.bf16.msra.mxu0 %v6357
    %6590 = vmatmul.bf16.gmra.mxu0 %v6084
    %v6591 = vpop.f32.mrf.mxu0
    %v6592 = vadd.f32 0.0, %v6591
    %v6593 = vpop.f32.mrf.mxu0
    %v6594 = vadd.f32 0.0, %v6593
    %6595 = vmatmul.bf16.gmra.mxu0 %v6086
    %v6596 = vpop.f32.mrf.mxu0
    %v6597 = vadd.f32 0.0, %v6596
    %v6598 = vpop.f32.mrf.mxu0
    %v6599 = vadd.f32 0.0, %v6598
    %6600 = vmatmul.bf16.gmra.mxu0 %v6088
    %v6601 = vpop.f32.mrf.mxu0
    %v6602 = vadd.f32 0.0, %v6601
    %v6603 = vpop.f32.mrf.mxu0
    %v6604 = vadd.f32 0.0, %v6603
    %6605 = vmatmul.bf16.gmra.mxu0 %v6090
    %v6606 = vpop.f32.mrf.mxu0
    %v6607 = vadd.f32 0.0, %v6606
    %v6608 = vpop.f32.mrf.mxu0
    %v6609 = vadd.f32 0.0, %v6608
    %6610 = vmatmul.bf16.gmra.mxu0 %v6092
    %v6611 = vpop.f32.mrf.mxu0
    %v6612 = vadd.f32 0.0, %v6611
    %v6613 = vpop.f32.mrf.mxu0
    %v6614 = vadd.f32 0.0, %v6613
    %6615 = vmatmul.bf16.gmra.mxu0 %v6094
    %v6616 = vpop.f32.mrf.mxu0
    %v6617 = vadd.f32 0.0, %v6616
    %v6618 = vpop.f32.mrf.mxu0
    %v6619 = vadd.f32 0.0, %v6618
    %6620 = vmatmul.bf16.gmra.mxu0 %v6096
    %v6621 = vpop.f32.mrf.mxu0
    %v6622 = vadd.f32 0.0, %v6621
    %v6623 = vpop.f32.mrf.mxu0
    %v6624 = vadd.f32 0.0, %v6623
    %6625 = vmatmul.bf16.gmra.mxu0 %v6098
    %v6626 = vpop.f32.mrf.mxu0
    %v6627 = vadd.f32 0.0, %v6626
    %v6628 = vpop.f32.mrf.mxu0
    %v6629 = vadd.f32 0.0, %v6628
    %6630 = vdwg.mxu0
    %6631 = vmatpush.bf16.msra.mxu0 %v6417
    %6632 = vmatpush.bf16.msra.mxu0 %v6413
    %6633 = vmatpush.bf16.msra.mxu0 %v6409
    %6634 = vmatpush.bf16.msra.mxu0 %v6405
    %6635 = vmatpush.bf16.msra.mxu0 %v6401
    %6636 = vmatpush.bf16.msra.mxu0 %v6397
    %6637 = vmatpush.bf16.msra.mxu0 %v6393
    %6638 = vmatpush.bf16.msra.mxu0 %v6389
    %6639 = vmatmul.bf16.gmra.mxu0 %v6085
    %v6640 = vpop.f32.mrf.mxu0
    %v6641 = vadd.f32 %v6592, %v6640
    %v6642 = vpop.f32.mrf.mxu0
    %v6643 = vadd.f32 %v6594, %v6642
    %6644 = vmatmul.bf16.gmra.mxu0 %v6087
    %v6645 = vpop.f32.mrf.mxu0
    %v6646 = vadd.f32 %v6597, %v6645
    %v6647 = vpop.f32.mrf.mxu0
    %v6648 = vadd.f32 %v6599, %v6647
    %6649 = vmatmul.bf16.gmra.mxu0 %v6089
    %v6650 = vpop.f32.mrf.mxu0
    %v6651 = vadd.f32 %v6602, %v6650
    %v6652 = vpop.f32.mrf.mxu0
    %v6653 = vadd.f32 %v6604, %v6652
    %6654 = vmatmul.bf16.gmra.mxu0 %v6091
    %v6655 = vpop.f32.mrf.mxu0
    %v6656 = vadd.f32 %v6607, %v6655
    %v6657 = vpop.f32.mrf.mxu0
    %v6658 = vadd.f32 %v6609, %v6657
    %6659 = vmatmul.bf16.gmra.mxu0 %v6093
    %v6660 = vpop.f32.mrf.mxu0
    %v6661 = vadd.f32 %v6612, %v6660
    %v6662 = vpop.f32.mrf.mxu0
    %v6663 = vadd.f32 %v6614, %v6662
    %6664 = vmatmul.bf16.gmra.mxu0 %v6095
    %v6665 = vpop.f32.mrf.mxu0
    %v6666 = vadd.f32 %v6617, %v6665
    %v6667 = vpop.f32.mrf.mxu0
    %v6668 = vadd.f32 %v6619, %v6667
    %6669 = vmatmul.bf16.gmra.mxu0 %v6097
    %v6670 = vpop.f32.mrf.mxu0
    %v6671 = vadd.f32 %v6622, %v6670
    %v6672 = vpop.f32.mrf.mxu0
    %v6673 = vadd.f32 %v6624, %v6672
    %6674 = vmatmul.bf16.gmra.mxu0 %v6099
    %v6675 = vpop.f32.mrf.mxu0
    %v6676 = vadd.f32 %v6627, %v6675
    %v6677 = vpop.f32.mrf.mxu0
    %v6678 = vadd.f32 %v6629, %v6677
    %6679 = vdwg.mxu0
    %6680 = vmatpush.bf16.msra.mxu0 %v6386
    %6681 = vmatpush.bf16.msra.mxu0 %v6382
    %6682 = vmatpush.bf16.msra.mxu0 %v6378
    %6683 = vmatpush.bf16.msra.mxu0 %v6374
    %6684 = vmatpush.bf16.msra.mxu0 %v6370
    %6685 = vmatpush.bf16.msra.mxu0 %v6366
    %6686 = vmatpush.bf16.msra.mxu0 %v6362
    %6687 = vmatpush.bf16.msra.mxu0 %v6358
    %6688 = vmatmul.bf16.gmra.mxu0 %v6084
    %v6689 = vpop.f32.mrf.mxu0
    %v6690 = vadd.f32 0.0, %v6689
    %v6691 = vpop.f32.mrf.mxu0
    %v6692 = vadd.f32 0.0, %v6691
    %6693 = vmatmul.bf16.gmra.mxu0 %v6086
    %v6694 = vpop.f32.mrf.mxu0
    %v6695 = vadd.f32 0.0, %v6694
    %v6696 = vpop.f32.mrf.mxu0
    %v6697 = vadd.f32 0.0, %v6696
    %6698 = vmatmul.bf16.gmra.mxu0 %v6088
    %v6699 = vpop.f32.mrf.mxu0
    %v6700 = vadd.f32 0.0, %v6699
    %v6701 = vpop.f32.mrf.mxu0
    %v6702 = vadd.f32 0.0, %v6701
    %6703 = vmatmul.bf16.gmra.mxu0 %v6090
    %v6704 = vpop.f32.mrf.mxu0
    %v6705 = vadd.f32 0.0, %v6704
    %v6706 = vpop.f32.mrf.mxu0
    %v6707 = vadd.f32 0.0, %v6706
    %6708 = vmatmul.bf16.gmra.mxu0 %v6092
    %v6709 = vpop.f32.mrf.mxu0
    %v6710 = vadd.f32 0.0, %v6709
    %v6711 = vpop.f32.mrf.mxu0
    %v6712 = vadd.f32 0.0, %v6711
    %6713 = vmatmul.bf16.gmra.mxu0 %v6094
    %v6714 = vpop.f32.mrf.mxu0
    %v6715 = vadd.f32 0.0, %v6714
    %v6716 = vpop.f32.mrf.mxu0
    %v6717 = vadd.f32 0.0, %v6716
    %6718 = vmatmul.bf16.gmra.mxu0 %v6096
    %v6719 = vpop.f32.mrf.mxu0
    %v6720 = vadd.f32 0.0, %v6719
    %v6721 = vpop.f32.mrf.mxu0
    %v6722 = vadd.f32 0.0, %v6721
    %6723 = vmatmul.bf16.gmra.mxu0 %v6098
    %v6724 = vpop.f32.mrf.mxu0
    %v6725 = vadd.f32 0.0, %v6724
    %v6726 = vpop.f32.mrf.mxu0
    %v6727 = vadd.f32 0.0, %v6726
    %6728 = vdwg.mxu0
    %6729 = vmatpush.bf16.msra.mxu0 %v6418
    %6730 = vmatpush.bf16.msra.mxu0 %v6414
    %6731 = vmatpush.bf16.msra.mxu0 %v6410
    %6732 = vmatpush.bf16.msra.mxu0 %v6406
    %6733 = vmatpush.bf16.msra.mxu0 %v6402
    %6734 = vmatpush.bf16.msra.mxu0 %v6398
    %6735 = vmatpush.bf16.msra.mxu0 %v6394
    %6736 = vmatpush.bf16.msra.mxu0 %v6390
    %6737 = vmatmul.bf16.gmra.mxu0 %v6085
    %v6738 = vpop.f32.mrf.mxu0
    %v6739 = vadd.f32 %v6690, %v6738
    %v6740 = vpop.f32.mrf.mxu0
    %v6741 = vadd.f32 %v6692, %v6740
    %6742 = vmatmul.bf16.gmra.mxu0 %v6087
    %v6743 = vpop.f32.mrf.mxu0
    %v6744 = vadd.f32 %v6695, %v6743
    %v6745 = vpop.f32.mrf.mxu0
    %v6746 = vadd.f32 %v6697, %v6745
    %6747 = vmatmul.bf16.gmra.mxu0 %v6089
    %v6748 = vpop.f32.mrf.mxu0
    %v6749 = vadd.f32 %v6700, %v6748
    %v6750 = vpop.f32.mrf.mxu0
    %v6751 = vadd.f32 %v6702, %v6750
    %6752 = vmatmul.bf16.gmra.mxu0 %v6091
    %v6753 = vpop.f32.mrf.mxu0
    %v6754 = vadd.f32 %v6705, %v6753
    %v6755 = vpop.f32.mrf.mxu0
    %v6756 = vadd.f32 %v6707, %v6755
    %6757 = vmatmul.bf16.gmra.mxu0 %v6093
    %v6758 = vpop.f32.mrf.mxu0
    %v6759 = vadd.f32 %v6710, %v6758
    %v6760 = vpop.f32.mrf.mxu0
    %v6761 = vadd.f32 %v6712, %v6760
    %6762 = vmatmul.bf16.gmra.mxu0 %v6095
    %v6763 = vpop.f32.mrf.mxu0
    %v6764 = vadd.f32 %v6715, %v6763
    %v6765 = vpop.f32.mrf.mxu0
    %v6766 = vadd.f32 %v6717, %v6765
    %6767 = vmatmul.bf16.gmra.mxu0 %v6097
    %v6768 = vpop.f32.mrf.mxu0
    %v6769 = vadd.f32 %v6720, %v6768
    %v6770 = vpop.f32.mrf.mxu0
    %v6771 = vadd.f32 %v6722, %v6770
    %6772 = vmatmul.bf16.gmra.mxu0 %v6099
    %v6773 = vpop.f32.mrf.mxu0
    %v6774 = vadd.f32 %v6725, %v6773
    %v6775 = vpop.f32.mrf.mxu0
    %v6776 = vadd.f32 %v6727, %v6775
    %6777 = vdwg.mxu0
    %6778 = vmatpush.bf16.msra.mxu0 %v6387
    %6779 = vmatpush.bf16.msra.mxu0 %v6383
    %6780 = vmatpush.bf16.msra.mxu0 %v6379
    %6781 = vmatpush.bf16.msra.mxu0 %v6375
    %6782 = vmatpush.bf16.msra.mxu0 %v6371
    %6783 = vmatpush.bf16.msra.mxu0 %v6367
    %6784 = vmatpush.bf16.msra.mxu0 %v6363
    %6785 = vmatpush.bf16.msra.mxu0 %v6359
    %6786 = vmatmul.bf16.gmra.mxu0 %v6084
    %v6787 = vpop.f32.mrf.mxu0
    %v6788 = vadd.f32 0.0, %v6787
    %v6789 = vpop.f32.mrf.mxu0
    %v6790 = vadd.f32 0.0, %v6789
    %6791 = vmatmul.bf16.gmra.mxu0 %v6086
    %v6792 = vpop.f32.mrf.mxu0
    %v6793 = vadd.f32 0.0, %v6792
    %v6794 = vpop.f32.mrf.mxu0
    %v6795 = vadd.f32 0.0, %v6794
    %6796 = vmatmul.bf16.gmra.mxu0 %v6088
    %v6797 = vpop.f32.mrf.mxu0
    %v6798 = vadd.f32 0.0, %v6797
    %v6799 = vpop.f32.mrf.mxu0
    %v6800 = vadd.f32 0.0, %v6799
    %6801 = vmatmul.bf16.gmra.mxu0 %v6090
    %v6802 = vpop.f32.mrf.mxu0
    %v6803 = vadd.f32 0.0, %v6802
    %v6804 = vpop.f32.mrf.mxu0
    %v6805 = vadd.f32 0.0, %v6804
    %6806 = vmatmul.bf16.gmra.mxu0 %v6092
    %v6807 = vpop.f32.mrf.mxu0
    %v6808 = vadd.f32 0.0, %v6807
    %v6809 = vpop.f32.mrf.mxu0
    %v6810 = vadd.f32 0.0, %v6809
    %6811 = vmatmul.bf16.gmra.mxu0 %v6094
    %v6812 = vpop.f32.mrf.mxu0
    %v6813 = vadd.f32 0.0, %v6812
    %v6814 = vpop.f32.mrf.mxu0
    %v6815 = vadd.f32 0.0, %v6814
    %6816 = vmatmul.bf16.gmra.mxu0 %v6096
    %v6817 = vpop.f32.mrf.mxu0
    %v6818 = vadd.f32 0.0, %v6817
    %v6819 = vpop.f32.mrf.mxu0
    %v6820 = vadd.f32 0.0, %v6819
    %6821 = vmatmul.bf16.gmra.mxu0 %v6098
    %v6822 = vpop.f32.mrf.mxu0
    %v6823 = vadd.f32 0.0, %v6822
    %v6824 = vpop.f32.mrf.mxu0
    %v6825 = vadd.f32 0.0, %v6824
    %6826 = vdwg.mxu0
    %6827 = vmatpush.bf16.msra.mxu0 %v6419
    %6828 = vmatpush.bf16.msra.mxu0 %v6415
    %6829 = vmatpush.bf16.msra.mxu0 %v6411
    %6830 = vmatpush.bf16.msra.mxu0 %v6407
    %6831 = vmatpush.bf16.msra.mxu0 %v6403
    %6832 = vmatpush.bf16.msra.mxu0 %v6399
    %6833 = vmatpush.bf16.msra.mxu0 %v6395
    %6834 = vmatpush.bf16.msra.mxu0 %v6391
    %6835 = vmatmul.bf16.gmra.mxu0 %v6085
    %v6836 = vpop.f32.mrf.mxu0
    %v6837 = vadd.f32 %v6788, %v6836
    %v6838 = vpop.f32.mrf.mxu0
    %v6839 = vadd.f32 %v6790, %v6838
    %6840 = vmatmul.bf16.gmra.mxu0 %v6087
    %v6841 = vpop.f32.mrf.mxu0
    %v6842 = vadd.f32 %v6793, %v6841
    %v6843 = vpop.f32.mrf.mxu0
    %v6844 = vadd.f32 %v6795, %v6843
    %6845 = vmatmul.bf16.gmra.mxu0 %v6089
    %v6846 = vpop.f32.mrf.mxu0
    %v6847 = vadd.f32 %v6798, %v6846
    %v6848 = vpop.f32.mrf.mxu0
    %v6849 = vadd.f32 %v6800, %v6848
    %6850 = vmatmul.bf16.gmra.mxu0 %v6091
    %v6851 = vpop.f32.mrf.mxu0
    %v6852 = vadd.f32 %v6803, %v6851
    %v6853 = vpop.f32.mrf.mxu0
    %v6854 = vadd.f32 %v6805, %v6853
    %6855 = vmatmul.bf16.gmra.mxu0 %v6093
    %v6856 = vpop.f32.mrf.mxu0
    %v6857 = vadd.f32 %v6808, %v6856
    %v6858 = vpop.f32.mrf.mxu0
    %v6859 = vadd.f32 %v6810, %v6858
    %6860 = vmatmul.bf16.gmra.mxu0 %v6095
    %v6861 = vpop.f32.mrf.mxu0
    %v6862 = vadd.f32 %v6813, %v6861
    %v6863 = vpop.f32.mrf.mxu0
    %v6864 = vadd.f32 %v6815, %v6863
    %6865 = vmatmul.bf16.gmra.mxu0 %v6097
    %v6866 = vpop.f32.mrf.mxu0
    %v6867 = vadd.f32 %v6818, %v6866
    %v6868 = vpop.f32.mrf.mxu0
    %v6869 = vadd.f32 %v6820, %v6868
    %6870 = vmatmul.bf16.gmra.mxu0 %v6099
    %v6871 = vpop.f32.mrf.mxu0
    %v6872 = vadd.f32 %v6823, %v6871
    %v6873 = vpop.f32.mrf.mxu0
    %v6874 = vadd.f32 %v6825, %v6873
    %6875 = vdwg.mxu0
    %v6876 = vadd.f32 %v6543, %v6545
    %v6877 = vadd.f32 %v6876, %v6548
    %v6878 = vadd.f32 %v6877, %v6550
    %v6879 = vadd.f32 %v6878, %v6553
    %v6880 = vadd.f32 %v6879, %v6555
    %v6881 = vadd.f32 %v6880, %v6558
    %v6882 = vadd.f32 %v6881, %v6560
    %v6883 = vadd.f32 %v6882, %v6563
    %v6884 = vadd.f32 %v6883, %v6565
    %v6885 = vadd.f32 %v6884, %v6568
    %v6886 = vadd.f32 %v6885, %v6570
    %v6887 = vadd.f32 %v6886, %v6573
    %v6888 = vadd.f32 %v6887, %v6575
    %v6889 = vadd.f32 %v6888, %v6578
    %v6890 = vadd.f32 %v6889, %v6580
    %v6891 = vrot.slane %v6890, 4
    %v6892 = vadd.f32 %v6890, %v6891
    %v6893 = vrot.slane %v6892, 2
    %v6894 = vadd.f32 %v6892, %v6893
    %v6895 = vrot.slane %v6894, 1
    %v6896 = vadd.f32 %v6894, %v6895
    %v6897 = vadd.f32 %v6641, %v6643
    %v6898 = vadd.f32 %v6897, %v6646
    %v6899 = vadd.f32 %v6898, %v6648
    %v6900 = vadd.f32 %v6899, %v6651
    %v6901 = vadd.f32 %v6900, %v6653
    %v6902 = vadd.f32 %v6901, %v6656
    %v6903 = vadd.f32 %v6902, %v6658
    %v6904 = vadd.f32 %v6903, %v6661
    %v6905 = vadd.f32 %v6904, %v6663
    %v6906 = vadd.f32 %v6905, %v6666
    %v6907 = vadd.f32 %v6906, %v6668
    %v6908 = vadd.f32 %v6907, %v6671
    %v6909 = vadd.f32 %v6908, %v6673
    %v6910 = vadd.f32 %v6909, %v6676
    %v6911 = vadd.f32 %v6910, %v6678
    %v6912 = vrot.slane %v6911, 4
    %v6913 = vadd.f32 %v6911, %v6912
    %v6914 = vrot.slane %v6913, 2
    %v6915 = vadd.f32 %v6913, %v6914
    %v6916 = vrot.slane %v6915, 1
    %v6917 = vadd.f32 %v6915, %v6916
    %v6918 = vadd.f32 %v6739, %v6741
    %v6919 = vadd.f32 %v6918, %v6744
    %v6920 = vadd.f32 %v6919, %v6746
    %v6921 = vadd.f32 %v6920, %v6749
    %v6922 = vadd.f32 %v6921, %v6751
    %v6923 = vadd.f32 %v6922, %v6754
    %v6924 = vadd.f32 %v6923, %v6756
    %v6925 = vadd.f32 %v6924, %v6759
    %v6926 = vadd.f32 %v6925, %v6761
    %v6927 = vadd.f32 %v6926, %v6764
    %v6928 = vadd.f32 %v6927, %v6766
    %v6929 = vadd.f32 %v6928, %v6769
    %v6930 = vadd.f32 %v6929, %v6771
    %v6931 = vadd.f32 %v6930, %v6774
    %v6932 = vadd.f32 %v6931, %v6776
    %v6933 = vrot.slane %v6932, 4
    %v6934 = vadd.f32 %v6932, %v6933
    %v6935 = vrot.slane %v6934, 2
    %v6936 = vadd.f32 %v6934, %v6935
    %v6937 = vrot.slane %v6936, 1
    %v6938 = vadd.f32 %v6936, %v6937
    %v6939 = vadd.f32 %v6837, %v6839
    %v6940 = vadd.f32 %v6939, %v6842
    %v6941 = vadd.f32 %v6940, %v6844
    %v6942 = vadd.f32 %v6941, %v6847
    %v6943 = vadd.f32 %v6942, %v6849
    %v6944 = vadd.f32 %v6943, %v6852
    %v6945 = vadd.f32 %v6944, %v6854
    %v6946 = vadd.f32 %v6945, %v6857
    %v6947 = vadd.f32 %v6946, %v6859
    %v6948 = vadd.f32 %v6947, %v6862
    %v6949 = vadd.f32 %v6948, %v6864
    %v6950 = vadd.f32 %v6949, %v6867
    %v6951 = vadd.f32 %v6950, %v6869
    %v6952 = vadd.f32 %v6951, %v6872
    %v6953 = vadd.f32 %v6952, %v6874
    %v6954 = vrot.slane %v6953, 4
    %v6955 = vadd.f32 %v6953, %v6954
    %v6956 = vrot.slane %v6955, 2
    %v6957 = vadd.f32 %v6955, %v6956
    %v6958 = vrot.slane %v6957, 1
    %v6959 = vadd.f32 %v6957, %v6958
    %v6960 = vmul.f32 %v6896, %v2923
    %v6961 = vmul.f32 %v6917, %v2923
    %v6962 = vmul.f32 %v6938, %v2923
    %v6963 = vmul.f32 %v6959, %v2923
    %v6964 = vsub.f32 %v6543, %v6960
    %v6965 = vsub.f32 %v6641, %v6961
    %v6966 = vsub.f32 %v6739, %v6962
    %v6967 = vsub.f32 %v6837, %v6963
    %v6968 = vsub.f32 %v6545, %v6960
    %v6969 = vsub.f32 %v6643, %v6961
    %v6970 = vsub.f32 %v6741, %v6962
    %v6971 = vsub.f32 %v6839, %v6963
    %v6972 = vsub.f32 %v6548, %v6960
    %v6973 = vsub.f32 %v6646, %v6961
    %v6974 = vsub.f32 %v6744, %v6962
    %v6975 = vsub.f32 %v6842, %v6963
    %v6976 = vsub.f32 %v6550, %v6960
    %v6977 = vsub.f32 %v6648, %v6961
    %v6978 = vsub.f32 %v6746, %v6962
    %v6979 = vsub.f32 %v6844, %v6963
    %v6980 = vsub.f32 %v6553, %v6960
    %v6981 = vsub.f32 %v6651, %v6961
    %v6982 = vsub.f32 %v6749, %v6962
    %v6983 = vsub.f32 %v6847, %v6963
    %v6984 = vsub.f32 %v6555, %v6960
    %v6985 = vsub.f32 %v6653, %v6961
    %v6986 = vsub.f32 %v6751, %v6962
    %v6987 = vsub.f32 %v6849, %v6963
    %v6988 = vsub.f32 %v6558, %v6960
    %v6989 = vsub.f32 %v6656, %v6961
    %v6990 = vsub.f32 %v6754, %v6962
    %v6991 = vsub.f32 %v6852, %v6963
    %v6992 = vsub.f32 %v6560, %v6960
    %v6993 = vsub.f32 %v6658, %v6961
    %v6994 = vsub.f32 %v6756, %v6962
    %v6995 = vsub.f32 %v6854, %v6963
    %v6996 = vsub.f32 %v6563, %v6960
    %v6997 = vsub.f32 %v6661, %v6961
    %v6998 = vsub.f32 %v6759, %v6962
    %v6999 = vsub.f32 %v6857, %v6963
    %v7000 = vsub.f32 %v6565, %v6960
    %v7001 = vsub.f32 %v6663, %v6961
    %v7002 = vsub.f32 %v6761, %v6962
    %v7003 = vsub.f32 %v6859, %v6963
    %v7004 = vsub.f32 %v6568, %v6960
    %v7005 = vsub.f32 %v6666, %v6961
    %v7006 = vsub.f32 %v6764, %v6962
    %v7007 = vsub.f32 %v6862, %v6963
    %v7008 = vsub.f32 %v6570, %v6960
    %v7009 = vsub.f32 %v6668, %v6961
    %v7010 = vsub.f32 %v6766, %v6962
    %v7011 = vsub.f32 %v6864, %v6963
    %v7012 = vsub.f32 %v6573, %v6960
    %v7013 = vsub.f32 %v6671, %v6961
    %v7014 = vsub.f32 %v6769, %v6962
    %v7015 = vsub.f32 %v6867, %v6963
    %v7016 = vsub.f32 %v6575, %v6960
    %v7017 = vsub.f32 %v6673, %v6961
    %v7018 = vsub.f32 %v6771, %v6962
    %v7019 = vsub.f32 %v6869, %v6963
    %v7020 = vsub.f32 %v6578, %v6960
    %v7021 = vsub.f32 %v6676, %v6961
    %v7022 = vsub.f32 %v6774, %v6962
    %v7023 = vsub.f32 %v6872, %v6963
    %v7024 = vsub.f32 %v6580, %v6960
    %v7025 = vsub.f32 %v6678, %v6961
    %v7026 = vsub.f32 %v6776, %v6962
    %v7027 = vsub.f32 %v6874, %v6963
    %v7028 = vmul.f32 %v6964, %v6964
    %v7029 = vmul.f32 %v6965, %v6965
    %v7030 = vmul.f32 %v6966, %v6966
    %v7031 = vmul.f32 %v6967, %v6967
    %v7032 = vmul.f32 %v6968, %v6968
    %v7033 = vmul.f32 %v6969, %v6969
    %v7034 = vmul.f32 %v6970, %v6970
    %v7035 = vmul.f32 %v6971, %v6971
    %v7036 = vmul.f32 %v6972, %v6972
    %v7037 = vmul.f32 %v6973, %v6973
    %v7038 = vmul.f32 %v6974, %v6974
    %v7039 = vmul.f32 %v6975, %v6975
    %v7040 = vmul.f32 %v6976, %v6976
    %v7041 = vmul.f32 %v6977, %v6977
    %v7042 = vmul.f32 %v6978, %v6978
    %v7043 = vmul.f32 %v6979, %v6979
    %v7044 = vmul.f32 %v6980, %v6980
    %v7045 = vmul.f32 %v6981, %v6981
    %v7046 = vmul.f32 %v6982, %v6982
    %v7047 = vmul.f32 %v6983, %v6983
    %v7048 = vmul.f32 %v6984, %v6984
    %v7049 = vmul.f32 %v6985, %v6985
    %v7050 = vmul.f32 %v6986, %v6986
    %v7051 = vmul.f32 %v6987, %v6987
    %v7052 = vmul.f32 %v6988, %v6988
    %v7053 = vmul.f32 %v6989, %v6989
    %v7054 = vmul.f32 %v6990, %v6990
    %v7055 = vmul.f32 %v6991, %v6991
    %v7056 = vmul.f32 %v6992, %v6992
    %v7057 = vmul.f32 %v6993, %v6993
    %v7058 = vmul.f32 %v6994, %v6994
    %v7059 = vmul.f32 %v6995, %v6995
    %v7060 = vmul.f32 %v6996, %v6996
    %v7061 = vmul.f32 %v6997, %v6997
    %v7062 = vmul.f32 %v6998, %v6998
    %v7063 = vmul.f32 %v6999, %v6999
    %v7064 = vmul.f32 %v7000, %v7000
    %v7065 = vmul.f32 %v7001, %v7001
    %v7066 = vmul.f32 %v7002, %v7002
    %v7067 = vmul.f32 %v7003, %v7003
    %v7068 = vmul.f32 %v7004, %v7004
    %v7069 = vmul.f32 %v7005, %v7005
    %v7070 = vmul.f32 %v7006, %v7006
    %v7071 = vmul.f32 %v7007, %v7007
    %v7072 = vmul.f32 %v7008, %v7008
    %v7073 = vmul.f32 %v7009, %v7009
    %v7074 = vmul.f32 %v7010, %v7010
    %v7075 = vmul.f32 %v7011, %v7011
    %v7076 = vmul.f32 %v7012, %v7012
    %v7077 = vmul.f32 %v7013, %v7013
    %v7078 = vmul.f32 %v7014, %v7014
    %v7079 = vmul.f32 %v7015, %v7015
    %v7080 = vmul.f32 %v7016, %v7016
    %v7081 = vmul.f32 %v7017, %v7017
    %v7082 = vmul.f32 %v7018, %v7018
    %v7083 = vmul.f32 %v7019, %v7019
    %v7084 = vmul.f32 %v7020, %v7020
    %v7085 = vmul.f32 %v7021, %v7021
    %v7086 = vmul.f32 %v7022, %v7022
    %v7087 = vmul.f32 %v7023, %v7023
    %v7088 = vmul.f32 %v7024, %v7024
    %v7089 = vmul.f32 %v7025, %v7025
    %v7090 = vmul.f32 %v7026, %v7026
    %v7091 = vmul.f32 %v7027, %v7027
    %v7092 = vadd.f32 %v7028, %v7032
    %v7093 = vadd.f32 %v7092, %v7036
    %v7094 = vadd.f32 %v7093, %v7040
    %v7095 = vadd.f32 %v7094, %v7044
    %v7096 = vadd.f32 %v7095, %v7048
    %v7097 = vadd.f32 %v7096, %v7052
    %v7098 = vadd.f32 %v7097, %v7056
    %v7099 = vadd.f32 %v7098, %v7060
    %v7100 = vadd.f32 %v7099, %v7064
    %v7101 = vadd.f32 %v7100, %v7068
    %v7102 = vadd.f32 %v7101, %v7072
    %v7103 = vadd.f32 %v7102, %v7076
    %v7104 = vadd.f32 %v7103, %v7080
    %v7105 = vadd.f32 %v7104, %v7084
    %v7106 = vadd.f32 %v7105, %v7088
    %v7107 = vrot.slane %v7106, 4
    %v7108 = vadd.f32 %v7106, %v7107
    %v7109 = vrot.slane %v7108, 2
    %v7110 = vadd.f32 %v7108, %v7109
    %v7111 = vrot.slane %v7110, 1
    %v7112 = vadd.f32 %v7110, %v7111
    %v7113 = vadd.f32 %v7029, %v7033
    %v7114 = vadd.f32 %v7113, %v7037
    %v7115 = vadd.f32 %v7114, %v7041
    %v7116 = vadd.f32 %v7115, %v7045
    %v7117 = vadd.f32 %v7116, %v7049
    %v7118 = vadd.f32 %v7117, %v7053
    %v7119 = vadd.f32 %v7118, %v7057
    %v7120 = vadd.f32 %v7119, %v7061
    %v7121 = vadd.f32 %v7120, %v7065
    %v7122 = vadd.f32 %v7121, %v7069
    %v7123 = vadd.f32 %v7122, %v7073
    %v7124 = vadd.f32 %v7123, %v7077
    %v7125 = vadd.f32 %v7124, %v7081
    %v7126 = vadd.f32 %v7125, %v7085
    %v7127 = vadd.f32 %v7126, %v7089
    %v7128 = vrot.slane %v7127, 4
    %v7129 = vadd.f32 %v7127, %v7128
    %v7130 = vrot.slane %v7129, 2
    %v7131 = vadd.f32 %v7129, %v7130
    %v7132 = vrot.slane %v7131, 1
    %v7133 = vadd.f32 %v7131, %v7132
    %v7134 = vadd.f32 %v7030, %v7034
    %v7135 = vadd.f32 %v7134, %v7038
    %v7136 = vadd.f32 %v7135, %v7042
    %v7137 = vadd.f32 %v7136, %v7046
    %v7138 = vadd.f32 %v7137, %v7050
    %v7139 = vadd.f32 %v7138, %v7054
    %v7140 = vadd.f32 %v7139, %v7058
    %v7141 = vadd.f32 %v7140, %v7062
    %v7142 = vadd.f32 %v7141, %v7066
    %v7143 = vadd.f32 %v7142, %v7070
    %v7144 = vadd.f32 %v7143, %v7074
    %v7145 = vadd.f32 %v7144, %v7078
    %v7146 = vadd.f32 %v7145, %v7082
    %v7147 = vadd.f32 %v7146, %v7086
    %v7148 = vadd.f32 %v7147, %v7090
    %v7149 = vrot.slane %v7148, 4
    %v7150 = vadd.f32 %v7148, %v7149
    %v7151 = vrot.slane %v7150, 2
    %v7152 = vadd.f32 %v7150, %v7151
    %v7153 = vrot.slane %v7152, 1
    %v7154 = vadd.f32 %v7152, %v7153
    %v7155 = vadd.f32 %v7031, %v7035
    %v7156 = vadd.f32 %v7155, %v7039
    %v7157 = vadd.f32 %v7156, %v7043
    %v7158 = vadd.f32 %v7157, %v7047
    %v7159 = vadd.f32 %v7158, %v7051
    %v7160 = vadd.f32 %v7159, %v7055
    %v7161 = vadd.f32 %v7160, %v7059
    %v7162 = vadd.f32 %v7161, %v7063
    %v7163 = vadd.f32 %v7162, %v7067
    %v7164 = vadd.f32 %v7163, %v7071
    %v7165 = vadd.f32 %v7164, %v7075
    %v7166 = vadd.f32 %v7165, %v7079
    %v7167 = vadd.f32 %v7166, %v7083
    %v7168 = vadd.f32 %v7167, %v7087
    %v7169 = vadd.f32 %v7168, %v7091
    %v7170 = vrot.slane %v7169, 4
    %v7171 = vadd.f32 %v7169, %v7170
    %v7172 = vrot.slane %v7171, 2
    %v7173 = vadd.f32 %v7171, %v7172
    %v7174 = vrot.slane %v7173, 1
    %v7175 = vadd.f32 %v7173, %v7174
    %v7176 = vmul.f32 %v7112, %v2923
    %v7177 = vmul.f32 %v7133, %v2923
    %v7178 = vmul.f32 %v7154, %v2923
    %v7179 = vmul.f32 %v7175, %v2923
    %v7180 = vld [vmem:[%s20] sm:$0xf]
    %v7181 = vadd.f32 %v7176, 1e-05
    %v7182 = vadd.f32 %v7177, 1e-05
    %v7183 = vadd.f32 %v7178, 1e-05
    %v7184 = vadd.f32 %v7179, 1e-05
    %v7185 = vrsqrt.pop %v7181
    %v7186 = vmul.f32 %v7185, %v7181
    %v7187 = vmul.f32 %v7186, %v7185
    %v7188 = vmul.f32 0.5, %v7187
    %v7189 = vsub.f32 1.5, %v7188
    %v7190 = vmul.f32 %v7185, %v7189
    %vm7191 = vweird.f32 %v7181
    %vm7192 = vweird.f32 %v7185
    %vm7193 = vmor %vm7191, %vm7192
    %v7194 = vsel %vm7193, %v7185, %v7190
    %v7195 = vrsqrt.pop %v7182
    %v7196 = vmul.f32 %v7195, %v7182
    %v7197 = vmul.f32 %v7196, %v7195
    %v7198 = vmul.f32 0.5, %v7197
    %v7199 = vsub.f32 1.5, %v7198
    %v7200 = vmul.f32 %v7195, %v7199
    %vm7201 = vweird.f32 %v7182
    %vm7202 = vweird.f32 %v7195
    %vm7203 = vmor %vm7201, %vm7202
    %v7204 = vsel %vm7203, %v7195, %v7200
    %v7205 = vrsqrt.pop %v7183
    %v7206 = vmul.f32 %v7205, %v7183
    %v7207 = vmul.f32 %v7206, %v7205
    %v7208 = vmul.f32 0.5, %v7207
    %v7209 = vsub.f32 1.5, %v7208
    %v7210 = vmul.f32 %v7205, %v7209
    %vm7211 = vweird.f32 %v7183
    %vm7212 = vweird.f32 %v7205
    %vm7213 = vmor %vm7211, %vm7212
    %v7214 = vsel %vm7213, %v7205, %v7210
    %v7215 = vrsqrt.pop %v7184
    %v7216 = vmul.f32 %v7215, %v7184
    %v7217 = vmul.f32 %v7216, %v7215
    %v7218 = vmul.f32 0.5, %v7217
    %v7219 = vsub.f32 1.5, %v7218
    %v7220 = vmul.f32 %v7215, %v7219
    %vm7221 = vweird.f32 %v7184
    %vm7222 = vweird.f32 %v7215
    %vm7223 = vmor %vm7221, %vm7222
    %v7224 = vsel %vm7223, %v7215, %v7220
    %v7229 = vrot.slane %v7204, 7
    %v7230 = vrot.slane %v7214, 6
    %v7231 = vrot.slane %v7224, 5
    %v7232 = vsel %vm3196, %v7194, %v7229
    %v7233 = vsel %vm3198, %v7230, %v7231
    %v7234 = vsel %vm3200, %v7232, %v7233
    %v7236 = vmul.f32 %v7180, %v7234
    %v7238 = vperm.slane %v7236, 0
    %v7239 = vperm.slane %v7236, 1
    %v7240 = vperm.slane %v7236, 2
    %v7241 = vperm.slane %v7236, 3
    %v7246 = vmul.f32 %v6964, %v7238
    %v7247 = vmul.f32 %v6965, %v7239
    %v7248 = vmul.f32 %v6966, %v7240
    %v7249 = vmul.f32 %v6967, %v7241
    %v7250 = vmul.f32 %v6968, %v7238
    %v7251 = vmul.f32 %v6969, %v7239
    %v7252 = vmul.f32 %v6970, %v7240
    %v7253 = vmul.f32 %v6971, %v7241
    %v7254 = vmul.f32 %v6972, %v7238
    %v7255 = vmul.f32 %v6973, %v7239
    %v7256 = vmul.f32 %v6974, %v7240
    %v7257 = vmul.f32 %v6975, %v7241
    %v7258 = vmul.f32 %v6976, %v7238
    %v7259 = vmul.f32 %v6977, %v7239
    %v7260 = vmul.f32 %v6978, %v7240
    %v7261 = vmul.f32 %v6979, %v7241
    %v7262 = vmul.f32 %v6980, %v7238
    %v7263 = vmul.f32 %v6981, %v7239
    %v7264 = vmul.f32 %v6982, %v7240
    %v7265 = vmul.f32 %v6983, %v7241
    %v7266 = vmul.f32 %v6984, %v7238
    %v7267 = vmul.f32 %v6985, %v7239
    %v7268 = vmul.f32 %v6986, %v7240
    %v7269 = vmul.f32 %v6987, %v7241
    %v7270 = vmul.f32 %v6988, %v7238
    %v7271 = vmul.f32 %v6989, %v7239
    %v7272 = vmul.f32 %v6990, %v7240
    %v7273 = vmul.f32 %v6991, %v7241
    %v7274 = vmul.f32 %v6992, %v7238
    %v7275 = vmul.f32 %v6993, %v7239
    %v7276 = vmul.f32 %v6994, %v7240
    %v7277 = vmul.f32 %v6995, %v7241
    %v7278 = vmul.f32 %v6996, %v7238
    %v7279 = vmul.f32 %v6997, %v7239
    %v7280 = vmul.f32 %v6998, %v7240
    %v7281 = vmul.f32 %v6999, %v7241
    %v7282 = vmul.f32 %v7000, %v7238
    %v7283 = vmul.f32 %v7001, %v7239
    %v7284 = vmul.f32 %v7002, %v7240
    %v7285 = vmul.f32 %v7003, %v7241
    %v7286 = vmul.f32 %v7004, %v7238
    %v7287 = vmul.f32 %v7005, %v7239
    %v7288 = vmul.f32 %v7006, %v7240
    %v7289 = vmul.f32 %v7007, %v7241
    %v7290 = vmul.f32 %v7008, %v7238
    %v7291 = vmul.f32 %v7009, %v7239
    %v7292 = vmul.f32 %v7010, %v7240
    %v7293 = vmul.f32 %v7011, %v7241
    %v7294 = vmul.f32 %v7012, %v7238
    %v7295 = vmul.f32 %v7013, %v7239
    %v7296 = vmul.f32 %v7014, %v7240
    %v7297 = vmul.f32 %v7015, %v7241
    %v7298 = vmul.f32 %v7016, %v7238
    %v7299 = vmul.f32 %v7017, %v7239
    %v7300 = vmul.f32 %v7018, %v7240
    %v7301 = vmul.f32 %v7019, %v7241
    %v7302 = vmul.f32 %v7020, %v7238
    %v7303 = vmul.f32 %v7021, %v7239
    %v7304 = vmul.f32 %v7022, %v7240
    %v7305 = vmul.f32 %v7023, %v7241
    %v7306 = vmul.f32 %v7024, %v7238
    %v7307 = vmul.f32 %v7025, %v7239
    %v7308 = vmul.f32 %v7026, %v7240
    %v7309 = vmul.f32 %v7027, %v7241
    %v7310 = vld [vmem:[%s21] sm:$0xf]
    %v7312 = vperm.slane %v7310, 0
    %v7313 = vperm.slane %v7310, 1
    %v7314 = vperm.slane %v7310, 2
    %v7315 = vperm.slane %v7310, 3
    %v7320 = vadd.f32 %v7246, %v7312
    %v7321 = vadd.f32 %v7247, %v7313
    %v7322 = vadd.f32 %v7248, %v7314
    %v7323 = vadd.f32 %v7249, %v7315
    %v7324 = vadd.f32 %v7250, %v7312
    %v7325 = vadd.f32 %v7251, %v7313
    %v7326 = vadd.f32 %v7252, %v7314
    %v7327 = vadd.f32 %v7253, %v7315
    %v7328 = vadd.f32 %v7254, %v7312
    %v7329 = vadd.f32 %v7255, %v7313
    %v7330 = vadd.f32 %v7256, %v7314
    %v7331 = vadd.f32 %v7257, %v7315
    %v7332 = vadd.f32 %v7258, %v7312
    %v7333 = vadd.f32 %v7259, %v7313
    %v7334 = vadd.f32 %v7260, %v7314
    %v7335 = vadd.f32 %v7261, %v7315
    %v7336 = vadd.f32 %v7262, %v7312
    %v7337 = vadd.f32 %v7263, %v7313
    %v7338 = vadd.f32 %v7264, %v7314
    %v7339 = vadd.f32 %v7265, %v7315
    %v7340 = vadd.f32 %v7266, %v7312
    %v7341 = vadd.f32 %v7267, %v7313
    %v7342 = vadd.f32 %v7268, %v7314
    %v7343 = vadd.f32 %v7269, %v7315
    %v7344 = vadd.f32 %v7270, %v7312
    %v7345 = vadd.f32 %v7271, %v7313
    %v7346 = vadd.f32 %v7272, %v7314
    %v7347 = vadd.f32 %v7273, %v7315
    %v7348 = vadd.f32 %v7274, %v7312
    %v7349 = vadd.f32 %v7275, %v7313
    %v7350 = vadd.f32 %v7276, %v7314
    %v7351 = vadd.f32 %v7277, %v7315
    %v7352 = vadd.f32 %v7278, %v7312
    %v7353 = vadd.f32 %v7279, %v7313
    %v7354 = vadd.f32 %v7280, %v7314
    %v7355 = vadd.f32 %v7281, %v7315
    %v7356 = vadd.f32 %v7282, %v7312
    %v7357 = vadd.f32 %v7283, %v7313
    %v7358 = vadd.f32 %v7284, %v7314
    %v7359 = vadd.f32 %v7285, %v7315
    %v7360 = vadd.f32 %v7286, %v7312
    %v7361 = vadd.f32 %v7287, %v7313
    %v7362 = vadd.f32 %v7288, %v7314
    %v7363 = vadd.f32 %v7289, %v7315
    %v7364 = vadd.f32 %v7290, %v7312
    %v7365 = vadd.f32 %v7291, %v7313
    %v7366 = vadd.f32 %v7292, %v7314
    %v7367 = vadd.f32 %v7293, %v7315
    %v7368 = vadd.f32 %v7294, %v7312
    %v7369 = vadd.f32 %v7295, %v7313
    %v7370 = vadd.f32 %v7296, %v7314
    %v7371 = vadd.f32 %v7297, %v7315
    %v7372 = vadd.f32 %v7298, %v7312
    %v7373 = vadd.f32 %v7299, %v7313
    %v7374 = vadd.f32 %v7300, %v7314
    %v7375 = vadd.f32 %v7301, %v7315
    %v7376 = vadd.f32 %v7302, %v7312
    %v7377 = vadd.f32 %v7303, %v7313
    %v7378 = vadd.f32 %v7304, %v7314
    %v7379 = vadd.f32 %v7305, %v7315
    %v7380 = vadd.f32 %v7306, %v7312
    %v7381 = vadd.f32 %v7307, %v7313
    %v7382 = vadd.f32 %v7308, %v7314
    %v7383 = vadd.f32 %v7309, %v7315
    %vm7384 = vcmp.ge.f32.partialorder %v7320, 0.0
    %vm7385 = vcmp.ge.f32.partialorder %v7321, 0.0
    %vm7386 = vcmp.ge.f32.partialorder %v7322, 0.0
    %vm7387 = vcmp.ge.f32.partialorder %v7323, 0.0
    %vm7388 = vcmp.ge.f32.partialorder %v7324, 0.0
    %vm7389 = vcmp.ge.f32.partialorder %v7325, 0.0
    %vm7390 = vcmp.ge.f32.partialorder %v7326, 0.0
    %vm7391 = vcmp.ge.f32.partialorder %v7327, 0.0
    %vm7392 = vcmp.ge.f32.partialorder %v7328, 0.0
    %vm7393 = vcmp.ge.f32.partialorder %v7329, 0.0
    %vm7394 = vcmp.ge.f32.partialorder %v7330, 0.0
    %vm7395 = vcmp.ge.f32.partialorder %v7331, 0.0
    %vm7396 = vcmp.ge.f32.partialorder %v7332, 0.0
    %vm7397 = vcmp.ge.f32.partialorder %v7333, 0.0
    %vm7398 = vcmp.ge.f32.partialorder %v7334, 0.0
    %vm7399 = vcmp.ge.f32.partialorder %v7335, 0.0
    %vm7400 = vcmp.ge.f32.partialorder %v7336, 0.0
    %vm7401 = vcmp.ge.f32.partialorder %v7337, 0.0
    %vm7402 = vcmp.ge.f32.partialorder %v7338, 0.0
    %vm7403 = vcmp.ge.f32.partialorder %v7339, 0.0
    %vm7404 = vcmp.ge.f32.partialorder %v7340, 0.0
    %vm7405 = vcmp.ge.f32.partialorder %v7341, 0.0
    %vm7406 = vcmp.ge.f32.partialorder %v7342, 0.0
    %vm7407 = vcmp.ge.f32.partialorder %v7343, 0.0
    %vm7408 = vcmp.ge.f32.partialorder %v7344, 0.0
    %vm7409 = vcmp.ge.f32.partialorder %v7345, 0.0
    %vm7410 = vcmp.ge.f32.partialorder %v7346, 0.0
    %vm7411 = vcmp.ge.f32.partialorder %v7347, 0.0
    %vm7412 = vcmp.ge.f32.partialorder %v7348, 0.0
    %vm7413 = vcmp.ge.f32.partialorder %v7349, 0.0
    %vm7414 = vcmp.ge.f32.partialorder %v7350, 0.0
    %vm7415 = vcmp.ge.f32.partialorder %v7351, 0.0
    %vm7416 = vcmp.ge.f32.partialorder %v7352, 0.0
    %vm7417 = vcmp.ge.f32.partialorder %v7353, 0.0
    %vm7418 = vcmp.ge.f32.partialorder %v7354, 0.0
    %vm7419 = vcmp.ge.f32.partialorder %v7355, 0.0
    %vm7420 = vcmp.ge.f32.partialorder %v7356, 0.0
    %vm7421 = vcmp.ge.f32.partialorder %v7357, 0.0
    %vm7422 = vcmp.ge.f32.partialorder %v7358, 0.0
    %vm7423 = vcmp.ge.f32.partialorder %v7359, 0.0
    %vm7424 = vcmp.ge.f32.partialorder %v7360, 0.0
    %vm7425 = vcmp.ge.f32.partialorder %v7361, 0.0
    %vm7426 = vcmp.ge.f32.partialorder %v7362, 0.0
    %vm7427 = vcmp.ge.f32.partialorder %v7363, 0.0
    %vm7428 = vcmp.ge.f32.partialorder %v7364, 0.0
    %vm7429 = vcmp.ge.f32.partialorder %v7365, 0.0
    %vm7430 = vcmp.ge.f32.partialorder %v7366, 0.0
    %vm7431 = vcmp.ge.f32.partialorder %v7367, 0.0
    %vm7432 = vcmp.ge.f32.partialorder %v7368, 0.0
    %vm7433 = vcmp.ge.f32.partialorder %v7369, 0.0
    %vm7434 = vcmp.ge.f32.partialorder %v7370, 0.0
    %vm7435 = vcmp.ge.f32.partialorder %v7371, 0.0
    %vm7436 = vcmp.ge.f32.partialorder %v7372, 0.0
    %vm7437 = vcmp.ge.f32.partialorder %v7373, 0.0
    %vm7438 = vcmp.ge.f32.partialorder %v7374, 0.0
    %vm7439 = vcmp.ge.f32.partialorder %v7375, 0.0
    %vm7440 = vcmp.ge.f32.partialorder %v7376, 0.0
    %vm7441 = vcmp.ge.f32.partialorder %v7377, 0.0
    %vm7442 = vcmp.ge.f32.partialorder %v7378, 0.0
    %vm7443 = vcmp.ge.f32.partialorder %v7379, 0.0
    %vm7444 = vcmp.ge.f32.partialorder %v7380, 0.0
    %vm7445 = vcmp.ge.f32.partialorder %v7381, 0.0
    %vm7446 = vcmp.ge.f32.partialorder %v7382, 0.0
    %vm7447 = vcmp.ge.f32.partialorder %v7383, 0.0
    %v7448 = vstv %s6083
    %v7449 = vmul.f32 %v7448, %v7320
    %v7450 = vmul.f32 %v7448, %v7321
    %v7451 = vmul.f32 %v7448, %v7322
    %v7452 = vmul.f32 %v7448, %v7323
    %v7453 = vmul.f32 %v7448, %v7324
    %v7454 = vmul.f32 %v7448, %v7325
    %v7455 = vmul.f32 %v7448, %v7326
    %v7456 = vmul.f32 %v7448, %v7327
    %v7457 = vmul.f32 %v7448, %v7328
    %v7458 = vmul.f32 %v7448, %v7329
    %v7459 = vmul.f32 %v7448, %v7330
    %v7460 = vmul.f32 %v7448, %v7331
    %v7461 = vmul.f32 %v7448, %v7332
    %v7462 = vmul.f32 %v7448, %v7333
    %v7463 = vmul.f32 %v7448, %v7334
    %v7464 = vmul.f32 %v7448, %v7335
    %v7465 = vmul.f32 %v7448, %v7336
    %v7466 = vmul.f32 %v7448, %v7337
    %v7467 = vmul.f32 %v7448, %v7338
    %v7468 = vmul.f32 %v7448, %v7339
    %v7469 = vmul.f32 %v7448, %v7340
    %v7470 = vmul.f32 %v7448, %v7341
    %v7471 = vmul.f32 %v7448, %v7342
    %v7472 = vmul.f32 %v7448, %v7343
    %v7473 = vmul.f32 %v7448, %v7344
    %v7474 = vmul.f32 %v7448, %v7345
    %v7475 = vmul.f32 %v7448, %v7346
    %v7476 = vmul.f32 %v7448, %v7347
    %v7477 = vmul.f32 %v7448, %v7348
    %v7478 = vmul.f32 %v7448, %v7349
    %v7479 = vmul.f32 %v7448, %v7350
    %v7480 = vmul.f32 %v7448, %v7351
    %v7481 = vmul.f32 %v7448, %v7352
    %v7482 = vmul.f32 %v7448, %v7353
    %v7483 = vmul.f32 %v7448, %v7354
    %v7484 = vmul.f32 %v7448, %v7355
    %v7485 = vmul.f32 %v7448, %v7356
    %v7486 = vmul.f32 %v7448, %v7357
    %v7487 = vmul.f32 %v7448, %v7358
    %v7488 = vmul.f32 %v7448, %v7359
    %v7489 = vmul.f32 %v7448, %v7360
    %v7490 = vmul.f32 %v7448, %v7361
    %v7491 = vmul.f32 %v7448, %v7362
    %v7492 = vmul.f32 %v7448, %v7363
    %v7493 = vmul.f32 %v7448, %v7364
    %v7494 = vmul.f32 %v7448, %v7365
    %v7495 = vmul.f32 %v7448, %v7366
    %v7496 = vmul.f32 %v7448, %v7367
    %v7497 = vmul.f32 %v7448, %v7368
    %v7498 = vmul.f32 %v7448, %v7369
    %v7499 = vmul.f32 %v7448, %v7370
    %v7500 = vmul.f32 %v7448, %v7371
    %v7501 = vmul.f32 %v7448, %v7372
    %v7502 = vmul.f32 %v7448, %v7373
    %v7503 = vmul.f32 %v7448, %v7374
    %v7504 = vmul.f32 %v7448, %v7375
    %v7505 = vmul.f32 %v7448, %v7376
    %v7506 = vmul.f32 %v7448, %v7377
    %v7507 = vmul.f32 %v7448, %v7378
    %v7508 = vmul.f32 %v7448, %v7379
    %v7509 = vmul.f32 %v7448, %v7380
    %v7510 = vmul.f32 %v7448, %v7381
    %v7511 = vmul.f32 %v7448, %v7382
    %v7512 = vmul.f32 %v7448, %v7383
    %v7513 = vsel %vm7384, %v7320, %v7449
    %v7514 = vsel %vm7385, %v7321, %v7450
    %v7515 = vsel %vm7386, %v7322, %v7451
    %v7516 = vsel %vm7387, %v7323, %v7452
    %v7517 = vsel %vm7388, %v7324, %v7453
    %v7518 = vsel %vm7389, %v7325, %v7454
    %v7519 = vsel %vm7390, %v7326, %v7455
    %v7520 = vsel %vm7391, %v7327, %v7456
    %v7521 = vsel %vm7392, %v7328, %v7457
    %v7522 = vsel %vm7393, %v7329, %v7458
    %v7523 = vsel %vm7394, %v7330, %v7459
    %v7524 = vsel %vm7395, %v7331, %v7460
    %v7525 = vsel %vm7396, %v7332, %v7461
    %v7526 = vsel %vm7397, %v7333, %v7462
    %v7527 = vsel %vm7398, %v7334, %v7463
    %v7528 = vsel %vm7399, %v7335, %v7464
    %v7529 = vsel %vm7400, %v7336, %v7465
    %v7530 = vsel %vm7401, %v7337, %v7466
    %v7531 = vsel %vm7402, %v7338, %v7467
    %v7532 = vsel %vm7403, %v7339, %v7468
    %v7533 = vsel %vm7404, %v7340, %v7469
    %v7534 = vsel %vm7405, %v7341, %v7470
    %v7535 = vsel %vm7406, %v7342, %v7471
    %v7536 = vsel %vm7407, %v7343, %v7472
    %v7537 = vsel %vm7408, %v7344, %v7473
    %v7538 = vsel %vm7409, %v7345, %v7474
    %v7539 = vsel %vm7410, %v7346, %v7475
    %v7540 = vsel %vm7411, %v7347, %v7476
    %v7541 = vsel %vm7412, %v7348, %v7477
    %v7542 = vsel %vm7413, %v7349, %v7478
    %v7543 = vsel %vm7414, %v7350, %v7479
    %v7544 = vsel %vm7415, %v7351, %v7480
    %v7545 = vsel %vm7416, %v7352, %v7481
    %v7546 = vsel %vm7417, %v7353, %v7482
    %v7547 = vsel %vm7418, %v7354, %v7483
    %v7548 = vsel %vm7419, %v7355, %v7484
    %v7549 = vsel %vm7420, %v7356, %v7485
    %v7550 = vsel %vm7421, %v7357, %v7486
    %v7551 = vsel %vm7422, %v7358, %v7487
    %v7552 = vsel %vm7423, %v7359, %v7488
    %v7553 = vsel %vm7424, %v7360, %v7489
    %v7554 = vsel %vm7425, %v7361, %v7490
    %v7555 = vsel %vm7426, %v7362, %v7491
    %v7556 = vsel %vm7427, %v7363, %v7492
    %v7557 = vsel %vm7428, %v7364, %v7493
    %v7558 = vsel %vm7429, %v7365, %v7494
    %v7559 = vsel %vm7430, %v7366, %v7495
    %v7560 = vsel %vm7431, %v7367, %v7496
    %v7561 = vsel %vm7432, %v7368, %v7497
    %v7562 = vsel %vm7433, %v7369, %v7498
    %v7563 = vsel %vm7434, %v7370, %v7499
    %v7564 = vsel %vm7435, %v7371, %v7500
    %v7565 = vsel %vm7436, %v7372, %v7501
    %v7566 = vsel %vm7437, %v7373, %v7502
    %v7567 = vsel %vm7438, %v7374, %v7503
    %v7568 = vsel %vm7439, %v7375, %v7504
    %v7569 = vsel %vm7440, %v7376, %v7505
    %v7570 = vsel %vm7441, %v7377, %v7506
    %v7571 = vsel %vm7442, %v7378, %v7507
    %v7572 = vsel %vm7443, %v7379, %v7508
    %v7573 = vsel %vm7444, %v7380, %v7509
    %v7574 = vsel %vm7445, %v7381, %v7510
    %v7575 = vsel %vm7446, %v7382, %v7511
    %v7576 = vsel %vm7447, %v7383, %v7512
    %v7577 = vpack.c.bf16 %v7517, %v7513
    %v7578 = vpack.c.bf16 %v7518, %v7514
    %v7579 = vpack.c.bf16 %v7519, %v7515
    %v7580 = vpack.c.bf16 %v7520, %v7516
    %v7581 = vpack.c.bf16 %v7525, %v7521
    %v7582 = vpack.c.bf16 %v7526, %v7522
    %v7583 = vpack.c.bf16 %v7527, %v7523
    %v7584 = vpack.c.bf16 %v7528, %v7524
    %v7585 = vpack.c.bf16 %v7533, %v7529
    %v7586 = vpack.c.bf16 %v7534, %v7530
    %v7587 = vpack.c.bf16 %v7535, %v7531
    %v7588 = vpack.c.bf16 %v7536, %v7532
    %v7589 = vpack.c.bf16 %v7541, %v7537
    %v7590 = vpack.c.bf16 %v7542, %v7538
    %v7591 = vpack.c.bf16 %v7543, %v7539
    %v7592 = vpack.c.bf16 %v7544, %v7540
    %v7593 = vpack.c.bf16 %v7549, %v7545
    %v7594 = vpack.c.bf16 %v7550, %v7546
    %v7595 = vpack.c.bf16 %v7551, %v7547
    %v7596 = vpack.c.bf16 %v7552, %v7548
    %v7597 = vpack.c.bf16 %v7557, %v7553
    %v7598 = vpack.c.bf16 %v7558, %v7554
    %v7599 = vpack.c.bf16 %v7559, %v7555
    %v7600 = vpack.c.bf16 %v7560, %v7556
    %v7601 = vpack.c.bf16 %v7565, %v7561
    %v7602 = vpack.c.bf16 %v7566, %v7562
    %v7603 = vpack.c.bf16 %v7567, %v7563
    %v7604 = vpack.c.bf16 %v7568, %v7564
    %v7605 = vpack.c.bf16 %v7573, %v7569
    %v7606 = vpack.c.bf16 %v7574, %v7570
    %v7607 = vpack.c.bf16 %v7575, %v7571
    %v7608 = vpack.c.bf16 %v7576, %v7572
    %v7609 = vld [vmem:[%s22] sm:$0xff]
    %v7610 = vld [vmem:[%s22 + $0x8] sm:$0xff]
    %v7611 = vld [vmem:[%s22 + $0x10] sm:$0xff]
    %v7612 = vld [vmem:[%s22 + $0x18] sm:$0xf]
    %v7613 = vld [vmem:[%s22 + $0x1c] sm:$0xff]
    %v7614 = vld [vmem:[%s22 + $0x24] sm:$0xff]
    %v7615 = vld [vmem:[%s22 + $0x2c] sm:$0xff]
    %v7616 = vld [vmem:[%s22 + $0x34] sm:$0xf]
    %v7617 = vld [vmem:[%s22 + $0x38] sm:$0xff]
    %v7618 = vld [vmem:[%s22 + $0x40] sm:$0xff]
    %v7619 = vld [vmem:[%s22 + $0x48] sm:$0xff]
    %v7620 = vld [vmem:[%s22 + $0x50] sm:$0xf]
    %v7621 = vld [vmem:[%s22 + $0x54] sm:$0xff]
    %v7622 = vld [vmem:[%s22 + $0x5c] sm:$0xff]
    %v7623 = vld [vmem:[%s22 + $0x64] sm:$0xff]
    %v7624 = vld [vmem:[%s22 + $0x6c] sm:$0xf]
    %v7625 = vld [vmem:[%s22 + $0x70] sm:$0xff]
    %v7626 = vld [vmem:[%s22 + $0x78] sm:$0xff]
    %v7627 = vld [vmem:[%s22 + $0x80] sm:$0xff]
    %v7628 = vld [vmem:[%s22 + $0x88] sm:$0xf]
    %v7629 = vld [vmem:[%s22 + $0x8c] sm:$0xff]
    %v7630 = vld [vmem:[%s22 + $0x94] sm:$0xff]
    %v7631 = vld [vmem:[%s22 + $0x9c] sm:$0xff]
    %v7632 = vld [vmem:[%s22 + $0xa4] sm:$0xf]
    %v7633 = vld [vmem:[%s22 + $0xa8] sm:$0xff]
    %v7634 = vld [vmem:[%s22 + $0xb0] sm:$0xff]
    %v7635 = vld [vmem:[%s22 + $0xb8] sm:$0xff]
    %v7636 = vld [vmem:[%s22 + $0xc0] sm:$0xf]
    %v7637 = vld [vmem:[%s22 + $0xc4] sm:$0xff]
    %v7638 = vld [vmem:[%s22 + $0xcc] sm:$0xff]
    %v7639 = vld [vmem:[%s22 + $0xd4] sm:$0xff]
    %v7640 = vld [vmem:[%s22 + $0xdc] sm:$0xf]
    %v7641 = vld [vmem:[%s22 + $0xe0] sm:$0xff]
    %v7642 = vld [vmem:[%s22 + $0xe8] sm:$0xff]
    %v7643 = vld [vmem:[%s22 + $0xf0] sm:$0xff]
    %v7644 = vld [vmem:[%s22 + $0xf8] sm:$0xf]
    %v7645 = vld [vmem:[%s22 + $0xfc] sm:$0xff]
    %v7646 = vld [vmem:[%s22 + $0x104] sm:$0xff]
    %v7647 = vld [vmem:[%s22 + $0x10c] sm:$0xff]
    %v7648 = vld [vmem:[%s22 + $0x114] sm:$0xf]
    %v7649 = vld [vmem:[%s22 + $0x118] sm:$0xff]
    %v7650 = vld [vmem:[%s22 + $0x120] sm:$0xff]
    %v7651 = vld [vmem:[%s22 + $0x128] sm:$0xff]
    %v7652 = vld [vmem:[%s22 + $0x130] sm:$0xf]
    %v7653 = vld [vmem:[%s22 + $0x134] sm:$0xff]
    %v7654 = vld [vmem:[%s22 + $0x13c] sm:$0xff]
    %v7655 = vld [vmem:[%s22 + $0x144] sm:$0xff]
    %v7656 = vld [vmem:[%s22 + $0x14c] sm:$0xf]
    %v7657 = vld [vmem:[%s22 + $0x150] sm:$0xff]
    %v7658 = vld [vmem:[%s22 + $0x158] sm:$0xff]
    %v7659 = vld [vmem:[%s22 + $0x160] sm:$0xff]
    %v7660 = vld [vmem:[%s22 + $0x168] sm:$0xf]
    %v7661 = vld [vmem:[%s22 + $0x16c] sm:$0xff]
    %v7662 = vld [vmem:[%s22 + $0x174] sm:$0xff]
    %v7663 = vld [vmem:[%s22 + $0x17c] sm:$0xff]
    %v7664 = vld [vmem:[%s22 + $0x184] sm:$0xf]
    %v7665 = vld [vmem:[%s22 + $0x188] sm:$0xff]
    %v7666 = vld [vmem:[%s22 + $0x190] sm:$0xff]
    %v7667 = vld [vmem:[%s22 + $0x198] sm:$0xff]
    %v7668 = vld [vmem:[%s22 + $0x1a0] sm:$0xf]
    %v7669 = vld [vmem:[%s22 + $0x1a4] sm:$0xff]
    %v7670 = vld [vmem:[%s22 + $0x1ac] sm:$0xff]
    %v7671 = vld [vmem:[%s22 + $0x1b4] sm:$0xff]
    %v7672 = vld [vmem:[%s22 + $0x1bc] sm:$0xf]
    %v7673 = vld [vmem:[%s22 + $0x1c0] sm:$0xff]
    %v7674 = vld [vmem:[%s22 + $0x1c8] sm:$0xff]
    %v7675 = vld [vmem:[%s22 + $0x1d0] sm:$0xff]
    %v7676 = vld [vmem:[%s22 + $0x1d8] sm:$0xf]
    %v7677 = vld [vmem:[%s22 + $0x1dc] sm:$0xff]
    %v7678 = vld [vmem:[%s22 + $0x1e4] sm:$0xff]
    %v7679 = vld [vmem:[%s22 + $0x1ec] sm:$0xff]
    %v7680 = vld [vmem:[%s22 + $0x1f4] sm:$0xf]
    %v7681 = vld [vmem:[%s22 + $0x1f8] sm:$0xff]
    %v7682 = vld [vmem:[%s22 + $0x200] sm:$0xff]
    %v7683 = vld [vmem:[%s22 + $0x208] sm:$0xff]
    %v7684 = vld [vmem:[%s22 + $0x210] sm:$0xf]
    %v7685 = vld [vmem:[%s22 + $0x214] sm:$0xff]
    %v7686 = vld [vmem:[%s22 + $0x21c] sm:$0xff]
    %v7687 = vld [vmem:[%s22 + $0x224] sm:$0xff]
    %v7688 = vld [vmem:[%s22 + $0x22c] sm:$0xf]
    %v7689 = vld [vmem:[%s22 + $0x230] sm:$0xff]
    %v7690 = vld [vmem:[%s22 + $0x238] sm:$0xff]
    %v7691 = vld [vmem:[%s22 + $0x240] sm:$0xff]
    %v7692 = vld [vmem:[%s22 + $0x248] sm:$0xf]
    %v7693 = vld [vmem:[%s22 + $0x24c] sm:$0xff]
    %v7694 = vld [vmem:[%s22 + $0x254] sm:$0xff]
    %v7695 = vld [vmem:[%s22 + $0x25c] sm:$0xff]
    %v7696 = vld [vmem:[%s22 + $0x264] sm:$0xf]
    %v7697 = vld [vmem:[%s22 + $0x268] sm:$0xff]
    %v7698 = vld [vmem:[%s22 + $0x270] sm:$0xff]
    %v7699 = vld [vmem:[%s22 + $0x278] sm:$0xff]
    %v7700 = vld [vmem:[%s22 + $0x280] sm:$0xf]
    %v7701 = vld [vmem:[%s22 + $0x284] sm:$0xff]
    %v7702 = vld [vmem:[%s22 + $0x28c] sm:$0xff]
    %v7703 = vld [vmem:[%s22 + $0x294] sm:$0xff]
    %v7704 = vld [vmem:[%s22 + $0x29c] sm:$0xf]
    %v7705 = vld [vmem:[%s22 + $0x2a0] sm:$0xff]
    %v7706 = vld [vmem:[%s22 + $0x2a8] sm:$0xff]
    %v7707 = vld [vmem:[%s22 + $0x2b0] sm:$0xff]
    %v7708 = vld [vmem:[%s22 + $0x2b8] sm:$0xf]
    %v7709 = vld [vmem:[%s22 + $0x2bc] sm:$0xff]
    %v7710 = vld [vmem:[%s22 + $0x2c4] sm:$0xff]
    %v7711 = vld [vmem:[%s22 + $0x2cc] sm:$0xff]
    %v7712 = vld [vmem:[%s22 + $0x2d4] sm:$0xf]
    %v7713 = vld [vmem:[%s22 + $0x2d8] sm:$0xff]
    %v7714 = vld [vmem:[%s22 + $0x2e0] sm:$0xff]
    %v7715 = vld [vmem:[%s22 + $0x2e8] sm:$0xff]
    %v7716 = vld [vmem:[%s22 + $0x2f0] sm:$0xf]
    %v7717 = vld [vmem:[%s22 + $0x2f4] sm:$0xff]
    %v7718 = vld [vmem:[%s22 + $0x2fc] sm:$0xff]
    %v7719 = vld [vmem:[%s22 + $0x304] sm:$0xff]
    %v7720 = vld [vmem:[%s22 + $0x30c] sm:$0xf]
    %v7721 = vld [vmem:[%s22 + $0x310] sm:$0xff]
    %v7722 = vld [vmem:[%s22 + $0x318] sm:$0xff]
    %v7723 = vld [vmem:[%s22 + $0x320] sm:$0xff]
    %v7724 = vld [vmem:[%s22 + $0x328] sm:$0xf]
    %v7725 = vld [vmem:[%s22 + $0x32c] sm:$0xff]
    %v7726 = vld [vmem:[%s22 + $0x334] sm:$0xff]
    %v7727 = vld [vmem:[%s22 + $0x33c] sm:$0xff]
    %v7728 = vld [vmem:[%s22 + $0x344] sm:$0xf]
    %v7729 = vld [vmem:[%s22 + $0x348] sm:$0xff]
    %v7730 = vld [vmem:[%s22 + $0x350] sm:$0xff]
    %v7731 = vld [vmem:[%s22 + $0x358] sm:$0xff]
    %v7732 = vld [vmem:[%s22 + $0x360] sm:$0xf]
    %v7733 = vld [vmem:[%s22 + $0x364] sm:$0xff]
    %v7734 = vld [vmem:[%s22 + $0x36c] sm:$0xff]
    %v7735 = vld [vmem:[%s22 + $0x374] sm:$0xff]
    %v7736 = vld [vmem:[%s22 + $0x37c] sm:$0xf]
    %v7737 = vld [vmem:[%s22 + $0x380] sm:$0xff]
    %v7738 = vld [vmem:[%s22 + $0x388] sm:$0xff]
    %v7739 = vld [vmem:[%s22 + $0x390] sm:$0xff]
    %v7740 = vld [vmem:[%s22 + $0x398] sm:$0xf]
    %v7741 = vld [vmem:[%s22 + $0x39c] sm:$0xff]
    %v7742 = vld [vmem:[%s22 + $0x3a4] sm:$0xff]
    %v7743 = vld [vmem:[%s22 + $0x3ac] sm:$0xff]
    %v7744 = vld [vmem:[%s22 + $0x3b4] sm:$0xf]
    %v7745 = vld [vmem:[%s22 + $0x3b8] sm:$0xff]
    %v7746 = vld [vmem:[%s22 + $0x3c0] sm:$0xff]
    %v7747 = vld [vmem:[%s22 + $0x3c8] sm:$0xff]
    %v7748 = vld [vmem:[%s22 + $0x3d0] sm:$0xf]
    %v7749 = vld [vmem:[%s22 + $0x3d4] sm:$0xff]
    %v7750 = vld [vmem:[%s22 + $0x3dc] sm:$0xff]
    %v7751 = vld [vmem:[%s22 + $0x3e4] sm:$0xff]
    %v7752 = vld [vmem:[%s22 + $0x3ec] sm:$0xf]
    %v7753 = vld [vmem:[%s22 + $0x3f0] sm:$0xff]
    %v7754 = vld [vmem:[%s22 + $0x3f8] sm:$0xff]
    %v7755 = vld [vmem:[%s22 + $0x400] sm:$0xff]
    %v7756 = vld [vmem:[%s22 + $0x408] sm:$0xf]
    %v7757 = vld [vmem:[%s22 + $0x40c] sm:$0xff]
    %v7758 = vld [vmem:[%s22 + $0x414] sm:$0xff]
    %v7759 = vld [vmem:[%s22 + $0x41c] sm:$0xff]
    %v7760 = vld [vmem:[%s22 + $0x424] sm:$0xf]
    %v7761 = vld [vmem:[%s22 + $0x428] sm:$0xff]
    %v7762 = vld [vmem:[%s22 + $0x430] sm:$0xff]
    %v7763 = vld [vmem:[%s22 + $0x438] sm:$0xff]
    %v7764 = vld [vmem:[%s22 + $0x440] sm:$0xf]
    %v7765 = vld [vmem:[%s22 + $0x444] sm:$0xff]
    %v7766 = vld [vmem:[%s22 + $0x44c] sm:$0xff]
    %v7767 = vld [vmem:[%s22 + $0x454] sm:$0xff]
    %v7768 = vld [vmem:[%s22 + $0x45c] sm:$0xf]
    %v7769 = vld [vmem:[%s22 + $0x460] sm:$0xff]
    %v7770 = vld [vmem:[%s22 + $0x468] sm:$0xff]
    %v7771 = vld [vmem:[%s22 + $0x470] sm:$0xff]
    %v7772 = vld [vmem:[%s22 + $0x478] sm:$0xf]
    %v7773 = vld [vmem:[%s22 + $0x47c] sm:$0xff]
    %v7774 = vld [vmem:[%s22 + $0x484] sm:$0xff]
    %v7775 = vld [vmem:[%s22 + $0x48c] sm:$0xff]
    %v7776 = vld [vmem:[%s22 + $0x494] sm:$0xf]
    %v7777 = vld [vmem:[%s22 + $0x498] sm:$0xff]
    %v7778 = vld [vmem:[%s22 + $0x4a0] sm:$0xff]
    %v7779 = vld [vmem:[%s22 + $0x4a8] sm:$0xff]
    %v7780 = vld [vmem:[%s22 + $0x4b0] sm:$0xf]
    %v7781 = vld [vmem:[%s22 + $0x4b4] sm:$0xff]
    %v7782 = vld [vmem:[%s22 + $0x4bc] sm:$0xff]
    %v7783 = vld [vmem:[%s22 + $0x4c4] sm:$0xff]
    %v7784 = vld [vmem:[%s22 + $0x4cc] sm:$0xf]
    %v7785 = vld [vmem:[%s22 + $0x4d0] sm:$0xff]
    %v7786 = vld [vmem:[%s22 + $0x4d8] sm:$0xff]
    %v7787 = vld [vmem:[%s22 + $0x4e0] sm:$0xff]
    %v7788 = vld [vmem:[%s22 + $0x4e8] sm:$0xf]
    %v7789 = vld [vmem:[%s22 + $0x4ec] sm:$0xff]
    %v7790 = vld [vmem:[%s22 + $0x4f4] sm:$0xff]
    %v7791 = vld [vmem:[%s22 + $0x4fc] sm:$0xff]
    %v7792 = vld [vmem:[%s22 + $0x504] sm:$0xf]
    %v7793 = vld [vmem:[%s22 + $0x508] sm:$0xff]
    %v7794 = vld [vmem:[%s22 + $0x510] sm:$0xff]
    %v7795 = vld [vmem:[%s22 + $0x518] sm:$0xff]
    %v7796 = vld [vmem:[%s22 + $0x520] sm:$0xf]
    %v7797 = vld [vmem:[%s22 + $0x524] sm:$0xff]
    %v7798 = vld [vmem:[%s22 + $0x52c] sm:$0xff]
    %v7799 = vld [vmem:[%s22 + $0x534] sm:$0xff]
    %v7800 = vld [vmem:[%s22 + $0x53c] sm:$0xf]
    %v7801 = vld [vmem:[%s22 + $0x540] sm:$0xff]
    %v7802 = vld [vmem:[%s22 + $0x548] sm:$0xff]
    %v7803 = vld [vmem:[%s22 + $0x550] sm:$0xff]
    %v7804 = vld [vmem:[%s22 + $0x558] sm:$0xf]
    %v7805 = vld [vmem:[%s22 + $0x55c] sm:$0xff]
    %v7806 = vld [vmem:[%s22 + $0x564] sm:$0xff]
    %v7807 = vld [vmem:[%s22 + $0x56c] sm:$0xff]
    %v7808 = vld [vmem:[%s22 + $0x574] sm:$0xf]
    %v7809 = vld [vmem:[%s22 + $0x578] sm:$0xff]
    %v7810 = vld [vmem:[%s22 + $0x580] sm:$0xff]
    %v7811 = vld [vmem:[%s22 + $0x588] sm:$0xff]
    %v7812 = vld [vmem:[%s22 + $0x590] sm:$0xf]
    %v7813 = vld [vmem:[%s22 + $0x594] sm:$0xff]
    %v7814 = vld [vmem:[%s22 + $0x59c] sm:$0xff]
    %v7815 = vld [vmem:[%s22 + $0x5a4] sm:$0xff]
    %v7816 = vld [vmem:[%s22 + $0x5ac] sm:$0xf]
    %v7817 = vld [vmem:[%s22 + $0x5b0] sm:$0xff]
    %v7818 = vld [vmem:[%s22 + $0x5b8] sm:$0xff]
    %v7819 = vld [vmem:[%s22 + $0x5c0] sm:$0xff]
    %v7820 = vld [vmem:[%s22 + $0x5c8] sm:$0xf]
    %v7821 = vld [vmem:[%s22 + $0x5cc] sm:$0xff]
    %v7822 = vld [vmem:[%s22 + $0x5d4] sm:$0xff]
    %v7823 = vld [vmem:[%s22 + $0x5dc] sm:$0xff]
    %v7824 = vld [vmem:[%s22 + $0x5e4] sm:$0xf]
    %v7825 = vld [vmem:[%s22 + $0x5e8] sm:$0xff]
    %v7826 = vld [vmem:[%s22 + $0x5f0] sm:$0xff]
    %v7827 = vld [vmem:[%s22 + $0x5f8] sm:$0xff]
    %v7828 = vld [vmem:[%s22 + $0x600] sm:$0xf]
    %v7829 = vld [vmem:[%s22 + $0x604] sm:$0xff]
    %v7830 = vld [vmem:[%s22 + $0x60c] sm:$0xff]
    %v7831 = vld [vmem:[%s22 + $0x614] sm:$0xff]
    %v7832 = vld [vmem:[%s22 + $0x61c] sm:$0xf]
    %v7833 = vld [vmem:[%s22 + $0x620] sm:$0xff]
    %v7834 = vld [vmem:[%s22 + $0x628] sm:$0xff]
    %v7835 = vld [vmem:[%s22 + $0x630] sm:$0xff]
    %v7836 = vld [vmem:[%s22 + $0x638] sm:$0xf]
    %v7837 = vld [vmem:[%s22 + $0x63c] sm:$0xff]
    %v7838 = vld [vmem:[%s22 + $0x644] sm:$0xff]
    %v7839 = vld [vmem:[%s22 + $0x64c] sm:$0xff]
    %v7840 = vld [vmem:[%s22 + $0x654] sm:$0xf]
    %v7841 = vld [vmem:[%s22 + $0x658] sm:$0xff]
    %v7842 = vld [vmem:[%s22 + $0x660] sm:$0xff]
    %v7843 = vld [vmem:[%s22 + $0x668] sm:$0xff]
    %v7844 = vld [vmem:[%s22 + $0x670] sm:$0xf]
    %v7845 = vld [vmem:[%s22 + $0x674] sm:$0xff]
    %v7846 = vld [vmem:[%s22 + $0x67c] sm:$0xff]
    %v7847 = vld [vmem:[%s22 + $0x684] sm:$0xff]
    %v7848 = vld [vmem:[%s22 + $0x68c] sm:$0xf]
    %v7849 = vld [vmem:[%s22 + $0x690] sm:$0xff]
    %v7850 = vld [vmem:[%s22 + $0x698] sm:$0xff]
    %v7851 = vld [vmem:[%s22 + $0x6a0] sm:$0xff]
    %v7852 = vld [vmem:[%s22 + $0x6a8] sm:$0xf]
    %v7853 = vld [vmem:[%s22 + $0x6ac] sm:$0xff]
    %v7854 = vld [vmem:[%s22 + $0x6b4] sm:$0xff]
    %v7855 = vld [vmem:[%s22 + $0x6bc] sm:$0xff]
    %v7856 = vld [vmem:[%s22 + $0x6c4] sm:$0xf]
    %v7857 = vld [vmem:[%s22 + $0x6c8] sm:$0xff]
    %v7858 = vld [vmem:[%s22 + $0x6d0] sm:$0xff]
    %v7859 = vld [vmem:[%s22 + $0x6d8] sm:$0xff]
    %v7860 = vld [vmem:[%s22 + $0x6e0] sm:$0xf]
    %v7861 = vld [vmem:[%s22 + $0x6e4] sm:$0xff]
    %v7862 = vld [vmem:[%s22 + $0x6ec] sm:$0xff]
    %v7863 = vld [vmem:[%s22 + $0x6f4] sm:$0xff]
    %v7864 = vld [vmem:[%s22 + $0x6fc] sm:$0xf]
    %v7865 = vld [vmem:[%s23] sm:$0x7f]
    %v7867 = vperm.slane %v7865, 0
    %v7868 = vperm.slane %v7865, 1
    %v7869 = vperm.slane %v7865, 2
    %v7870 = vperm.slane %v7865, 3
    %v7871 = vperm.slane %v7865, 4
    %v7872 = vperm.slane %v7865, 5
    %v7873 = vperm.slane %v7865, 6
    %v8137 = vunpack.c.l.b16 %v7609
    %v8138 = vunpack.c.h.b16 %v7609
    %v8139 = vunpack.c.l.b16 %v7610
    %v8140 = vunpack.c.h.b16 %v7610
    %v8141 = vunpack.c.l.b16 %v7611
    %v8142 = vunpack.c.h.b16 %v7611
    %v8143 = vunpack.c.l.b16 %v7612
    %v8144 = vunpack.c.l.b16 %v7613
    %v8145 = vunpack.c.h.b16 %v7613
    %v8146 = vunpack.c.l.b16 %v7614
    %v8147 = vunpack.c.h.b16 %v7614
    %v8148 = vunpack.c.l.b16 %v7615
    %v8149 = vunpack.c.h.b16 %v7615
    %v8150 = vunpack.c.l.b16 %v7616
    %v8151 = vunpack.c.l.b16 %v7617
    %v8152 = vunpack.c.h.b16 %v7617
    %v8153 = vunpack.c.l.b16 %v7618
    %v8154 = vunpack.c.h.b16 %v7618
    %v8155 = vunpack.c.l.b16 %v7619
    %v8156 = vunpack.c.h.b16 %v7619
    %v8157 = vunpack.c.l.b16 %v7620
    %v8158 = vunpack.c.l.b16 %v7621
    %v8159 = vunpack.c.h.b16 %v7621
    %v8160 = vunpack.c.l.b16 %v7622
    %v8161 = vunpack.c.h.b16 %v7622
    %v8162 = vunpack.c.l.b16 %v7623
    %v8163 = vunpack.c.h.b16 %v7623
    %v8164 = vunpack.c.l.b16 %v7624
    %v8165 = vunpack.c.l.b16 %v7625
    %v8166 = vunpack.c.h.b16 %v7625
    %v8167 = vunpack.c.l.b16 %v7626
    %v8168 = vunpack.c.h.b16 %v7626
    %v8169 = vunpack.c.l.b16 %v7627
    %v8170 = vunpack.c.h.b16 %v7627
    %v8171 = vunpack.c.l.b16 %v7628
    %v8172 = vunpack.c.l.b16 %v7629
    %v8173 = vunpack.c.h.b16 %v7629
    %v8174 = vunpack.c.l.b16 %v7630
    %v8175 = vunpack.c.h.b16 %v7630
    %v8176 = vunpack.c.l.b16 %v7631
    %v8177 = vunpack.c.h.b16 %v7631
    %v8178 = vunpack.c.l.b16 %v7632
    %v8179 = vunpack.c.l.b16 %v7633
    %v8180 = vunpack.c.h.b16 %v7633
    %v8181 = vunpack.c.l.b16 %v7634
    %v8182 = vunpack.c.h.b16 %v7634
    %v8183 = vunpack.c.l.b16 %v7635
    %v8184 = vunpack.c.h.b16 %v7635
    %v8185 = vunpack.c.l.b16 %v7636
    %v8186 = vunpack.c.l.b16 %v7637
    %v8187 = vunpack.c.h.b16 %v7637
    %v8188 = vunpack.c.l.b16 %v7638
    %v8189 = vunpack.c.h.b16 %v7638
    %v8190 = vunpack.c.l.b16 %v7639
    %v8191 = vunpack.c.h.b16 %v7639
    %v8192 = vunpack.c.l.b16 %v7640
    %v8193 = vunpack.c.l.b16 %v7641
    %v8194 = vunpack.c.h.b16 %v7641
    %v8195 = vunpack.c.l.b16 %v7642
    %v8196 = vunpack.c.h.b16 %v7642
    %v8197 = vunpack.c.l.b16 %v7643
    %v8198 = vunpack.c.h.b16 %v7643
    %v8199 = vunpack.c.l.b16 %v7644
    %v8200 = vunpack.c.l.b16 %v7645
    %v8201 = vunpack.c.h.b16 %v7645
    %v8202 = vunpack.c.l.b16 %v7646
    %v8203 = vunpack.c.h.b16 %v7646
    %v8204 = vunpack.c.l.b16 %v7647
    %v8205 = vunpack.c.h.b16 %v7647
    %v8206 = vunpack.c.l.b16 %v7648
    %v8207 = vunpack.c.l.b16 %v7649
    %v8208 = vunpack.c.h.b16 %v7649
    %v8209 = vunpack.c.l.b16 %v7650
    %v8210 = vunpack.c.h.b16 %v7650
    %v8211 = vunpack.c.l.b16 %v7651
    %v8212 = vunpack.c.h.b16 %v7651
    %v8213 = vunpack.c.l.b16 %v7652
    %v8214 = vunpack.c.l.b16 %v7653
    %v8215 = vunpack.c.h.b16 %v7653
    %v8216 = vunpack.c.l.b16 %v7654
    %v8217 = vunpack.c.h.b16 %v7654
    %v8218 = vunpack.c.l.b16 %v7655
    %v8219 = vunpack.c.h.b16 %v7655
    %v8220 = vunpack.c.l.b16 %v7656
    %v8221 = vunpack.c.l.b16 %v7657
    %v8222 = vunpack.c.h.b16 %v7657
    %v8223 = vunpack.c.l.b16 %v7658
    %v8224 = vunpack.c.h.b16 %v7658
    %v8225 = vunpack.c.l.b16 %v7659
    %v8226 = vunpack.c.h.b16 %v7659
    %v8227 = vunpack.c.l.b16 %v7660
    %v8228 = vunpack.c.l.b16 %v7661
    %v8229 = vunpack.c.h.b16 %v7661
    %v8230 = vunpack.c.l.b16 %v7662
    %v8231 = vunpack.c.h.b16 %v7662
    %v8232 = vunpack.c.l.b16 %v7663
    %v8233 = vunpack.c.h.b16 %v7663
    %v8234 = vunpack.c.l.b16 %v7664
    %v8235 = vunpack.c.l.b16 %v7665
    %v8236 = vunpack.c.h.b16 %v7665
    %v8237 = vunpack.c.l.b16 %v7666
    %v8238 = vunpack.c.h.b16 %v7666
    %v8239 = vunpack.c.l.b16 %v7667
    %v8240 = vunpack.c.h.b16 %v7667
    %v8241 = vunpack.c.l.b16 %v7668
    %v8242 = vunpack.c.l.b16 %v7669
    %v8243 = vunpack.c.h.b16 %v7669
    %v8244 = vunpack.c.l.b16 %v7670
    %v8245 = vunpack.c.h.b16 %v7670
    %v8246 = vunpack.c.l.b16 %v7671
    %v8247 = vunpack.c.h.b16 %v7671
    %v8248 = vunpack.c.l.b16 %v7672
    %v8249 = vunpack.c.l.b16 %v7673
    %v8250 = vunpack.c.h.b16 %v7673
    %v8251 = vunpack.c.l.b16 %v7674
    %v8252 = vunpack.c.h.b16 %v7674
    %v8253 = vunpack.c.l.b16 %v7675
    %v8254 = vunpack.c.h.b16 %v7675
    %v8255 = vunpack.c.l.b16 %v7676
    %v8256 = vunpack.c.l.b16 %v7677
    %v8257 = vunpack.c.h.b16 %v7677
    %v8258 = vunpack.c.l.b16 %v7678
    %v8259 = vunpack.c.h.b16 %v7678
    %v8260 = vunpack.c.l.b16 %v7679
    %v8261 = vunpack.c.h.b16 %v7679
    %v8262 = vunpack.c.l.b16 %v7680
    %v8263 = vunpack.c.l.b16 %v7681
    %v8264 = vunpack.c.h.b16 %v7681
    %v8265 = vunpack.c.l.b16 %v7682
    %v8266 = vunpack.c.h.b16 %v7682
    %v8267 = vunpack.c.l.b16 %v7683
    %v8268 = vunpack.c.h.b16 %v7683
    %v8269 = vunpack.c.l.b16 %v7684
    %v8270 = vunpack.c.l.b16 %v7685
    %v8271 = vunpack.c.h.b16 %v7685
    %v8272 = vunpack.c.l.b16 %v7686
    %v8273 = vunpack.c.h.b16 %v7686
    %v8274 = vunpack.c.l.b16 %v7687
    %v8275 = vunpack.c.h.b16 %v7687
    %v8276 = vunpack.c.l.b16 %v7688
    %v8277 = vunpack.c.l.b16 %v7689
    %v8278 = vunpack.c.h.b16 %v7689
    %v8279 = vunpack.c.l.b16 %v7690
    %v8280 = vunpack.c.h.b16 %v7690
    %v8281 = vunpack.c.l.b16 %v7691
    %v8282 = vunpack.c.h.b16 %v7691
    %v8283 = vunpack.c.l.b16 %v7692
    %v8284 = vunpack.c.l.b16 %v7693
    %v8285 = vunpack.c.h.b16 %v7693
    %v8286 = vunpack.c.l.b16 %v7694
    %v8287 = vunpack.c.h.b16 %v7694
    %v8288 = vunpack.c.l.b16 %v7695
    %v8289 = vunpack.c.h.b16 %v7695
    %v8290 = vunpack.c.l.b16 %v7696
    %v8291 = vunpack.c.l.b16 %v7697
    %v8292 = vunpack.c.h.b16 %v7697
    %v8293 = vunpack.c.l.b16 %v7698
    %v8294 = vunpack.c.h.b16 %v7698
    %v8295 = vunpack.c.l.b16 %v7699
    %v8296 = vunpack.c.h.b16 %v7699
    %v8297 = vunpack.c.l.b16 %v7700
    %v8298 = vunpack.c.l.b16 %v7701
    %v8299 = vunpack.c.h.b16 %v7701
    %v8300 = vunpack.c.l.b16 %v7702
    %v8301 = vunpack.c.h.b16 %v7702
    %v8302 = vunpack.c.l.b16 %v7703
    %v8303 = vunpack.c.h.b16 %v7703
    %v8304 = vunpack.c.l.b16 %v7704
    %v8305 = vunpack.c.l.b16 %v7705
    %v8306 = vunpack.c.h.b16 %v7705
    %v8307 = vunpack.c.l.b16 %v7706
    %v8308 = vunpack.c.h.b16 %v7706
    %v8309 = vunpack.c.l.b16 %v7707
    %v8310 = vunpack.c.h.b16 %v7707
    %v8311 = vunpack.c.l.b16 %v7708
    %v8312 = vunpack.c.l.b16 %v7709
    %v8313 = vunpack.c.h.b16 %v7709
    %v8314 = vunpack.c.l.b16 %v7710
    %v8315 = vunpack.c.h.b16 %v7710
    %v8316 = vunpack.c.l.b16 %v7711
    %v8317 = vunpack.c.h.b16 %v7711
    %v8318 = vunpack.c.l.b16 %v7712
    %v8319 = vunpack.c.l.b16 %v7713
    %v8320 = vunpack.c.h.b16 %v7713
    %v8321 = vunpack.c.l.b16 %v7714
    %v8322 = vunpack.c.h.b16 %v7714
    %v8323 = vunpack.c.l.b16 %v7715
    %v8324 = vunpack.c.h.b16 %v7715
    %v8325 = vunpack.c.l.b16 %v7716
    %v8326 = vunpack.c.l.b16 %v7717
    %v8327 = vunpack.c.h.b16 %v7717
    %v8328 = vunpack.c.l.b16 %v7718
    %v8329 = vunpack.c.h.b16 %v7718
    %v8330 = vunpack.c.l.b16 %v7719
    %v8331 = vunpack.c.h.b16 %v7719
    %v8332 = vunpack.c.l.b16 %v7720
    %v8333 = vunpack.c.l.b16 %v7721
    %v8334 = vunpack.c.h.b16 %v7721
    %v8335 = vunpack.c.l.b16 %v7722
    %v8336 = vunpack.c.h.b16 %v7722
    %v8337 = vunpack.c.l.b16 %v7723
    %v8338 = vunpack.c.h.b16 %v7723
    %v8339 = vunpack.c.l.b16 %v7724
    %v8340 = vunpack.c.l.b16 %v7725
    %v8341 = vunpack.c.h.b16 %v7725
    %v8342 = vunpack.c.l.b16 %v7726
    %v8343 = vunpack.c.h.b16 %v7726
    %v8344 = vunpack.c.l.b16 %v7727
    %v8345 = vunpack.c.h.b16 %v7727
    %v8346 = vunpack.c.l.b16 %v7728
    %v8347 = vunpack.c.l.b16 %v7729
    %v8348 = vunpack.c.h.b16 %v7729
    %v8349 = vunpack.c.l.b16 %v7730
    %v8350 = vunpack.c.h.b16 %v7730
    %v8351 = vunpack.c.l.b16 %v7731
    %v8352 = vunpack.c.h.b16 %v7731
    %v8353 = vunpack.c.l.b16 %v7732
    %v8354 = vunpack.c.l.b16 %v7733
    %v8355 = vunpack.c.h.b16 %v7733
    %v8356 = vunpack.c.l.b16 %v7734
    %v8357 = vunpack.c.h.b16 %v7734
    %v8358 = vunpack.c.l.b16 %v7735
    %v8359 = vunpack.c.h.b16 %v7735
    %v8360 = vunpack.c.l.b16 %v7736
    %v8361 = vunpack.c.l.b16 %v7737
    %v8362 = vunpack.c.h.b16 %v7737
    %v8363 = vunpack.c.l.b16 %v7738
    %v8364 = vunpack.c.h.b16 %v7738
    %v8365 = vunpack.c.l.b16 %v7739
    %v8366 = vunpack.c.h.b16 %v7739
    %v8367 = vunpack.c.l.b16 %v7740
    %v8368 = vunpack.c.l.b16 %v7741
    %v8369 = vunpack.c.h.b16 %v7741
    %v8370 = vunpack.c.l.b16 %v7742
    %v8371 = vunpack.c.h.b16 %v7742
    %v8372 = vunpack.c.l.b16 %v7743
    %v8373 = vunpack.c.h.b16 %v7743
    %v8374 = vunpack.c.l.b16 %v7744
    %v8375 = vunpack.c.l.b16 %v7745
    %v8376 = vunpack.c.h.b16 %v7745
    %v8377 = vunpack.c.l.b16 %v7746
    %v8378 = vunpack.c.h.b16 %v7746
    %v8379 = vunpack.c.l.b16 %v7747
    %v8380 = vunpack.c.h.b16 %v7747
    %v8381 = vunpack.c.l.b16 %v7748
    %v8382 = vunpack.c.l.b16 %v7749
    %v8383 = vunpack.c.h.b16 %v7749
    %v8384 = vunpack.c.l.b16 %v7750
    %v8385 = vunpack.c.h.b16 %v7750
    %v8386 = vunpack.c.l.b16 %v7751
    %v8387 = vunpack.c.h.b16 %v7751
    %v8388 = vunpack.c.l.b16 %v7752
    %v8389 = vunpack.c.l.b16 %v7753
    %v8390 = vunpack.c.h.b16 %v7753
    %v8391 = vunpack.c.l.b16 %v7754
    %v8392 = vunpack.c.h.b16 %v7754
    %v8393 = vunpack.c.l.b16 %v7755
    %v8394 = vunpack.c.h.b16 %v7755
    %v8395 = vunpack.c.l.b16 %v7756
    %v8396 = vunpack.c.l.b16 %v7757
    %v8397 = vunpack.c.h.b16 %v7757
    %v8398 = vunpack.c.l.b16 %v7758
    %v8399 = vunpack.c.h.b16 %v7758
    %v8400 = vunpack.c.l.b16 %v7759
    %v8401 = vunpack.c.h.b16 %v7759
    %v8402 = vunpack.c.l.b16 %v7760
    %v8403 = vunpack.c.l.b16 %v7761
    %v8404 = vunpack.c.h.b16 %v7761
    %v8405 = vunpack.c.l.b16 %v7762
    %v8406 = vunpack.c.h.b16 %v7762
    %v8407 = vunpack.c.l.b16 %v7763
    %v8408 = vunpack.c.h.b16 %v7763
    %v8409 = vunpack.c.l.b16 %v7764
    %v8410 = vunpack.c.l.b16 %v7765
    %v8411 = vunpack.c.h.b16 %v7765
    %v8412 = vunpack.c.l.b16 %v7766
    %v8413 = vunpack.c.h.b16 %v7766
    %v8414 = vunpack.c.l.b16 %v7767
    %v8415 = vunpack.c.h.b16 %v7767
    %v8416 = vunpack.c.l.b16 %v7768
    %v8417 = vunpack.c.l.b16 %v7769
    %v8418 = vunpack.c.h.b16 %v7769
    %v8419 = vunpack.c.l.b16 %v7770
    %v8420 = vunpack.c.h.b16 %v7770
    %v8421 = vunpack.c.l.b16 %v7771
    %v8422 = vunpack.c.h.b16 %v7771
    %v8423 = vunpack.c.l.b16 %v7772
    %v8424 = vunpack.c.l.b16 %v7773
    %v8425 = vunpack.c.h.b16 %v7773
    %v8426 = vunpack.c.l.b16 %v7774
    %v8427 = vunpack.c.h.b16 %v7774
    %v8428 = vunpack.c.l.b16 %v7775
    %v8429 = vunpack.c.h.b16 %v7775
    %v8430 = vunpack.c.l.b16 %v7776
    %v8431 = vunpack.c.l.b16 %v7777
    %v8432 = vunpack.c.h.b16 %v7777
    %v8433 = vunpack.c.l.b16 %v7778
    %v8434 = vunpack.c.h.b16 %v7778
    %v8435 = vunpack.c.l.b16 %v7779
    %v8436 = vunpack.c.h.b16 %v7779
    %v8437 = vunpack.c.l.b16 %v7780
    %v8438 = vunpack.c.l.b16 %v7781
    %v8439 = vunpack.c.h.b16 %v7781
    %v8440 = vunpack.c.l.b16 %v7782
    %v8441 = vunpack.c.h.b16 %v7782
    %v8442 = vunpack.c.l.b16 %v7783
    %v8443 = vunpack.c.h.b16 %v7783
    %v8444 = vunpack.c.l.b16 %v7784
    %v8445 = vunpack.c.l.b16 %v7785
    %v8446 = vunpack.c.h.b16 %v7785
    %v8447 = vunpack.c.l.b16 %v7786
    %v8448 = vunpack.c.h.b16 %v7786
    %v8449 = vunpack.c.l.b16 %v7787
    %v8450 = vunpack.c.h.b16 %v7787
    %v8451 = vunpack.c.l.b16 %v7788
    %v8452 = vunpack.c.l.b16 %v7789
    %v8453 = vunpack.c.h.b16 %v7789
    %v8454 = vunpack.c.l.b16 %v7790
    %v8455 = vunpack.c.h.b16 %v7790
    %v8456 = vunpack.c.l.b16 %v7791
    %v8457 = vunpack.c.h.b16 %v7791
    %v8458 = vunpack.c.l.b16 %v7792
    %v8459 = vunpack.c.l.b16 %v7793
    %v8460 = vunpack.c.h.b16 %v7793
    %v8461 = vunpack.c.l.b16 %v7794
    %v8462 = vunpack.c.h.b16 %v7794
    %v8463 = vunpack.c.l.b16 %v7795
    %v8464 = vunpack.c.h.b16 %v7795
    %v8465 = vunpack.c.l.b16 %v7796
    %v8466 = vunpack.c.l.b16 %v7797
    %v8467 = vunpack.c.h.b16 %v7797
    %v8468 = vunpack.c.l.b16 %v7798
    %v8469 = vunpack.c.h.b16 %v7798
    %v8470 = vunpack.c.l.b16 %v7799
    %v8471 = vunpack.c.h.b16 %v7799
    %v8472 = vunpack.c.l.b16 %v7800
    %v8473 = vunpack.c.l.b16 %v7801
    %v8474 = vunpack.c.h.b16 %v7801
    %v8475 = vunpack.c.l.b16 %v7802
    %v8476 = vunpack.c.h.b16 %v7802
    %v8477 = vunpack.c.l.b16 %v7803
    %v8478 = vunpack.c.h.b16 %v7803
    %v8479 = vunpack.c.l.b16 %v7804
    %v8480 = vunpack.c.l.b16 %v7805
    %v8481 = vunpack.c.h.b16 %v7805
    %v8482 = vunpack.c.l.b16 %v7806
    %v8483 = vunpack.c.h.b16 %v7806
    %v8484 = vunpack.c.l.b16 %v7807
    %v8485 = vunpack.c.h.b16 %v7807
    %v8486 = vunpack.c.l.b16 %v7808
    %v8487 = vunpack.c.l.b16 %v7809
    %v8488 = vunpack.c.h.b16 %v7809
    %v8489 = vunpack.c.l.b16 %v7810
    %v8490 = vunpack.c.h.b16 %v7810
    %v8491 = vunpack.c.l.b16 %v7811
    %v8492 = vunpack.c.h.b16 %v7811
    %v8493 = vunpack.c.l.b16 %v7812
    %v8494 = vunpack.c.l.b16 %v7813
    %v8495 = vunpack.c.h.b16 %v7813
    %v8496 = vunpack.c.l.b16 %v7814
    %v8497 = vunpack.c.h.b16 %v7814
    %v8498 = vunpack.c.l.b16 %v7815
    %v8499 = vunpack.c.h.b16 %v7815
    %v8500 = vunpack.c.l.b16 %v7816
    %v8501 = vunpack.c.l.b16 %v7817
    %v8502 = vunpack.c.h.b16 %v7817
    %v8503 = vunpack.c.l.b16 %v7818
    %v8504 = vunpack.c.h.b16 %v7818
    %v8505 = vunpack.c.l.b16 %v7819
    %v8506 = vunpack.c.h.b16 %v7819
    %v8507 = vunpack.c.l.b16 %v7820
    %v8508 = vunpack.c.l.b16 %v7821
    %v8509 = vunpack.c.h.b16 %v7821
    %v8510 = vunpack.c.l.b16 %v7822
    %v8511 = vunpack.c.h.b16 %v7822
    %v8512 = vunpack.c.l.b16 %v7823
    %v8513 = vunpack.c.h.b16 %v7823
    %v8514 = vunpack.c.l.b16 %v7824
    %v8515 = vunpack.c.l.b16 %v7825
    %v8516 = vunpack.c.h.b16 %v7825
    %v8517 = vunpack.c.l.b16 %v7826
    %v8518 = vunpack.c.h.b16 %v7826
    %v8519 = vunpack.c.l.b16 %v7827
    %v8520 = vunpack.c.h.b16 %v7827
    %v8521 = vunpack.c.l.b16 %v7828
    %v8522 = vunpack.c.l.b16 %v7829
    %v8523 = vunpack.c.h.b16 %v7829
    %v8524 = vunpack.c.l.b16 %v7830
    %v8525 = vunpack.c.h.b16 %v7830
    %v8526 = vunpack.c.l.b16 %v7831
    %v8527 = vunpack.c.h.b16 %v7831
    %v8528 = vunpack.c.l.b16 %v7832
    %v8529 = vunpack.c.l.b16 %v7833
    %v8530 = vunpack.c.h.b16 %v7833
    %v8531 = vunpack.c.l.b16 %v7834
    %v8532 = vunpack.c.h.b16 %v7834
    %v8533 = vunpack.c.l.b16 %v7835
    %v8534 = vunpack.c.h.b16 %v7835
    %v8535 = vunpack.c.l.b16 %v7836
    %v8536 = vunpack.c.l.b16 %v7837
    %v8537 = vunpack.c.h.b16 %v7837
    %v8538 = vunpack.c.l.b16 %v7838
    %v8539 = vunpack.c.h.b16 %v7838
    %v8540 = vunpack.c.l.b16 %v7839
    %v8541 = vunpack.c.h.b16 %v7839
    %v8542 = vunpack.c.l.b16 %v7840
    %v8543 = vunpack.c.l.b16 %v7841
    %v8544 = vunpack.c.h.b16 %v7841
    %v8545 = vunpack.c.l.b16 %v7842
    %v8546 = vunpack.c.h.b16 %v7842
    %v8547 = vunpack.c.l.b16 %v7843
    %v8548 = vunpack.c.h.b16 %v7843
    %v8549 = vunpack.c.l.b16 %v7844
    %v8550 = vunpack.c.l.b16 %v7845
    %v8551 = vunpack.c.h.b16 %v7845
    %v8552 = vunpack.c.l.b16 %v7846
    %v8553 = vunpack.c.h.b16 %v7846
    %v8554 = vunpack.c.l.b16 %v7847
    %v8555 = vunpack.c.h.b16 %v7847
    %v8556 = vunpack.c.l.b16 %v7848
    %v8557 = vunpack.c.l.b16 %v7849
    %v8558 = vunpack.c.h.b16 %v7849
    %v8559 = vunpack.c.l.b16 %v7850
    %v8560 = vunpack.c.h.b16 %v7850
    %v8561 = vunpack.c.l.b16 %v7851
    %v8562 = vunpack.c.h.b16 %v7851
    %v8563 = vunpack.c.l.b16 %v7852
    %v8564 = vunpack.c.l.b16 %v7853
    %v8565 = vunpack.c.h.b16 %v7853
    %v8566 = vunpack.c.l.b16 %v7854
    %v8567 = vunpack.c.h.b16 %v7854
    %v8568 = vunpack.c.l.b16 %v7855
    %v8569 = vunpack.c.h.b16 %v7855
    %v8570 = vunpack.c.l.b16 %v7856
    %v8571 = vunpack.c.l.b16 %v7857
    %v8572 = vunpack.c.h.b16 %v7857
    %v8573 = vunpack.c.l.b16 %v7858
    %v8574 = vunpack.c.h.b16 %v7858
    %v8575 = vunpack.c.l.b16 %v7859
    %v8576 = vunpack.c.h.b16 %v7859
    %v8577 = vunpack.c.l.b16 %v7860
    %v8578 = vunpack.c.l.b16 %v7861
    %v8579 = vunpack.c.h.b16 %v7861
    %v8580 = vunpack.c.l.b16 %v7862
    %v8581 = vunpack.c.h.b16 %v7862
    %v8582 = vunpack.c.l.b16 %v7863
    %v8583 = vunpack.c.h.b16 %v7863
    %v8584 = vunpack.c.l.b16 %v7864
    %v8585 = vpack.c.b16 %v8144, %v8137
    %v8586 = vpack.c.b16 %v8145, %v8138
    %v8587 = vpack.c.b16 %v8146, %v8139
    %v8588 = vpack.c.b16 %v8147, %v8140
    %v8589 = vpack.c.b16 %v8148, %v8141
    %v8590 = vpack.c.b16 %v8149, %v8142
    %v8591 = vpack.c.b16 %v8150, %v8143
    %v8592 = vpack.c.b16 %v8158, %v8151
    %v8593 = vpack.c.b16 %v8159, %v8152
    %v8594 = vpack.c.b16 %v8160, %v8153
    %v8595 = vpack.c.b16 %v8161, %v8154
    %v8596 = vpack.c.b16 %v8162, %v8155
    %v8597 = vpack.c.b16 %v8163, %v8156
    %v8598 = vpack.c.b16 %v8164, %v8157
    %v8599 = vpack.c.b16 %v8172, %v8165
    %v8600 = vpack.c.b16 %v8173, %v8166
    %v8601 = vpack.c.b16 %v8174, %v8167
    %v8602 = vpack.c.b16 %v8175, %v8168
    %v8603 = vpack.c.b16 %v8176, %v8169
    %v8604 = vpack.c.b16 %v8177, %v8170
    %v8605 = vpack.c.b16 %v8178, %v8171
    %v8606 = vpack.c.b16 %v8186, %v8179
    %v8607 = vpack.c.b16 %v8187, %v8180
    %v8608 = vpack.c.b16 %v8188, %v8181
    %v8609 = vpack.c.b16 %v8189, %v8182
    %v8610 = vpack.c.b16 %v8190, %v8183
    %v8611 = vpack.c.b16 %v8191, %v8184
    %v8612 = vpack.c.b16 %v8192, %v8185
    %v8613 = vpack.c.b16 %v8200, %v8193
    %v8614 = vpack.c.b16 %v8201, %v8194
    %v8615 = vpack.c.b16 %v8202, %v8195
    %v8616 = vpack.c.b16 %v8203, %v8196
    %v8617 = vpack.c.b16 %v8204, %v8197
    %v8618 = vpack.c.b16 %v8205, %v8198
    %v8619 = vpack.c.b16 %v8206, %v8199
    %v8620 = vpack.c.b16 %v8214, %v8207
    %v8621 = vpack.c.b16 %v8215, %v8208
    %v8622 = vpack.c.b16 %v8216, %v8209
    %v8623 = vpack.c.b16 %v8217, %v8210
    %v8624 = vpack.c.b16 %v8218, %v8211
    %v8625 = vpack.c.b16 %v8219, %v8212
    %v8626 = vpack.c.b16 %v8220, %v8213
    %v8627 = vpack.c.b16 %v8228, %v8221
    %v8628 = vpack.c.b16 %v8229, %v8222
    %v8629 = vpack.c.b16 %v8230, %v8223
    %v8630 = vpack.c.b16 %v8231, %v8224
    %v8631 = vpack.c.b16 %v8232, %v8225
    %v8632 = vpack.c.b16 %v8233, %v8226
    %v8633 = vpack.c.b16 %v8234, %v8227
    %v8634 = vpack.c.b16 %v8242, %v8235
    %v8635 = vpack.c.b16 %v8243, %v8236
    %v8636 = vpack.c.b16 %v8244, %v8237
    %v8637 = vpack.c.b16 %v8245, %v8238
    %v8638 = vpack.c.b16 %v8246, %v8239
    %v8639 = vpack.c.b16 %v8247, %v8240
    %v8640 = vpack.c.b16 %v8248, %v8241
    %v8641 = vpack.c.b16 %v8256, %v8249
    %v8642 = vpack.c.b16 %v8257, %v8250
    %v8643 = vpack.c.b16 %v8258, %v8251
    %v8644 = vpack.c.b16 %v8259, %v8252
    %v8645 = vpack.c.b16 %v8260, %v8253
    %v8646 = vpack.c.b16 %v8261, %v8254
    %v8647 = vpack.c.b16 %v8262, %v8255
    %v8648 = vpack.c.b16 %v8270, %v8263
    %v8649 = vpack.c.b16 %v8271, %v8264
    %v8650 = vpack.c.b16 %v8272, %v8265
    %v8651 = vpack.c.b16 %v8273, %v8266
    %v8652 = vpack.c.b16 %v8274, %v8267
    %v8653 = vpack.c.b16 %v8275, %v8268
    %v8654 = vpack.c.b16 %v8276, %v8269
    %v8655 = vpack.c.b16 %v8284, %v8277
    %v8656 = vpack.c.b16 %v8285, %v8278
    %v8657 = vpack.c.b16 %v8286, %v8279
    %v8658 = vpack.c.b16 %v8287, %v8280
    %v8659 = vpack.c.b16 %v8288, %v8281
    %v8660 = vpack.c.b16 %v8289, %v8282
    %v8661 = vpack.c.b16 %v8290, %v8283
    %v8662 = vpack.c.b16 %v8298, %v8291
    %v8663 = vpack.c.b16 %v8299, %v8292
    %v8664 = vpack.c.b16 %v8300, %v8293
    %v8665 = vpack.c.b16 %v8301, %v8294
    %v8666 = vpack.c.b16 %v8302, %v8295
    %v8667 = vpack.c.b16 %v8303, %v8296
    %v8668 = vpack.c.b16 %v8304, %v8297
    %v8669 = vpack.c.b16 %v8312, %v8305
    %v8670 = vpack.c.b16 %v8313, %v8306
    %v8671 = vpack.c.b16 %v8314, %v8307
    %v8672 = vpack.c.b16 %v8315, %v8308
    %v8673 = vpack.c.b16 %v8316, %v8309
    %v8674 = vpack.c.b16 %v8317, %v8310
    %v8675 = vpack.c.b16 %v8318, %v8311
    %v8676 = vpack.c.b16 %v8326, %v8319
    %v8677 = vpack.c.b16 %v8327, %v8320
    %v8678 = vpack.c.b16 %v8328, %v8321
    %v8679 = vpack.c.b16 %v8329, %v8322
    %v8680 = vpack.c.b16 %v8330, %v8323
    %v8681 = vpack.c.b16 %v8331, %v8324
    %v8682 = vpack.c.b16 %v8332, %v8325
    %v8683 = vpack.c.b16 %v8340, %v8333
    %v8684 = vpack.c.b16 %v8341, %v8334
    %v8685 = vpack.c.b16 %v8342, %v8335
    %v8686 = vpack.c.b16 %v8343, %v8336
    %v8687 = vpack.c.b16 %v8344, %v8337
    %v8688 = vpack.c.b16 %v8345, %v8338
    %v8689 = vpack.c.b16 %v8346, %v8339
    %v8690 = vpack.c.b16 %v8354, %v8347
    %v8691 = vpack.c.b16 %v8355, %v8348
    %v8692 = vpack.c.b16 %v8356, %v8349
    %v8693 = vpack.c.b16 %v8357, %v8350
    %v8694 = vpack.c.b16 %v8358, %v8351
    %v8695 = vpack.c.b16 %v8359, %v8352
    %v8696 = vpack.c.b16 %v8360, %v8353
    %v8697 = vpack.c.b16 %v8368, %v8361
    %v8698 = vpack.c.b16 %v8369, %v8362
    %v8699 = vpack.c.b16 %v8370, %v8363
    %v8700 = vpack.c.b16 %v8371, %v8364
    %v8701 = vpack.c.b16 %v8372, %v8365
    %v8702 = vpack.c.b16 %v8373, %v8366
    %v8703 = vpack.c.b16 %v8374, %v8367
    %v8704 = vpack.c.b16 %v8382, %v8375
    %v8705 = vpack.c.b16 %v8383, %v8376
    %v8706 = vpack.c.b16 %v8384, %v8377
    %v8707 = vpack.c.b16 %v8385, %v8378
    %v8708 = vpack.c.b16 %v8386, %v8379
    %v8709 = vpack.c.b16 %v8387, %v8380
    %v8710 = vpack.c.b16 %v8388, %v8381
    %v8711 = vpack.c.b16 %v8396, %v8389
    %v8712 = vpack.c.b16 %v8397, %v8390
    %v8713 = vpack.c.b16 %v8398, %v8391
    %v8714 = vpack.c.b16 %v8399, %v8392
    %v8715 = vpack.c.b16 %v8400, %v8393
    %v8716 = vpack.c.b16 %v8401, %v8394
    %v8717 = vpack.c.b16 %v8402, %v8395
    %v8718 = vpack.c.b16 %v8410, %v8403
    %v8719 = vpack.c.b16 %v8411, %v8404
    %v8720 = vpack.c.b16 %v8412, %v8405
    %v8721 = vpack.c.b16 %v8413, %v8406
    %v8722 = vpack.c.b16 %v8414, %v8407
    %v8723 = vpack.c.b16 %v8415, %v8408
    %v8724 = vpack.c.b16 %v8416, %v8409
    %v8725 = vpack.c.b16 %v8424, %v8417
    %v8726 = vpack.c.b16 %v8425, %v8418
    %v8727 = vpack.c.b16 %v8426, %v8419
    %v8728 = vpack.c.b16 %v8427, %v8420
    %v8729 = vpack.c.b16 %v8428, %v8421
    %v8730 = vpack.c.b16 %v8429, %v8422
    %v8731 = vpack.c.b16 %v8430, %v8423
    %v8732 = vpack.c.b16 %v8438, %v8431
    %v8733 = vpack.c.b16 %v8439, %v8432
    %v8734 = vpack.c.b16 %v8440, %v8433
    %v8735 = vpack.c.b16 %v8441, %v8434
    %v8736 = vpack.c.b16 %v8442, %v8435
    %v8737 = vpack.c.b16 %v8443, %v8436
    %v8738 = vpack.c.b16 %v8444, %v8437
    %v8739 = vpack.c.b16 %v8452, %v8445
    %v8740 = vpack.c.b16 %v8453, %v8446
    %v8741 = vpack.c.b16 %v8454, %v8447
    %v8742 = vpack.c.b16 %v8455, %v8448
    %v8743 = vpack.c.b16 %v8456, %v8449
    %v8744 = vpack.c.b16 %v8457, %v8450
    %v8745 = vpack.c.b16 %v8458, %v8451
    %v8746 = vpack.c.b16 %v8466, %v8459
    %v8747 = vpack.c.b16 %v8467, %v8460
    %v8748 = vpack.c.b16 %v8468, %v8461
    %v8749 = vpack.c.b16 %v8469, %v8462
    %v8750 = vpack.c.b16 %v8470, %v8463
    %v8751 = vpack.c.b16 %v8471, %v8464
    %v8752 = vpack.c.b16 %v8472, %v8465
    %v8753 = vpack.c.b16 %v8480, %v8473
    %v8754 = vpack.c.b16 %v8481, %v8474
    %v8755 = vpack.c.b16 %v8482, %v8475
    %v8756 = vpack.c.b16 %v8483, %v8476
    %v8757 = vpack.c.b16 %v8484, %v8477
    %v8758 = vpack.c.b16 %v8485, %v8478
    %v8759 = vpack.c.b16 %v8486, %v8479
    %v8760 = vpack.c.b16 %v8494, %v8487
    %v8761 = vpack.c.b16 %v8495, %v8488
    %v8762 = vpack.c.b16 %v8496, %v8489
    %v8763 = vpack.c.b16 %v8497, %v8490
    %v8764 = vpack.c.b16 %v8498, %v8491
    %v8765 = vpack.c.b16 %v8499, %v8492
    %v8766 = vpack.c.b16 %v8500, %v8493
    %v8767 = vpack.c.b16 %v8508, %v8501
    %v8768 = vpack.c.b16 %v8509, %v8502
    %v8769 = vpack.c.b16 %v8510, %v8503
    %v8770 = vpack.c.b16 %v8511, %v8504
    %v8771 = vpack.c.b16 %v8512, %v8505
    %v8772 = vpack.c.b16 %v8513, %v8506
    %v8773 = vpack.c.b16 %v8514, %v8507
    %v8774 = vpack.c.b16 %v8522, %v8515
    %v8775 = vpack.c.b16 %v8523, %v8516
    %v8776 = vpack.c.b16 %v8524, %v8517
    %v8777 = vpack.c.b16 %v8525, %v8518
    %v8778 = vpack.c.b16 %v8526, %v8519
    %v8779 = vpack.c.b16 %v8527, %v8520
    %v8780 = vpack.c.b16 %v8528, %v8521
    %v8781 = vpack.c.b16 %v8536, %v8529
    %v8782 = vpack.c.b16 %v8537, %v8530
    %v8783 = vpack.c.b16 %v8538, %v8531
    %v8784 = vpack.c.b16 %v8539, %v8532
    %v8785 = vpack.c.b16 %v8540, %v8533
    %v8786 = vpack.c.b16 %v8541, %v8534
    %v8787 = vpack.c.b16 %v8542, %v8535
    %v8788 = vpack.c.b16 %v8550, %v8543
    %v8789 = vpack.c.b16 %v8551, %v8544
    %v8790 = vpack.c.b16 %v8552, %v8545
    %v8791 = vpack.c.b16 %v8553, %v8546
    %v8792 = vpack.c.b16 %v8554, %v8547
    %v8793 = vpack.c.b16 %v8555, %v8548
    %v8794 = vpack.c.b16 %v8556, %v8549
    %v8795 = vpack.c.b16 %v8564, %v8557
    %v8796 = vpack.c.b16 %v8565, %v8558
    %v8797 = vpack.c.b16 %v8566, %v8559
    %v8798 = vpack.c.b16 %v8567, %v8560
    %v8799 = vpack.c.b16 %v8568, %v8561
    %v8800 = vpack.c.b16 %v8569, %v8562
    %v8801 = vpack.c.b16 %v8570, %v8563
    %v8802 = vpack.c.b16 %v8578, %v8571
    %v8803 = vpack.c.b16 %v8579, %v8572
    %v8804 = vpack.c.b16 %v8580, %v8573
    %v8805 = vpack.c.b16 %v8581, %v8574
    %v8806 = vpack.c.b16 %v8582, %v8575
    %v8807 = vpack.c.b16 %v8583, %v8576
    %v8808 = vpack.c.b16 %v8584, %v8577
    %9033 = vmatpush.bf16.msra.mxu0 %v8634
    %9034 = vmatpush.bf16.msra.mxu0 %v8627
    %9035 = vmatpush.bf16.msra.mxu0 %v8620
    %9036 = vmatpush.bf16.msra.mxu0 %v8613
    %9037 = vmatpush.bf16.msra.mxu0 %v8606
    %9038 = vmatpush.bf16.msra.mxu0 %v8599
    %9039 = vmatpush.bf16.msra.mxu0 %v8592
    %9040 = vmatpush.bf16.msra.mxu0 %v8585
    %9041 = vmatmul.bf16.gmra.mxu0 %v7577
    %v9042 = vpop.f32.mrf.mxu0
    %v9043 = vadd.f32 %v7867, %v9042
    %v9044 = vpop.f32.mrf.mxu0
    %v9045 = vadd.f32 %v7867, %v9044
    %9046 = vmatmul.bf16.gmra.mxu0 %v7581
    %v9047 = vpop.f32.mrf.mxu0
    %v9048 = vadd.f32 %v7867, %v9047
    %v9049 = vpop.f32.mrf.mxu0
    %v9050 = vadd.f32 %v7867, %v9049
    %9051 = vmatmul.bf16.gmra.mxu0 %v7585
    %v9052 = vpop.f32.mrf.mxu0
    %v9053 = vadd.f32 %v7867, %v9052
    %v9054 = vpop.f32.mrf.mxu0
    %v9055 = vadd.f32 %v7867, %v9054
    %9056 = vmatmul.bf16.gmra.mxu0 %v7589
    %v9057 = vpop.f32.mrf.mxu0
    %v9058 = vadd.f32 %v7867, %v9057
    %v9059 = vpop.f32.mrf.mxu0
    %v9060 = vadd.f32 %v7867, %v9059
    %9061 = vmatmul.bf16.gmra.mxu0 %v7593
    %v9062 = vpop.f32.mrf.mxu0
    %v9063 = vadd.f32 %v7867, %v9062
    %v9064 = vpop.f32.mrf.mxu0
    %v9065 = vadd.f32 %v7867, %v9064
    %9066 = vmatmul.bf16.gmra.mxu0 %v7597
    %v9067 = vpop.f32.mrf.mxu0
    %v9068 = vadd.f32 %v7867, %v9067
    %v9069 = vpop.f32.mrf.mxu0
    %v9070 = vadd.f32 %v7867, %v9069
    %9071 = vmatmul.bf16.gmra.mxu0 %v7601
    %v9072 = vpop.f32.mrf.mxu0
    %v9073 = vadd.f32 %v7867, %v9072
    %v9074 = vpop.f32.mrf.mxu0
    %v9075 = vadd.f32 %v7867, %v9074
    %9076 = vmatmul.bf16.gmra.mxu0 %v7605
    %v9077 = vpop.f32.mrf.mxu0
    %v9078 = vadd.f32 %v7867, %v9077
    %v9079 = vpop.f32.mrf.mxu0
    %v9080 = vadd.f32 %v7867, %v9079
    %9081 = vdwg.mxu0
    %9082 = vmatpush.bf16.msra.mxu0 %v8690
    %9083 = vmatpush.bf16.msra.mxu0 %v8683
    %9084 = vmatpush.bf16.msra.mxu0 %v8676
    %9085 = vmatpush.bf16.msra.mxu0 %v8669
    %9086 = vmatpush.bf16.msra.mxu0 %v8662
    %9087 = vmatpush.bf16.msra.mxu0 %v8655
    %9088 = vmatpush.bf16.msra.mxu0 %v8648
    %9089 = vmatpush.bf16.msra.mxu0 %v8641
    %9090 = vmatmul.bf16.gmra.mxu0 %v7578
    %v9091 = vpop.f32.mrf.mxu0
    %v9092 = vadd.f32 %v9043, %v9091
    %v9093 = vpop.f32.mrf.mxu0
    %v9094 = vadd.f32 %v9045, %v9093
    %9095 = vmatmul.bf16.gmra.mxu0 %v7582
    %v9096 = vpop.f32.mrf.mxu0
    %v9097 = vadd.f32 %v9048, %v9096
    %v9098 = vpop.f32.mrf.mxu0
    %v9099 = vadd.f32 %v9050, %v9098
    %9100 = vmatmul.bf16.gmra.mxu0 %v7586
    %v9101 = vpop.f32.mrf.mxu0
    %v9102 = vadd.f32 %v9053, %v9101
    %v9103 = vpop.f32.mrf.mxu0
    %v9104 = vadd.f32 %v9055, %v9103
    %9105 = vmatmul.bf16.gmra.mxu0 %v7590
    %v9106 = vpop.f32.mrf.mxu0
    %v9107 = vadd.f32 %v9058, %v9106
    %v9108 = vpop.f32.mrf.mxu0
    %v9109 = vadd.f32 %v9060, %v9108
    %9110 = vmatmul.bf16.gmra.mxu0 %v7594
    %v9111 = vpop.f32.mrf.mxu0
    %v9112 = vadd.f32 %v9063, %v9111
    %v9113 = vpop.f32.mrf.mxu0
    %v9114 = vadd.f32 %v9065, %v9113
    %9115 = vmatmul.bf16.gmra.mxu0 %v7598
    %v9116 = vpop.f32.mrf.mxu0
    %v9117 = vadd.f32 %v9068, %v9116
    %v9118 = vpop.f32.mrf.mxu0
    %v9119 = vadd.f32 %v9070, %v9118
    %9120 = vmatmul.bf16.gmra.mxu0 %v7602
    %v9121 = vpop.f32.mrf.mxu0
    %v9122 = vadd.f32 %v9073, %v9121
    %v9123 = vpop.f32.mrf.mxu0
    %v9124 = vadd.f32 %v9075, %v9123
    %9125 = vmatmul.bf16.gmra.mxu0 %v7606
    %v9126 = vpop.f32.mrf.mxu0
    %v9127 = vadd.f32 %v9078, %v9126
    %v9128 = vpop.f32.mrf.mxu0
    %v9129 = vadd.f32 %v9080, %v9128
    %9130 = vdwg.mxu0
    %9131 = vmatpush.bf16.msra.mxu0 %v8746
    %9132 = vmatpush.bf16.msra.mxu0 %v8739
    %9133 = vmatpush.bf16.msra.mxu0 %v8732
    %9134 = vmatpush.bf16.msra.mxu0 %v8725
    %9135 = vmatpush.bf16.msra.mxu0 %v8718
    %9136 = vmatpush.bf16.msra.mxu0 %v8711
    %9137 = vmatpush.bf16.msra.mxu0 %v8704
    %9138 = vmatpush.bf16.msra.mxu0 %v8697
    %9139 = vmatmul.bf16.gmra.mxu0 %v7579
    %v9140 = vpop.f32.mrf.mxu0
    %v9141 = vadd.f32 %v9092, %v9140
    %v9142 = vpop.f32.mrf.mxu0
    %v9143 = vadd.f32 %v9094, %v9142
    %9144 = vmatmul.bf16.gmra.mxu0 %v7583
    %v9145 = vpop.f32.mrf.mxu0
    %v9146 = vadd.f32 %v9097, %v9145
    %v9147 = vpop.f32.mrf.mxu0
    %v9148 = vadd.f32 %v9099, %v9147
    %9149 = vmatmul.bf16.gmra.mxu0 %v7587
    %v9150 = vpop.f32.mrf.mxu0
    %v9151 = vadd.f32 %v9102, %v9150
    %v9152 = vpop.f32.mrf.mxu0
    %v9153 = vadd.f32 %v9104, %v9152
    %9154 = vmatmul.bf16.gmra.mxu0 %v7591
    %v9155 = vpop.f32.mrf.mxu0
    %v9156 = vadd.f32 %v9107, %v9155
    %v9157 = vpop.f32.mrf.mxu0
    %v9158 = vadd.f32 %v9109, %v9157
    %9159 = vmatmul.bf16.gmra.mxu0 %v7595
    %v9160 = vpop.f32.mrf.mxu0
    %v9161 = vadd.f32 %v9112, %v9160
    %v9162 = vpop.f32.mrf.mxu0
    %v9163 = vadd.f32 %v9114, %v9162
    %9164 = vmatmul.bf16.gmra.mxu0 %v7599
    %v9165 = vpop.f32.mrf.mxu0
    %v9166 = vadd.f32 %v9117, %v9165
    %v9167 = vpop.f32.mrf.mxu0
    %v9168 = vadd.f32 %v9119, %v9167
    %9169 = vmatmul.bf16.gmra.mxu0 %v7603
    %v9170 = vpop.f32.mrf.mxu0
    %v9171 = vadd.f32 %v9122, %v9170
    %v9172 = vpop.f32.mrf.mxu0
    %v9173 = vadd.f32 %v9124, %v9172
    %9174 = vmatmul.bf16.gmra.mxu0 %v7607
    %v9175 = vpop.f32.mrf.mxu0
    %v9176 = vadd.f32 %v9127, %v9175
    %v9177 = vpop.f32.mrf.mxu0
    %v9178 = vadd.f32 %v9129, %v9177
    %9179 = vdwg.mxu0
    %9180 = vmatpush.bf16.msra.mxu0 %v8802
    %9181 = vmatpush.bf16.msra.mxu0 %v8795
    %9182 = vmatpush.bf16.msra.mxu0 %v8788
    %9183 = vmatpush.bf16.msra.mxu0 %v8781
    %9184 = vmatpush.bf16.msra.mxu0 %v8774
    %9185 = vmatpush.bf16.msra.mxu0 %v8767
    %9186 = vmatpush.bf16.msra.mxu0 %v8760
    %9187 = vmatpush.bf16.msra.mxu0 %v8753
    %9188 = vmatmul.bf16.gmra.mxu0 %v7580
    %v9189 = vpop.f32.mrf.mxu0
    %v9190 = vadd.f32 %v9141, %v9189
    %v9191 = vpop.f32.mrf.mxu0
    %v9192 = vadd.f32 %v9143, %v9191
    %9193 = vmatmul.bf16.gmra.mxu0 %v7584
    %v9194 = vpop.f32.mrf.mxu0
    %v9195 = vadd.f32 %v9146, %v9194
    %v9196 = vpop.f32.mrf.mxu0
    %v9197 = vadd.f32 %v9148, %v9196
    %9198 = vmatmul.bf16.gmra.mxu0 %v7588
    %v9199 = vpop.f32.mrf.mxu0
    %v9200 = vadd.f32 %v9151, %v9199
    %v9201 = vpop.f32.mrf.mxu0
    %v9202 = vadd.f32 %v9153, %v9201
    %9203 = vmatmul.bf16.gmra.mxu0 %v7592
    %v9204 = vpop.f32.mrf.mxu0
    %v9205 = vadd.f32 %v9156, %v9204
    %v9206 = vpop.f32.mrf.mxu0
    %v9207 = vadd.f32 %v9158, %v9206
    %9208 = vmatmul.bf16.gmra.mxu0 %v7596
    %v9209 = vpop.f32.mrf.mxu0
    %v9210 = vadd.f32 %v9161, %v9209
    %v9211 = vpop.f32.mrf.mxu0
    %v9212 = vadd.f32 %v9163, %v9211
    %9213 = vmatmul.bf16.gmra.mxu0 %v7600
    %v9214 = vpop.f32.mrf.mxu0
    %v9215 = vadd.f32 %v9166, %v9214
    %v9216 = vpop.f32.mrf.mxu0
    %v9217 = vadd.f32 %v9168, %v9216
    %9218 = vmatmul.bf16.gmra.mxu0 %v7604
    %v9219 = vpop.f32.mrf.mxu0
    %v9220 = vadd.f32 %v9171, %v9219
    %v9221 = vpop.f32.mrf.mxu0
    %v9222 = vadd.f32 %v9173, %v9221
    %9223 = vmatmul.bf16.gmra.mxu0 %v7608
    %v9224 = vpop.f32.mrf.mxu0
    %v9225 = vadd.f32 %v9176, %v9224
    %v9226 = vpop.f32.mrf.mxu0
    %v9227 = vadd.f32 %v9178, %v9226
    %9228 = vdwg.mxu0
    %9229 = vmatpush.bf16.msra.mxu0 %v8635
    %9230 = vmatpush.bf16.msra.mxu0 %v8628
    %9231 = vmatpush.bf16.msra.mxu0 %v8621
    %9232 = vmatpush.bf16.msra.mxu0 %v8614
    %9233 = vmatpush.bf16.msra.mxu0 %v8607
    %9234 = vmatpush.bf16.msra.mxu0 %v8600
    %9235 = vmatpush.bf16.msra.mxu0 %v8593
    %9236 = vmatpush.bf16.msra.mxu0 %v8586
    %9237 = vmatmul.bf16.gmra.mxu0 %v7577
    %v9238 = vpop.f32.mrf.mxu0
    %v9239 = vadd.f32 %v7868, %v9238
    %v9240 = vpop.f32.mrf.mxu0
    %v9241 = vadd.f32 %v7868, %v9240
    %9242 = vmatmul.bf16.gmra.mxu0 %v7581
    %v9243 = vpop.f32.mrf.mxu0
    %v9244 = vadd.f32 %v7868, %v9243
    %v9245 = vpop.f32.mrf.mxu0
    %v9246 = vadd.f32 %v7868, %v9245
    %9247 = vmatmul.bf16.gmra.mxu0 %v7585
    %v9248 = vpop.f32.mrf.mxu0
    %v9249 = vadd.f32 %v7868, %v9248
    %v9250 = vpop.f32.mrf.mxu0
    %v9251 = vadd.f32 %v7868, %v9250
    %9252 = vmatmul.bf16.gmra.mxu0 %v7589
    %v9253 = vpop.f32.mrf.mxu0
    %v9254 = vadd.f32 %v7868, %v9253
    %v9255 = vpop.f32.mrf.mxu0
    %v9256 = vadd.f32 %v7868, %v9255
    %9257 = vmatmul.bf16.gmra.mxu0 %v7593
    %v9258 = vpop.f32.mrf.mxu0
    %v9259 = vadd.f32 %v7868, %v9258
    %v9260 = vpop.f32.mrf.mxu0
    %v9261 = vadd.f32 %v7868, %v9260
    %9262 = vmatmul.bf16.gmra.mxu0 %v7597
    %v9263 = vpop.f32.mrf.mxu0
    %v9264 = vadd.f32 %v7868, %v9263
    %v9265 = vpop.f32.mrf.mxu0
    %v9266 = vadd.f32 %v7868, %v9265
    %9267 = vmatmul.bf16.gmra.mxu0 %v7601
    %v9268 = vpop.f32.mrf.mxu0
    %v9269 = vadd.f32 %v7868, %v9268
    %v9270 = vpop.f32.mrf.mxu0
    %v9271 = vadd.f32 %v7868, %v9270
    %9272 = vmatmul.bf16.gmra.mxu0 %v7605
    %v9273 = vpop.f32.mrf.mxu0
    %v9274 = vadd.f32 %v7868, %v9273
    %v9275 = vpop.f32.mrf.mxu0
    %v9276 = vadd.f32 %v7868, %v9275
    %9277 = vdwg.mxu0
    %9278 = vmatpush.bf16.msra.mxu0 %v8691
    %9279 = vmatpush.bf16.msra.mxu0 %v8684
    %9280 = vmatpush.bf16.msra.mxu0 %v8677
    %9281 = vmatpush.bf16.msra.mxu0 %v8670
    %9282 = vmatpush.bf16.msra.mxu0 %v8663
    %9283 = vmatpush.bf16.msra.mxu0 %v8656
    %9284 = vmatpush.bf16.msra.mxu0 %v8649
    %9285 = vmatpush.bf16.msra.mxu0 %v8642
    %9286 = vmatmul.bf16.gmra.mxu0 %v7578
    %v9287 = vpop.f32.mrf.mxu0
    %v9288 = vadd.f32 %v9239, %v9287
    %v9289 = vpop.f32.mrf.mxu0
    %v9290 = vadd.f32 %v9241, %v9289
    %9291 = vmatmul.bf16.gmra.mxu0 %v7582
    %v9292 = vpop.f32.mrf.mxu0
    %v9293 = vadd.f32 %v9244, %v9292
    %v9294 = vpop.f32.mrf.mxu0
    %v9295 = vadd.f32 %v9246, %v9294
    %9296 = vmatmul.bf16.gmra.mxu0 %v7586
    %v9297 = vpop.f32.mrf.mxu0
    %v9298 = vadd.f32 %v9249, %v9297
    %v9299 = vpop.f32.mrf.mxu0
    %v9300 = vadd.f32 %v9251, %v9299
    %9301 = vmatmul.bf16.gmra.mxu0 %v7590
    %v9302 = vpop.f32.mrf.mxu0
    %v9303 = vadd.f32 %v9254, %v9302
    %v9304 = vpop.f32.mrf.mxu0
    %v9305 = vadd.f32 %v9256, %v9304
    %9306 = vmatmul.bf16.gmra.mxu0 %v7594
    %v9307 = vpop.f32.mrf.mxu0
    %v9308 = vadd.f32 %v9259, %v9307
    %v9309 = vpop.f32.mrf.mxu0
    %v9310 = vadd.f32 %v9261, %v9309
    %9311 = vmatmul.bf16.gmra.mxu0 %v7598
    %v9312 = vpop.f32.mrf.mxu0
    %v9313 = vadd.f32 %v9264, %v9312
    %v9314 = vpop.f32.mrf.mxu0
    %v9315 = vadd.f32 %v9266, %v9314
    %9316 = vmatmul.bf16.gmra.mxu0 %v7602
    %v9317 = vpop.f32.mrf.mxu0
    %v9318 = vadd.f32 %v9269, %v9317
    %v9319 = vpop.f32.mrf.mxu0
    %v9320 = vadd.f32 %v9271, %v9319
    %9321 = vmatmul.bf16.gmra.mxu0 %v7606
    %v9322 = vpop.f32.mrf.mxu0
    %v9323 = vadd.f32 %v9274, %v9322
    %v9324 = vpop.f32.mrf.mxu0
    %v9325 = vadd.f32 %v9276, %v9324
    %9326 = vdwg.mxu0
    %9327 = vmatpush.bf16.msra.mxu0 %v8747
    %9328 = vmatpush.bf16.msra.mxu0 %v8740
    %9329 = vmatpush.bf16.msra.mxu0 %v8733
    %9330 = vmatpush.bf16.msra.mxu0 %v8726
    %9331 = vmatpush.bf16.msra.mxu0 %v8719
    %9332 = vmatpush.bf16.msra.mxu0 %v8712
    %9333 = vmatpush.bf16.msra.mxu0 %v8705
    %9334 = vmatpush.bf16.msra.mxu0 %v8698
    %9335 = vmatmul.bf16.gmra.mxu0 %v7579
    %v9336 = vpop.f32.mrf.mxu0
    %v9337 = vadd.f32 %v9288, %v9336
    %v9338 = vpop.f32.mrf.mxu0
    %v9339 = vadd.f32 %v9290, %v9338
    %9340 = vmatmul.bf16.gmra.mxu0 %v7583
    %v9341 = vpop.f32.mrf.mxu0
    %v9342 = vadd.f32 %v9293, %v9341
    %v9343 = vpop.f32.mrf.mxu0
    %v9344 = vadd.f32 %v9295, %v9343
    %9345 = vmatmul.bf16.gmra.mxu0 %v7587
    %v9346 = vpop.f32.mrf.mxu0
    %v9347 = vadd.f32 %v9298, %v9346
    %v9348 = vpop.f32.mrf.mxu0
    %v9349 = vadd.f32 %v9300, %v9348
    %9350 = vmatmul.bf16.gmra.mxu0 %v7591
    %v9351 = vpop.f32.mrf.mxu0
    %v9352 = vadd.f32 %v9303, %v9351
    %v9353 = vpop.f32.mrf.mxu0
    %v9354 = vadd.f32 %v9305, %v9353
    %9355 = vmatmul.bf16.gmra.mxu0 %v7595
    %v9356 = vpop.f32.mrf.mxu0
    %v9357 = vadd.f32 %v9308, %v9356
    %v9358 = vpop.f32.mrf.mxu0
    %v9359 = vadd.f32 %v9310, %v9358
    %9360 = vmatmul.bf16.gmra.mxu0 %v7599
    %v9361 = vpop.f32.mrf.mxu0
    %v9362 = vadd.f32 %v9313, %v9361
    %v9363 = vpop.f32.mrf.mxu0
    %v9364 = vadd.f32 %v9315, %v9363
    %9365 = vmatmul.bf16.gmra.mxu0 %v7603
    %v9366 = vpop.f32.mrf.mxu0
    %v9367 = vadd.f32 %v9318, %v9366
    %v9368 = vpop.f32.mrf.mxu0
    %v9369 = vadd.f32 %v9320, %v9368
    %9370 = vmatmul.bf16.gmra.mxu0 %v7607
    %v9371 = vpop.f32.mrf.mxu0
    %v9372 = vadd.f32 %v9323, %v9371
    %v9373 = vpop.f32.mrf.mxu0
    %v9374 = vadd.f32 %v9325, %v9373
    %9375 = vdwg.mxu0
    %9376 = vmatpush.bf16.msra.mxu0 %v8803
    %9377 = vmatpush.bf16.msra.mxu0 %v8796
    %9378 = vmatpush.bf16.msra.mxu0 %v8789
    %9379 = vmatpush.bf16.msra.mxu0 %v8782
    %9380 = vmatpush.bf16.msra.mxu0 %v8775
    %9381 = vmatpush.bf16.msra.mxu0 %v8768
    %9382 = vmatpush.bf16.msra.mxu0 %v8761
    %9383 = vmatpush.bf16.msra.mxu0 %v8754
    %9384 = vmatmul.bf16.gmra.mxu0 %v7580
    %v9385 = vpop.f32.mrf.mxu0
    %v9386 = vadd.f32 %v9337, %v9385
    %v9387 = vpop.f32.mrf.mxu0
    %v9388 = vadd.f32 %v9339, %v9387
    %9389 = vmatmul.bf16.gmra.mxu0 %v7584
    %v9390 = vpop.f32.mrf.mxu0
    %v9391 = vadd.f32 %v9342, %v9390
    %v9392 = vpop.f32.mrf.mxu0
    %v9393 = vadd.f32 %v9344, %v9392
    %9394 = vmatmul.bf16.gmra.mxu0 %v7588
    %v9395 = vpop.f32.mrf.mxu0
    %v9396 = vadd.f32 %v9347, %v9395
    %v9397 = vpop.f32.mrf.mxu0
    %v9398 = vadd.f32 %v9349, %v9397
    %9399 = vmatmul.bf16.gmra.mxu0 %v7592
    %v9400 = vpop.f32.mrf.mxu0
    %v9401 = vadd.f32 %v9352, %v9400
    %v9402 = vpop.f32.mrf.mxu0
    %v9403 = vadd.f32 %v9354, %v9402
    %9404 = vmatmul.bf16.gmra.mxu0 %v7596
    %v9405 = vpop.f32.mrf.mxu0
    %v9406 = vadd.f32 %v9357, %v9405
    %v9407 = vpop.f32.mrf.mxu0
    %v9408 = vadd.f32 %v9359, %v9407
    %9409 = vmatmul.bf16.gmra.mxu0 %v7600
    %v9410 = vpop.f32.mrf.mxu0
    %v9411 = vadd.f32 %v9362, %v9410
    %v9412 = vpop.f32.mrf.mxu0
    %v9413 = vadd.f32 %v9364, %v9412
    %9414 = vmatmul.bf16.gmra.mxu0 %v7604
    %v9415 = vpop.f32.mrf.mxu0
    %v9416 = vadd.f32 %v9367, %v9415
    %v9417 = vpop.f32.mrf.mxu0
    %v9418 = vadd.f32 %v9369, %v9417
    %9419 = vmatmul.bf16.gmra.mxu0 %v7608
    %v9420 = vpop.f32.mrf.mxu0
    %v9421 = vadd.f32 %v9372, %v9420
    %v9422 = vpop.f32.mrf.mxu0
    %v9423 = vadd.f32 %v9374, %v9422
    %9424 = vdwg.mxu0
    %9425 = vmatpush.bf16.msra.mxu0 %v8636
    %9426 = vmatpush.bf16.msra.mxu0 %v8629
    %9427 = vmatpush.bf16.msra.mxu0 %v8622
    %9428 = vmatpush.bf16.msra.mxu0 %v8615
    %9429 = vmatpush.bf16.msra.mxu0 %v8608
    %9430 = vmatpush.bf16.msra.mxu0 %v8601
    %9431 = vmatpush.bf16.msra.mxu0 %v8594
    %9432 = vmatpush.bf16.msra.mxu0 %v8587
    %9433 = vmatmul.bf16.gmra.mxu0 %v7577
    %v9434 = vpop.f32.mrf.mxu0
    %v9435 = vadd.f32 %v7869, %v9434
    %v9436 = vpop.f32.mrf.mxu0
    %v9437 = vadd.f32 %v7869, %v9436
    %9438 = vmatmul.bf16.gmra.mxu0 %v7581
    %v9439 = vpop.f32.mrf.mxu0
    %v9440 = vadd.f32 %v7869, %v9439
    %v9441 = vpop.f32.mrf.mxu0
    %v9442 = vadd.f32 %v7869, %v9441
    %9443 = vmatmul.bf16.gmra.mxu0 %v7585
    %v9444 = vpop.f32.mrf.mxu0
    %v9445 = vadd.f32 %v7869, %v9444
    %v9446 = vpop.f32.mrf.mxu0
    %v9447 = vadd.f32 %v7869, %v9446
    %9448 = vmatmul.bf16.gmra.mxu0 %v7589
    %v9449 = vpop.f32.mrf.mxu0
    %v9450 = vadd.f32 %v7869, %v9449
    %v9451 = vpop.f32.mrf.mxu0
    %v9452 = vadd.f32 %v7869, %v9451
    %9453 = vmatmul.bf16.gmra.mxu0 %v7593
    %v9454 = vpop.f32.mrf.mxu0
    %v9455 = vadd.f32 %v7869, %v9454
    %v9456 = vpop.f32.mrf.mxu0
    %v9457 = vadd.f32 %v7869, %v9456
    %9458 = vmatmul.bf16.gmra.mxu0 %v7597
    %v9459 = vpop.f32.mrf.mxu0
    %v9460 = vadd.f32 %v7869, %v9459
    %v9461 = vpop.f32.mrf.mxu0
    %v9462 = vadd.f32 %v7869, %v9461
    %9463 = vmatmul.bf16.gmra.mxu0 %v7601
    %v9464 = vpop.f32.mrf.mxu0
    %v9465 = vadd.f32 %v7869, %v9464
    %v9466 = vpop.f32.mrf.mxu0
    %v9467 = vadd.f32 %v7869, %v9466
    %9468 = vmatmul.bf16.gmra.mxu0 %v7605
    %v9469 = vpop.f32.mrf.mxu0
    %v9470 = vadd.f32 %v7869, %v9469
    %v9471 = vpop.f32.mrf.mxu0
    %v9472 = vadd.f32 %v7869, %v9471
    %9473 = vdwg.mxu0
    %9474 = vmatpush.bf16.msra.mxu0 %v8692
    %9475 = vmatpush.bf16.msra.mxu0 %v8685
    %9476 = vmatpush.bf16.msra.mxu0 %v8678
    %9477 = vmatpush.bf16.msra.mxu0 %v8671
    %9478 = vmatpush.bf16.msra.mxu0 %v8664
    %9479 = vmatpush.bf16.msra.mxu0 %v8657
    %9480 = vmatpush.bf16.msra.mxu0 %v8650
    %9481 = vmatpush.bf16.msra.mxu0 %v8643
    %9482 = vmatmul.bf16.gmra.mxu0 %v7578
    %v9483 = vpop.f32.mrf.mxu0
    %v9484 = vadd.f32 %v9435, %v9483
    %v9485 = vpop.f32.mrf.mxu0
    %v9486 = vadd.f32 %v9437, %v9485
    %9487 = vmatmul.bf16.gmra.mxu0 %v7582
    %v9488 = vpop.f32.mrf.mxu0
    %v9489 = vadd.f32 %v9440, %v9488
    %v9490 = vpop.f32.mrf.mxu0
    %v9491 = vadd.f32 %v9442, %v9490
    %9492 = vmatmul.bf16.gmra.mxu0 %v7586
    %v9493 = vpop.f32.mrf.mxu0
    %v9494 = vadd.f32 %v9445, %v9493
    %v9495 = vpop.f32.mrf.mxu0
    %v9496 = vadd.f32 %v9447, %v9495
    %9497 = vmatmul.bf16.gmra.mxu0 %v7590
    %v9498 = vpop.f32.mrf.mxu0
    %v9499 = vadd.f32 %v9450, %v9498
    %v9500 = vpop.f32.mrf.mxu0
    %v9501 = vadd.f32 %v9452, %v9500
    %9502 = vmatmul.bf16.gmra.mxu0 %v7594
    %v9503 = vpop.f32.mrf.mxu0
    %v9504 = vadd.f32 %v9455, %v9503
    %v9505 = vpop.f32.mrf.mxu0
    %v9506 = vadd.f32 %v9457, %v9505
    %9507 = vmatmul.bf16.gmra.mxu0 %v7598
    %v9508 = vpop.f32.mrf.mxu0
    %v9509 = vadd.f32 %v9460, %v9508
    %v9510 = vpop.f32.mrf.mxu0
    %v9511 = vadd.f32 %v9462, %v9510
    %9512 = vmatmul.bf16.gmra.mxu0 %v7602
    %v9513 = vpop.f32.mrf.mxu0
    %v9514 = vadd.f32 %v9465, %v9513
    %v9515 = vpop.f32.mrf.mxu0
    %v9516 = vadd.f32 %v9467, %v9515
    %9517 = vmatmul.bf16.gmra.mxu0 %v7606
    %v9518 = vpop.f32.mrf.mxu0
    %v9519 = vadd.f32 %v9470, %v9518
    %v9520 = vpop.f32.mrf.mxu0
    %v9521 = vadd.f32 %v9472, %v9520
    %9522 = vdwg.mxu0
    %9523 = vmatpush.bf16.msra.mxu0 %v8748
    %9524 = vmatpush.bf16.msra.mxu0 %v8741
    %9525 = vmatpush.bf16.msra.mxu0 %v8734
    %9526 = vmatpush.bf16.msra.mxu0 %v8727
    %9527 = vmatpush.bf16.msra.mxu0 %v8720
    %9528 = vmatpush.bf16.msra.mxu0 %v8713
    %9529 = vmatpush.bf16.msra.mxu0 %v8706
    %9530 = vmatpush.bf16.msra.mxu0 %v8699
    %9531 = vmatmul.bf16.gmra.mxu0 %v7579
    %v9532 = vpop.f32.mrf.mxu0
    %v9533 = vadd.f32 %v9484, %v9532
    %v9534 = vpop.f32.mrf.mxu0
    %v9535 = vadd.f32 %v9486, %v9534
    %9536 = vmatmul.bf16.gmra.mxu0 %v7583
    %v9537 = vpop.f32.mrf.mxu0
    %v9538 = vadd.f32 %v9489, %v9537
    %v9539 = vpop.f32.mrf.mxu0
    %v9540 = vadd.f32 %v9491, %v9539
    %9541 = vmatmul.bf16.gmra.mxu0 %v7587
    %v9542 = vpop.f32.mrf.mxu0
    %v9543 = vadd.f32 %v9494, %v9542
    %v9544 = vpop.f32.mrf.mxu0
    %v9545 = vadd.f32 %v9496, %v9544
    %9546 = vmatmul.bf16.gmra.mxu0 %v7591
    %v9547 = vpop.f32.mrf.mxu0
    %v9548 = vadd.f32 %v9499, %v9547
    %v9549 = vpop.f32.mrf.mxu0
    %v9550 = vadd.f32 %v9501, %v9549
    %9551 = vmatmul.bf16.gmra.mxu0 %v7595
    %v9552 = vpop.f32.mrf.mxu0
    %v9553 = vadd.f32 %v9504, %v9552
    %v9554 = vpop.f32.mrf.mxu0
    %v9555 = vadd.f32 %v9506, %v9554
    %9556 = vmatmul.bf16.gmra.mxu0 %v7599
    %v9557 = vpop.f32.mrf.mxu0
    %v9558 = vadd.f32 %v9509, %v9557
    %v9559 = vpop.f32.mrf.mxu0
    %v9560 = vadd.f32 %v9511, %v9559
    %9561 = vmatmul.bf16.gmra.mxu0 %v7603
    %v9562 = vpop.f32.mrf.mxu0
    %v9563 = vadd.f32 %v9514, %v9562
    %v9564 = vpop.f32.mrf.mxu0
    %v9565 = vadd.f32 %v9516, %v9564
    %9566 = vmatmul.bf16.gmra.mxu0 %v7607
    %v9567 = vpop.f32.mrf.mxu0
    %v9568 = vadd.f32 %v9519, %v9567
    %v9569 = vpop.f32.mrf.mxu0
    %v9570 = vadd.f32 %v9521, %v9569
    %9571 = vdwg.mxu0
    %9572 = vmatpush.bf16.msra.mxu0 %v8804
    %9573 = vmatpush.bf16.msra.mxu0 %v8797
    %9574 = vmatpush.bf16.msra.mxu0 %v8790
    %9575 = vmatpush.bf16.msra.mxu0 %v8783
    %9576 = vmatpush.bf16.msra.mxu0 %v8776
    %9577 = vmatpush.bf16.msra.mxu0 %v8769
    %9578 = vmatpush.bf16.msra.mxu0 %v8762
    %9579 = vmatpush.bf16.msra.mxu0 %v8755
    %9580 = vmatmul.bf16.gmra.mxu0 %v7580
    %v9581 = vpop.f32.mrf.mxu0
    %v9582 = vadd.f32 %v9533, %v9581
    %v9583 = vpop.f32.mrf.mxu0
    %v9584 = vadd.f32 %v9535, %v9583
    %9585 = vmatmul.bf16.gmra.mxu0 %v7584
    %v9586 = vpop.f32.mrf.mxu0
    %v9587 = vadd.f32 %v9538, %v9586
    %v9588 = vpop.f32.mrf.mxu0
    %v9589 = vadd.f32 %v9540, %v9588
    %9590 = vmatmul.bf16.gmra.mxu0 %v7588
    %v9591 = vpop.f32.mrf.mxu0
    %v9592 = vadd.f32 %v9543, %v9591
    %v9593 = vpop.f32.mrf.mxu0
    %v9594 = vadd.f32 %v9545, %v9593
    %9595 = vmatmul.bf16.gmra.mxu0 %v7592
    %v9596 = vpop.f32.mrf.mxu0
    %v9597 = vadd.f32 %v9548, %v9596
    %v9598 = vpop.f32.mrf.mxu0
    %v9599 = vadd.f32 %v9550, %v9598
    %9600 = vmatmul.bf16.gmra.mxu0 %v7596
    %v9601 = vpop.f32.mrf.mxu0
    %v9602 = vadd.f32 %v9553, %v9601
    %v9603 = vpop.f32.mrf.mxu0
    %v9604 = vadd.f32 %v9555, %v9603
    %9605 = vmatmul.bf16.gmra.mxu0 %v7600
    %v9606 = vpop.f32.mrf.mxu0
    %v9607 = vadd.f32 %v9558, %v9606
    %v9608 = vpop.f32.mrf.mxu0
    %v9609 = vadd.f32 %v9560, %v9608
    %9610 = vmatmul.bf16.gmra.mxu0 %v7604
    %v9611 = vpop.f32.mrf.mxu0
    %v9612 = vadd.f32 %v9563, %v9611
    %v9613 = vpop.f32.mrf.mxu0
    %v9614 = vadd.f32 %v9565, %v9613
    %9615 = vmatmul.bf16.gmra.mxu0 %v7608
    %v9616 = vpop.f32.mrf.mxu0
    %v9617 = vadd.f32 %v9568, %v9616
    %v9618 = vpop.f32.mrf.mxu0
    %v9619 = vadd.f32 %v9570, %v9618
    %9620 = vdwg.mxu0
    %9621 = vmatpush.bf16.msra.mxu0 %v8637
    %9622 = vmatpush.bf16.msra.mxu0 %v8630
    %9623 = vmatpush.bf16.msra.mxu0 %v8623
    %9624 = vmatpush.bf16.msra.mxu0 %v8616
    %9625 = vmatpush.bf16.msra.mxu0 %v8609
    %9626 = vmatpush.bf16.msra.mxu0 %v8602
    %9627 = vmatpush.bf16.msra.mxu0 %v8595
    %9628 = vmatpush.bf16.msra.mxu0 %v8588
    %9629 = vmatmul.bf16.gmra.mxu0 %v7577
    %v9630 = vpop.f32.mrf.mxu0
    %v9631 = vadd.f32 %v7870, %v9630
    %v9632 = vpop.f32.mrf.mxu0
    %v9633 = vadd.f32 %v7870, %v9632
    %9634 = vmatmul.bf16.gmra.mxu0 %v7581
    %v9635 = vpop.f32.mrf.mxu0
    %v9636 = vadd.f32 %v7870, %v9635
    %v9637 = vpop.f32.mrf.mxu0
    %v9638 = vadd.f32 %v7870, %v9637
    %9639 = vmatmul.bf16.gmra.mxu0 %v7585
    %v9640 = vpop.f32.mrf.mxu0
    %v9641 = vadd.f32 %v7870, %v9640
    %v9642 = vpop.f32.mrf.mxu0
    %v9643 = vadd.f32 %v7870, %v9642
    %9644 = vmatmul.bf16.gmra.mxu0 %v7589
    %v9645 = vpop.f32.mrf.mxu0
    %v9646 = vadd.f32 %v7870, %v9645
    %v9647 = vpop.f32.mrf.mxu0
    %v9648 = vadd.f32 %v7870, %v9647
    %9649 = vmatmul.bf16.gmra.mxu0 %v7593
    %v9650 = vpop.f32.mrf.mxu0
    %v9651 = vadd.f32 %v7870, %v9650
    %v9652 = vpop.f32.mrf.mxu0
    %v9653 = vadd.f32 %v7870, %v9652
    %9654 = vmatmul.bf16.gmra.mxu0 %v7597
    %v9655 = vpop.f32.mrf.mxu0
    %v9656 = vadd.f32 %v7870, %v9655
    %v9657 = vpop.f32.mrf.mxu0
    %v9658 = vadd.f32 %v7870, %v9657
    %9659 = vmatmul.bf16.gmra.mxu0 %v7601
    %v9660 = vpop.f32.mrf.mxu0
    %v9661 = vadd.f32 %v7870, %v9660
    %v9662 = vpop.f32.mrf.mxu0
    %v9663 = vadd.f32 %v7870, %v9662
    %9664 = vmatmul.bf16.gmra.mxu0 %v7605
    %v9665 = vpop.f32.mrf.mxu0
    %v9666 = vadd.f32 %v7870, %v9665
    %v9667 = vpop.f32.mrf.mxu0
    %v9668 = vadd.f32 %v7870, %v9667
    %9669 = vdwg.mxu0
    %9670 = vmatpush.bf16.msra.mxu0 %v8693
    %9671 = vmatpush.bf16.msra.mxu0 %v8686
    %9672 = vmatpush.bf16.msra.mxu0 %v8679
    %9673 = vmatpush.bf16.msra.mxu0 %v8672
    %9674 = vmatpush.bf16.msra.mxu0 %v8665
    %9675 = vmatpush.bf16.msra.mxu0 %v8658
    %9676 = vmatpush.bf16.msra.mxu0 %v8651
    %9677 = vmatpush.bf16.msra.mxu0 %v8644
    %9678 = vmatmul.bf16.gmra.mxu0 %v7578
    %v9679 = vpop.f32.mrf.mxu0
    %v9680 = vadd.f32 %v9631, %v9679
    %v9681 = vpop.f32.mrf.mxu0
    %v9682 = vadd.f32 %v9633, %v9681
    %9683 = vmatmul.bf16.gmra.mxu0 %v7582
    %v9684 = vpop.f32.mrf.mxu0
    %v9685 = vadd.f32 %v9636, %v9684
    %v9686 = vpop.f32.mrf.mxu0
    %v9687 = vadd.f32 %v9638, %v9686
    %9688 = vmatmul.bf16.gmra.mxu0 %v7586
    %v9689 = vpop.f32.mrf.mxu0
    %v9690 = vadd.f32 %v9641, %v9689
    %v9691 = vpop.f32.mrf.mxu0
    %v9692 = vadd.f32 %v9643, %v9691
    %9693 = vmatmul.bf16.gmra.mxu0 %v7590
    %v9694 = vpop.f32.mrf.mxu0
    %v9695 = vadd.f32 %v9646, %v9694
    %v9696 = vpop.f32.mrf.mxu0
    %v9697 = vadd.f32 %v9648, %v9696
    %9698 = vmatmul.bf16.gmra.mxu0 %v7594
    %v9699 = vpop.f32.mrf.mxu0
    %v9700 = vadd.f32 %v9651, %v9699
    %v9701 = vpop.f32.mrf.mxu0
    %v9702 = vadd.f32 %v9653, %v9701
    %9703 = vmatmul.bf16.gmra.mxu0 %v7598
    %v9704 = vpop.f32.mrf.mxu0
    %v9705 = vadd.f32 %v9656, %v9704
    %v9706 = vpop.f32.mrf.mxu0
    %v9707 = vadd.f32 %v9658, %v9706
    %9708 = vmatmul.bf16.gmra.mxu0 %v7602
    %v9709 = vpop.f32.mrf.mxu0
    %v9710 = vadd.f32 %v9661, %v9709
    %v9711 = vpop.f32.mrf.mxu0
    %v9712 = vadd.f32 %v9663, %v9711
    %9713 = vmatmul.bf16.gmra.mxu0 %v7606
    %v9714 = vpop.f32.mrf.mxu0
    %v9715 = vadd.f32 %v9666, %v9714
    %v9716 = vpop.f32.mrf.mxu0
    %v9717 = vadd.f32 %v9668, %v9716
    %9718 = vdwg.mxu0
    %9719 = vmatpush.bf16.msra.mxu0 %v8749
    %9720 = vmatpush.bf16.msra.mxu0 %v8742
    %9721 = vmatpush.bf16.msra.mxu0 %v8735
    %9722 = vmatpush.bf16.msra.mxu0 %v8728
    %9723 = vmatpush.bf16.msra.mxu0 %v8721
    %9724 = vmatpush.bf16.msra.mxu0 %v8714
    %9725 = vmatpush.bf16.msra.mxu0 %v8707
    %9726 = vmatpush.bf16.msra.mxu0 %v8700
    %9727 = vmatmul.bf16.gmra.mxu0 %v7579
    %v9728 = vpop.f32.mrf.mxu0
    %v9729 = vadd.f32 %v9680, %v9728
    %v9730 = vpop.f32.mrf.mxu0
    %v9731 = vadd.f32 %v9682, %v9730
    %9732 = vmatmul.bf16.gmra.mxu0 %v7583
    %v9733 = vpop.f32.mrf.mxu0
    %v9734 = vadd.f32 %v9685, %v9733
    %v9735 = vpop.f32.mrf.mxu0
    %v9736 = vadd.f32 %v9687, %v9735
    %9737 = vmatmul.bf16.gmra.mxu0 %v7587
    %v9738 = vpop.f32.mrf.mxu0
    %v9739 = vadd.f32 %v9690, %v9738
    %v9740 = vpop.f32.mrf.mxu0
    %v9741 = vadd.f32 %v9692, %v9740
    %9742 = vmatmul.bf16.gmra.mxu0 %v7591
    %v9743 = vpop.f32.mrf.mxu0
    %v9744 = vadd.f32 %v9695, %v9743
    %v9745 = vpop.f32.mrf.mxu0
    %v9746 = vadd.f32 %v9697, %v9745
    %9747 = vmatmul.bf16.gmra.mxu0 %v7595
    %v9748 = vpop.f32.mrf.mxu0
    %v9749 = vadd.f32 %v9700, %v9748
    %v9750 = vpop.f32.mrf.mxu0
    %v9751 = vadd.f32 %v9702, %v9750
    %9752 = vmatmul.bf16.gmra.mxu0 %v7599
    %v9753 = vpop.f32.mrf.mxu0
    %v9754 = vadd.f32 %v9705, %v9753
    %v9755 = vpop.f32.mrf.mxu0
    %v9756 = vadd.f32 %v9707, %v9755
    %9757 = vmatmul.bf16.gmra.mxu0 %v7603
    %v9758 = vpop.f32.mrf.mxu0
    %v9759 = vadd.f32 %v9710, %v9758
    %v9760 = vpop.f32.mrf.mxu0
    %v9761 = vadd.f32 %v9712, %v9760
    %9762 = vmatmul.bf16.gmra.mxu0 %v7607
    %v9763 = vpop.f32.mrf.mxu0
    %v9764 = vadd.f32 %v9715, %v9763
    %v9765 = vpop.f32.mrf.mxu0
    %v9766 = vadd.f32 %v9717, %v9765
    %9767 = vdwg.mxu0
    %9768 = vmatpush.bf16.msra.mxu0 %v8805
    %9769 = vmatpush.bf16.msra.mxu0 %v8798
    %9770 = vmatpush.bf16.msra.mxu0 %v8791
    %9771 = vmatpush.bf16.msra.mxu0 %v8784
    %9772 = vmatpush.bf16.msra.mxu0 %v8777
    %9773 = vmatpush.bf16.msra.mxu0 %v8770
    %9774 = vmatpush.bf16.msra.mxu0 %v8763
    %9775 = vmatpush.bf16.msra.mxu0 %v8756
    %9776 = vmatmul.bf16.gmra.mxu0 %v7580
    %v9777 = vpop.f32.mrf.mxu0
    %v9778 = vadd.f32 %v9729, %v9777
    %v9779 = vpop.f32.mrf.mxu0
    %v9780 = vadd.f32 %v9731, %v9779
    %9781 = vmatmul.bf16.gmra.mxu0 %v7584
    %v9782 = vpop.f32.mrf.mxu0
    %v9783 = vadd.f32 %v9734, %v9782
    %v9784 = vpop.f32.mrf.mxu0
    %v9785 = vadd.f32 %v9736, %v9784
    %9786 = vmatmul.bf16.gmra.mxu0 %v7588
    %v9787 = vpop.f32.mrf.mxu0
    %v9788 = vadd.f32 %v9739, %v9787
    %v9789 = vpop.f32.mrf.mxu0
    %v9790 = vadd.f32 %v9741, %v9789
    %9791 = vmatmul.bf16.gmra.mxu0 %v7592
    %v9792 = vpop.f32.mrf.mxu0
    %v9793 = vadd.f32 %v9744, %v9792
    %v9794 = vpop.f32.mrf.mxu0
    %v9795 = vadd.f32 %v9746, %v9794
    %9796 = vmatmul.bf16.gmra.mxu0 %v7596
    %v9797 = vpop.f32.mrf.mxu0
    %v9798 = vadd.f32 %v9749, %v9797
    %v9799 = vpop.f32.mrf.mxu0
    %v9800 = vadd.f32 %v9751, %v9799
    %9801 = vmatmul.bf16.gmra.mxu0 %v7600
    %v9802 = vpop.f32.mrf.mxu0
    %v9803 = vadd.f32 %v9754, %v9802
    %v9804 = vpop.f32.mrf.mxu0
    %v9805 = vadd.f32 %v9756, %v9804
    %9806 = vmatmul.bf16.gmra.mxu0 %v7604
    %v9807 = vpop.f32.mrf.mxu0
    %v9808 = vadd.f32 %v9759, %v9807
    %v9809 = vpop.f32.mrf.mxu0
    %v9810 = vadd.f32 %v9761, %v9809
    %9811 = vmatmul.bf16.gmra.mxu0 %v7608
    %v9812 = vpop.f32.mrf.mxu0
    %v9813 = vadd.f32 %v9764, %v9812
    %v9814 = vpop.f32.mrf.mxu0
    %v9815 = vadd.f32 %v9766, %v9814
    %9816 = vdwg.mxu0
    %9817 = vmatpush.bf16.msra.mxu0 %v8638
    %9818 = vmatpush.bf16.msra.mxu0 %v8631
    %9819 = vmatpush.bf16.msra.mxu0 %v8624
    %9820 = vmatpush.bf16.msra.mxu0 %v8617
    %9821 = vmatpush.bf16.msra.mxu0 %v8610
    %9822 = vmatpush.bf16.msra.mxu0 %v8603
    %9823 = vmatpush.bf16.msra.mxu0 %v8596
    %9824 = vmatpush.bf16.msra.mxu0 %v8589
    %9825 = vmatmul.bf16.gmra.mxu0 %v7577
    %v9826 = vpop.f32.mrf.mxu0
    %v9827 = vadd.f32 %v7871, %v9826
    %v9828 = vpop.f32.mrf.mxu0
    %v9829 = vadd.f32 %v7871, %v9828
    %9830 = vmatmul.bf16.gmra.mxu0 %v7581
    %v9831 = vpop.f32.mrf.mxu0
    %v9832 = vadd.f32 %v7871, %v9831
    %v9833 = vpop.f32.mrf.mxu0
    %v9834 = vadd.f32 %v7871, %v9833
    %9835 = vmatmul.bf16.gmra.mxu0 %v7585
    %v9836 = vpop.f32.mrf.mxu0
    %v9837 = vadd.f32 %v7871, %v9836
    %v9838 = vpop.f32.mrf.mxu0
    %v9839 = vadd.f32 %v7871, %v9838
    %9840 = vmatmul.bf16.gmra.mxu0 %v7589
    %v9841 = vpop.f32.mrf.mxu0
    %v9842 = vadd.f32 %v7871, %v9841
    %v9843 = vpop.f32.mrf.mxu0
    %v9844 = vadd.f32 %v7871, %v9843
    %9845 = vmatmul.bf16.gmra.mxu0 %v7593
    %v9846 = vpop.f32.mrf.mxu0
    %v9847 = vadd.f32 %v7871, %v9846
    %v9848 = vpop.f32.mrf.mxu0
    %v9849 = vadd.f32 %v7871, %v9848
    %9850 = vmatmul.bf16.gmra.mxu0 %v7597
    %v9851 = vpop.f32.mrf.mxu0
    %v9852 = vadd.f32 %v7871, %v9851
    %v9853 = vpop.f32.mrf.mxu0
    %v9854 = vadd.f32 %v7871, %v9853
    %9855 = vmatmul.bf16.gmra.mxu0 %v7601
    %v9856 = vpop.f32.mrf.mxu0
    %v9857 = vadd.f32 %v7871, %v9856
    %v9858 = vpop.f32.mrf.mxu0
    %v9859 = vadd.f32 %v7871, %v9858
    %9860 = vmatmul.bf16.gmra.mxu0 %v7605
    %v9861 = vpop.f32.mrf.mxu0
    %v9862 = vadd.f32 %v7871, %v9861
    %v9863 = vpop.f32.mrf.mxu0
    %v9864 = vadd.f32 %v7871, %v9863
    %9865 = vdwg.mxu0
    %9866 = vmatpush.bf16.msra.mxu0 %v8694
    %9867 = vmatpush.bf16.msra.mxu0 %v8687
    %9868 = vmatpush.bf16.msra.mxu0 %v8680
    %9869 = vmatpush.bf16.msra.mxu0 %v8673
    %9870 = vmatpush.bf16.msra.mxu0 %v8666
    %9871 = vmatpush.bf16.msra.mxu0 %v8659
    %9872 = vmatpush.bf16.msra.mxu0 %v8652
    %9873 = vmatpush.bf16.msra.mxu0 %v8645
    %9874 = vmatmul.bf16.gmra.mxu0 %v7578
    %v9875 = vpop.f32.mrf.mxu0
    %v9876 = vadd.f32 %v9827, %v9875
    %v9877 = vpop.f32.mrf.mxu0
    %v9878 = vadd.f32 %v9829, %v9877
    %9879 = vmatmul.bf16.gmra.mxu0 %v7582
    %v9880 = vpop.f32.mrf.mxu0
    %v9881 = vadd.f32 %v9832, %v9880
    %v9882 = vpop.f32.mrf.mxu0
    %v9883 = vadd.f32 %v9834, %v9882
    %9884 = vmatmul.bf16.gmra.mxu0 %v7586
    %v9885 = vpop.f32.mrf.mxu0
    %v9886 = vadd.f32 %v9837, %v9885
    %v9887 = vpop.f32.mrf.mxu0
    %v9888 = vadd.f32 %v9839, %v9887
    %9889 = vmatmul.bf16.gmra.mxu0 %v7590
    %v9890 = vpop.f32.mrf.mxu0
    %v9891 = vadd.f32 %v9842, %v9890
    %v9892 = vpop.f32.mrf.mxu0
    %v9893 = vadd.f32 %v9844, %v9892
    %9894 = vmatmul.bf16.gmra.mxu0 %v7594
    %v9895 = vpop.f32.mrf.mxu0
    %v9896 = vadd.f32 %v9847, %v9895
    %v9897 = vpop.f32.mrf.mxu0
    %v9898 = vadd.f32 %v9849, %v9897
    %9899 = vmatmul.bf16.gmra.mxu0 %v7598
    %v9900 = vpop.f32.mrf.mxu0
    %v9901 = vadd.f32 %v9852, %v9900
    %v9902 = vpop.f32.mrf.mxu0
    %v9903 = vadd.f32 %v9854, %v9902
    %9904 = vmatmul.bf16.gmra.mxu0 %v7602
    %v9905 = vpop.f32.mrf.mxu0
    %v9906 = vadd.f32 %v9857, %v9905
    %v9907 = vpop.f32.mrf.mxu0
    %v9908 = vadd.f32 %v9859, %v9907
    %9909 = vmatmul.bf16.gmra.mxu0 %v7606
    %v9910 = vpop.f32.mrf.mxu0
    %v9911 = vadd.f32 %v9862, %v9910
    %v9912 = vpop.f32.mrf.mxu0
    %v9913 = vadd.f32 %v9864, %v9912
    %9914 = vdwg.mxu0
    %9915 = vmatpush.bf16.msra.mxu0 %v8750
    %9916 = vmatpush.bf16.msra.mxu0 %v8743
    %9917 = vmatpush.bf16.msra.mxu0 %v8736
    %9918 = vmatpush.bf16.msra.mxu0 %v8729
    %9919 = vmatpush.bf16.msra.mxu0 %v8722
    %9920 = vmatpush.bf16.msra.mxu0 %v8715
    %9921 = vmatpush.bf16.msra.mxu0 %v8708
    %9922 = vmatpush.bf16.msra.mxu0 %v8701
    %9923 = vmatmul.bf16.gmra.mxu0 %v7579
    %v9924 = vpop.f32.mrf.mxu0
    %v9925 = vadd.f32 %v9876, %v9924
    %v9926 = vpop.f32.mrf.mxu0
    %v9927 = vadd.f32 %v9878, %v9926
    %9928 = vmatmul.bf16.gmra.mxu0 %v7583
    %v9929 = vpop.f32.mrf.mxu0
    %v9930 = vadd.f32 %v9881, %v9929
    %v9931 = vpop.f32.mrf.mxu0
    %v9932 = vadd.f32 %v9883, %v9931
    %9933 = vmatmul.bf16.gmra.mxu0 %v7587
    %v9934 = vpop.f32.mrf.mxu0
    %v9935 = vadd.f32 %v9886, %v9934
    %v9936 = vpop.f32.mrf.mxu0
    %v9937 = vadd.f32 %v9888, %v9936
    %9938 = vmatmul.bf16.gmra.mxu0 %v7591
    %v9939 = vpop.f32.mrf.mxu0
    %v9940 = vadd.f32 %v9891, %v9939
    %v9941 = vpop.f32.mrf.mxu0
    %v9942 = vadd.f32 %v9893, %v9941
    %9943 = vmatmul.bf16.gmra.mxu0 %v7595
    %v9944 = vpop.f32.mrf.mxu0
    %v9945 = vadd.f32 %v9896, %v9944
    %v9946 = vpop.f32.mrf.mxu0
    %v9947 = vadd.f32 %v9898, %v9946
    %9948 = vmatmul.bf16.gmra.mxu0 %v7599
    %v9949 = vpop.f32.mrf.mxu0
    %v9950 = vadd.f32 %v9901, %v9949
    %v9951 = vpop.f32.mrf.mxu0
    %v9952 = vadd.f32 %v9903, %v9951
    %9953 = vmatmul.bf16.gmra.mxu0 %v7603
    %v9954 = vpop.f32.mrf.mxu0
    %v9955 = vadd.f32 %v9906, %v9954
    %v9956 = vpop.f32.mrf.mxu0
    %v9957 = vadd.f32 %v9908, %v9956
    %9958 = vmatmul.bf16.gmra.mxu0 %v7607
    %v9959 = vpop.f32.mrf.mxu0
    %v9960 = vadd.f32 %v9911, %v9959
    %v9961 = vpop.f32.mrf.mxu0
    %v9962 = vadd.f32 %v9913, %v9961
    %9963 = vdwg.mxu0
    %9964 = vmatpush.bf16.msra.mxu0 %v8806
    %9965 = vmatpush.bf16.msra.mxu0 %v8799
    %9966 = vmatpush.bf16.msra.mxu0 %v8792
    %9967 = vmatpush.bf16.msra.mxu0 %v8785
    %9968 = vmatpush.bf16.msra.mxu0 %v8778
    %9969 = vmatpush.bf16.msra.mxu0 %v8771
    %9970 = vmatpush.bf16.msra.mxu0 %v8764
    %9971 = vmatpush.bf16.msra.mxu0 %v8757
    %9972 = vmatmul.bf16.gmra.mxu0 %v7580
    %v9973 = vpop.f32.mrf.mxu0
    %v9974 = vadd.f32 %v9925, %v9973
    %v9975 = vpop.f32.mrf.mxu0
    %v9976 = vadd.f32 %v9927, %v9975
    %9977 = vmatmul.bf16.gmra.mxu0 %v7584
    %v9978 = vpop.f32.mrf.mxu0
    %v9979 = vadd.f32 %v9930, %v9978
    %v9980 = vpop.f32.mrf.mxu0
    %v9981 = vadd.f32 %v9932, %v9980
    %9982 = vmatmul.bf16.gmra.mxu0 %v7588
    %v9983 = vpop.f32.mrf.mxu0
    %v9984 = vadd.f32 %v9935, %v9983
    %v9985 = vpop.f32.mrf.mxu0
    %v9986 = vadd.f32 %v9937, %v9985
    %9987 = vmatmul.bf16.gmra.mxu0 %v7592
    %v9988 = vpop.f32.mrf.mxu0
    %v9989 = vadd.f32 %v9940, %v9988
    %v9990 = vpop.f32.mrf.mxu0
    %v9991 = vadd.f32 %v9942, %v9990
    %9992 = vmatmul.bf16.gmra.mxu0 %v7596
    %v9993 = vpop.f32.mrf.mxu0
    %v9994 = vadd.f32 %v9945, %v9993
    %v9995 = vpop.f32.mrf.mxu0
    %v9996 = vadd.f32 %v9947, %v9995
    %9997 = vmatmul.bf16.gmra.mxu0 %v7600
    %v9998 = vpop.f32.mrf.mxu0
    %v9999 = vadd.f32 %v9950, %v9998
    %v10000 = vpop.f32.mrf.mxu0
    %v10001 = vadd.f32 %v9952, %v10000
    %10002 = vmatmul.bf16.gmra.mxu0 %v7604
    %v10003 = vpop.f32.mrf.mxu0
    %v10004 = vadd.f32 %v9955, %v10003
    %v10005 = vpop.f32.mrf.mxu0
    %v10006 = vadd.f32 %v9957, %v10005
    %10007 = vmatmul.bf16.gmra.mxu0 %v7608
    %v10008 = vpop.f32.mrf.mxu0
    %v10009 = vadd.f32 %v9960, %v10008
    %v10010 = vpop.f32.mrf.mxu0
    %v10011 = vadd.f32 %v9962, %v10010
    %10012 = vdwg.mxu0
    %10013 = vmatpush.bf16.msra.mxu0 %v8639
    %10014 = vmatpush.bf16.msra.mxu0 %v8632
    %10015 = vmatpush.bf16.msra.mxu0 %v8625
    %10016 = vmatpush.bf16.msra.mxu0 %v8618
    %10017 = vmatpush.bf16.msra.mxu0 %v8611
    %10018 = vmatpush.bf16.msra.mxu0 %v8604
    %10019 = vmatpush.bf16.msra.mxu0 %v8597
    %10020 = vmatpush.bf16.msra.mxu0 %v8590
    %10021 = vmatmul.bf16.gmra.mxu0 %v7577
    %v10022 = vpop.f32.mrf.mxu0
    %v10023 = vadd.f32 %v7872, %v10022
    %v10024 = vpop.f32.mrf.mxu0
    %v10025 = vadd.f32 %v7872, %v10024
    %10026 = vmatmul.bf16.gmra.mxu0 %v7581
    %v10027 = vpop.f32.mrf.mxu0
    %v10028 = vadd.f32 %v7872, %v10027
    %v10029 = vpop.f32.mrf.mxu0
    %v10030 = vadd.f32 %v7872, %v10029
    %10031 = vmatmul.bf16.gmra.mxu0 %v7585
    %v10032 = vpop.f32.mrf.mxu0
    %v10033 = vadd.f32 %v7872, %v10032
    %v10034 = vpop.f32.mrf.mxu0
    %v10035 = vadd.f32 %v7872, %v10034
    %10036 = vmatmul.bf16.gmra.mxu0 %v7589
    %v10037 = vpop.f32.mrf.mxu0
    %v10038 = vadd.f32 %v7872, %v10037
    %v10039 = vpop.f32.mrf.mxu0
    %v10040 = vadd.f32 %v7872, %v10039
    %10041 = vmatmul.bf16.gmra.mxu0 %v7593
    %v10042 = vpop.f32.mrf.mxu0
    %v10043 = vadd.f32 %v7872, %v10042
    %v10044 = vpop.f32.mrf.mxu0
    %v10045 = vadd.f32 %v7872, %v10044
    %10046 = vmatmul.bf16.gmra.mxu0 %v7597
    %v10047 = vpop.f32.mrf.mxu0
    %v10048 = vadd.f32 %v7872, %v10047
    %v10049 = vpop.f32.mrf.mxu0
    %v10050 = vadd.f32 %v7872, %v10049
    %10051 = vmatmul.bf16.gmra.mxu0 %v7601
    %v10052 = vpop.f32.mrf.mxu0
    %v10053 = vadd.f32 %v7872, %v10052
    %v10054 = vpop.f32.mrf.mxu0
    %v10055 = vadd.f32 %v7872, %v10054
    %10056 = vmatmul.bf16.gmra.mxu0 %v7605
    %v10057 = vpop.f32.mrf.mxu0
    %v10058 = vadd.f32 %v7872, %v10057
    %v10059 = vpop.f32.mrf.mxu0
    %v10060 = vadd.f32 %v7872, %v10059
    %10061 = vdwg.mxu0
    %10062 = vmatpush.bf16.msra.mxu0 %v8695
    %10063 = vmatpush.bf16.msra.mxu0 %v8688
    %10064 = vmatpush.bf16.msra.mxu0 %v8681
    %10065 = vmatpush.bf16.msra.mxu0 %v8674
    %10066 = vmatpush.bf16.msra.mxu0 %v8667
    %10067 = vmatpush.bf16.msra.mxu0 %v8660
    %10068 = vmatpush.bf16.msra.mxu0 %v8653
    %10069 = vmatpush.bf16.msra.mxu0 %v8646
    %10070 = vmatmul.bf16.gmra.mxu0 %v7578
    %v10071 = vpop.f32.mrf.mxu0
    %v10072 = vadd.f32 %v10023, %v10071
    %v10073 = vpop.f32.mrf.mxu0
    %v10074 = vadd.f32 %v10025, %v10073
    %10075 = vmatmul.bf16.gmra.mxu0 %v7582
    %v10076 = vpop.f32.mrf.mxu0
    %v10077 = vadd.f32 %v10028, %v10076
    %v10078 = vpop.f32.mrf.mxu0
    %v10079 = vadd.f32 %v10030, %v10078
    %10080 = vmatmul.bf16.gmra.mxu0 %v7586
    %v10081 = vpop.f32.mrf.mxu0
    %v10082 = vadd.f32 %v10033, %v10081
    %v10083 = vpop.f32.mrf.mxu0
    %v10084 = vadd.f32 %v10035, %v10083
    %10085 = vmatmul.bf16.gmra.mxu0 %v7590
    %v10086 = vpop.f32.mrf.mxu0
    %v10087 = vadd.f32 %v10038, %v10086
    %v10088 = vpop.f32.mrf.mxu0
    %v10089 = vadd.f32 %v10040, %v10088
    %10090 = vmatmul.bf16.gmra.mxu0 %v7594
    %v10091 = vpop.f32.mrf.mxu0
    %v10092 = vadd.f32 %v10043, %v10091
    %v10093 = vpop.f32.mrf.mxu0
    %v10094 = vadd.f32 %v10045, %v10093
    %10095 = vmatmul.bf16.gmra.mxu0 %v7598
    %v10096 = vpop.f32.mrf.mxu0
    %v10097 = vadd.f32 %v10048, %v10096
    %v10098 = vpop.f32.mrf.mxu0
    %v10099 = vadd.f32 %v10050, %v10098
    %10100 = vmatmul.bf16.gmra.mxu0 %v7602
    %v10101 = vpop.f32.mrf.mxu0
    %v10102 = vadd.f32 %v10053, %v10101
    %v10103 = vpop.f32.mrf.mxu0
    %v10104 = vadd.f32 %v10055, %v10103
    %10105 = vmatmul.bf16.gmra.mxu0 %v7606
    %v10106 = vpop.f32.mrf.mxu0
    %v10107 = vadd.f32 %v10058, %v10106
    %v10108 = vpop.f32.mrf.mxu0
    %v10109 = vadd.f32 %v10060, %v10108
    %10110 = vdwg.mxu0
    %10111 = vmatpush.bf16.msra.mxu0 %v8751
    %10112 = vmatpush.bf16.msra.mxu0 %v8744
    %10113 = vmatpush.bf16.msra.mxu0 %v8737
    %10114 = vmatpush.bf16.msra.mxu0 %v8730
    %10115 = vmatpush.bf16.msra.mxu0 %v8723
    %10116 = vmatpush.bf16.msra.mxu0 %v8716
    %10117 = vmatpush.bf16.msra.mxu0 %v8709
    %10118 = vmatpush.bf16.msra.mxu0 %v8702
    %10119 = vmatmul.bf16.gmra.mxu0 %v7579
    %v10120 = vpop.f32.mrf.mxu0
    %v10121 = vadd.f32 %v10072, %v10120
    %v10122 = vpop.f32.mrf.mxu0
    %v10123 = vadd.f32 %v10074, %v10122
    %10124 = vmatmul.bf16.gmra.mxu0 %v7583
    %v10125 = vpop.f32.mrf.mxu0
    %v10126 = vadd.f32 %v10077, %v10125
    %v10127 = vpop.f32.mrf.mxu0
    %v10128 = vadd.f32 %v10079, %v10127
    %10129 = vmatmul.bf16.gmra.mxu0 %v7587
    %v10130 = vpop.f32.mrf.mxu0
    %v10131 = vadd.f32 %v10082, %v10130
    %v10132 = vpop.f32.mrf.mxu0
    %v10133 = vadd.f32 %v10084, %v10132
    %10134 = vmatmul.bf16.gmra.mxu0 %v7591
    %v10135 = vpop.f32.mrf.mxu0
    %v10136 = vadd.f32 %v10087, %v10135
    %v10137 = vpop.f32.mrf.mxu0
    %v10138 = vadd.f32 %v10089, %v10137
    %10139 = vmatmul.bf16.gmra.mxu0 %v7595
    %v10140 = vpop.f32.mrf.mxu0
    %v10141 = vadd.f32 %v10092, %v10140
    %v10142 = vpop.f32.mrf.mxu0
    %v10143 = vadd.f32 %v10094, %v10142
    %10144 = vmatmul.bf16.gmra.mxu0 %v7599
    %v10145 = vpop.f32.mrf.mxu0
    %v10146 = vadd.f32 %v10097, %v10145
    %v10147 = vpop.f32.mrf.mxu0
    %v10148 = vadd.f32 %v10099, %v10147
    %10149 = vmatmul.bf16.gmra.mxu0 %v7603
    %v10150 = vpop.f32.mrf.mxu0
    %v10151 = vadd.f32 %v10102, %v10150
    %v10152 = vpop.f32.mrf.mxu0
    %v10153 = vadd.f32 %v10104, %v10152
    %10154 = vmatmul.bf16.gmra.mxu0 %v7607
    %v10155 = vpop.f32.mrf.mxu0
    %v10156 = vadd.f32 %v10107, %v10155
    %v10157 = vpop.f32.mrf.mxu0
    %v10158 = vadd.f32 %v10109, %v10157
    %10159 = vdwg.mxu0
    %10160 = vmatpush.bf16.msra.mxu0 %v8807
    %10161 = vmatpush.bf16.msra.mxu0 %v8800
    %10162 = vmatpush.bf16.msra.mxu0 %v8793
    %10163 = vmatpush.bf16.msra.mxu0 %v8786
    %10164 = vmatpush.bf16.msra.mxu0 %v8779
    %10165 = vmatpush.bf16.msra.mxu0 %v8772
    %10166 = vmatpush.bf16.msra.mxu0 %v8765
    %10167 = vmatpush.bf16.msra.mxu0 %v8758
    %10168 = vmatmul.bf16.gmra.mxu0 %v7580
    %v10169 = vpop.f32.mrf.mxu0
    %v10170 = vadd.f32 %v10121, %v10169
    %v10171 = vpop.f32.mrf.mxu0
    %v10172 = vadd.f32 %v10123, %v10171
    %10173 = vmatmul.bf16.gmra.mxu0 %v7584
    %v10174 = vpop.f32.mrf.mxu0
    %v10175 = vadd.f32 %v10126, %v10174
    %v10176 = vpop.f32.mrf.mxu0
    %v10177 = vadd.f32 %v10128, %v10176
    %10178 = vmatmul.bf16.gmra.mxu0 %v7588
    %v10179 = vpop.f32.mrf.mxu0
    %v10180 = vadd.f32 %v10131, %v10179
    %v10181 = vpop.f32.mrf.mxu0
    %v10182 = vadd.f32 %v10133, %v10181
    %10183 = vmatmul.bf16.gmra.mxu0 %v7592
    %v10184 = vpop.f32.mrf.mxu0
    %v10185 = vadd.f32 %v10136, %v10184
    %v10186 = vpop.f32.mrf.mxu0
    %v10187 = vadd.f32 %v10138, %v10186
    %10188 = vmatmul.bf16.gmra.mxu0 %v7596
    %v10189 = vpop.f32.mrf.mxu0
    %v10190 = vadd.f32 %v10141, %v10189
    %v10191 = vpop.f32.mrf.mxu0
    %v10192 = vadd.f32 %v10143, %v10191
    %10193 = vmatmul.bf16.gmra.mxu0 %v7600
    %v10194 = vpop.f32.mrf.mxu0
    %v10195 = vadd.f32 %v10146, %v10194
    %v10196 = vpop.f32.mrf.mxu0
    %v10197 = vadd.f32 %v10148, %v10196
    %10198 = vmatmul.bf16.gmra.mxu0 %v7604
    %v10199 = vpop.f32.mrf.mxu0
    %v10200 = vadd.f32 %v10151, %v10199
    %v10201 = vpop.f32.mrf.mxu0
    %v10202 = vadd.f32 %v10153, %v10201
    %10203 = vmatmul.bf16.gmra.mxu0 %v7608
    %v10204 = vpop.f32.mrf.mxu0
    %v10205 = vadd.f32 %v10156, %v10204
    %v10206 = vpop.f32.mrf.mxu0
    %v10207 = vadd.f32 %v10158, %v10206
    %10208 = vdwg.mxu0
    %10209 = vmatpush.bf16.msra.mxu0 %v8640
    %10210 = vmatpush.bf16.msra.mxu0 %v8633
    %10211 = vmatpush.bf16.msra.mxu0 %v8626
    %10212 = vmatpush.bf16.msra.mxu0 %v8619
    %10213 = vmatpush.bf16.msra.mxu0 %v8612
    %10214 = vmatpush.bf16.msra.mxu0 %v8605
    %10215 = vmatpush.bf16.msra.mxu0 %v8598
    %10216 = vmatpush.bf16.msra.mxu0 %v8591
    %10217 = vmatmul.bf16.gmra.mxu0 %v7577
    %v10218 = vpop.f32.mrf.mxu0
    %v10219 = vadd.f32 %v7873, %v10218
    %v10220 = vpop.f32.mrf.mxu0
    %v10221 = vadd.f32 %v7873, %v10220
    %10222 = vmatmul.bf16.gmra.mxu0 %v7581
    %v10223 = vpop.f32.mrf.mxu0
    %v10224 = vadd.f32 %v7873, %v10223
    %v10225 = vpop.f32.mrf.mxu0
    %v10226 = vadd.f32 %v7873, %v10225
    %10227 = vmatmul.bf16.gmra.mxu0 %v7585
    %v10228 = vpop.f32.mrf.mxu0
    %v10229 = vadd.f32 %v7873, %v10228
    %v10230 = vpop.f32.mrf.mxu0
    %v10231 = vadd.f32 %v7873, %v10230
    %10232 = vmatmul.bf16.gmra.mxu0 %v7589
    %v10233 = vpop.f32.mrf.mxu0
    %v10234 = vadd.f32 %v7873, %v10233
    %v10235 = vpop.f32.mrf.mxu0
    %v10236 = vadd.f32 %v7873, %v10235
    %10237 = vmatmul.bf16.gmra.mxu0 %v7593
    %v10238 = vpop.f32.mrf.mxu0
    %v10239 = vadd.f32 %v7873, %v10238
    %v10240 = vpop.f32.mrf.mxu0
    %v10241 = vadd.f32 %v7873, %v10240
    %10242 = vmatmul.bf16.gmra.mxu0 %v7597
    %v10243 = vpop.f32.mrf.mxu0
    %v10244 = vadd.f32 %v7873, %v10243
    %v10245 = vpop.f32.mrf.mxu0
    %v10246 = vadd.f32 %v7873, %v10245
    %10247 = vmatmul.bf16.gmra.mxu0 %v7601
    %v10248 = vpop.f32.mrf.mxu0
    %v10249 = vadd.f32 %v7873, %v10248
    %v10250 = vpop.f32.mrf.mxu0
    %v10251 = vadd.f32 %v7873, %v10250
    %10252 = vmatmul.bf16.gmra.mxu0 %v7605
    %v10253 = vpop.f32.mrf.mxu0
    %v10254 = vadd.f32 %v7873, %v10253
    %v10255 = vpop.f32.mrf.mxu0
    %v10256 = vadd.f32 %v7873, %v10255
    %10257 = vdwg.mxu0
    %10258 = vmatpush.bf16.msra.mxu0 %v8696
    %10259 = vmatpush.bf16.msra.mxu0 %v8689
    %10260 = vmatpush.bf16.msra.mxu0 %v8682
    %10261 = vmatpush.bf16.msra.mxu0 %v8675
    %10262 = vmatpush.bf16.msra.mxu0 %v8668
    %10263 = vmatpush.bf16.msra.mxu0 %v8661
    %10264 = vmatpush.bf16.msra.mxu0 %v8654
    %10265 = vmatpush.bf16.msra.mxu0 %v8647
    %10266 = vmatmul.bf16.gmra.mxu0 %v7578
    %v10267 = vpop.f32.mrf.mxu0
    %v10268 = vadd.f32 %v10219, %v10267
    %v10269 = vpop.f32.mrf.mxu0
    %v10270 = vadd.f32 %v10221, %v10269
    %10271 = vmatmul.bf16.gmra.mxu0 %v7582
    %v10272 = vpop.f32.mrf.mxu0
    %v10273 = vadd.f32 %v10224, %v10272
    %v10274 = vpop.f32.mrf.mxu0
    %v10275 = vadd.f32 %v10226, %v10274
    %10276 = vmatmul.bf16.gmra.mxu0 %v7586
    %v10277 = vpop.f32.mrf.mxu0
    %v10278 = vadd.f32 %v10229, %v10277
    %v10279 = vpop.f32.mrf.mxu0
    %v10280 = vadd.f32 %v10231, %v10279
    %10281 = vmatmul.bf16.gmra.mxu0 %v7590
    %v10282 = vpop.f32.mrf.mxu0
    %v10283 = vadd.f32 %v10234, %v10282
    %v10284 = vpop.f32.mrf.mxu0
    %v10285 = vadd.f32 %v10236, %v10284
    %10286 = vmatmul.bf16.gmra.mxu0 %v7594
    %v10287 = vpop.f32.mrf.mxu0
    %v10288 = vadd.f32 %v10239, %v10287
    %v10289 = vpop.f32.mrf.mxu0
    %v10290 = vadd.f32 %v10241, %v10289
    %10291 = vmatmul.bf16.gmra.mxu0 %v7598
    %v10292 = vpop.f32.mrf.mxu0
    %v10293 = vadd.f32 %v10244, %v10292
    %v10294 = vpop.f32.mrf.mxu0
    %v10295 = vadd.f32 %v10246, %v10294
    %10296 = vmatmul.bf16.gmra.mxu0 %v7602
    %v10297 = vpop.f32.mrf.mxu0
    %v10298 = vadd.f32 %v10249, %v10297
    %v10299 = vpop.f32.mrf.mxu0
    %v10300 = vadd.f32 %v10251, %v10299
    %10301 = vmatmul.bf16.gmra.mxu0 %v7606
    %v10302 = vpop.f32.mrf.mxu0
    %v10303 = vadd.f32 %v10254, %v10302
    %v10304 = vpop.f32.mrf.mxu0
    %v10305 = vadd.f32 %v10256, %v10304
    %10306 = vdwg.mxu0
    %10307 = vmatpush.bf16.msra.mxu0 %v8752
    %10308 = vmatpush.bf16.msra.mxu0 %v8745
    %10309 = vmatpush.bf16.msra.mxu0 %v8738
    %10310 = vmatpush.bf16.msra.mxu0 %v8731
    %10311 = vmatpush.bf16.msra.mxu0 %v8724
    %10312 = vmatpush.bf16.msra.mxu0 %v8717
    %10313 = vmatpush.bf16.msra.mxu0 %v8710
    %10314 = vmatpush.bf16.msra.mxu0 %v8703
    %10315 = vmatmul.bf16.gmra.mxu0 %v7579
    %v10316 = vpop.f32.mrf.mxu0
    %v10317 = vadd.f32 %v10268, %v10316
    %v10318 = vpop.f32.mrf.mxu0
    %v10319 = vadd.f32 %v10270, %v10318
    %10320 = vmatmul.bf16.gmra.mxu0 %v7583
    %v10321 = vpop.f32.mrf.mxu0
    %v10322 = vadd.f32 %v10273, %v10321
    %v10323 = vpop.f32.mrf.mxu0
    %v10324 = vadd.f32 %v10275, %v10323
    %10325 = vmatmul.bf16.gmra.mxu0 %v7587
    %v10326 = vpop.f32.mrf.mxu0
    %v10327 = vadd.f32 %v10278, %v10326
    %v10328 = vpop.f32.mrf.mxu0
    %v10329 = vadd.f32 %v10280, %v10328
    %10330 = vmatmul.bf16.gmra.mxu0 %v7591
    %v10331 = vpop.f32.mrf.mxu0
    %v10332 = vadd.f32 %v10283, %v10331
    %v10333 = vpop.f32.mrf.mxu0
    %v10334 = vadd.f32 %v10285, %v10333
    %10335 = vmatmul.bf16.gmra.mxu0 %v7595
    %v10336 = vpop.f32.mrf.mxu0
    %v10337 = vadd.f32 %v10288, %v10336
    %v10338 = vpop.f32.mrf.mxu0
    %v10339 = vadd.f32 %v10290, %v10338
    %10340 = vmatmul.bf16.gmra.mxu0 %v7599
    %v10341 = vpop.f32.mrf.mxu0
    %v10342 = vadd.f32 %v10293, %v10341
    %v10343 = vpop.f32.mrf.mxu0
    %v10344 = vadd.f32 %v10295, %v10343
    %10345 = vmatmul.bf16.gmra.mxu0 %v7603
    %v10346 = vpop.f32.mrf.mxu0
    %v10347 = vadd.f32 %v10298, %v10346
    %v10348 = vpop.f32.mrf.mxu0
    %v10349 = vadd.f32 %v10300, %v10348
    %10350 = vmatmul.bf16.gmra.mxu0 %v7607
    %v10351 = vpop.f32.mrf.mxu0
    %v10352 = vadd.f32 %v10303, %v10351
    %v10353 = vpop.f32.mrf.mxu0
    %v10354 = vadd.f32 %v10305, %v10353
    %10355 = vdwg.mxu0
    %10356 = vmatpush.bf16.msra.mxu0 %v8808
    %10357 = vmatpush.bf16.msra.mxu0 %v8801
    %10358 = vmatpush.bf16.msra.mxu0 %v8794
    %10359 = vmatpush.bf16.msra.mxu0 %v8787
    %10360 = vmatpush.bf16.msra.mxu0 %v8780
    %10361 = vmatpush.bf16.msra.mxu0 %v8773
    %10362 = vmatpush.bf16.msra.mxu0 %v8766
    %10363 = vmatpush.bf16.msra.mxu0 %v8759
    %10364 = vmatmul.bf16.gmra.mxu0 %v7580
    %v10365 = vpop.f32.mrf.mxu0
    %v10366 = vadd.f32 %v10317, %v10365
    %v10367 = vpop.f32.mrf.mxu0
    %v10368 = vadd.f32 %v10319, %v10367
    %10369 = vmatmul.bf16.gmra.mxu0 %v7584
    %v10370 = vpop.f32.mrf.mxu0
    %v10371 = vadd.f32 %v10322, %v10370
    %v10372 = vpop.f32.mrf.mxu0
    %v10373 = vadd.f32 %v10324, %v10372
    %10374 = vmatmul.bf16.gmra.mxu0 %v7588
    %v10375 = vpop.f32.mrf.mxu0
    %v10376 = vadd.f32 %v10327, %v10375
    %v10377 = vpop.f32.mrf.mxu0
    %v10378 = vadd.f32 %v10329, %v10377
    %10379 = vmatmul.bf16.gmra.mxu0 %v7592
    %v10380 = vpop.f32.mrf.mxu0
    %v10381 = vadd.f32 %v10332, %v10380
    %v10382 = vpop.f32.mrf.mxu0
    %v10383 = vadd.f32 %v10334, %v10382
    %10384 = vmatmul.bf16.gmra.mxu0 %v7596
    %v10385 = vpop.f32.mrf.mxu0
    %v10386 = vadd.f32 %v10337, %v10385
    %v10387 = vpop.f32.mrf.mxu0
    %v10388 = vadd.f32 %v10339, %v10387
    %10389 = vmatmul.bf16.gmra.mxu0 %v7600
    %v10390 = vpop.f32.mrf.mxu0
    %v10391 = vadd.f32 %v10342, %v10390
    %v10392 = vpop.f32.mrf.mxu0
    %v10393 = vadd.f32 %v10344, %v10392
    %10394 = vmatmul.bf16.gmra.mxu0 %v7604
    %v10395 = vpop.f32.mrf.mxu0
    %v10396 = vadd.f32 %v10347, %v10395
    %v10397 = vpop.f32.mrf.mxu0
    %v10398 = vadd.f32 %v10349, %v10397
    %10399 = vmatmul.bf16.gmra.mxu0 %v7608
    %v10400 = vpop.f32.mrf.mxu0
    %v10401 = vadd.f32 %v10352, %v10400
    %v10402 = vpop.f32.mrf.mxu0
    %v10403 = vadd.f32 %v10354, %v10402
    %10404 = vdwg.mxu0
    %10405 = vst [vmem:[%s24] sm:$0xff] %v9190
    %10406 = vst [vmem:[%s24 + $0x8] sm:$0xff] %v9386
    %10407 = vst [vmem:[%s24 + $0x10] sm:$0xff] %v9582
    %10408 = vst [vmem:[%s24 + $0x18] sm:$0xff] %v9778
    %10409 = vst [vmem:[%s24 + $0x20] sm:$0xff] %v9974
    %10410 = vst [vmem:[%s24 + $0x28] sm:$0xff] %v10170
    %10411 = vst.msk [vmem:[%s24 + $0x30] sm:$0xff] %vm1436, %v10366
    %10412 = vst [vmem:[%s24 + $0x38] sm:$0xff] %v9192
    %10413 = vst [vmem:[%s24 + $0x40] sm:$0xff] %v9388
    %10414 = vst [vmem:[%s24 + $0x48] sm:$0xff] %v9584
    %10415 = vst [vmem:[%s24 + $0x50] sm:$0xff] %v9780
    %10416 = vst [vmem:[%s24 + $0x58] sm:$0xff] %v9976
    %10417 = vst [vmem:[%s24 + $0x60] sm:$0xff] %v10172
    %10418 = vst.msk [vmem:[%s24 + $0x68] sm:$0xff] %vm1436, %v10368
    %10419 = vst [vmem:[%s24 + $0x70] sm:$0xff] %v9195
    %10420 = vst [vmem:[%s24 + $0x78] sm:$0xff] %v9391
    %10421 = vst [vmem:[%s24 + $0x80] sm:$0xff] %v9587
    %10422 = vst [vmem:[%s24 + $0x88] sm:$0xff] %v9783
    %10423 = vst [vmem:[%s24 + $0x90] sm:$0xff] %v9979
    %10424 = vst [vmem:[%s24 + $0x98] sm:$0xff] %v10175
    %10425 = vst.msk [vmem:[%s24 + $0xa0] sm:$0xff] %vm1436, %v10371
    %10426 = vst [vmem:[%s24 + $0xa8] sm:$0xff] %v9197
    %10427 = vst [vmem:[%s24 + $0xb0] sm:$0xff] %v9393
    %10428 = vst [vmem:[%s24 + $0xb8] sm:$0xff] %v9589
    %10429 = vst [vmem:[%s24 + $0xc0] sm:$0xff] %v9785
    %10430 = vst [vmem:[%s24 + $0xc8] sm:$0xff] %v9981
    %10431 = vst [vmem:[%s24 + $0xd0] sm:$0xff] %v10177
    %10432 = vst.msk [vmem:[%s24 + $0xd8] sm:$0xff] %vm1436, %v10373
    %10433 = vst [vmem:[%s24 + $0xe0] sm:$0xff] %v9200
    %10434 = vst [vmem:[%s24 + $0xe8] sm:$0xff] %v9396
    %10435 = vst [vmem:[%s24 + $0xf0] sm:$0xff] %v9592
    %10436 = vst [vmem:[%s24 + $0xf8] sm:$0xff] %v9788
    %10437 = vst [vmem:[%s24 + $0x100] sm:$0xff] %v9984
    %10438 = vst [vmem:[%s24 + $0x108] sm:$0xff] %v10180
    %10439 = vst.msk [vmem:[%s24 + $0x110] sm:$0xff] %vm1436, %v10376
    %10440 = vst [vmem:[%s24 + $0x118] sm:$0xff] %v9202
    %10441 = vst [vmem:[%s24 + $0x120] sm:$0xff] %v9398
    %10442 = vst [vmem:[%s24 + $0x128] sm:$0xff] %v9594
    %10443 = vst [vmem:[%s24 + $0x130] sm:$0xff] %v9790
    %10444 = vst [vmem:[%s24 + $0x138] sm:$0xff] %v9986
    %10445 = vst [vmem:[%s24 + $0x140] sm:$0xff] %v10182
    %10446 = vst.msk [vmem:[%s24 + $0x148] sm:$0xff] %vm1436, %v10378
    %10447 = vst [vmem:[%s24 + $0x150] sm:$0xff] %v9205
    %10448 = vst [vmem:[%s24 + $0x158] sm:$0xff] %v9401
    %10449 = vst [vmem:[%s24 + $0x160] sm:$0xff] %v9597
    %10450 = vst [vmem:[%s24 + $0x168] sm:$0xff] %v9793
    %10451 = vst [vmem:[%s24 + $0x170] sm:$0xff] %v9989
    %10452 = vst [vmem:[%s24 + $0x178] sm:$0xff] %v10185
    %10453 = vst.msk [vmem:[%s24 + $0x180] sm:$0xff] %vm1436, %v10381
    %10454 = vst [vmem:[%s24 + $0x188] sm:$0xff] %v9207
    %10455 = vst [vmem:[%s24 + $0x190] sm:$0xff] %v9403
    %10456 = vst [vmem:[%s24 + $0x198] sm:$0xff] %v9599
    %10457 = vst [vmem:[%s24 + $0x1a0] sm:$0xff] %v9795
    %10458 = vst [vmem:[%s24 + $0x1a8] sm:$0xff] %v9991
    %10459 = vst [vmem:[%s24 + $0x1b0] sm:$0xff] %v10187
    %10460 = vst.msk [vmem:[%s24 + $0x1b8] sm:$0xff] %vm1436, %v10383
    %10461 = vst [vmem:[%s24 + $0x1c0] sm:$0xff] %v9210
    %10462 = vst [vmem:[%s24 + $0x1c8] sm:$0xff] %v9406
    %10463 = vst [vmem:[%s24 + $0x1d0] sm:$0xff] %v9602
    %10464 = vst [vmem:[%s24 + $0x1d8] sm:$0xff] %v9798
    %10465 = vst [vmem:[%s24 + $0x1e0] sm:$0xff] %v9994
    %10466 = vst [vmem:[%s24 + $0x1e8] sm:$0xff] %v10190
    %10467 = vst.msk [vmem:[%s24 + $0x1f0] sm:$0xff] %vm1436, %v10386
    %10468 = vst [vmem:[%s24 + $0x1f8] sm:$0xff] %v9212
    %10469 = vst [vmem:[%s24 + $0x200] sm:$0xff] %v9408
    %10470 = vst [vmem:[%s24 + $0x208] sm:$0xff] %v9604
    %10471 = vst [vmem:[%s24 + $0x210] sm:$0xff] %v9800
    %10472 = vst [vmem:[%s24 + $0x218] sm:$0xff] %v9996
    %10473 = vst [vmem:[%s24 + $0x220] sm:$0xff] %v10192
    %10474 = vst.msk [vmem:[%s24 + $0x228] sm:$0xff] %vm1436, %v10388
    %10475 = vst [vmem:[%s24 + $0x230] sm:$0xff] %v9215
    %10476 = vst [vmem:[%s24 + $0x238] sm:$0xff] %v9411
    %10477 = vst [vmem:[%s24 + $0x240] sm:$0xff] %v9607
    %10478 = vst [vmem:[%s24 + $0x248] sm:$0xff] %v9803
    %10479 = vst [vmem:[%s24 + $0x250] sm:$0xff] %v9999
    %10480 = vst [vmem:[%s24 + $0x258] sm:$0xff] %v10195
    %10481 = vst.msk [vmem:[%s24 + $0x260] sm:$0xff] %vm1436, %v10391
    %10482 = vst [vmem:[%s24 + $0x268] sm:$0xff] %v9217
    %10483 = vst [vmem:[%s24 + $0x270] sm:$0xff] %v9413
    %10484 = vst [vmem:[%s24 + $0x278] sm:$0xff] %v9609
    %10485 = vst [vmem:[%s24 + $0x280] sm:$0xff] %v9805
    %10486 = vst [vmem:[%s24 + $0x288] sm:$0xff] %v10001
    %10487 = vst [vmem:[%s24 + $0x290] sm:$0xff] %v10197
    %10488 = vst.msk [vmem:[%s24 + $0x298] sm:$0xff] %vm1436, %v10393
    %10489 = vst [vmem:[%s24 + $0x2a0] sm:$0xff] %v9220
    %10490 = vst [vmem:[%s24 + $0x2a8] sm:$0xff] %v9416
    %10491 = vst [vmem:[%s24 + $0x2b0] sm:$0xff] %v9612
    %10492 = vst [vmem:[%s24 + $0x2b8] sm:$0xff] %v9808
    %10493 = vst [vmem:[%s24 + $0x2c0] sm:$0xff] %v10004
    %10494 = vst [vmem:[%s24 + $0x2c8] sm:$0xff] %v10200
    %10495 = vst.msk [vmem:[%s24 + $0x2d0] sm:$0xff] %vm1436, %v10396
    %10496 = vst [vmem:[%s24 + $0x2d8] sm:$0xff] %v9222
    %10497 = vst [vmem:[%s24 + $0x2e0] sm:$0xff] %v9418
    %10498 = vst [vmem:[%s24 + $0x2e8] sm:$0xff] %v9614
    %10499 = vst [vmem:[%s24 + $0x2f0] sm:$0xff] %v9810
    %10500 = vst [vmem:[%s24 + $0x2f8] sm:$0xff] %v10006
    %10501 = vst [vmem:[%s24 + $0x300] sm:$0xff] %v10202
    %10502 = vst.msk [vmem:[%s24 + $0x308] sm:$0xff] %vm1436, %v10398
    %10503 = vst [vmem:[%s24 + $0x310] sm:$0xff] %v9225
    %10504 = vst [vmem:[%s24 + $0x318] sm:$0xff] %v9421
    %10505 = vst [vmem:[%s24 + $0x320] sm:$0xff] %v9617
    %10506 = vst [vmem:[%s24 + $0x328] sm:$0xff] %v9813
    %10507 = vst [vmem:[%s24 + $0x330] sm:$0xff] %v10009
    %10508 = vst [vmem:[%s24 + $0x338] sm:$0xff] %v10205
    %10509 = vst.msk [vmem:[%s24 + $0x340] sm:$0xff] %vm1436, %v10401
    %10510 = vst [vmem:[%s24 + $0x348] sm:$0xff] %v9227
    %10511 = vst [vmem:[%s24 + $0x350] sm:$0xff] %v9423
    %10512 = vst [vmem:[%s24 + $0x358] sm:$0xff] %v9619
    %10513 = vst [vmem:[%s24 + $0x360] sm:$0xff] %v9815
    %10514 = vst [vmem:[%s24 + $0x368] sm:$0xff] %v10011
    %10515 = vst [vmem:[%s24 + $0x370] sm:$0xff] %v10207
    %10516 = vst.msk [vmem:[%s24 + $0x378] sm:$0xff] %vm1436, %v10403
    // Predicated region
    $region102: #{ae_forward.1} parent=1 // pred_check
      _
    $region103: #{ae_forward.1} parent=1 // pred_check_branch
      %10518 = sbr.rel (0) target = $region105
    $region104: #{ae_forward.1} parent=1 // pred_region
      _
    $region105: #{ae_forward.1} parent=1 // pred_fallthru
      _
    // Predicated region
    $region106: #{ae_forward.1} parent=1 // pred_check
      _
    $region107: #{ae_forward.1} parent=1 // pred_check_branch
      %10520 = sbr.rel (0) target = $region109
    $region108: #{ae_forward.1} parent=1 // pred_region
      _
    $region109: #{ae_forward.1} parent=1 // pred_fallthru
      _
    %10521 = vsyncpa [#allocation3], 1

</llo_original>
